<compile_context>
chip_gen: v7x
topology: tpu7x:2x2x1
jax: 0.10.0
libtpu: 0.0.40
codegen_flags: <defaults>
</compile_context>

<pallas_src>
import functools
import math

import jax
import jax.numpy as jnp
from jax.experimental import pallas as pl
from jax.experimental.pallas import tpu as pltpu


_NEG_INF = -1e9            # finite "masked" score (matches the reference masks)
_MXU_DTYPE = jnp.bfloat16  # MXU input dtype; all accumulation stays in f32


@functools.lru_cache(maxsize=None)
def _vmem_limit_bytes():
    """Generation-aware scoped-VMEM limit with headroom for Mosaic scratch."""
    cap = 128 * 1024 * 1024
    try:
        info = pltpu.get_tpu_info()
        cap = int(getattr(info, "vmem_capacity_bytes", cap)) or cap
    except Exception:
        pass
    # ~85% of physical, always leaving >=16 MiB headroom (v7x: ~48 MiB,
    # v5e/v6e: ~108 MiB), never below 32 MiB.
    return int(max(32 * 1024 * 1024,
                   min(cap - 16 * 1024 * 1024, int(cap * 0.85))))


def _pick_tile(dim, preferred, align):
    """Largest multiple of `align` that divides `dim` and is <= preferred,
    else the full dim (full-extent blocks are always legal)."""
    t = (preferred // align) * align
    while t >= align:
        if dim % t == 0:
            return t
        t -= align
    return dim


# ---------------------------------------------------------------------------
# Fused matmul: [NormLayer prologue] -> x @ w + b -> [ReLU] -> [+ residual]
# ---------------------------------------------------------------------------
def _matmul_fused_kernel(*refs, use_norm, use_residual, apply_relu, eps, k_dim):
    it = iter(refs)
    x_ref = next(it)
    w_ref = next(it)
    b_ref = next(it)
    alpha_ref = next(it) if use_norm else None
    beta_ref = next(it) if use_norm else None
    res_ref = next(it) if use_residual else None
    o_ref = next(it)
    xn_sc = next(it)          # (tm, K) MXU-dtype scratch, cached across j

    # Prologue (NormLayer + cast to the MXU dtype) runs once per row tile
    # (j == 0 on the inner, sequential N axis) and is reused for all N tiles.
    @pl.when(pl.program_id(1) == 0)
    def _():
        x = x_ref[...].astype(jnp.float32)
        if use_norm:
            # NormLayer semantics: unbiased std (divide by N-1), eps on std.
            mean = jnp.mean(x, axis=-1, keepdims=True)
            xc = x - mean
            var = jnp.sum(xc * xc, axis=-1, keepdims=True) * (1.0 / (k_dim - 1))
            std = jnp.sqrt(var)
            inv = pl.reciprocal(std + jnp.float32(eps), approx=False)
            alpha = alpha_ref[...].astype(jnp.float32)
            beta = beta_ref[...].astype(jnp.float32)
            x = alpha * (xc * inv) + beta
        xn_sc[...] = x.astype(xn_sc.dtype)

    y = jnp.dot(xn_sc[...], w_ref[...], preferred_element_type=jnp.float32)
    y = y + b_ref[...].astype(jnp.float32)
    if apply_relu:
        y = jnp.maximum(y, 0.0)
    if use_residual:
        y = y + res_ref[...].astype(jnp.float32)
    o_ref[...] = y.astype(o_ref.dtype)


def matmul_fused(x, w, b, *, norm=None, residual=None, relu=False, eps=1e-6,
                 out_split=None, preferred_tm=512, preferred_tn=512,
                 mxu_dtype=_MXU_DTYPE):
    """y = [norm(x)] @ w + b [relu] [+ residual].

    x: (M, K) f32, w: (K, N) (pre-cast to `mxu_dtype`), b: (N,).
    If out_split == G, the output is written as (G, M, N // G) (used to emit
    q/k/v as separate leading-axis slices with no extra pass).
    """
    M, K = x.shape
    K2, N = w.shape
    assert K == K2
    if w.dtype != mxu_dtype:
        w = w.astype(mxu_dtype)

    # Keep >= 2 row tiles when possible so a megacore (v7x) can split M.
    pref_tm = preferred_tm if M >= 2 * preferred_tm else max(8, M // 2)
    tm = _pick_tile(M, pref_tm, 8)

    if out_split is None:
        tn = _pick_tile(N, preferred_tn, 128)
        out_shape = jax.ShapeDtypeStruct((M, N), x.dtype)
        out_spec = pl.BlockSpec((tm, tn), lambda i, j: (i, j))
    else:
        assert N % out_split == 0
        tn = N // out_split
        out_shape = jax.ShapeDtypeStruct((out_split, M, tn), x.dtype)
        out_spec = pl.BlockSpec((None, tm, tn), lambda i, j: (j, i, 0))

    grid = (M // tm, N // tn)

    args = [x, w, b.reshape(1, N)]
    in_specs = [
        pl.BlockSpec((tm, K), lambda i, j: (i, 0)),
        pl.BlockSpec((K, tn), lambda i, j: (0, j)),
        pl.BlockSpec((1, tn), lambda i, j: (0, j)),
    ]
    if norm is not None:
        alpha, beta = norm
        args += [alpha.reshape(1, K), beta.reshape(1, K)]
        in_specs += [
            pl.BlockSpec((1, K), lambda i, j: (0, 0)),
            pl.BlockSpec((1, K), lambda i, j: (0, 0)),
        ]
    if residual is not None:
        args.append(residual)
        in_specs.append(pl.BlockSpec((tm, tn), lambda i, j: (i, j)))

    kernel = functools.partial(
        _matmul_fused_kernel,
        use_norm=norm is not None,
        use_residual=residual is not None,
        apply_relu=relu,
        eps=eps,
        k_dim=K,
    )
    return pl.pallas_call(
        kernel,
        out_shape=out_shape,
        grid_spec=pltpu.PrefetchScalarGridSpec(
            num_scalar_prefetch=0,
            grid=grid,
            in_specs=in_specs,
            out_specs=out_spec,
            scratch_shapes=[pltpu.VMEM((tm, K), mxu_dtype)],
        ),
        compiler_params=pltpu.CompilerParams(
            dimension_semantics=("parallel", "arbitrary"),
            vmem_limit_bytes=_vmem_limit_bytes(),
        ),
    )(*args)


# ---------------------------------------------------------------------------
# Flash-style attention, all heads per grid step, online softmax over K tiles
# ---------------------------------------------------------------------------
def _flash_attn_kernel(q_ref, k_ref, v_ref, tgt_ref, kpm_ref, o_ref,
                       m_sc, l_sc, acc_sc, *,
                       scale, num_head, head_dim, mxu_dtype):
    ki = pl.program_id(2)

    @pl.when(ki == 0)
    def _():
        m_sc[...] = jnp.full(m_sc.shape, -1e30, jnp.float32)
        l_sc[...] = jnp.zeros(l_sc.shape, jnp.float32)
        acc_sc[...] = jnp.zeros(acc_sc.shape, jnp.float32)

    # Additive bias: (tq, tk) tgt_mask tile + (1, tk) key-padding bias.
    bias = tgt_ref[...].astype(jnp.float32) + kpm_ref[...].astype(jnp.float32)

    q = q_ref[...]                 # (tq, E) f32
    k = k_ref[...]                 # (tk, E) f32
    v = v_ref[...]                 # (tk, E) f32
    m_prev = m_sc[...]             # (tq, H)
    l_prev = l_sc[...]             # (tq, H)
    tq = q.shape[0]

    m_cols, l_cols, corr_cols, pv_cols = [], [], [], []
    for h in range(num_head):
        sl = slice(h * head_dim, (h + 1) * head_dim)
        q_h = (q[:, sl].astype(jnp.float32) * jnp.float32(scale)).astype(mxu_dtype)
        k_h = k[:, sl].astype(mxu_dtype)
        # scores: q_h @ k_h^T via contraction on the last dim of both operands
        s = jax.lax.dot_general(
            q_h, k_h, (((1,), (1,)), ((), ())),
            preferred_element_type=jnp.float32)            # (tq, tk)
        s = s + bias

        m_prev_h = m_prev[:, h:h + 1]                      # (tq, 1)
        m_h = jnp.maximum(m_prev_h, jnp.max(s, axis=-1, keepdims=True))
        corr_h = jnp.exp(m_prev_h - m_h)
        p = jnp.exp(s - m_h)                               # (tq, tk) f32
        l_h = corr_h * l_prev[:, h:h + 1] + jnp.sum(p, axis=-1, keepdims=True)

        pv = jax.lax.dot_general(
            p.astype(mxu_dtype), v[:, sl].astype(mxu_dtype),
            (((1,), (0,)), ((), ())),
            preferred_element_type=jnp.float32)            # (tq, Dh)

        m_cols.append(m_h)
        l_cols.append(l_h)
        corr_cols.append(jnp.broadcast_to(corr_h, (tq, head_dim)))
        pv_cols.append(pv)

    m_sc[...] = jnp.concatenate(m_cols, axis=-1)
    l_sc[...] = jnp.concatenate(l_cols, axis=-1)
    acc_sc[...] = (jnp.concatenate(corr_cols, axis=-1) * acc_sc[...]
                   + jnp.concatenate(pv_cols, axis=-1))

    @pl.when(ki == pl.num_programs(2) - 1)
    def _():
        inv = pl.reciprocal(l_sc[...], approx=True)        # (tq, H), EUP
        inv_full = jnp.concatenate(
            [jnp.broadcast_to(inv[:, h:h + 1], (tq, head_dim))
             for h in range(num_head)], axis=-1)           # (tq, E)
        o_ref[...] = (acc_sc[...] * inv_full).astype(o_ref.dtype)


def flash_attention(qkv, tgt_mask, kpm_bias, *, num_head, scale, out_dtype,
                    preferred_tq=256, preferred_tk=512, mxu_dtype=_MXU_DTYPE):
    """qkv: (3, B, S, E); tgt_mask: (S, S) additive f32; kpm_bias: (B, 1, S)."""
    three, B, S, E = qkv.shape
    assert three == 3 and E % num_head == 0
    Dh = E // num_head
    tq = _pick_tile(S, preferred_tq, 8)
    tk = _pick_tile(S, preferred_tk, 128)
    grid = (B, S // tq, S // tk)

    kernel = functools.partial(
        _flash_attn_kernel, scale=scale, num_head=num_head, head_dim=Dh,
        mxu_dtype=mxu_dtype)
    return pl.pallas_call(
        kernel,
        out_shape=jax.ShapeDtypeStruct((B, S, E), out_dtype),
        grid_spec=pltpu.PrefetchScalarGridSpec(
            num_scalar_prefetch=0,
            grid=grid,
            in_specs=[
                pl.BlockSpec((None, None, tq, E), lambda b, qi, ki: (0, b, qi, 0)),
                pl.BlockSpec((None, None, tk, E), lambda b, qi, ki: (1, b, ki, 0)),
                pl.BlockSpec((None, None, tk, E), lambda b, qi, ki: (2, b, ki, 0)),
                pl.BlockSpec((tq, tk), lambda b, qi, ki: (qi, ki)),
                pl.BlockSpec((None, 1, tk), lambda b, qi, ki: (b, 0, ki)),
            ],
            out_specs=pl.BlockSpec((None, tq, E), lambda b, qi, ki: (b, qi, 0)),
            scratch_shapes=[
                pltpu.VMEM((tq, num_head), jnp.float32),   # running max
                pltpu.VMEM((tq, num_head), jnp.float32),   # running denom
                pltpu.VMEM((tq, E), jnp.float32),          # running numerator
            ],
        ),
        compiler_params=pltpu.CompilerParams(
            dimension_semantics=("parallel", "parallel", "arbitrary"),
            vmem_limit_bytes=_vmem_limit_bytes(),
        ),
    )(qkv, qkv, qkv, tgt_mask, kpm_bias)


# ---------------------------------------------------------------------------
# One-time parameter preparation (pre-transpose, pre-cast, fuse out_proj+lin)
# ---------------------------------------------------------------------------
def prepare_params(raw, mxu_dtype=_MXU_DTYPE):
    w_out = raw["w_out"].astype(jnp.float32)
    w_lin = raw["w_lin"].astype(jnp.float32)
    # attn @ W_out^T + b_out, then @ W_lin^T + b_lin
    #   == attn @ (W_lin @ W_out)^T + (W_lin @ b_out + b_lin)   (exact)
    w_c = (w_lin @ w_out).T
    b_c = w_lin @ raw["b_out"].astype(jnp.float32) + raw["b_lin"].astype(jnp.float32)
    return {
        "num_head": raw["num_head"],
        "eps": raw["eps"],
        "ln1_alpha": raw["ln1_alpha"], "ln1_bias": raw["ln1_bias"],
        "ln2_alpha": raw["ln2_alpha"], "ln2_bias": raw["ln2_bias"],
        "w_in_t": raw["w_in"].T.astype(mxu_dtype), "b_in": raw["b_in"],
        "w_c": w_c.astype(mxu_dtype), "b_c": b_c,
        "w_ff1_t": raw["w_ff1"].T.astype(mxu_dtype), "b_ff1": raw["b_ff1"],
        "w_ff2_t": raw["w_ff2"].T.astype(mxu_dtype), "b_ff2": raw["b_ff2"],
    }


# ---------------------------------------------------------------------------
# Full GPT2TransformerBlock forward (params from prepare_params)
# ---------------------------------------------------------------------------
def gpt2_transformer_block(x, tgt_mask, key_padding_mask, params):
    B, S, E = x.shape
    H = params["num_head"]
    Dh = E // H
    eps = params["eps"]
    rows = B * S
    x2 = x.reshape(rows, E)

    # Small (B, 1, S) key-padding bias; the (B, S, S) bias is never built.
    kpm_bias = jnp.where(key_padding_mask, jnp.float32(_NEG_INF),
                         jnp.float32(0.0)).reshape(B, 1, S)
    tgt = tgt_mask.astype(jnp.float32)

    # ln1 fused into the QKV projection; output emitted as (3, rows, E).
    qkv = matmul_fused(x2, params["w_in_t"], params["b_in"],
                       norm=(params["ln1_alpha"], params["ln1_bias"]), eps=eps,
                       out_split=3)
    qkv = qkv.reshape(3, B, S, E)          # free row-major reshape

    attn = flash_attention(qkv, tgt, kpm_bias, num_head=H,
                           scale=1.0 / math.sqrt(Dh), out_dtype=x.dtype)
    attn2 = attn.reshape(rows, E)          # free reshape (lane-dense output)

    # out_proj + extra Linear folded into one matmul; first residual fused.
    a = matmul_fused(attn2, params["w_c"], params["b_c"], residual=x2)

    # ln2 fused into the FF up-projection (+ fused ReLU); FF down-projection
    # with the second residual fused into its epilogue.
    h = matmul_fused(a, params["w_ff1_t"], params["b_ff1"],
                     norm=(params["ln2_alpha"], params["ln2_bias"]), eps=eps,
                     relu=True)
    out = matmul_fused(h, params["w_ff2_t"], params["b_ff2"], residual=a)

    # TODO(synk): dropout (attention probs, attention output, FF output) is
    # treated as identity (inference mode); no in-kernel RNG dropout.
    return out.reshape(B, S, E)


# ---------------------------------------------------------------------------
# Pure-JAX reference (same semantics as the PyTorch module in eval mode)
# ---------------------------------------------------------------------------
def ref_gpt2_transformer_block(x, tgt_mask, key_padding_mask, params):
    B, S, E = x.shape
    H = params["num_head"]
    Dh = E // H
    eps = params["eps"]

    def norm(h, a, b):
        mean = jnp.mean(h, axis=-1, keepdims=True)
        std = jnp.sqrt(jnp.sum((h - mean) ** 2, axis=-1, keepdims=True) / (E - 1))
        return a * (h - mean) / (std + eps) + b

    h = norm(x, params["ln1_alpha"], params["ln1_bias"])
    qkv = h @ params["w_in"].T + params["b_in"]
    q, k, v = jnp.split(qkv, 3, axis=-1)

    def heads(t):
        return t.reshape(B, S, H, Dh).transpose(0, 2, 1, 3)

    q, k, v = heads(q), heads(k), heads(v)
    bias = (tgt_mask[None, None, :, :]
            + jnp.where(key_padding_mask, _NEG_INF, 0.0)[:, None, None, :])
    s = jnp.einsum("bhqd,bhkd->bhqk", q, k) * (1.0 / math.sqrt(Dh)) + bias
    p = jax.nn.softmax(s, axis=-1)
    attn = jnp.einsum("bhqk,bhkd->bhqd", p, v)
    attn = attn.transpose(0, 2, 1, 3).reshape(B, S, E)

    a = attn @ params["w_out"].T + params["b_out"]
    a = a @ params["w_lin"].T + params["b_lin"]
    x1 = x + a
    h2 = norm(x1, params["ln2_alpha"], params["ln2_bias"])
    f = jnp.maximum(h2 @ params["w_ff1"].T + params["b_ff1"], 0.0)
    f = f @ params["w_ff2"].T + params["b_ff2"]
    return x1 + f


if __name__ == "__main__":
    batch, seq, embed_dim, num_head = 2, 128, 128, 4
    intermediate_dim = 2048     # hard-coded in FeedForwardBlock
    eps = 1e-6

    key = jax.random.PRNGKey(0)
    ks = jax.random.split(key, 12)

    def linear_w(kw, out_dim, in_dim):
        bound = 1.0 / math.sqrt(in_dim)
        return jax.random.uniform(kw, (out_dim, in_dim), jnp.float32, -bound, bound)

    x = jax.random.normal(ks[0], (batch, seq, embed_dim), dtype=jnp.float32)

    raw_params = {
        "num_head": num_head,
        "eps": eps,
        "ln1_alpha": jnp.ones((embed_dim,), jnp.float32),
        "ln1_bias": jnp.zeros((embed_dim,), jnp.float32),
        "ln2_alpha": jnp.ones((embed_dim,), jnp.float32),
        "ln2_bias": jnp.zeros((embed_dim,), jnp.float32),
        "w_in": linear_w(ks[1], 3 * embed_dim, embed_dim),
        "b_in": jax.random.uniform(ks[2], (3 * embed_dim,), jnp.float32, -0.05, 0.05),
        "w_out": linear_w(ks[3], embed_dim, embed_dim),
        "b_out": jax.random.uniform(ks[4], (embed_dim,), jnp.float32, -0.05, 0.05),
        "w_lin": linear_w(ks[5], embed_dim, embed_dim),
        "b_lin": jax.random.uniform(ks[6], (embed_dim,), jnp.float32, -0.05, 0.05),
        "w_ff1": linear_w(ks[7], intermediate_dim, embed_dim),
        "b_ff1": jax.random.uniform(ks[8], (intermediate_dim,), jnp.float32, -0.05, 0.05),
        "w_ff2": linear_w(ks[9], embed_dim, intermediate_dim),
        "b_ff2": jax.random.uniform(ks[10], (embed_dim,), jnp.float32, -0.05, 0.05),
    }

    # Causal target mask (additive floats) and key padding mask (True = pad).
    causal = jnp.triu(jnp.ones((seq, seq), dtype=bool), k=1)
    tgt_mask = jnp.where(causal, jnp.float32(_NEG_INF), jnp.float32(0.0))
    key_padding_mask = jnp.zeros((batch, seq), dtype=bool).at[1, seq - 16:].set(True)

    prepared = prepare_params(raw_params)
    fwd = jax.jit(functools.partial(gpt2_transformer_block, params=prepared))

    out = fwd(x, tgt_mask, key_padding_mask)
    out = jax.block_until_ready(out)

    ref = ref_gpt2_transformer_block(x, tgt_mask, key_padding_mask, raw_params)
    ref = jax.block_until_ready(ref)

    max_err = float(jnp.max(jnp.abs(out - ref)))
    # Tolerance covers bf16 MXU inputs (f32 accumulation) vs the f32 reference.
    assert jnp.allclose(out, ref, atol=5e-2, rtol=5e-2), (
        f"mismatch vs reference: max abs err {max_err}")

    print("KERNEL_OK")
</pallas_src>

<mosaic_0001>
module attributes {stable_mosaic.version = 11 : i64} {
  func.func @_matmul_fused_kernel(%arg0: i32, %arg1: i32, %arg2: memref<128x128xf32, #tpu.memory_space<vmem>>, %arg3: memref<128x128xbf16, #tpu.memory_space<vmem>>, %arg4: memref<1x128xf32, #tpu.memory_space<vmem>>, %arg5: memref<1x128xf32, #tpu.memory_space<vmem>>, %arg6: memref<1x128xf32, #tpu.memory_space<vmem>>, %arg7: memref<1x128x128xf32, #tpu.memory_space<vmem>>, %arg8: memref<128x128xbf16, #tpu.memory_space<vmem>>) attributes {dimension_semantics = [#tpu.dimension_semantics<parallel>, #tpu.dimension_semantics<arbitrary>], iteration_bounds = array<i64: 2, 3>, scalar_prefetch = 0 : i64, scratch_operands = 1 : i64, tpu.core_type = #tpu.core_type<tc>, window_params = [{transform_indices = @transform_0, window_bounds = array<i64: 128, 128>}, {transform_indices = @transform_1, window_bounds = array<i64: 128, 128>}, {transform_indices = @transform_2, window_bounds = array<i64: 1, 128>}, {pipeline_mode = #tpu.pipeline_mode<synchronous>, transform_indices = @transform_3, window_bounds = array<i64: 1, 128>}, {pipeline_mode = #tpu.pipeline_mode<synchronous>, transform_indices = @transform_4, window_bounds = array<i64: 1, 128>}, {transform_indices = @transform_5, window_bounds = array<i64: 1, 128, 128>}]} {
    %c0_i32 = arith.constant 0 : i32
    %0 = arith.cmpi eq, %arg1, %c0_i32 : i32
    %1 = arith.extui %0 : i1 to i32
    %c0_i32_0 = arith.constant 0 : i32
    %2 = arith.cmpi ne, %1, %c0_i32_0 : i32
    scf.if %2 {
      %c0_9 = arith.constant 0 : index
      %c0_10 = arith.constant 0 : index
      %12 = vector.load %arg2[%c0_9, %c0_10] : memref<128x128xf32, #tpu.memory_space<vmem>>, vector<128x128xf32>
      %cst_11 = arith.constant dense<0.000000e+00> : vector<128xf32>
      %13 = vector.multi_reduction <add>, %12, %cst_11 [1] : vector<128x128xf32> to vector<128xf32>
      %14 = vector.shape_cast %13 : vector<128xf32> to vector<128x1xf32>
      %cst_12 = arith.constant 1.280000e+02 : f32
      %15 = vector.broadcast %cst_12 : f32 to vector<128x1xf32>
      %16 = arith.divf %14, %15 : vector<128x1xf32>
      %17 = vector.broadcast %16 : vector<128x1xf32> to vector<128x128xf32>
      %18 = arith.subf %12, %17 : vector<128x128xf32>
      %19 = arith.mulf %18, %18 : vector<128x128xf32>
      %cst_13 = arith.constant dense<0.000000e+00> : vector<128xf32>
      %20 = vector.multi_reduction <add>, %19, %cst_13 [1] : vector<128x128xf32> to vector<128xf32>
      %21 = vector.shape_cast %20 : vector<128xf32> to vector<128x1xf32>
      %cst_14 = arith.constant 0.00787401571 : f32
      %22 = vector.broadcast %cst_14 : f32 to vector<128x1xf32>
      %23 = arith.mulf %21, %22 : vector<128x1xf32>
      %24 = math.sqrt %23 : vector<128x1xf32>
      %cst_15 = arith.constant 9.99999997E-7 : f32
      %25 = vector.broadcast %cst_15 : f32 to vector<128x1xf32>
      %26 = arith.addf %24, %25 : vector<128x1xf32>
      %27 = tpu.reciprocal %26 : vector<128x1xf32> -> vector<128x1xf32>
      %c0_16 = arith.constant 0 : index
      %c0_17 = arith.constant 0 : index
      %28 = vector.load %arg5[%c0_16, %c0_17] : memref<1x128xf32, #tpu.memory_space<vmem>>, vector<1x128xf32>
      %c0_18 = arith.constant 0 : index
      %c0_19 = arith.constant 0 : index
      %29 = vector.load %arg6[%c0_18, %c0_19] : memref<1x128xf32, #tpu.memory_space<vmem>>, vector<1x128xf32>
      %30 = vector.broadcast %27 : vector<128x1xf32> to vector<128x128xf32>
      %31 = arith.mulf %18, %30 : vector<128x128xf32>
      %32 = vector.broadcast %28 : vector<1x128xf32> to vector<128x128xf32>
      %33 = arith.mulf %32, %31 : vector<128x128xf32>
      %34 = vector.broadcast %29 : vector<1x128xf32> to vector<128x128xf32>
      %35 = arith.addf %33, %34 : vector<128x128xf32>
      %36 = arith.truncf %35 : vector<128x128xf32> to vector<128x128xbf16>
      %c0_20 = arith.constant 0 : index
      %c0_21 = arith.constant 0 : index
      %37 = vector.load %arg8[%c0_20, %c0_21] : memref<128x128xbf16, #tpu.memory_space<vmem>>, vector<128x128xbf16>
      tpu.vector_store %arg8[%c0_20, %c0_21], %36 {strides = array<i32>} : memref<128x128xbf16, #tpu.memory_space<vmem>>, vector<128x128xbf16>,
    } else {
    }
    %c0 = arith.constant 0 : index
    %c0_1 = arith.constant 0 : index
    %3 = vector.load %arg8[%c0, %c0_1] : memref<128x128xbf16, #tpu.memory_space<vmem>>, vector<128x128xbf16>
    %c0_2 = arith.constant 0 : index
    %c0_3 = arith.constant 0 : index
    %4 = vector.load %arg3[%c0_2, %c0_3] : memref<128x128xbf16, #tpu.memory_space<vmem>>, vector<128x128xbf16>
    %cst = arith.constant dense<0.000000e+00> : vector<128x128xf32>
    %5 = tpu.matmul %3, %4, %cst {dimension_numbers = #tpu.dot_dimension_numbers<[1], [0], [0], [1], [0, 0, 1, 1], [], []>} : vector<128x128xbf16>, vector<128x128xbf16>, vector<128x128xf32> -> vector<128x128xf32>
    %c0_4 = arith.constant 0 : index
    %c0_5 = arith.constant 0 : index
    %6 = vector.load %arg4[%c0_4, %c0_5] : memref<1x128xf32, #tpu.memory_space<vmem>>, vector<1x128xf32>
    %7 = vector.broadcast %6 : vector<1x128xf32> to vector<128x128xf32>
    %8 = arith.addf %5, %7 : vector<128x128xf32>
    %c0_6 = arith.constant 0 : index
    %c0_7 = arith.constant 0 : index
    %c0_8 = arith.constant 0 : index
    %9 = vector.load %arg7[%c0_6, %c0_7, %c0_8] : memref<1x128x128xf32, #tpu.memory_space<vmem>>, vector<1x128x128xf32>
    %10 = vector.shape_cast %9 : vector<1x128x128xf32> to vector<128x128xf32>
    %11 = vector.shape_cast %8 : vector<128x128xf32> to vector<1x128x128xf32>
    tpu.vector_store %arg7[%c0_6, %c0_7, %c0_8], %11 {strides = array<i32>} : memref<1x128x128xf32, #tpu.memory_space<vmem>>, vector<1x128x128xf32>,
    return
  }
  func.func @transform_0(%arg0: i32, %arg1: i32) -> (i32, i32) {
    %c0_i32 = arith.constant 0 : i32
    %c0_i32_0 = arith.constant 0 : i32
    return %arg0, %c0_i32 : i32, i32
  }
  func.func @transform_1(%arg0: i32, %arg1: i32) -> (i32, i32) {
    %c0_i32 = arith.constant 0 : i32
    %c0_i32_0 = arith.constant 0 : i32
    return %c0_i32, %arg1 : i32, i32
  }
  func.func @transform_2(%arg0: i32, %arg1: i32) -> (i32, i32) {
    %c0_i32 = arith.constant 0 : i32
    %c0_i32_0 = arith.constant 0 : i32
    return %c0_i32, %arg1 : i32, i32
  }
  func.func @transform_3(%arg0: i32, %arg1: i32) -> (i32, i32) {
    %c0_i32 = arith.constant 0 : i32
    %c0_i32_0 = arith.constant 0 : i32
    %c0_i32_1 = arith.constant 0 : i32
    return %c0_i32, %c0_i32_0 : i32, i32
  }
  func.func @transform_4(%arg0: i32, %arg1: i32) -> (i32, i32) {
    %c0_i32 = arith.constant 0 : i32
    %c0_i32_0 = arith.constant 0 : i32
    %c0_i32_1 = arith.constant 0 : i32
    return %c0_i32, %c0_i32_0 : i32, i32
  }
  func.func @transform_5(%arg0: i32, %arg1: i32) -> (i32, i32, i32) {
    %c0_i32 = arith.constant 0 : i32
    %c0_i32_0 = arith.constant 0 : i32
    return %arg1, %arg0, %c0_i32 : i32, i32, i32
  }
}

module attributes {stable_mosaic.version = 11 : i64} {
  func.func @_matmul_fused_kernel(%arg0: i32, %arg1: i32, %arg2: memref<128x128xf32, #tpu.memory_space<vmem>>, %arg3: memref<128x128xbf16, #tpu.memory_space<vmem>>, %arg4: memref<1x128xf32, #tpu.memory_space<vmem>>, %arg5: memref<128x128xf32, #tpu.memory_space<vmem>>, %arg6: memref<128x128xf32, #tpu.memory_space<vmem>>, %arg7: memref<128x128xbf16, #tpu.memory_space<vmem>>) attributes {dimension_semantics = [#tpu.dimension_semantics<parallel>, #tpu.dimension_semantics<arbitrary>], iteration_bounds = array<i64: 2, 1>, scalar_prefetch = 0 : i64, scratch_operands = 1 : i64, tpu.core_type = #tpu.core_type<tc>, window_params = [{transform_indices = @transform_0, window_bounds = array<i64: 128, 128>}, {transform_indices = @transform_1, window_bounds = array<i64: 128, 128>}, {transform_indices = @transform_2, window_bounds = array<i64: 1, 128>}, {transform_indices = @transform_3, window_bounds = array<i64: 128, 128>}, {transform_indices = @transform_4, window_bounds = array<i64: 128, 128>}]} {
    %c0_i32 = arith.constant 0 : i32
    %0 = arith.cmpi eq, %arg1, %c0_i32 : i32
    %1 = arith.extui %0 : i1 to i32
    %c0_i32_0 = arith.constant 0 : i32
    %2 = arith.cmpi ne, %1, %c0_i32_0 : i32
    scf.if %2 {
      %c0_10 = arith.constant 0 : index
      %c0_11 = arith.constant 0 : index
      %12 = vector.load %arg2[%c0_10, %c0_11] : memref<128x128xf32, #tpu.memory_space<vmem>>, vector<128x128xf32>
      %13 = arith.truncf %12 : vector<128x128xf32> to vector<128x128xbf16>
      %c0_12 = arith.constant 0 : index
      %c0_13 = arith.constant 0 : index
      %14 = vector.load %arg7[%c0_12, %c0_13] : memref<128x128xbf16, #tpu.memory_space<vmem>>, vector<128x128xbf16>
      tpu.vector_store %arg7[%c0_12, %c0_13], %13 {strides = array<i32>} : memref<128x128xbf16, #tpu.memory_space<vmem>>, vector<128x128xbf16>,
    } else {
    }
    %c0 = arith.constant 0 : index
    %c0_1 = arith.constant 0 : index
    %3 = vector.load %arg7[%c0, %c0_1] : memref<128x128xbf16, #tpu.memory_space<vmem>>, vector<128x128xbf16>
    %c0_2 = arith.constant 0 : index
    %c0_3 = arith.constant 0 : index
    %4 = vector.load %arg3[%c0_2, %c0_3] : memref<128x128xbf16, #tpu.memory_space<vmem>>, vector<128x128xbf16>
    %cst = arith.constant dense<0.000000e+00> : vector<128x128xf32>
    %5 = tpu.matmul %3, %4, %cst {dimension_numbers = #tpu.dot_dimension_numbers<[1], [0], [0], [1], [0, 0, 1, 1], [], []>} : vector<128x128xbf16>, vector<128x128xbf16>, vector<128x128xf32> -> vector<128x128xf32>
    %c0_4 = arith.constant 0 : index
    %c0_5 = arith.constant 0 : index
    %6 = vector.load %arg4[%c0_4, %c0_5] : memref<1x128xf32, #tpu.memory_space<vmem>>, vector<1x128xf32>
    %7 = vector.broadcast %6 : vector<1x128xf32> to vector<128x128xf32>
    %8 = arith.addf %5, %7 : vector<128x128xf32>
    %c0_6 = arith.constant 0 : index
    %c0_7 = arith.constant 0 : index
    %9 = vector.load %arg5[%c0_6, %c0_7] : memref<128x128xf32, #tpu.memory_space<vmem>>, vector<128x128xf32>
    %10 = arith.addf %8, %9 : vector<128x128xf32>
    %c0_8 = arith.constant 0 : index
    %c0_9 = arith.constant 0 : index
    %11 = vector.load %arg6[%c0_8, %c0_9] : memref<128x128xf32, #tpu.memory_space<vmem>>, vector<128x128xf32>
    tpu.vector_store %arg6[%c0_8, %c0_9], %10 {strides = array<i32>} : memref<128x128xf32, #tpu.memory_space<vmem>>, vector<128x128xf32>,
    return
  }
  func.func @transform_0(%arg0: i32, %arg1: i32) -> (i32, i32) {
    %c0_i32 = arith.constant 0 : i32
    %c0_i32_0 = arith.constant 0 : i32
    return %arg0, %c0_i32 : i32, i32
  }
  func.func @transform_1(%arg0: i32, %arg1: i32) -> (i32, i32) {
    %c0_i32 = arith.constant 0 : i32
    %c0_i32_0 = arith.constant 0 : i32
    return %c0_i32, %arg1 : i32, i32
  }
  func.func @transform_2(%arg0: i32, %arg1: i32) -> (i32, i32) {
    %c0_i32 = arith.constant 0 : i32
    %c0_i32_0 = arith.constant 0 : i32
    return %c0_i32, %arg1 : i32, i32
  }
  func.func @transform_3(%arg0: i32, %arg1: i32) -> (i32, i32) {
    %c0_i32 = arith.constant 0 : i32
    return %arg0, %arg1 : i32, i32
  }
  func.func @transform_4(%arg0: i32, %arg1: i32) -> (i32, i32) {
    %c0_i32 = arith.constant 0 : i32
    return %arg0, %arg1 : i32, i32
  }
}

module attributes {stable_mosaic.version = 11 : i64} {
  func.func @_flash_attn_kernel(%arg0: i32, %arg1: i32, %arg2: i32, %arg3: memref<1x1x128x128xf32, #tpu.memory_space<vmem>>, %arg4: memref<1x1x128x128xf32, #tpu.memory_space<vmem>>, %arg5: memref<1x1x128x128xf32, #tpu.memory_space<vmem>>, %arg6: memref<128x128xf32, #tpu.memory_space<vmem>>, %arg7: memref<1x1x128xf32, #tpu.memory_space<vmem>>, %arg8: memref<1x128x128xf32, #tpu.memory_space<vmem>>, %arg9: memref<128x4xf32, #tpu.memory_space<vmem>>, %arg10: memref<128x4xf32, #tpu.memory_space<vmem>>, %arg11: memref<128x128xf32, #tpu.memory_space<vmem>>) attributes {dimension_semantics = [#tpu.dimension_semantics<parallel>, #tpu.dimension_semantics<parallel>, #tpu.dimension_semantics<arbitrary>], iteration_bounds = array<i64: 2, 1, 1>, scalar_prefetch = 0 : i64, scratch_operands = 3 : i64, tpu.core_type = #tpu.core_type<tc>, window_params = [{transform_indices = @transform_0, window_bounds = array<i64: 1, 1, 128, 128>}, {transform_indices = @transform_1, window_bounds = array<i64: 1, 1, 128, 128>}, {transform_indices = @transform_2, window_bounds = array<i64: 1, 1, 128, 128>}, {transform_indices = @transform_3, window_bounds = array<i64: 128, 128>}, {transform_indices = @transform_4, window_bounds = array<i64: 1, 1, 128>}, {transform_indices = @transform_5, window_bounds = array<i64: 1, 128, 128>}]} {
    %c0_i32 = arith.constant 0 : i32
    %0 = arith.cmpi eq, %arg2, %c0_i32 : i32
    %1 = arith.extui %0 : i1 to i32
    %c0_i32_0 = arith.constant 0 : i32
    %2 = arith.cmpi ne, %1, %c0_i32_0 : i32
    scf.if %2 {
      %cst_50 = arith.constant -1.000000e+30 : f32
      %141 = vector.broadcast %cst_50 : f32 to vector<128x4xf32>
      %c0_51 = arith.constant 0 : index
      %c0_52 = arith.constant 0 : index
      %142 = vector.load %arg9[%c0_51, %c0_52] : memref<128x4xf32, #tpu.memory_space<vmem>>, vector<128x4xf32>
      tpu.vector_store %arg9[%c0_51, %c0_52], %141 {strides = array<i32>} : memref<128x4xf32, #tpu.memory_space<vmem>>, vector<128x4xf32>,
      %cst_53 = arith.constant 0.000000e+00 : f32
      %143 = vector.broadcast %cst_53 : f32 to vector<128x4xf32>
      %c0_54 = arith.constant 0 : index
      %c0_55 = arith.constant 0 : index
      %144 = vector.load %arg10[%c0_54, %c0_55] : memref<128x4xf32, #tpu.memory_space<vmem>>, vector<128x4xf32>
      tpu.vector_store %arg10[%c0_54, %c0_55], %143 {strides = array<i32>} : memref<128x4xf32, #tpu.memory_space<vmem>>, vector<128x4xf32>,
      %cst_56 = arith.constant 0.000000e+00 : f32
      %145 = vector.broadcast %cst_56 : f32 to vector<128x128xf32>
      %c0_57 = arith.constant 0 : index
      %c0_58 = arith.constant 0 : index
      %146 = vector.load %arg11[%c0_57, %c0_58] : memref<128x128xf32, #tpu.memory_space<vmem>>, vector<128x128xf32>
      tpu.vector_store %arg11[%c0_57, %c0_58], %145 {strides = array<i32>} : memref<128x128xf32, #tpu.memory_space<vmem>>, vector<128x128xf32>,
    } else {
    }
    %c0 = arith.constant 0 : index
    %c0_1 = arith.constant 0 : index
    %3 = vector.load %arg6[%c0, %c0_1] : memref<128x128xf32, #tpu.memory_space<vmem>>, vector<128x128xf32>
    %c0_2 = arith.constant 0 : index
    %c0_3 = arith.constant 0 : index
    %c0_4 = arith.constant 0 : index
    %4 = vector.load %arg7[%c0_2, %c0_3, %c0_4] : memref<1x1x128xf32, #tpu.memory_space<vmem>>, vector<1x1x128xf32>
    %5 = vector.shape_cast %4 : vector<1x1x128xf32> to vector<1x128xf32>
    %6 = vector.broadcast %5 : vector<1x128xf32> to vector<128x128xf32>
    %7 = arith.addf %3, %6 : vector<128x128xf32>
    %c0_5 = arith.constant 0 : index
    %c0_6 = arith.constant 0 : index
    %c0_7 = arith.constant 0 : index
    %c0_8 = arith.constant 0 : index
    %8 = vector.load %arg3[%c0_5, %c0_6, %c0_7, %c0_8] : memref<1x1x128x128xf32, #tpu.memory_space<vmem>>, vector<1x1x128x128xf32>
    %9 = vector.shape_cast %8 : vector<1x1x128x128xf32> to vector<128x128xf32>
    %c0_9 = arith.constant 0 : index
    %c0_10 = arith.constant 0 : index
    %c0_11 = arith.constant 0 : index
    %c0_12 = arith.constant 0 : index
    %10 = vector.load %arg4[%c0_9, %c0_10, %c0_11, %c0_12] : memref<1x1x128x128xf32, #tpu.memory_space<vmem>>, vector<1x1x128x128xf32>
    %11 = vector.shape_cast %10 : vector<1x1x128x128xf32> to vector<128x128xf32>
    %c0_13 = arith.constant 0 : index
    %c0_14 = arith.constant 0 : index
    %c0_15 = arith.constant 0 : index
    %c0_16 = arith.constant 0 : index
    %12 = vector.load %arg5[%c0_13, %c0_14, %c0_15, %c0_16] : memref<1x1x128x128xf32, #tpu.memory_space<vmem>>, vector<1x1x128x128xf32>
    %13 = vector.shape_cast %12 : vector<1x1x128x128xf32> to vector<128x128xf32>
    %c0_17 = arith.constant 0 : index
    %c0_18 = arith.constant 0 : index
    %14 = vector.load %arg9[%c0_17, %c0_18] : memref<128x4xf32, #tpu.memory_space<vmem>>, vector<128x4xf32>
    %c0_19 = arith.constant 0 : index
    %c0_20 = arith.constant 0 : index
    %15 = vector.load %arg10[%c0_19, %c0_20] : memref<128x4xf32, #tpu.memory_space<vmem>>, vector<128x4xf32>
    %16 = vector.extract_strided_slice %9 {offsets = [0, 0], sizes = [128, 32], strides = [1, 1]} : vector<128x128xf32> to vector<128x32xf32>
    %cst = arith.constant 0.176776692 : f32
    %17 = vector.broadcast %cst : f32 to vector<128x32xf32>
    %18 = arith.mulf %16, %17 : vector<128x32xf32>
    %19 = arith.truncf %18 : vector<128x32xf32> to vector<128x32xbf16>
    %20 = vector.extract_strided_slice %11 {offsets = [0, 0], sizes = [128, 32], strides = [1, 1]} : vector<128x128xf32> to vector<128x32xf32>
    %21 = arith.truncf %20 : vector<128x32xf32> to vector<128x32xbf16>
    %cst_21 = arith.constant dense<0.000000e+00> : vector<128x128xf32>
    %22 = tpu.matmul %19, %21, %cst_21 {dimension_numbers = #tpu.dot_dimension_numbers<[1], [1], [0], [0], [0, 0, 1, 0], [], []>} : vector<128x32xbf16>, vector<128x32xbf16>, vector<128x128xf32> -> vector<128x128xf32>
    %23 = arith.addf %22, %7 : vector<128x128xf32>
    %24 = vector.extract_strided_slice %14 {offsets = [0, 0], sizes = [128, 1], strides = [1, 1]} : vector<128x4xf32> to vector<128x1xf32>
    %cst_22 = arith.constant dense<0xFF800000> : vector<128xf32>
    %25 = vector.multi_reduction <maximumf>, %23, %cst_22 [1] : vector<128x128xf32> to vector<128xf32>
    %26 = vector.shape_cast %25 : vector<128xf32> to vector<128x1xf32>
    %27 = arith.maximumf %24, %26 : vector<128x1xf32>
    %28 = arith.subf %24, %27 : vector<128x1xf32>
    %29 = math.exp %28 : vector<128x1xf32>
    %30 = vector.broadcast %27 : vector<128x1xf32> to vector<128x128xf32>
    %31 = arith.subf %23, %30 : vector<128x128xf32>
    %32 = math.exp %31 : vector<128x128xf32>
    %33 = vector.extract_strided_slice %15 {offsets = [0, 0], sizes = [128, 1], strides = [1, 1]} : vector<128x4xf32> to vector<128x1xf32>
    %34 = arith.mulf %29, %33 : vector<128x1xf32>
    %cst_23 = arith.constant dense<0.000000e+00> : vector<128xf32>
    %35 = vector.multi_reduction <add>, %32, %cst_23 [1] : vector<128x128xf32> to vector<128xf32>
    %36 = vector.shape_cast %35 : vector<128xf32> to vector<128x1xf32>
    %37 = arith.addf %34, %36 : vector<128x1xf32>
    %38 = arith.truncf %32 : vector<128x128xf32> to vector<128x128xbf16>
    %39 = vector.extract_strided_slice %13 {offsets = [0, 0], sizes = [128, 32], strides = [1, 1]} : vector<128x128xf32> to vector<128x32xf32>
    %40 = arith.truncf %39 : vector<128x32xf32> to vector<128x32xbf16>
    %cst_24 = arith.constant dense<0.000000e+00> : vector<128x32xf32>
    %41 = tpu.matmul %38, %40, %cst_24 {dimension_numbers = #tpu.dot_dimension_numbers<[1], [0], [0], [1], [0, 0, 1, 1], [], []>} : vector<128x128xbf16>, vector<128x32xbf16>, vector<128x32xf32> -> vector<128x32xf32>
    %42 = vector.shape_cast %29 : vector<128x1xf32> to vector<128x1xf32>
    %43 = vector.broadcast %42 : vector<128x1xf32> to vector<128x32xf32>
    %44 = vector.extract_strided_slice %9 {offsets = [0, 32], sizes = [128, 32], strides = [1, 1]} : vector<128x128xf32> to vector<128x32xf32>
    %cst_25 = arith.constant 0.176776692 : f32
    %45 = vector.broadcast %cst_25 : f32 to vector<128x32xf32>
    %46 = arith.mulf %44, %45 : vector<128x32xf32>
    %47 = arith.truncf %46 : vector<128x32xf32> to vector<128x32xbf16>
    %48 = vector.extract_strided_slice %11 {offsets = [0, 32], sizes = [128, 32], strides = [1, 1]} : vector<128x128xf32> to vector<128x32xf32>
    %49 = arith.truncf %48 : vector<128x32xf32> to vector<128x32xbf16>
    %cst_26 = arith.constant dense<0.000000e+00> : vector<128x128xf32>
    %50 = tpu.matmul %47, %49, %cst_26 {dimension_numbers = #tpu.dot_dimension_numbers<[1], [1], [0], [0], [0, 0, 1, 0], [], []>} : vector<128x32xbf16>, vector<128x32xbf16>, vector<128x128xf32> -> vector<128x128xf32>
    %51 = arith.addf %50, %7 : vector<128x128xf32>
    %52 = vector.extract_strided_slice %14 {offsets = [0, 1], sizes = [128, 1], strides = [1, 1]} : vector<128x4xf32> to vector<128x1xf32>
    %cst_27 = arith.constant dense<0xFF800000> : vector<128xf32>
    %53 = vector.multi_reduction <maximumf>, %51, %cst_27 [1] : vector<128x128xf32> to vector<128xf32>
    %54 = vector.shape_cast %53 : vector<128xf32> to vector<128x1xf32>
    %55 = arith.maximumf %52, %54 : vector<128x1xf32>
    %56 = arith.subf %52, %55 : vector<128x1xf32>
    %57 = math.exp %56 : vector<128x1xf32>
    %58 = vector.broadcast %55 : vector<128x1xf32> to vector<128x128xf32>
    %59 = arith.subf %51, %58 : vector<128x128xf32>
    %60 = math.exp %59 : vector<128x128xf32>
    %61 = vector.extract_strided_slice %15 {offsets = [0, 1], sizes = [128, 1], strides = [1, 1]} : vector<128x4xf32> to vector<128x1xf32>
    %62 = arith.mulf %57, %61 : vector<128x1xf32>
    %cst_28 = arith.constant dense<0.000000e+00> : vector<128xf32>
    %63 = vector.multi_reduction <add>, %60, %cst_28 [1] : vector<128x128xf32> to vector<128xf32>
    %64 = vector.shape_cast %63 : vector<128xf32> to vector<128x1xf32>
    %65 = arith.addf %62, %64 : vector<128x1xf32>
    %66 = arith.truncf %60 : vector<128x128xf32> to vector<128x128xbf16>
    %67 = vector.extract_strided_slice %13 {offsets = [0, 32], sizes = [128, 32], strides = [1, 1]} : vector<128x128xf32> to vector<128x32xf32>
    %68 = arith.truncf %67 : vector<128x32xf32> to vector<128x32xbf16>
    %cst_29 = arith.constant dense<0.000000e+00> : vector<128x32xf32>
    %69 = tpu.matmul %66, %68, %cst_29 {dimension_numbers = #tpu.dot_dimension_numbers<[1], [0], [0], [1], [0, 0, 1, 1], [], []>} : vector<128x128xbf16>, vector<128x32xbf16>, vector<128x32xf32> -> vector<128x32xf32>
    %70 = vector.shape_cast %57 : vector<128x1xf32> to vector<128x1xf32>
    %71 = vector.broadcast %70 : vector<128x1xf32> to vector<128x32xf32>
    %72 = vector.extract_strided_slice %9 {offsets = [0, 64], sizes = [128, 32], strides = [1, 1]} : vector<128x128xf32> to vector<128x32xf32>
    %cst_30 = arith.constant 0.176776692 : f32
    %73 = vector.broadcast %cst_30 : f32 to vector<128x32xf32>
    %74 = arith.mulf %72, %73 : vector<128x32xf32>
    %75 = arith.truncf %74 : vector<128x32xf32> to vector<128x32xbf16>
    %76 = vector.extract_strided_slice %11 {offsets = [0, 64], sizes = [128, 32], strides = [1, 1]} : vector<128x128xf32> to vector<128x32xf32>
    %77 = arith.truncf %76 : vector<128x32xf32> to vector<128x32xbf16>
    %cst_31 = arith.constant dense<0.000000e+00> : vector<128x128xf32>
    %78 = tpu.matmul %75, %77, %cst_31 {dimension_numbers = #tpu.dot_dimension_numbers<[1], [1], [0], [0], [0, 0, 1, 0], [], []>} : vector<128x32xbf16>, vector<128x32xbf16>, vector<128x128xf32> -> vector<128x128xf32>
    %79 = arith.addf %78, %7 : vector<128x128xf32>
    %80 = vector.extract_strided_slice %14 {offsets = [0, 2], sizes = [128, 1], strides = [1, 1]} : vector<128x4xf32> to vector<128x1xf32>
    %cst_32 = arith.constant dense<0xFF800000> : vector<128xf32>
    %81 = vector.multi_reduction <maximumf>, %79, %cst_32 [1] : vector<128x128xf32> to vector<128xf32>
    %82 = vector.shape_cast %81 : vector<128xf32> to vector<128x1xf32>
    %83 = arith.maximumf %80, %82 : vector<128x1xf32>
    %84 = arith.subf %80, %83 : vector<128x1xf32>
    %85 = math.exp %84 : vector<128x1xf32>
    %86 = vector.broadcast %83 : vector<128x1xf32> to vector<128x128xf32>
    %87 = arith.subf %79, %86 : vector<128x128xf32>
    %88 = math.exp %87 : vector<128x128xf32>
    %89 = vector.extract_strided_slice %15 {offsets = [0, 2], sizes = [128, 1], strides = [1, 1]} : vector<128x4xf32> to vector<128x1xf32>
    %90 = arith.mulf %85, %89 : vector<128x1xf32>
    %cst_33 = arith.constant dense<0.000000e+00> : vector<128xf32>
    %91 = vector.multi_reduction <add>, %88, %cst_33 [1] : vector<128x128xf32> to vector<128xf32>
    %92 = vector.shape_cast %91 : vector<128xf32> to vector<128x1xf32>
    %93 = arith.addf %90, %92 : vector<128x1xf32>
    %94 = arith.truncf %88 : vector<128x128xf32> to vector<128x128xbf16>
    %95 = vector.extract_strided_slice %13 {offsets = [0, 64], sizes = [128, 32], strides = [1, 1]} : vector<128x128xf32> to vector<128x32xf32>
    %96 = arith.truncf %95 : vector<128x32xf32> to vector<128x32xbf16>
    %cst_34 = arith.constant dense<0.000000e+00> : vector<128x32xf32>
    %97 = tpu.matmul %94, %96, %cst_34 {dimension_numbers = #tpu.dot_dimension_numbers<[1], [0], [0], [1], [0, 0, 1, 1], [], []>} : vector<128x128xbf16>, vector<128x32xbf16>, vector<128x32xf32> -> vector<128x32xf32>
    %98 = vector.shape_cast %85 : vector<128x1xf32> to vector<128x1xf32>
    %99 = vector.broadcast %98 : vector<128x1xf32> to vector<128x32xf32>
    %100 = vector.extract_strided_slice %9 {offsets = [0, 96], sizes = [128, 32], strides = [1, 1]} : vector<128x128xf32> to vector<128x32xf32>
    %cst_35 = arith.constant 0.176776692 : f32
    %101 = vector.broadcast %cst_35 : f32 to vector<128x32xf32>
    %102 = arith.mulf %100, %101 : vector<128x32xf32>
    %103 = arith.truncf %102 : vector<128x32xf32> to vector<128x32xbf16>
    %104 = vector.extract_strided_slice %11 {offsets = [0, 96], sizes = [128, 32], strides = [1, 1]} : vector<128x128xf32> to vector<128x32xf32>
    %105 = arith.truncf %104 : vector<128x32xf32> to vector<128x32xbf16>
    %cst_36 = arith.constant dense<0.000000e+00> : vector<128x128xf32>
    %106 = tpu.matmul %103, %105, %cst_36 {dimension_numbers = #tpu.dot_dimension_numbers<[1], [1], [0], [0], [0, 0, 1, 0], [], []>} : vector<128x32xbf16>, vector<128x32xbf16>, vector<128x128xf32> -> vector<128x128xf32>
    %107 = arith.addf %106, %7 : vector<128x128xf32>
    %108 = vector.extract_strided_slice %14 {offsets = [0, 3], sizes = [128, 1], strides = [1, 1]} : vector<128x4xf32> to vector<128x1xf32>
    %cst_37 = arith.constant dense<0xFF800000> : vector<128xf32>
    %109 = vector.multi_reduction <maximumf>, %107, %cst_37 [1] : vector<128x128xf32> to vector<128xf32>
    %110 = vector.shape_cast %109 : vector<128xf32> to vector<128x1xf32>
    %111 = arith.maximumf %108, %110 : vector<128x1xf32>
    %112 = arith.subf %108, %111 : vector<128x1xf32>
    %113 = math.exp %112 : vector<128x1xf32>
    %114 = vector.broadcast %111 : vector<128x1xf32> to vector<128x128xf32>
    %115 = arith.subf %107, %114 : vector<128x128xf32>
    %116 = math.exp %115 : vector<128x128xf32>
    %117 = vector.extract_strided_slice %15 {offsets = [0, 3], sizes = [128, 1], strides = [1, 1]} : vector<128x4xf32> to vector<128x1xf32>
    %118 = arith.mulf %113, %117 : vector<128x1xf32>
    %cst_38 = arith.constant dense<0.000000e+00> : vector<128xf32>
    %119 = vector.multi_reduction <add>, %116, %cst_38 [1] : vector<128x128xf32> to vector<128xf32>
    %120 = vector.shape_cast %119 : vector<128xf32> to vector<128x1xf32>
    %121 = arith.addf %118, %120 : vector<128x1xf32>
    %122 = arith.truncf %116 : vector<128x128xf32> to vector<128x128xbf16>
    %123 = vector.extract_strided_slice %13 {offsets = [0, 96], sizes = [128, 32], strides = [1, 1]} : vector<128x128xf32> to vector<128x32xf32>
    %124 = arith.truncf %123 : vector<128x32xf32> to vector<128x32xbf16>
    %cst_39 = arith.constant dense<0.000000e+00> : vector<128x32xf32>
    %125 = tpu.matmul %122, %124, %cst_39 {dimension_numbers = #tpu.dot_dimension_numbers<[1], [0], [0], [1], [0, 0, 1, 1], [], []>} : vector<128x128xbf16>, vector<128x32xbf16>, vector<128x32xf32> -> vector<128x32xf32>
    %126 = vector.shape_cast %113 : vector<128x1xf32> to vector<128x1xf32>
    %127 = vector.broadcast %126 : vector<128x1xf32> to vector<128x32xf32>
    %128 = tpu.concatenate %27, %55, %83, %111 in 1 : vector<128x1xf32>, vector<128x1xf32>, vector<128x1xf32>, vector<128x1xf32> -> vector<128x4xf32>
    %c0_40 = arith.constant 0 : index
    %c0_41 = arith.constant 0 : index
    %129 = vector.load %arg9[%c0_40, %c0_41] : memref<128x4xf32, #tpu.memory_space<vmem>>, vector<128x4xf32>
    tpu.vector_store %arg9[%c0_40, %c0_41], %128 {strides = array<i32>} : memref<128x4xf32, #tpu.memory_space<vmem>>, vector<128x4xf32>,
    %130 = tpu.concatenate %37, %65, %93, %121 in 1 : vector<128x1xf32>, vector<128x1xf32>, vector<128x1xf32>, vector<128x1xf32> -> vector<128x4xf32>
    %c0_42 = arith.constant 0 : index
    %c0_43 = arith.constant 0 : index
    %131 = vector.load %arg10[%c0_42, %c0_43] : memref<128x4xf32, #tpu.memory_space<vmem>>, vector<128x4xf32>
    tpu.vector_store %arg10[%c0_42, %c0_43], %130 {strides = array<i32>} : memref<128x4xf32, #tpu.memory_space<vmem>>, vector<128x4xf32>,
    %132 = tpu.concatenate %43, %71, %99, %127 in 1 : vector<128x32xf32>, vector<128x32xf32>, vector<128x32xf32>, vector<128x32xf32> -> vector<128x128xf32>
    %c0_44 = arith.constant 0 : index
    %c0_45 = arith.constant 0 : index
    %133 = vector.load %arg11[%c0_44, %c0_45] : memref<128x128xf32, #tpu.memory_space<vmem>>, vector<128x128xf32>
    %134 = arith.mulf %132, %133 : vector<128x128xf32>
    %135 = tpu.concatenate %41, %69, %97, %125 in 1 : vector<128x32xf32>, vector<128x32xf32>, vector<128x32xf32>, vector<128x32xf32> -> vector<128x128xf32>
    %136 = arith.addf %134, %135 : vector<128x128xf32>
    %c0_46 = arith.constant 0 : index
    %c0_47 = arith.constant 0 : index
    %137 = vector.load %arg11[%c0_46, %c0_47] : memref<128x128xf32, #tpu.memory_space<vmem>>, vector<128x128xf32>
    tpu.vector_store %arg11[%c0_46, %c0_47], %136 {strides = array<i32>} : memref<128x128xf32, #tpu.memory_space<vmem>>, vector<128x128xf32>,
    %c0_i32_48 = arith.constant 0 : i32
    %138 = arith.cmpi eq, %arg2, %c0_i32_48 : i32
    %139 = arith.extui %138 : i1 to i32
    %c0_i32_49 = arith.constant 0 : i32
    %140 = arith.cmpi ne, %139, %c0_i32_49 : i32
    scf.if %140 {
      %c0_50 = arith.constant 0 : index
      %c0_51 = arith.constant 0 : index
      %141 = vector.load %arg10[%c0_50, %c0_51] : memref<128x4xf32, #tpu.memory_space<vmem>>, vector<128x4xf32>
      %142 = tpu.reciprocal %141 {approx = true} : vector<128x4xf32> -> vector<128x4xf32>
      %143 = vector.extract_strided_slice %142 {offsets = [0, 0], sizes = [128, 1], strides = [1, 1]} : vector<128x4xf32> to vector<128x1xf32>
      %144 = vector.shape_cast %143 : vector<128x1xf32> to vector<128x1xf32>
      %145 = vector.broadcast %144 : vector<128x1xf32> to vector<128x32xf32>
      %146 = vector.extract_strided_slice %142 {offsets = [0, 1], sizes = [128, 1], strides = [1, 1]} : vector<128x4xf32> to vector<128x1xf32>
      %147 = vector.shape_cast %146 : vector<128x1xf32> to vector<128x1xf32>
      %148 = vector.broadcast %147 : vector<128x1xf32> to vector<128x32xf32>
      %149 = vector.extract_strided_slice %142 {offsets = [0, 2], sizes = [128, 1], strides = [1, 1]} : vector<128x4xf32> to vector<128x1xf32>
      %150 = vector.shape_cast %149 : vector<128x1xf32> to vector<128x1xf32>
      %151 = vector.broadcast %150 : vector<128x1xf32> to vector<128x32xf32>
      %152 = vector.extract_strided_slice %142 {offsets = [0, 3], sizes = [128, 1], strides = [1, 1]} : vector<128x4xf32> to vector<128x1xf32>
      %153 = vector.shape_cast %152 : vector<128x1xf32> to vector<128x1xf32>
      %154 = vector.broadcast %153 : vector<128x1xf32> to vector<128x32xf32>
      %155 = tpu.concatenate %145, %148, %151, %154 in 1 : vector<128x32xf32>, vector<128x32xf32>, vector<128x32xf32>, vector<128x32xf32> -> vector<128x128xf32>
      %c0_52 = arith.constant 0 : index
      %c0_53 = arith.constant 0 : index
      %156 = vector.load %arg11[%c0_52, %c0_53] : memref<128x128xf32, #tpu.memory_space<vmem>>, vector<128x128xf32>
      %157 = arith.mulf %156, %155 : vector<128x128xf32>
      %c0_54 = arith.constant 0 : index
      %c0_55 = arith.constant 0 : index
      %c0_56 = arith.constant 0 : index
      %158 = vector.load %arg8[%c0_54, %c0_55, %c0_56] : memref<1x128x128xf32, #tpu.memory_space<vmem>>, vector<1x128x128xf32>
      %159 = vector.shape_cast %158 : vector<1x128x128xf32> to vector<128x128xf32>
      %160 = vector.shape_cast %157 : vector<128x128xf32> to vector<1x128x128xf32>
      tpu.vector_store %arg8[%c0_54, %c0_55, %c0_56], %160 {strides = array<i32>} : memref<1x128x128xf32, #tpu.memory_space<vmem>>, vector<1x128x128xf32>,
    } else {
    }
    return
  }
  func.func @transform_0(%arg0: i32, %arg1: i32, %arg2: i32) -> (i32, i32, i32, i32) {
    %c0_i32 = arith.constant 0 : i32
    %c0_i32_0 = arith.constant 0 : i32
    %c0_i32_1 = arith.constant 0 : i32
    return %c0_i32, %arg0, %arg1, %c0_i32_0 : i32, i32, i32, i32
  }
  func.func @transform_1(%arg0: i32, %arg1: i32, %arg2: i32) -> (i32, i32, i32, i32) {
    %c1_i32 = arith.constant 1 : i32
    %c0_i32 = arith.constant 0 : i32
    %c0_i32_0 = arith.constant 0 : i32
    return %c1_i32, %arg0, %arg2, %c0_i32 : i32, i32, i32, i32
  }
  func.func @transform_2(%arg0: i32, %arg1: i32, %arg2: i32) -> (i32, i32, i32, i32) {
    %c2_i32 = arith.constant 2 : i32
    %c0_i32 = arith.constant 0 : i32
    %c0_i32_0 = arith.constant 0 : i32
    return %c2_i32, %arg0, %arg2, %c0_i32 : i32, i32, i32, i32
  }
  func.func @transform_3(%arg0: i32, %arg1: i32, %arg2: i32) -> (i32, i32) {
    %c0_i32 = arith.constant 0 : i32
    return %arg1, %arg2 : i32, i32
  }
  func.func @transform_4(%arg0: i32, %arg1: i32, %arg2: i32) -> (i32, i32, i32) {
    %c0_i32 = arith.constant 0 : i32
    %c0_i32_0 = arith.constant 0 : i32
    return %arg0, %c0_i32, %arg2 : i32, i32, i32
  }
  func.func @transform_5(%arg0: i32, %arg1: i32, %arg2: i32) -> (i32, i32, i32) {
    %c0_i32 = arith.constant 0 : i32
    %c0_i32_0 = arith.constant 0 : i32
    return %arg0, %arg1, %c0_i32 : i32, i32, i32
  }
}

module attributes {stable_mosaic.version = 11 : i64} {
  func.func @_matmul_fused_kernel(%arg0: i32, %arg1: i32, %arg2: memref<128x128xf32, #tpu.memory_space<vmem>>, %arg3: memref<128x512xbf16, #tpu.memory_space<vmem>>, %arg4: memref<1x512xf32, #tpu.memory_space<vmem>>, %arg5: memref<1x128xf32, #tpu.memory_space<vmem>>, %arg6: memref<1x128xf32, #tpu.memory_space<vmem>>, %arg7: memref<128x512xf32, #tpu.memory_space<vmem>>, %arg8: memref<128x128xbf16, #tpu.memory_space<vmem>>) attributes {dimension_semantics = [#tpu.dimension_semantics<parallel>, #tpu.dimension_semantics<arbitrary>], iteration_bounds = array<i64: 2, 4>, scalar_prefetch = 0 : i64, scratch_operands = 1 : i64, tpu.core_type = #tpu.core_type<tc>, window_params = [{transform_indices = @transform_0, window_bounds = array<i64: 128, 128>}, {transform_indices = @transform_1, window_bounds = array<i64: 128, 512>}, {transform_indices = @transform_2, window_bounds = array<i64: 1, 512>}, {pipeline_mode = #tpu.pipeline_mode<synchronous>, transform_indices = @transform_3, window_bounds = array<i64: 1, 128>}, {pipeline_mode = #tpu.pipeline_mode<synchronous>, transform_indices = @transform_4, window_bounds = array<i64: 1, 128>}, {transform_indices = @transform_5, window_bounds = array<i64: 128, 512>}]} {
    %c0_i32 = arith.constant 0 : i32
    %0 = arith.cmpi eq, %arg1, %c0_i32 : i32
    %1 = arith.extui %0 : i1 to i32
    %c0_i32_0 = arith.constant 0 : i32
    %2 = arith.cmpi ne, %1, %c0_i32_0 : i32
    scf.if %2 {
      %c0_9 = arith.constant 0 : index
      %c0_10 = arith.constant 0 : index
      %12 = vector.load %arg2[%c0_9, %c0_10] : memref<128x128xf32, #tpu.memory_space<vmem>>, vector<128x128xf32>
      %cst_11 = arith.constant dense<0.000000e+00> : vector<128xf32>
      %13 = vector.multi_reduction <add>, %12, %cst_11 [1] : vector<128x128xf32> to vector<128xf32>
      %14 = vector.shape_cast %13 : vector<128xf32> to vector<128x1xf32>
      %cst_12 = arith.constant 1.280000e+02 : f32
      %15 = vector.broadcast %cst_12 : f32 to vector<128x1xf32>
      %16 = arith.divf %14, %15 : vector<128x1xf32>
      %17 = vector.broadcast %16 : vector<128x1xf32> to vector<128x128xf32>
      %18 = arith.subf %12, %17 : vector<128x128xf32>
      %19 = arith.mulf %18, %18 : vector<128x128xf32>
      %cst_13 = arith.constant dense<0.000000e+00> : vector<128xf32>
      %20 = vector.multi_reduction <add>, %19, %cst_13 [1] : vector<128x128xf32> to vector<128xf32>
      %21 = vector.shape_cast %20 : vector<128xf32> to vector<128x1xf32>
      %cst_14 = arith.constant 0.00787401571 : f32
      %22 = vector.broadcast %cst_14 : f32 to vector<128x1xf32>
      %23 = arith.mulf %21, %22 : vector<128x1xf32>
      %24 = math.sqrt %23 : vector<128x1xf32>
      %cst_15 = arith.constant 9.99999997E-7 : f32
      %25 = vector.broadcast %cst_15 : f32 to vector<128x1xf32>
      %26 = arith.addf %24, %25 : vector<128x1xf32>
      %27 = tpu.reciprocal %26 : vector<128x1xf32> -> vector<128x1xf32>
      %c0_16 = arith.constant 0 : index
      %c0_17 = arith.constant 0 : index
      %28 = vector.load %arg5[%c0_16, %c0_17] : memref<1x128xf32, #tpu.memory_space<vmem>>, vector<1x128xf32>
      %c0_18 = arith.constant 0 : index
      %c0_19 = arith.constant 0 : index
      %29 = vector.load %arg6[%c0_18, %c0_19] : memref<1x128xf32, #tpu.memory_space<vmem>>, vector<1x128xf32>
      %30 = vector.broadcast %27 : vector<128x1xf32> to vector<128x128xf32>
      %31 = arith.mulf %18, %30 : vector<128x128xf32>
      %32 = vector.broadcast %28 : vector<1x128xf32> to vector<128x128xf32>
      %33 = arith.mulf %32, %31 : vector<128x128xf32>
      %34 = vector.broadcast %29 : vector<1x128xf32> to vector<128x128xf32>
      %35 = arith.addf %33, %34 : vector<128x128xf32>
      %36 = arith.truncf %35 : vector<128x128xf32> to vector<128x128xbf16>
      %c0_20 = arith.constant 0 : index
      %c0_21 = arith.constant 0 : index
      %37 = vector.load %arg8[%c0_20, %c0_21] : memref<128x128xbf16, #tpu.memory_space<vmem>>, vector<128x128xbf16>
      tpu.vector_store %arg8[%c0_20, %c0_21], %36 {strides = array<i32>} : memref<128x128xbf16, #tpu.memory_space<vmem>>, vector<128x128xbf16>,
    } else {
    }
    %c0 = arith.constant 0 : index
    %c0_1 = arith.constant 0 : index
    %3 = vector.load %arg8[%c0, %c0_1] : memref<128x128xbf16, #tpu.memory_space<vmem>>, vector<128x128xbf16>
    %c0_2 = arith.constant 0 : index
    %c0_3 = arith.constant 0 : index
    %4 = vector.load %arg3[%c0_2, %c0_3] : memref<128x512xbf16, #tpu.memory_space<vmem>>, vector<128x512xbf16>
    %cst = arith.constant dense<0.000000e+00> : vector<128x512xf32>
    %5 = tpu.matmul %3, %4, %cst {dimension_numbers = #tpu.dot_dimension_numbers<[1], [0], [0], [1], [0, 0, 1, 1], [], []>} : vector<128x128xbf16>, vector<128x512xbf16>, vector<128x512xf32> -> vector<128x512xf32>
    %c0_4 = arith.constant 0 : index
    %c0_5 = arith.constant 0 : index
    %6 = vector.load %arg4[%c0_4, %c0_5] : memref<1x512xf32, #tpu.memory_space<vmem>>, vector<1x512xf32>
    %7 = vector.broadcast %6 : vector<1x512xf32> to vector<128x512xf32>
    %8 = arith.addf %5, %7 : vector<128x512xf32>
    %cst_6 = arith.constant 0.000000e+00 : f32
    %9 = vector.broadcast %cst_6 : f32 to vector<128x512xf32>
    %10 = arith.maximumf %8, %9 : vector<128x512xf32>
    %c0_7 = arith.constant 0 : index
    %c0_8 = arith.constant 0 : index
    %11 = vector.load %arg7[%c0_7, %c0_8] : memref<128x512xf32, #tpu.memory_space<vmem>>, vector<128x512xf32>
    tpu.vector_store %arg7[%c0_7, %c0_8], %10 {strides = array<i32>} : memref<128x512xf32, #tpu.memory_space<vmem>>, vector<128x512xf32>,
    return
  }
  func.func @transform_0(%arg0: i32, %arg1: i32) -> (i32, i32) {
    %c0_i32 = arith.constant 0 : i32
    %c0_i32_0 = arith.constant 0 : i32
    return %arg0, %c0_i32 : i32, i32
  }
  func.func @transform_1(%arg0: i32, %arg1: i32) -> (i32, i32) {
    %c0_i32 = arith.constant 0 : i32
    %c0_i32_0 = arith.constant 0 : i32
    return %c0_i32, %arg1 : i32, i32
  }
  func.func @transform_2(%arg0: i32, %arg1: i32) -> (i32, i32) {
    %c0_i32 = arith.constant 0 : i32
    %c0_i32_0 = arith.constant 0 : i32
    return %c0_i32, %arg1 : i32, i32
  }
  func.func @transform_3(%arg0: i32, %arg1: i32) -> (i32, i32) {
    %c0_i32 = arith.constant 0 : i32
    %c0_i32_0 = arith.constant 0 : i32
    %c0_i32_1 = arith.constant 0 : i32
    return %c0_i32, %c0_i32_0 : i32, i32
  }
  func.func @transform_4(%arg0: i32, %arg1: i32) -> (i32, i32) {
    %c0_i32 = arith.constant 0 : i32
    %c0_i32_0 = arith.constant 0 : i32
    %c0_i32_1 = arith.constant 0 : i32
    return %c0_i32, %c0_i32_0 : i32, i32
  }
  func.func @transform_5(%arg0: i32, %arg1: i32) -> (i32, i32) {
    %c0_i32 = arith.constant 0 : i32
    return %arg0, %arg1 : i32, i32
  }
}

module attributes {stable_mosaic.version = 11 : i64} {
  func.func @_matmul_fused_kernel(%arg0: i32, %arg1: i32, %arg2: memref<128x2048xf32, #tpu.memory_space<vmem>>, %arg3: memref<2048x128xbf16, #tpu.memory_space<vmem>>, %arg4: memref<1x128xf32, #tpu.memory_space<vmem>>, %arg5: memref<128x128xf32, #tpu.memory_space<vmem>>, %arg6: memref<128x128xf32, #tpu.memory_space<vmem>>, %arg7: memref<128x2048xbf16, #tpu.memory_space<vmem>>) attributes {dimension_semantics = [#tpu.dimension_semantics<parallel>, #tpu.dimension_semantics<arbitrary>], iteration_bounds = array<i64: 2, 1>, scalar_prefetch = 0 : i64, scratch_operands = 1 : i64, tpu.core_type = #tpu.core_type<tc>, window_params = [{transform_indices = @transform_0, window_bounds = array<i64: 128, 2048>}, {transform_indices = @transform_1, window_bounds = array<i64: 2048, 128>}, {transform_indices = @transform_2, window_bounds = array<i64: 1, 128>}, {transform_indices = @transform_3, window_bounds = array<i64: 128, 128>}, {transform_indices = @transform_4, window_bounds = array<i64: 128, 128>}]} {
    %c0_i32 = arith.constant 0 : i32
    %0 = arith.cmpi eq, %arg1, %c0_i32 : i32
    %1 = arith.extui %0 : i1 to i32
    %c0_i32_0 = arith.constant 0 : i32
    %2 = arith.cmpi ne, %1, %c0_i32_0 : i32
    scf.if %2 {
      %c0_10 = arith.constant 0 : index
      %c0_11 = arith.constant 0 : index
      %12 = vector.load %arg2[%c0_10, %c0_11] : memref<128x2048xf32, #tpu.memory_space<vmem>>, vector<128x2048xf32>
      %13 = arith.truncf %12 : vector<128x2048xf32> to vector<128x2048xbf16>
      %c0_12 = arith.constant 0 : index
      %c0_13 = arith.constant 0 : index
      %14 = vector.load %arg7[%c0_12, %c0_13] : memref<128x2048xbf16, #tpu.memory_space<vmem>>, vector<128x2048xbf16>
      tpu.vector_store %arg7[%c0_12, %c0_13], %13 {strides = array<i32>} : memref<128x2048xbf16, #tpu.memory_space<vmem>>, vector<128x2048xbf16>,
    } else {
    }
    %c0 = arith.constant 0 : index
    %c0_1 = arith.constant 0 : index
    %3 = vector.load %arg7[%c0, %c0_1] : memref<128x2048xbf16, #tpu.memory_space<vmem>>, vector<128x2048xbf16>
    %c0_2 = arith.constant 0 : index
    %c0_3 = arith.constant 0 : index
    %4 = vector.load %arg3[%c0_2, %c0_3] : memref<2048x128xbf16, #tpu.memory_space<vmem>>, vector<2048x128xbf16>
    %cst = arith.constant dense<0.000000e+00> : vector<128x128xf32>
    %5 = tpu.matmul %3, %4, %cst {dimension_numbers = #tpu.dot_dimension_numbers<[1], [0], [0], [1], [0, 0, 1, 1], [], []>} : vector<128x2048xbf16>, vector<2048x128xbf16>, vector<128x128xf32> -> vector<128x128xf32>
    %c0_4 = arith.constant 0 : index
    %c0_5 = arith.constant 0 : index
    %6 = vector.load %arg4[%c0_4, %c0_5] : memref<1x128xf32, #tpu.memory_space<vmem>>, vector<1x128xf32>
    %7 = vector.broadcast %6 : vector<1x128xf32> to vector<128x128xf32>
    %8 = arith.addf %5, %7 : vector<128x128xf32>
    %c0_6 = arith.constant 0 : index
    %c0_7 = arith.constant 0 : index
    %9 = vector.load %arg5[%c0_6, %c0_7] : memref<128x128xf32, #tpu.memory_space<vmem>>, vector<128x128xf32>
    %10 = arith.addf %8, %9 : vector<128x128xf32>
    %c0_8 = arith.constant 0 : index
    %c0_9 = arith.constant 0 : index
    %11 = vector.load %arg6[%c0_8, %c0_9] : memref<128x128xf32, #tpu.memory_space<vmem>>, vector<128x128xf32>
    tpu.vector_store %arg6[%c0_8, %c0_9], %10 {strides = array<i32>} : memref<128x128xf32, #tpu.memory_space<vmem>>, vector<128x128xf32>,
    return
  }
  func.func @transform_0(%arg0: i32, %arg1: i32) -> (i32, i32) {
    %c0_i32 = arith.constant 0 : i32
    %c0_i32_0 = arith.constant 0 : i32
    return %arg0, %c0_i32 : i32, i32
  }
  func.func @transform_1(%arg0: i32, %arg1: i32) -> (i32, i32) {
    %c0_i32 = arith.constant 0 : i32
    %c0_i32_0 = arith.constant 0 : i32
    return %c0_i32, %arg1 : i32, i32
  }
  func.func @transform_2(%arg0: i32, %arg1: i32) -> (i32, i32) {
    %c0_i32 = arith.constant 0 : i32
    %c0_i32_0 = arith.constant 0 : i32
    return %c0_i32, %arg1 : i32, i32
  }
  func.func @transform_3(%arg0: i32, %arg1: i32) -> (i32, i32) {
    %c0_i32 = arith.constant 0 : i32
    return %arg0, %arg1 : i32, i32
  }
  func.func @transform_4(%arg0: i32, %arg1: i32) -> (i32, i32) {
    %c0_i32 = arith.constant 0 : i32
    return %arg0, %arg1 : i32, i32
  }
}

</mosaic_0001>

<llo_original>
// kernel: gpt2_transformer_block.5
$region0: #{gpt2_transformer_block.5}
  #allocation0 [shape = 'u32[]', space=smem, size = 0x4, offset = 0x4, fixed_abs, tag = 'smem constant byte address 0x4 - core index']
  #allocation1 [shape = 'u32[144,128]{1,0:T(1,128)}', space=vmem, size = 0x12000, scoped, tag = 'internal scratch']
  #allocation2 [shape = 'bf16[128,128]{1,0:T(16,128)(2,1)}', space=vmem, size = 0x8000, scoped, tag = 'scratch operand']
  %s0 = inlined_call_operand.hbm [shape: f32[256,128], index: 0, kind: input, shape index: {}]
  %s1 = inlined_call_operand.hbm [shape: bf16[128,384], index: 1, kind: input, shape index: {}]
  %s2 = inlined_call_operand.hbm [shape: f32[1,384], index: 2, kind: input, shape index: {}]
  %s3 = inlined_call_operand.hbm [shape: f32[1,128], index: 3, kind: input, shape index: {}]
  %s4 = inlined_call_operand.hbm [shape: f32[1,128], index: 4, kind: input, shape index: {}]
  %s5 = inlined_call_operand.hbm [shape: f32[3,256,128], index: 5, kind: output, shape index: {}]
  %s6 = sld [smem:[#allocation0]]
  $region77: #{gpt2_transformer_block.5} parent=0
    _
  %s8 = ssub.s32 1, %s6
  %s9 = scalar_select 0, %s8, %s6
  $region1: #{gpt2_transformer_block.5} parent=0
    #allocation3 [shape = 'u8[131072]{0}', space=vmem, size = 0x20000, scoped, tag = 'input window, operand 0']
    #allocation4 [shape = 's32[2]{0}', space=sflag, size = 0x8, scoped, tag = 'scoped memory for gpt2_transformer_block.5']
    #allocation5 [shape = 's32[2]{0}', space=sflag, size = 0x8, scoped, tag = 'scoped memory for gpt2_transformer_block.5']
    #allocation6 [shape = 'u8[65536]{0}', space=vmem, size = 0x10000, scoped, tag = 'input window, operand 1']
    #allocation7 [shape = 's32[2]{0}', space=sflag, size = 0x8, scoped, tag = 'scoped memory for gpt2_transformer_block.5']
    #allocation8 [shape = 'u8[1024]{0}', space=vmem, size = 0x400, scoped, tag = 'input window, operand 2']
    #allocation9 [shape = 'u8[512]{0}', space=vmem, size = 0x400, scoped, tag = 'input window, operand 3, single buffered']
    #allocation10 [shape = 's32[1]{0}', space=sflag, size = 0x4, scoped, tag = 'scoped memory for gpt2_transformer_block.5']
    #allocation11 [shape = 'u8[512]{0}', space=vmem, size = 0x400, scoped, tag = 'input window, operand 4, single buffered']
    #allocation12 [shape = 'u8[131072]{0}', space=vmem, size = 0x20000, scoped, tag = 'output window, operand 0']
    %10 = vsyncpa [#allocation4], 0
    %s11 = scalar_lea.sflag [#allocation4], 1
    %12 = vsyncpa %s11, 0
    %13 = vsyncpa [#allocation7], 0
    %s14 = scalar_lea.sflag [#allocation7], 1
    %15 = vsyncpa %s14, 0
    %16 = vsyncpa [#allocation10], 0
    %17 = vsyncpa [#allocation5], 0
    %s18 = scalar_lea.sflag [#allocation5], 1
    %19 = vsyncpa %s18, 0
    loop: start=0, step=1, limit=8
    $region2: #{gpt2_transformer_block.5} parent=1 // loop_pre_header
      _
    $region3: #{gpt2_transformer_block.5} parent=1 // loop_header
      %s21 = sphi 0, %s25
      %p22 = scmp.ge.s32.totalorder %s21, 8
      %s28 = sphi 0, %s40
      %s29 = sphi 0, %s36
      %s30 = sphi 0, %s28
      %s31 = sphi 0, %s29
      %s32 = sphi 0, %s30
      %s33 = sphi 0, %s31
      %s43 = sphi 0, %s45
      %s46 = sphi 0, %s43
      %s47 = sphi 0, %s46
      %s63 = sphi 0, %s47
      %s69 = sphi 0, %s71
      %s72 = sphi 0, %s69
      %s73 = sphi 0, %s72
      %s89 = sphi 0, %s73
      %s95 = sphi 0, %s97
      %s98 = sphi 0, %s95
      %s99 = sphi 0, %s98
      %s115 = sphi 0, %s99
      %s119 = sphi 0, %s119
      %s121 = sphi 0, %s119
      %s122 = sphi 0, %s121
      %s136 = sphi 0, %s122
      %s140 = sphi 0, %s140
      %s142 = sphi 0, %s140
      %s143 = sphi 0, %s142
      %s157 = sphi 0, %s143
      %s165 = sphi 0, %s167
      %s168 = sphi 0, %s165
      %s169 = sphi 0, %s168
      %s185 = sphi 0, %s169
    $region4: #{gpt2_transformer_block.5} parent=1 // loop_header_branch
      %24 = sbr.rel (%p22) target = $region8
    $region5: #{gpt2_transformer_block.5} parent=1 // loop_body
      %s26 = ssub.s32 %s21, 1
      %s27 = ssub.s32 %s21, 2
      %s34 = sadd.s32 1, %s29
      %p35 = scmp.ge.s32.totalorder %s34, 3
      %s36 = scalar_select %p35, 0, %s34
      %s37 = sadd.s32 1, %s28
      %s38 = scalar_select %p35, %s37, %s28
      %p39 = scmp.ge.s32.totalorder %s38, 2
      %s40 = scalar_select %p39, 0, %s38
      %s41 = ssub.s32 %s28, %s40
      %p42 = scmp.eq.s32.totalorder %s41, 0
      %s44 = sadd.s32 %s43, 1
      %s45 = scalar_select %p42, %s43, %s44
      %p48 = pneg %p42
      %p49 = scmp.eq.s32.totalorder %s21, 5
      %p50 = por %p48, %p49
      %p51 = scmp.ne.s32.totalorder %s43, %s46
      %p52 = scmp.eq.s32.totalorder %s21, 0
      %p53 = por %p51, %p52
      %p54 = scmp.ne.s32.totalorder %s43, %s46
      %p55 = scmp.eq.s32.totalorder %s26, 5
      %p56 = por %p54, %p55
      %p57 = scmp.ne.s32.totalorder %s46, %s47
      %p58 = scmp.eq.s32.totalorder %s26, 0
      %p59 = por %p57, %p58
      %p60 = scmp.ne.s32.totalorder %s46, %s47
      %p61 = scmp.eq.s32.totalorder %s27, 5
      %p62 = por %p60, %p61
      %p64 = scmp.ne.s32.totalorder %s47, %s63
      %p65 = scmp.eq.s32.totalorder %s27, 0
      %p66 = por %p64, %p65
      %s67 = ssub.s32 %s29, %s36
      %p68 = scmp.eq.s32.totalorder %s67, 0
      %s70 = sadd.s32 %s69, 1
      %s71 = scalar_select %p68, %s69, %s70
      %p74 = pneg %p68
      %p75 = scmp.eq.s32.totalorder %s21, 5
      %p76 = por %p74, %p75
      %p77 = scmp.ne.s32.totalorder %s69, %s72
      %p78 = scmp.eq.s32.totalorder %s21, 0
      %p79 = por %p77, %p78
      %p80 = scmp.ne.s32.totalorder %s69, %s72
      %p81 = scmp.eq.s32.totalorder %s26, 5
      %p82 = por %p80, %p81
      %p83 = scmp.ne.s32.totalorder %s72, %s73
      %p84 = scmp.eq.s32.totalorder %s26, 0
      %p85 = por %p83, %p84
      %p86 = scmp.ne.s32.totalorder %s72, %s73
      %p87 = scmp.eq.s32.totalorder %s27, 5
      %p88 = por %p86, %p87
      %p90 = scmp.ne.s32.totalorder %s73, %s89
      %p91 = scmp.eq.s32.totalorder %s27, 0
      %p92 = por %p90, %p91
      %s93 = ssub.s32 %s29, %s36
      %p94 = scmp.eq.s32.totalorder %s93, 0
      %s96 = sadd.s32 %s95, 1
      %s97 = scalar_select %p94, %s95, %s96
      %p100 = pneg %p94
      %p101 = scmp.eq.s32.totalorder %s21, 5
      %p102 = por %p100, %p101
      %p103 = scmp.ne.s32.totalorder %s95, %s98
      %p104 = scmp.eq.s32.totalorder %s21, 0
      %p105 = por %p103, %p104
      %p106 = scmp.ne.s32.totalorder %s95, %s98
      %p107 = scmp.eq.s32.totalorder %s26, 5
      %p108 = por %p106, %p107
      %p109 = scmp.ne.s32.totalorder %s98, %s99
      %p110 = scmp.eq.s32.totalorder %s26, 0
      %p111 = por %p109, %p110
      %p112 = scmp.ne.s32.totalorder %s98, %s99
      %p113 = scmp.eq.s32.totalorder %s27, 5
      %p114 = por %p112, %p113
      %p116 = scmp.ne.s32.totalorder %s99, %s115
      %p117 = scmp.eq.s32.totalorder %s27, 0
      %p118 = por %p116, %p117
      %s120 = sadd.s32 %s119, 1
      %p123 = scmp.eq.s32.totalorder %s21, 5
      %p124 = scmp.ne.s32.totalorder %s119, %s121
      %p125 = scmp.eq.s32.totalorder %s21, 0
      %p126 = por %p124, %p125
      %p127 = scmp.ne.s32.totalorder %s119, %s121
      %p128 = scmp.eq.s32.totalorder %s26, 5
      %p129 = por %p127, %p128
      %p130 = scmp.ne.s32.totalorder %s121, %s122
      %p131 = scmp.eq.s32.totalorder %s26, 0
      %p132 = por %p130, %p131
      %p133 = scmp.ne.s32.totalorder %s121, %s122
      %p134 = scmp.eq.s32.totalorder %s27, 5
      %p135 = por %p133, %p134
      %p137 = scmp.ne.s32.totalorder %s122, %s136
      %p138 = scmp.eq.s32.totalorder %s27, 0
      %p139 = por %p137, %p138
      %s141 = sadd.s32 %s140, 1
      %p144 = scmp.eq.s32.totalorder %s21, 5
      %p145 = scmp.ne.s32.totalorder %s140, %s142
      %p146 = scmp.eq.s32.totalorder %s21, 0
      %p147 = por %p145, %p146
      %p148 = scmp.ne.s32.totalorder %s140, %s142
      %p149 = scmp.eq.s32.totalorder %s26, 5
      %p150 = por %p148, %p149
      %p151 = scmp.ne.s32.totalorder %s142, %s143
      %p152 = scmp.eq.s32.totalorder %s26, 0
      %p153 = por %p151, %p152
      %p154 = scmp.ne.s32.totalorder %s142, %s143
      %p155 = scmp.eq.s32.totalorder %s27, 5
      %p156 = por %p154, %p155
      %p158 = scmp.ne.s32.totalorder %s143, %s157
      %p159 = scmp.eq.s32.totalorder %s27, 0
      %p160 = por %p158, %p159
      %s161 = ssub.s32 %s29, %s36
      %s162 = ssub.s32 %s28, %s40
      %s163 = sor.u32 %s161, %s162
      %p164 = scmp.eq.s32.totalorder %s163, 0
      %s166 = sadd.s32 %s165, 1
      %s167 = scalar_select %p164, %s165, %s166
      %p170 = pneg %p164
      %p171 = scmp.eq.s32.totalorder %s21, 5
      %p172 = por %p170, %p171
      %p173 = scmp.ne.s32.totalorder %s165, %s168
      %p174 = scmp.eq.s32.totalorder %s21, 0
      %p175 = por %p173, %p174
      %p176 = scmp.ne.s32.totalorder %s165, %s168
      %p177 = scmp.eq.s32.totalorder %s26, 5
      %p178 = por %p176, %p177
      %p179 = scmp.ne.s32.totalorder %s168, %s169
      %p180 = scmp.eq.s32.totalorder %s26, 0
      %p181 = por %p179, %p180
      %p182 = scmp.ne.s32.totalorder %s168, %s169
      %p183 = scmp.eq.s32.totalorder %s27, 5
      %p184 = por %p182, %p183
      %p186 = scmp.ne.s32.totalorder %s169, %s185
      %p187 = scmp.eq.s32.totalorder %s27, 0
      %p188 = por %p186, %p187
      %p189 = scmp.le.s32.totalorder 1, %s21
      %p190 = scmp.lt.s32.totalorder %s21, 7
      %p191 = pnand %p189, %p190
      %p192 = pneg %p191
      // Predicated region
      $region9: #{gpt2_transformer_block.5} parent=5 // pred_check
        _
      $region10: #{gpt2_transformer_block.5} parent=5 // pred_check_branch
        %194 = sbr.rel (%p191) target = $region12
      $region11: #{gpt2_transformer_block.5} parent=5 // pred_region
        %s195 = ssub.s32 %s21, 1
        // Predicated region
        $region13: #{gpt2_transformer_block.5} parent=11 // pred_check
          %p196 = pneg %p132
        $region14: #{gpt2_transformer_block.5} parent=11 // pred_check_branch
          %198 = sbr.rel (%p196) target = $region16
        $region15: #{gpt2_transformer_block.5} parent=11 // pred_region
          %s200 = ssub.s32 16, 16
          %201 = vsyncadd [#allocation10], %s200
          %s203 = sshll.u32 [#allocation9], 4
          %s204 = int_to_ptr.vmem [resolvable:$true] %s203
          %206 = dma.hbm_to_vmem [thread:$0]  %s3, 16, %s204, [#allocation10]
        $region16: #{gpt2_transformer_block.5} parent=11 // pred_fallthru
          _
        // Predicated region
        $region17: #{gpt2_transformer_block.5} parent=11 // pred_check
          %p207 = pneg %p153
        $region18: #{gpt2_transformer_block.5} parent=11 // pred_check_branch
          %209 = sbr.rel (%p207) target = $region20
        $region19: #{gpt2_transformer_block.5} parent=11 // pred_region
          %s211 = ssub.s32 16, 16
          %212 = vsyncadd [#allocation10], %s211
          %s214 = sshll.u32 [#allocation11], 4
          %s215 = int_to_ptr.vmem [resolvable:$true] %s214
          %217 = dma.hbm_to_vmem [thread:$0]  %s4, 16, %s215, [#allocation10]
        $region20: #{gpt2_transformer_block.5} parent=11 // pred_fallthru
          _
      $region12: #{gpt2_transformer_block.5} parent=5 // pred_fallthru
        _
      %p218 = scmp.lt.s32.totalorder %s21, 6
      // Predicated region
      $region21: #{gpt2_transformer_block.5} parent=5 // pred_check
        %p219 = pneg %p218
      $region22: #{gpt2_transformer_block.5} parent=5 // pred_check_branch
        %221 = sbr.rel (%p219) target = $region24
      $region23: #{gpt2_transformer_block.5} parent=5 // pred_region
        // Predicated region
        $region25: #{gpt2_transformer_block.5} parent=23 // pred_check
          %p222 = pneg %p53
        $region26: #{gpt2_transformer_block.5} parent=23 // pred_check_branch
          %224 = sbr.rel (%p222) target = $region28
        $region27: #{gpt2_transformer_block.5} parent=23 // pred_region
          %s225 = sand.u32 %s43, 1
          %s226 = scalar_lea.sflag [#allocation4], %s225
          %s227 = sand.u32 %s43, 1
          %s228 = smul.addr %s227, 128
          %s229 = scalar_lea.vmem [#allocation3], %s228
          %s230 = smul.u32 16, %s28
          %s232 = ssub.s32 2048, 2048
          %233 = vsyncadd %s226, %s232
          %s234 = smul.addr %s230, 128
          %s235 = scalar_lea.hbm %s0, %s234
          %s236 = sshll.u32 %s229, 4
          %s237 = int_to_ptr.vmem [resolvable:$true] %s236
          %242 = dma.hbm_to_vmem [thread:$0]  %s235, 2048, %s237, %s226, 128, 128, 8
        $region28: #{gpt2_transformer_block.5} parent=23 // pred_fallthru
          _
        // Predicated region
        $region29: #{gpt2_transformer_block.5} parent=23 // pred_check
          %p243 = pneg %p79
        $region30: #{gpt2_transformer_block.5} parent=23 // pred_check_branch
          %245 = sbr.rel (%p243) target = $region32
        $region31: #{gpt2_transformer_block.5} parent=23 // pred_region
          %s246 = sand.u32 %s21, 1
          %s247 = scalar_lea.sflag [#allocation7], %s246
          %s248 = sand.u32 %s69, 1
          %s249 = smul.addr %s248, 64
          %s250 = scalar_lea.vmem [#allocation6], %s249
          %s252 = ssub.s32 1024, 1024
          %253 = vsyncadd %s247, %s252
          %s254 = smul.addr %s29, 64
          %s255 = scalar_lea.hbm %s1, %s254
          %s256 = sshll.u32 %s250, 4
          %s257 = int_to_ptr.vmem [resolvable:$true] %s256
          %262 = dma.hbm_to_vmem [thread:$0]  %s255, 1024, %s257, %s247, 192, 64, 4
        $region32: #{gpt2_transformer_block.5} parent=23 // pred_fallthru
          _
        // Predicated region
        $region33: #{gpt2_transformer_block.5} parent=23 // pred_check
          %p263 = pneg %p105
        $region34: #{gpt2_transformer_block.5} parent=23 // pred_check_branch
          %265 = sbr.rel (%p263) target = $region36
        $region35: #{gpt2_transformer_block.5} parent=23 // pred_region
          %s266 = sand.u32 %s21, 1
          %s267 = scalar_lea.sflag [#allocation7], %s266
          %s268 = sand.u32 %s95, 1
          %s269 = scalar_lea.vmem [#allocation8], %s268
          %s271 = ssub.s32 16, 16
          %272 = vsyncadd %s267, %s271
          %s273 = smul.addr %s29, 16
          %s274 = scalar_lea.hbm %s2, %s273
          %s276 = sshll.u32 %s269, 4
          %s277 = int_to_ptr.vmem [resolvable:$true] %s276
          %279 = dma.hbm_to_vmem [thread:$0]  %s274, 16, %s277, %s267
        $region36: #{gpt2_transformer_block.5} parent=23 // pred_fallthru
          _
      $region24: #{gpt2_transformer_block.5} parent=5 // pred_fallthru
        _
      %p280 = scmp.le.s32.totalorder 1, %s21
      %p281 = scmp.lt.s32.totalorder %s21, 7
      %p282 = pnand %p280, %p281
      %p283 = pneg %p282
      // Predicated region
      $region37: #{gpt2_transformer_block.5} parent=5 // pred_check
        _
      $region38: #{gpt2_transformer_block.5} parent=5 // pred_check_branch
        %285 = sbr.rel (%p282) target = $region40
      $region39: #{gpt2_transformer_block.5} parent=5 // pred_region
        %s286 = ssub.s32 %s21, 1
        %s287 = sand.u32 %s46, 1
        %s288 = scalar_lea.sflag [#allocation4], %s287
        %s289 = sand.u32 %s46, 1
        %s290 = smul.addr %s289, 128
        %s291 = scalar_lea.vmem [#allocation3], %s290
        // Predicated region
        $region41: #{gpt2_transformer_block.5} parent=39 // pred_check
          %p292 = pneg %p59
        $region42: #{gpt2_transformer_block.5} parent=39 // pred_check_branch
          %294 = sbr.rel (%p292) target = $region44
        $region43: #{gpt2_transformer_block.5} parent=39 // pred_region
          %295 = dma.done %s288, 2048
        $region44: #{gpt2_transformer_block.5} parent=39 // pred_fallthru
          _
        %s296 = sand.u32 %s26, 1
        %s297 = scalar_lea.sflag [#allocation7], %s296
        %s298 = sand.u32 %s72, 1
        %s299 = smul.addr %s298, 64
        %s300 = scalar_lea.vmem [#allocation6], %s299
        // Predicated region
        $region45: #{gpt2_transformer_block.5} parent=39 // pred_check
          %p301 = pneg %p85
        $region46: #{gpt2_transformer_block.5} parent=39 // pred_check_branch
          %303 = sbr.rel (%p301) target = $region48
        $region47: #{gpt2_transformer_block.5} parent=39 // pred_region
          %304 = dma.done %s297, 1024
        $region48: #{gpt2_transformer_block.5} parent=39 // pred_fallthru
          _
        %s305 = sand.u32 %s26, 1
        %s306 = scalar_lea.sflag [#allocation7], %s305
        %s307 = sand.u32 %s98, 1
        %s308 = scalar_lea.vmem [#allocation8], %s307
        // Predicated region
        $region49: #{gpt2_transformer_block.5} parent=39 // pred_check
          %p309 = pneg %p111
        $region50: #{gpt2_transformer_block.5} parent=39 // pred_check_branch
          %311 = sbr.rel (%p309) target = $region52
        $region51: #{gpt2_transformer_block.5} parent=39 // pred_region
          %312 = dma.done %s306, 16
        $region52: #{gpt2_transformer_block.5} parent=39 // pred_fallthru
          _
        // Predicated region
        $region53: #{gpt2_transformer_block.5} parent=39 // pred_check
          %p313 = pneg %p132
        $region54: #{gpt2_transformer_block.5} parent=39 // pred_check_branch
          %315 = sbr.rel (%p313) target = $region56
        $region55: #{gpt2_transformer_block.5} parent=39 // pred_region
          %316 = dma.done [#allocation10], 16
        $region56: #{gpt2_transformer_block.5} parent=39 // pred_fallthru
          _
        // Predicated region
        $region57: #{gpt2_transformer_block.5} parent=39 // pred_check
          %p317 = pneg %p153
        $region58: #{gpt2_transformer_block.5} parent=39 // pred_check_branch
          %319 = sbr.rel (%p317) target = $region60
        $region59: #{gpt2_transformer_block.5} parent=39 // pred_region
          %320 = dma.done [#allocation10], 16
        $region60: #{gpt2_transformer_block.5} parent=39 // pred_fallthru
          _
        %s321 = sand.u32 %s46, 1
        %s322 = scalar_lea.sflag [#allocation4], %s321
        %s323 = sand.u32 %s46, 1
        %s324 = smul.addr %s323, 128
        %s325 = scalar_lea.vmem [#allocation3], %s324
        %p326 = pneg %p59
        %p327 = pneg %p56
        %s328 = sand.u32 %s26, 1
        %s329 = scalar_lea.sflag [#allocation7], %s328
        %s330 = sand.u32 %s72, 1
        %s331 = smul.addr %s330, 64
        %s332 = scalar_lea.vmem [#allocation6], %s331
        %p333 = pneg %p85
        %p334 = pneg %p82
        %s335 = sand.u32 %s26, 1
        %s336 = scalar_lea.sflag [#allocation7], %s335
        %s337 = sand.u32 %s98, 1
        %s338 = scalar_lea.vmem [#allocation8], %s337
        %p339 = pneg %p111
        %p340 = pneg %p108
        %p341 = pneg %p132
        %p342 = pneg %p129
        %p343 = pneg %p153
        %p344 = pneg %p150
        %p345 = pneg %p181
        %p346 = pneg %p178
        %s347 = sand.u32 %s168, 1
        %s348 = scalar_lea.sflag [#allocation5], %s347
        %s349 = sand.u32 %s168, 1
        %s350 = smul.addr %s349, 128
        %s351 = scalar_lea.vmem [#allocation12], %s350
        %s352 = smul.u32 16, %s30
        %s353 = smul.u32 16, %s30
        %p355 = scmp.eq.s32.totalorder %s31, 0
        // Predicated region
        $region61: #{gpt2_transformer_block.5} parent=39 // pred_check
          %p356 = pneg %p355
        $region62: #{gpt2_transformer_block.5} parent=39 // pred_check_branch
          %358 = sbr.rel (%p356) target = $region64
        $region63: #{gpt2_transformer_block.5} parent=39 // pred_region
          %v359 = vld [vmem:[%s291] sm:$0xff]
          %v360 = vld [vmem:[%s291 + $0x8] sm:$0xff]
          %v361 = vld [vmem:[%s291 + $0x10] sm:$0xff]
          %v362 = vld [vmem:[%s291 + $0x18] sm:$0xff]
          %v363 = vld [vmem:[%s291 + $0x20] sm:$0xff]
          %v364 = vld [vmem:[%s291 + $0x28] sm:$0xff]
          %v365 = vld [vmem:[%s291 + $0x30] sm:$0xff]
          %v366 = vld [vmem:[%s291 + $0x38] sm:$0xff]
          %v367 = vld [vmem:[%s291 + $0x40] sm:$0xff]
          %v368 = vld [vmem:[%s291 + $0x48] sm:$0xff]
          %v369 = vld [vmem:[%s291 + $0x50] sm:$0xff]
          %v370 = vld [vmem:[%s291 + $0x58] sm:$0xff]
          %v371 = vld [vmem:[%s291 + $0x60] sm:$0xff]
          %v372 = vld [vmem:[%s291 + $0x68] sm:$0xff]
          %v373 = vld [vmem:[%s291 + $0x70] sm:$0xff]
          %v374 = vld [vmem:[%s291 + $0x78] sm:$0xff]
          %375 = vadd.xlane.f32.xlu0 %v359
          %v376 = vpop.xlane.xlu0 %375
          %377 = vadd.xlane.f32.xlu0 %v360
          %v378 = vpop.xlane.xlu0 %377
          %379 = vadd.xlane.f32.xlu0 %v361
          %v380 = vpop.xlane.xlu0 %379
          %381 = vadd.xlane.f32.xlu0 %v362
          %v382 = vpop.xlane.xlu0 %381
          %383 = vadd.xlane.f32.xlu0 %v363
          %v384 = vpop.xlane.xlu0 %383
          %385 = vadd.xlane.f32.xlu0 %v364
          %v386 = vpop.xlane.xlu0 %385
          %387 = vadd.xlane.f32.xlu0 %v365
          %v388 = vpop.xlane.xlu0 %387
          %389 = vadd.xlane.f32.xlu0 %v366
          %v390 = vpop.xlane.xlu0 %389
          %391 = vadd.xlane.f32.xlu0 %v367
          %v392 = vpop.xlane.xlu0 %391
          %393 = vadd.xlane.f32.xlu0 %v368
          %v394 = vpop.xlane.xlu0 %393
          %395 = vadd.xlane.f32.xlu0 %v369
          %v396 = vpop.xlane.xlu0 %395
          %397 = vadd.xlane.f32.xlu0 %v370
          %v398 = vpop.xlane.xlu0 %397
          %399 = vadd.xlane.f32.xlu0 %v371
          %v400 = vpop.xlane.xlu0 %399
          %401 = vadd.xlane.f32.xlu0 %v372
          %v402 = vpop.xlane.xlu0 %401
          %403 = vadd.xlane.f32.xlu0 %v373
          %v404 = vpop.xlane.xlu0 %403
          %405 = vadd.xlane.f32.xlu0 %v374
          %v406 = vpop.xlane.xlu0 %405
          %v407 = vrcp.pop 128.0
          %v408 = vmul.f32 %v376, %v407
          %v409 = vmul.f32 %v378, %v407
          %v410 = vmul.f32 %v380, %v407
          %v411 = vmul.f32 %v382, %v407
          %v412 = vmul.f32 %v384, %v407
          %v413 = vmul.f32 %v386, %v407
          %v414 = vmul.f32 %v388, %v407
          %v415 = vmul.f32 %v390, %v407
          %v416 = vmul.f32 %v392, %v407
          %v417 = vmul.f32 %v394, %v407
          %v418 = vmul.f32 %v396, %v407
          %v419 = vmul.f32 %v398, %v407
          %v420 = vmul.f32 %v400, %v407
          %v421 = vmul.f32 %v402, %v407
          %v422 = vmul.f32 %v404, %v407
          %v423 = vmul.f32 %v406, %v407
          %v424 = vsub.f32 %v359, %v408
          %v425 = vsub.f32 %v360, %v409
          %v426 = vsub.f32 %v361, %v410
          %v427 = vsub.f32 %v362, %v411
          %v428 = vsub.f32 %v363, %v412
          %v429 = vsub.f32 %v364, %v413
          %v430 = vsub.f32 %v365, %v414
          %v431 = vsub.f32 %v366, %v415
          %v432 = vsub.f32 %v367, %v416
          %v433 = vsub.f32 %v368, %v417
          %v434 = vsub.f32 %v369, %v418
          %v435 = vsub.f32 %v370, %v419
          %v436 = vsub.f32 %v371, %v420
          %v437 = vsub.f32 %v372, %v421
          %v438 = vsub.f32 %v373, %v422
          %v439 = vsub.f32 %v374, %v423
          %v440 = vmul.f32 %v424, %v424
          %v441 = vmul.f32 %v425, %v425
          %v442 = vmul.f32 %v426, %v426
          %v443 = vmul.f32 %v427, %v427
          %v444 = vmul.f32 %v428, %v428
          %v445 = vmul.f32 %v429, %v429
          %v446 = vmul.f32 %v430, %v430
          %v447 = vmul.f32 %v431, %v431
          %v448 = vmul.f32 %v432, %v432
          %v449 = vmul.f32 %v433, %v433
          %v450 = vmul.f32 %v434, %v434
          %v451 = vmul.f32 %v435, %v435
          %v452 = vmul.f32 %v436, %v436
          %v453 = vmul.f32 %v437, %v437
          %v454 = vmul.f32 %v438, %v438
          %v455 = vmul.f32 %v439, %v439
          %456 = vadd.xlane.f32.xlu0 %v440
          %v457 = vpop.xlane.xlu0 %456
          %458 = vadd.xlane.f32.xlu0 %v441
          %v459 = vpop.xlane.xlu0 %458
          %460 = vadd.xlane.f32.xlu0 %v442
          %v461 = vpop.xlane.xlu0 %460
          %462 = vadd.xlane.f32.xlu0 %v443
          %v463 = vpop.xlane.xlu0 %462
          %464 = vadd.xlane.f32.xlu0 %v444
          %v465 = vpop.xlane.xlu0 %464
          %466 = vadd.xlane.f32.xlu0 %v445
          %v467 = vpop.xlane.xlu0 %466
          %468 = vadd.xlane.f32.xlu0 %v446
          %v469 = vpop.xlane.xlu0 %468
          %470 = vadd.xlane.f32.xlu0 %v447
          %v471 = vpop.xlane.xlu0 %470
          %472 = vadd.xlane.f32.xlu0 %v448
          %v473 = vpop.xlane.xlu0 %472
          %474 = vadd.xlane.f32.xlu0 %v449
          %v475 = vpop.xlane.xlu0 %474
          %476 = vadd.xlane.f32.xlu0 %v450
          %v477 = vpop.xlane.xlu0 %476
          %478 = vadd.xlane.f32.xlu0 %v451
          %v479 = vpop.xlane.xlu0 %478
          %480 = vadd.xlane.f32.xlu0 %v452
          %v481 = vpop.xlane.xlu0 %480
          %482 = vadd.xlane.f32.xlu0 %v453
          %v483 = vpop.xlane.xlu0 %482
          %484 = vadd.xlane.f32.xlu0 %v454
          %v485 = vpop.xlane.xlu0 %484
          %486 = vadd.xlane.f32.xlu0 %v455
          %v487 = vpop.xlane.xlu0 %486
          %v488 = vmul.f32 %v457, 0.007874016
          %v489 = vmul.f32 %v459, 0.007874016
          %v490 = vmul.f32 %v461, 0.007874016
          %v491 = vmul.f32 %v463, 0.007874016
          %v492 = vmul.f32 %v465, 0.007874016
          %v493 = vmul.f32 %v467, 0.007874016
          %v494 = vmul.f32 %v469, 0.007874016
          %v495 = vmul.f32 %v471, 0.007874016
          %v496 = vmul.f32 %v473, 0.007874016
          %v497 = vmul.f32 %v475, 0.007874016
          %v498 = vmul.f32 %v477, 0.007874016
          %v499 = vmul.f32 %v479, 0.007874016
          %v500 = vmul.f32 %v481, 0.007874016
          %v501 = vmul.f32 %v483, 0.007874016
          %v502 = vmul.f32 %v485, 0.007874016
          %v503 = vmul.f32 %v487, 0.007874016
          %v504 = vrsqrt.pop %v488
          %v505 = vmul.f32 %v488, %v504
          %vm506 = vcmp.eq.f32.partialorder %v488, inf
          %v507 = vsel %vm506, %v488, %v505
          %vm508 = vcmp.eq.f32.partialorder %v488, 0.0
          %v509 = vand.u32 %v488, 2147483648
          %v510 = vsel %vm508, %v509, %v507
          %v511 = vrsqrt.pop %v489
          %v512 = vmul.f32 %v489, %v511
          %vm513 = vcmp.eq.f32.partialorder %v489, inf
          %v514 = vsel %vm513, %v489, %v512
          %vm515 = vcmp.eq.f32.partialorder %v489, 0.0
          %v516 = vand.u32 %v489, 2147483648
          %v517 = vsel %vm515, %v516, %v514
          %v518 = vrsqrt.pop %v490
          %v519 = vmul.f32 %v490, %v518
          %vm520 = vcmp.eq.f32.partialorder %v490, inf
          %v521 = vsel %vm520, %v490, %v519
          %vm522 = vcmp.eq.f32.partialorder %v490, 0.0
          %v523 = vand.u32 %v490, 2147483648
          %v524 = vsel %vm522, %v523, %v521
          %v525 = vrsqrt.pop %v491
          %v526 = vmul.f32 %v491, %v525
          %vm527 = vcmp.eq.f32.partialorder %v491, inf
          %v528 = vsel %vm527, %v491, %v526
          %vm529 = vcmp.eq.f32.partialorder %v491, 0.0
          %v530 = vand.u32 %v491, 2147483648
          %v531 = vsel %vm529, %v530, %v528
          %v532 = vrsqrt.pop %v492
          %v533 = vmul.f32 %v492, %v532
          %vm534 = vcmp.eq.f32.partialorder %v492, inf
          %v535 = vsel %vm534, %v492, %v533
          %vm536 = vcmp.eq.f32.partialorder %v492, 0.0
          %v537 = vand.u32 %v492, 2147483648
          %v538 = vsel %vm536, %v537, %v535
          %v539 = vrsqrt.pop %v493
          %v540 = vmul.f32 %v493, %v539
          %vm541 = vcmp.eq.f32.partialorder %v493, inf
          %v542 = vsel %vm541, %v493, %v540
          %vm543 = vcmp.eq.f32.partialorder %v493, 0.0
          %v544 = vand.u32 %v493, 2147483648
          %v545 = vsel %vm543, %v544, %v542
          %v546 = vrsqrt.pop %v494
          %v547 = vmul.f32 %v494, %v546
          %vm548 = vcmp.eq.f32.partialorder %v494, inf
          %v549 = vsel %vm548, %v494, %v547
          %vm550 = vcmp.eq.f32.partialorder %v494, 0.0
          %v551 = vand.u32 %v494, 2147483648
          %v552 = vsel %vm550, %v551, %v549
          %v553 = vrsqrt.pop %v495
          %v554 = vmul.f32 %v495, %v553
          %vm555 = vcmp.eq.f32.partialorder %v495, inf
          %v556 = vsel %vm555, %v495, %v554
          %vm557 = vcmp.eq.f32.partialorder %v495, 0.0
          %v558 = vand.u32 %v495, 2147483648
          %v559 = vsel %vm557, %v558, %v556
          %v560 = vrsqrt.pop %v496
          %v561 = vmul.f32 %v496, %v560
          %vm562 = vcmp.eq.f32.partialorder %v496, inf
          %v563 = vsel %vm562, %v496, %v561
          %vm564 = vcmp.eq.f32.partialorder %v496, 0.0
          %v565 = vand.u32 %v496, 2147483648
          %v566 = vsel %vm564, %v565, %v563
          %v567 = vrsqrt.pop %v497
          %v568 = vmul.f32 %v497, %v567
          %vm569 = vcmp.eq.f32.partialorder %v497, inf
          %v570 = vsel %vm569, %v497, %v568
          %vm571 = vcmp.eq.f32.partialorder %v497, 0.0
          %v572 = vand.u32 %v497, 2147483648
          %v573 = vsel %vm571, %v572, %v570
          %v574 = vrsqrt.pop %v498
          %v575 = vmul.f32 %v498, %v574
          %vm576 = vcmp.eq.f32.partialorder %v498, inf
          %v577 = vsel %vm576, %v498, %v575
          %vm578 = vcmp.eq.f32.partialorder %v498, 0.0
          %v579 = vand.u32 %v498, 2147483648
          %v580 = vsel %vm578, %v579, %v577
          %v581 = vrsqrt.pop %v499
          %v582 = vmul.f32 %v499, %v581
          %vm583 = vcmp.eq.f32.partialorder %v499, inf
          %v584 = vsel %vm583, %v499, %v582
          %vm585 = vcmp.eq.f32.partialorder %v499, 0.0
          %v586 = vand.u32 %v499, 2147483648
          %v587 = vsel %vm585, %v586, %v584
          %v588 = vrsqrt.pop %v500
          %v589 = vmul.f32 %v500, %v588
          %vm590 = vcmp.eq.f32.partialorder %v500, inf
          %v591 = vsel %vm590, %v500, %v589
          %vm592 = vcmp.eq.f32.partialorder %v500, 0.0
          %v593 = vand.u32 %v500, 2147483648
          %v594 = vsel %vm592, %v593, %v591
          %v595 = vrsqrt.pop %v501
          %v596 = vmul.f32 %v501, %v595
          %vm597 = vcmp.eq.f32.partialorder %v501, inf
          %v598 = vsel %vm597, %v501, %v596
          %vm599 = vcmp.eq.f32.partialorder %v501, 0.0
          %v600 = vand.u32 %v501, 2147483648
          %v601 = vsel %vm599, %v600, %v598
          %v602 = vrsqrt.pop %v502
          %v603 = vmul.f32 %v502, %v602
          %vm604 = vcmp.eq.f32.partialorder %v502, inf
          %v605 = vsel %vm604, %v502, %v603
          %vm606 = vcmp.eq.f32.partialorder %v502, 0.0
          %v607 = vand.u32 %v502, 2147483648
          %v608 = vsel %vm606, %v607, %v605
          %v609 = vrsqrt.pop %v503
          %v610 = vmul.f32 %v503, %v609
          %vm611 = vcmp.eq.f32.partialorder %v503, inf
          %v612 = vsel %vm611, %v503, %v610
          %vm613 = vcmp.eq.f32.partialorder %v503, 0.0
          %v614 = vand.u32 %v503, 2147483648
          %v615 = vsel %vm613, %v614, %v612
          %v616 = vadd.f32 %v510, 1e-06
          %v617 = vadd.f32 %v517, 1e-06
          %v618 = vadd.f32 %v524, 1e-06
          %v619 = vadd.f32 %v531, 1e-06
          %v620 = vadd.f32 %v538, 1e-06
          %v621 = vadd.f32 %v545, 1e-06
          %v622 = vadd.f32 %v552, 1e-06
          %v623 = vadd.f32 %v559, 1e-06
          %v624 = vadd.f32 %v566, 1e-06
          %v625 = vadd.f32 %v573, 1e-06
          %v626 = vadd.f32 %v580, 1e-06
          %v627 = vadd.f32 %v587, 1e-06
          %v628 = vadd.f32 %v594, 1e-06
          %v629 = vadd.f32 %v601, 1e-06
          %v630 = vadd.f32 %v608, 1e-06
          %v631 = vadd.f32 %v615, 1e-06
          %v632 = vrcp.pop %v616
          %v633 = vrcp.pop %v617
          %v634 = vrcp.pop %v618
          %v635 = vrcp.pop %v619
          %v636 = vrcp.pop %v620
          %v637 = vrcp.pop %v621
          %v638 = vrcp.pop %v622
          %v639 = vrcp.pop %v623
          %v640 = vrcp.pop %v624
          %v641 = vrcp.pop %v625
          %v642 = vrcp.pop %v626
          %v643 = vrcp.pop %v627
          %v644 = vrcp.pop %v628
          %v645 = vrcp.pop %v629
          %v646 = vrcp.pop %v630
          %v647 = vrcp.pop %v631
          %v648 = vld [vmem:[#allocation9] sm:$0x1]
          %v649 = vld [vmem:[#allocation11] sm:$0x1]
          %v650 = vmul.f32 %v424, %v632
          %v651 = vmul.f32 %v425, %v633
          %v652 = vmul.f32 %v426, %v634
          %v653 = vmul.f32 %v427, %v635
          %v654 = vmul.f32 %v428, %v636
          %v655 = vmul.f32 %v429, %v637
          %v656 = vmul.f32 %v430, %v638
          %v657 = vmul.f32 %v431, %v639
          %v658 = vmul.f32 %v432, %v640
          %v659 = vmul.f32 %v433, %v641
          %v660 = vmul.f32 %v434, %v642
          %v661 = vmul.f32 %v435, %v643
          %v662 = vmul.f32 %v436, %v644
          %v663 = vmul.f32 %v437, %v645
          %v664 = vmul.f32 %v438, %v646
          %v665 = vmul.f32 %v439, %v647
          %v667 = vlaneseq
          %v668 = vshrl.u32 %v667, 7
          %v669 = vsub.s32 0, %v668
          %v670 = vrot.slane %v648, %v669
          %v672 = vmul.f32 %v670, %v650
          %v673 = vmul.f32 %v670, %v651
          %v674 = vmul.f32 %v670, %v652
          %v675 = vmul.f32 %v670, %v653
          %v676 = vmul.f32 %v670, %v654
          %v677 = vmul.f32 %v670, %v655
          %v678 = vmul.f32 %v670, %v656
          %v679 = vmul.f32 %v670, %v657
          %v680 = vmul.f32 %v670, %v658
          %v681 = vmul.f32 %v670, %v659
          %v682 = vmul.f32 %v670, %v660
          %v683 = vmul.f32 %v670, %v661
          %v684 = vmul.f32 %v670, %v662
          %v685 = vmul.f32 %v670, %v663
          %v686 = vmul.f32 %v670, %v664
          %v687 = vmul.f32 %v670, %v665
          %v689 = vlaneseq
          %v690 = vshrl.u32 %v689, 7
          %v691 = vsub.s32 0, %v690
          %v692 = vrot.slane %v649, %v691
          %v694 = vadd.f32 %v672, %v692
          %v695 = vadd.f32 %v673, %v692
          %v696 = vadd.f32 %v674, %v692
          %v697 = vadd.f32 %v675, %v692
          %v698 = vadd.f32 %v676, %v692
          %v699 = vadd.f32 %v677, %v692
          %v700 = vadd.f32 %v678, %v692
          %v701 = vadd.f32 %v679, %v692
          %v702 = vadd.f32 %v680, %v692
          %v703 = vadd.f32 %v681, %v692
          %v704 = vadd.f32 %v682, %v692
          %v705 = vadd.f32 %v683, %v692
          %v706 = vadd.f32 %v684, %v692
          %v707 = vadd.f32 %v685, %v692
          %v708 = vadd.f32 %v686, %v692
          %v709 = vadd.f32 %v687, %v692
          %v710 = vpack.c.bf16 %v695, %v694
          %v711 = vpack.c.bf16 %v697, %v696
          %v712 = vpack.c.bf16 %v699, %v698
          %v713 = vpack.c.bf16 %v701, %v700
          %v714 = vpack.c.bf16 %v703, %v702
          %v715 = vpack.c.bf16 %v705, %v704
          %v716 = vpack.c.bf16 %v707, %v706
          %v717 = vpack.c.bf16 %v709, %v708
          %718 = vst [vmem:[#allocation2] sm:$0xff] %v710
          %719 = vst [vmem:[#allocation2 + $0x8] sm:$0xff] %v711
          %720 = vst [vmem:[#allocation2 + $0x10] sm:$0xff] %v712
          %721 = vst [vmem:[#allocation2 + $0x18] sm:$0xff] %v713
          %722 = vst [vmem:[#allocation2 + $0x20] sm:$0xff] %v714
          %723 = vst [vmem:[#allocation2 + $0x28] sm:$0xff] %v715
          %724 = vst [vmem:[#allocation2 + $0x30] sm:$0xff] %v716
          %725 = vst [vmem:[#allocation2 + $0x38] sm:$0xff] %v717
        $region64: #{gpt2_transformer_block.5} parent=39 // pred_fallthru
          _
        %v726 = vld [vmem:[#allocation2] sm:$0xff]
        %v727 = vld [vmem:[#allocation2 + $0x8] sm:$0xff]
        %v728 = vld [vmem:[#allocation2 + $0x10] sm:$0xff]
        %v729 = vld [vmem:[#allocation2 + $0x18] sm:$0xff]
        %v730 = vld [vmem:[#allocation2 + $0x20] sm:$0xff]
        %v731 = vld [vmem:[#allocation2 + $0x28] sm:$0xff]
        %v732 = vld [vmem:[#allocation2 + $0x30] sm:$0xff]
        %v733 = vld [vmem:[#allocation2 + $0x38] sm:$0xff]
        %v734 = vld [vmem:[%s300] sm:$0xf]
        %v735 = vld [vmem:[%s300 + $0x4] sm:$0xf]
        %v736 = vld [vmem:[%s300 + $0x8] sm:$0xf]
        %v737 = vld [vmem:[%s300 + $0xc] sm:$0xf]
        %v738 = vld [vmem:[%s300 + $0x10] sm:$0xf]
        %v739 = vld [vmem:[%s300 + $0x14] sm:$0xf]
        %v740 = vld [vmem:[%s300 + $0x18] sm:$0xf]
        %v741 = vld [vmem:[%s300 + $0x1c] sm:$0xf]
        %v742 = vld [vmem:[%s300 + $0x20] sm:$0xf]
        %v743 = vld [vmem:[%s300 + $0x24] sm:$0xf]
        %v744 = vld [vmem:[%s300 + $0x28] sm:$0xf]
        %v745 = vld [vmem:[%s300 + $0x2c] sm:$0xf]
        %v746 = vld [vmem:[%s300 + $0x30] sm:$0xf]
        %v747 = vld [vmem:[%s300 + $0x34] sm:$0xf]
        %v748 = vld [vmem:[%s300 + $0x38] sm:$0xf]
        %v749 = vld [vmem:[%s300 + $0x3c] sm:$0xf]
        %v750 = vld [vmem:[%s308] sm:$0x1]
        %v752 = vlaneseq
        %v753 = vshrl.u32 %v752, 7
        %v754 = vsub.s32 0, %v753
        %v755 = vrot.slane %v750, %v754
        %v773 = vunpack.c.l.b16 %v734
        %v774 = vunpack.c.l.b16 %v735
        %v775 = vunpack.c.l.b16 %v736
        %v776 = vunpack.c.l.b16 %v737
        %v777 = vunpack.c.l.b16 %v738
        %v778 = vunpack.c.l.b16 %v739
        %v779 = vunpack.c.l.b16 %v740
        %v780 = vunpack.c.l.b16 %v741
        %v781 = vunpack.c.l.b16 %v742
        %v782 = vunpack.c.l.b16 %v743
        %v783 = vunpack.c.l.b16 %v744
        %v784 = vunpack.c.l.b16 %v745
        %v785 = vunpack.c.l.b16 %v746
        %v786 = vunpack.c.l.b16 %v747
        %v787 = vunpack.c.l.b16 %v748
        %v788 = vunpack.c.l.b16 %v749
        %v789 = vpack.c.b16 %v774, %v773
        %v790 = vpack.c.b16 %v776, %v775
        %v791 = vpack.c.b16 %v778, %v777
        %v792 = vpack.c.b16 %v780, %v779
        %v793 = vpack.c.b16 %v782, %v781
        %v794 = vpack.c.b16 %v784, %v783
        %v795 = vpack.c.b16 %v786, %v785
        %v796 = vpack.c.b16 %v788, %v787
        %805 = vmatprep.subr.bf16.mxu0 0
        %806 = vmatpush1.bf16.msra.mxu0 %v789
        %807 = vmatprep.subr.bf16.mxu0 0
        %808 = vmatpush1.bf16.msra.mxu0 %v790
        %809 = vmatprep.subr.bf16.mxu0 0
        %810 = vmatpush1.bf16.msra.mxu0 %v791
        %811 = vmatprep.subr.bf16.mxu0 0
        %812 = vmatpush1.bf16.msra.mxu0 %v792
        %813 = vmatprep.subr.bf16.mxu0 0
        %814 = vmatpush1.bf16.msra.mxu0 %v793
        %815 = vmatprep.subr.bf16.mxu0 0
        %816 = vmatpush1.bf16.msra.mxu0 %v794
        %817 = vmatprep.subr.bf16.mxu0 0
        %818 = vmatpush1.bf16.msra.mxu0 %v795
        %819 = vmatprep.subr.bf16.mxu0 0
        %820 = vmatpush1.bf16.msra.mxu0 %v796
        %821 = vmatprep.subr.bf16.mxu0 0
        %822 = vmatpush1.bf16.msra.mxu0 0
        %823 = vmatprep.subr.bf16.mxu0 0
        %824 = vmatpush1.bf16.msra.mxu0 0
        %825 = vmatprep.subr.bf16.mxu0 0
        %826 = vmatpush1.bf16.msra.mxu0 0
        %827 = vmatprep.subr.bf16.mxu0 0
        %828 = vmatpush1.bf16.msra.mxu0 0
        %829 = vmatprep.subr.bf16.mxu0 0
        %830 = vmatpush1.bf16.msra.mxu0 0
        %831 = vmatprep.subr.bf16.mxu0 0
        %832 = vmatpush1.bf16.msra.mxu0 0
        %833 = vmatprep.subr.bf16.mxu0 0
        %834 = vmatpush1.bf16.msra.mxu0 0
        %835 = vmatprep.subr.bf16.mxu0 0
        %836 = vmatpush1.bf16.msra.mxu0 0
        %837 = vmatprep.mubr.bf16.mxu0 0
        %838 = vmatmul.mubr.bf16.gmra.mrb[0].mxu0 %v726
        %v839 = vpop.f32.mrb[0].mxu0
        %v840 = vadd.f32 %v755, %v839
        %v841 = vpop.f32.mrb[0].mxu0
        %v842 = vpop.f32.mrb[0].mxu0
        %v843 = vadd.f32 %v755, %v842
        %v844 = vpop.f32.mrb[0].mxu0
        %845 = vmatprep.mubr.bf16.mxu0 0
        %846 = vmatmul.mubr.bf16.gmra.mrb[0].mxu0 %v727
        %v847 = vpop.f32.mrb[0].mxu0
        %v848 = vadd.f32 %v755, %v847
        %v849 = vpop.f32.mrb[0].mxu0
        %v850 = vpop.f32.mrb[0].mxu0
        %v851 = vadd.f32 %v755, %v850
        %v852 = vpop.f32.mrb[0].mxu0
        %853 = vmatprep.mubr.bf16.mxu0 0
        %854 = vmatmul.mubr.bf16.gmra.mrb[0].mxu0 %v728
        %v855 = vpop.f32.mrb[0].mxu0
        %v856 = vadd.f32 %v755, %v855
        %v857 = vpop.f32.mrb[0].mxu0
        %v858 = vpop.f32.mrb[0].mxu0
        %v859 = vadd.f32 %v755, %v858
        %v860 = vpop.f32.mrb[0].mxu0
        %861 = vmatprep.mubr.bf16.mxu0 0
        %862 = vmatmul.mubr.bf16.gmra.mrb[0].mxu0 %v729
        %v863 = vpop.f32.mrb[0].mxu0
        %v864 = vadd.f32 %v755, %v863
        %v865 = vpop.f32.mrb[0].mxu0
        %v866 = vpop.f32.mrb[0].mxu0
        %v867 = vadd.f32 %v755, %v866
        %v868 = vpop.f32.mrb[0].mxu0
        %869 = vmatprep.mubr.bf16.mxu0 0
        %870 = vmatmul.mubr.bf16.gmra.mrb[0].mxu0 %v730
        %v871 = vpop.f32.mrb[0].mxu0
        %v872 = vadd.f32 %v755, %v871
        %v873 = vpop.f32.mrb[0].mxu0
        %v874 = vpop.f32.mrb[0].mxu0
        %v875 = vadd.f32 %v755, %v874
        %v876 = vpop.f32.mrb[0].mxu0
        %877 = vmatprep.mubr.bf16.mxu0 0
        %878 = vmatmul.mubr.bf16.gmra.mrb[0].mxu0 %v731
        %v879 = vpop.f32.mrb[0].mxu0
        %v880 = vadd.f32 %v755, %v879
        %v881 = vpop.f32.mrb[0].mxu0
        %v882 = vpop.f32.mrb[0].mxu0
        %v883 = vadd.f32 %v755, %v882
        %v884 = vpop.f32.mrb[0].mxu0
        %885 = vmatprep.mubr.bf16.mxu0 0
        %886 = vmatmul.mubr.bf16.gmra.mrb[0].mxu0 %v732
        %v887 = vpop.f32.mrb[0].mxu0
        %v888 = vadd.f32 %v755, %v887
        %v889 = vpop.f32.mrb[0].mxu0
        %v890 = vpop.f32.mrb[0].mxu0
        %v891 = vadd.f32 %v755, %v890
        %v892 = vpop.f32.mrb[0].mxu0
        %893 = vmatprep.mubr.bf16.mxu0 0
        %894 = vmatmul.mubr.bf16.gmra.mrb[0].mxu0 %v733
        %v895 = vpop.f32.mrb[0].mxu0
        %v896 = vadd.f32 %v755, %v895
        %v897 = vpop.f32.mrb[0].mxu0
        %v898 = vpop.f32.mrb[0].mxu0
        %v899 = vadd.f32 %v755, %v898
        %v900 = vpop.f32.mrb[0].mxu0
        %901 = vdwg.mxu0
        %902 = vst [vmem:[%s351] sm:$0xff] %v840
        %903 = vst [vmem:[%s351 + $0x8] sm:$0xff] %v843
        %904 = vst [vmem:[%s351 + $0x10] sm:$0xff] %v848
        %905 = vst [vmem:[%s351 + $0x18] sm:$0xff] %v851
        %906 = vst [vmem:[%s351 + $0x20] sm:$0xff] %v856
        %907 = vst [vmem:[%s351 + $0x28] sm:$0xff] %v859
        %908 = vst [vmem:[%s351 + $0x30] sm:$0xff] %v864
        %909 = vst [vmem:[%s351 + $0x38] sm:$0xff] %v867
        %910 = vst [vmem:[%s351 + $0x40] sm:$0xff] %v872
        %911 = vst [vmem:[%s351 + $0x48] sm:$0xff] %v875
        %912 = vst [vmem:[%s351 + $0x50] sm:$0xff] %v880
        %913 = vst [vmem:[%s351 + $0x58] sm:$0xff] %v883
        %914 = vst [vmem:[%s351 + $0x60] sm:$0xff] %v888
        %915 = vst [vmem:[%s351 + $0x68] sm:$0xff] %v891
        %916 = vst [vmem:[%s351 + $0x70] sm:$0xff] %v896
        %917 = vst [vmem:[%s351 + $0x78] sm:$0xff] %v899
        %s918 = sand.u32 %s168, 1
        %s919 = scalar_lea.sflag [#allocation5], %s918
        %s920 = sand.u32 %s168, 1
        %s921 = smul.addr %s920, 128
        %s922 = scalar_lea.vmem [#allocation12], %s921
        // Predicated region
        $region65: #{gpt2_transformer_block.5} parent=39 // pred_check
          %p923 = pneg %p178
        $region66: #{gpt2_transformer_block.5} parent=39 // pred_check_branch
          %925 = sbr.rel (%p923) target = $region68
        $region67: #{gpt2_transformer_block.5} parent=39 // pred_region
          %s926 = smul.u32 16, %s30
          %s928 = ssub.s32 2048, 2048
          %929 = vsyncadd %s919, %s928
          %s930 = smul.addr %s31, 32
          %s931 = sadd.s32 %s926, %s930
          %s932 = smul.addr %s931, 128
          %s933 = scalar_lea.hbm %s5, %s932
          %s934 = sshll.u32 %s922, 4
          %s935 = int_to_ptr.vmem [resolvable:$true] %s934
          %940 = dma.vmem_to_hbm [thread:$0]  %s935, 2048, %s933, %s919, 128, 128, 8
        $region68: #{gpt2_transformer_block.5} parent=39 // pred_fallthru
          _
      $region40: #{gpt2_transformer_block.5} parent=5 // pred_fallthru
        _
      %p941 = scmp.le.s32.totalorder 2, %s21
      // Predicated region
      $region69: #{gpt2_transformer_block.5} parent=5 // pred_check
        %p942 = pneg %p941
      $region70: #{gpt2_transformer_block.5} parent=5 // pred_check_branch
        %944 = sbr.rel (%p942) target = $region72
      $region71: #{gpt2_transformer_block.5} parent=5 // pred_region
        %s945 = ssub.s32 %s21, 2
        // Predicated region
        $region73: #{gpt2_transformer_block.5} parent=71 // pred_check
          %p946 = pneg %p184
        $region74: #{gpt2_transformer_block.5} parent=71 // pred_check_branch
          %948 = sbr.rel (%p946) target = $region76
        $region75: #{gpt2_transformer_block.5} parent=71 // pred_region
          %s949 = sand.u32 %s169, 1
          %s950 = scalar_lea.sflag [#allocation5], %s949
          %s951 = sand.u32 %s169, 1
          %s952 = smul.addr %s951, 128
          %s953 = scalar_lea.vmem [#allocation12], %s952
          %954 = dma.done %s950, 2048
        $region76: #{gpt2_transformer_block.5} parent=71 // pred_fallthru
          _
      $region72: #{gpt2_transformer_block.5} parent=5 // pred_fallthru
        _
    $region6: #{gpt2_transformer_block.5} parent=1 // loop_footer
      %s25 = sadd.s32 1, %s21
    $region7: #{gpt2_transformer_block.5} parent=1 // loop_footer_branch
      %20 = sbr.rel target = $region3
    $region8: #{gpt2_transformer_block.5} parent=1 // loop_exit
      _
    %955 = vsyncpa [#allocation4], 1
    %s956 = scalar_lea.sflag [#allocation4], 1
    %957 = vsyncpa %s956, 1
    %958 = vsyncpa [#allocation7], 1
    %s959 = scalar_lea.sflag [#allocation7], 1
    %960 = vsyncpa %s959, 1
    %961 = vsyncpa [#allocation10], 1
    %962 = vsyncpa [#allocation5], 1
    %s963 = scalar_lea.sflag [#allocation5], 1
    %964 = vsyncpa %s963, 1

// kernel: gpt2_transformer_block.7
$region0: #{gpt2_transformer_block.7}
  #allocation0 [shape = 'u32[]', space=smem, size = 0x4, offset = 0x4, fixed_abs, tag = 'smem constant byte address 0x4 - core index']
  #allocation1 [shape = 'u32[144,128]{1,0:T(1,128)}', space=vmem, size = 0x12000, scoped, tag = 'internal scratch']
  #allocation2 [shape = 'bf16[128,128]{1,0:T(16,128)(2,1)}', space=vmem, size = 0x8000, scoped, tag = 'scratch operand']
  %s0 = inlined_call_operand.hbm [shape: f32[256,128], index: 0, kind: input, shape index: {}]
  %s1 = inlined_call_operand.hbm [shape: bf16[128,128], index: 1, kind: input, shape index: {}]
  %s2 = inlined_call_operand.hbm [shape: f32[1,128], index: 2, kind: input, shape index: {}]
  %s3 = inlined_call_operand.hbm [shape: f32[256,128], index: 3, kind: input, shape index: {}]
  %s4 = inlined_call_operand.hbm [shape: f32[256,128], index: 4, kind: output, shape index: {}]
  %s5 = sld [smem:[#allocation0]]
  $region69: #{gpt2_transformer_block.7} parent=0
    _
  %s7 = ssub.s32 1, %s5
  %s8 = scalar_select 0, %s7, %s5
  $region1: #{gpt2_transformer_block.7} parent=0
    #allocation3 [shape = 'u8[131072]{0}', space=vmem, size = 0x20000, scoped, tag = 'input window, operand 0']
    #allocation4 [shape = 's32[2]{0}', space=sflag, size = 0x8, scoped, tag = 'scoped memory for gpt2_transformer_block.7']
    #allocation5 [shape = 's32[2]{0}', space=sflag, size = 0x8, scoped, tag = 'scoped memory for gpt2_transformer_block.7']
    #allocation6 [shape = 'u8[32768]{0}', space=vmem, size = 0x8000, scoped, tag = 'input window, operand 1, single buffered']
    #allocation7 [shape = 's32[1]{0}', space=sflag, size = 0x4, scoped, tag = 'scoped memory for gpt2_transformer_block.7']
    #allocation8 [shape = 'u8[512]{0}', space=vmem, size = 0x400, scoped, tag = 'input window, operand 2, single buffered']
    #allocation9 [shape = 'u8[131072]{0}', space=vmem, size = 0x20000, scoped, tag = 'input window, operand 3']
    #allocation10 [shape = 's32[2]{0}', space=sflag, size = 0x8, scoped, tag = 'scoped memory for gpt2_transformer_block.7']
    #allocation11 [shape = 'u8[131072]{0}', space=vmem, size = 0x20000, scoped, tag = 'output window, operand 0']
    %9 = vsyncpa [#allocation4], 0
    %s10 = scalar_lea.sflag [#allocation4], 1
    %11 = vsyncpa %s10, 0
    %12 = vsyncpa [#allocation7], 0
    %13 = vsyncpa [#allocation10], 0
    %s14 = scalar_lea.sflag [#allocation10], 1
    %15 = vsyncpa %s14, 0
    %16 = vsyncpa [#allocation5], 0
    %s17 = scalar_lea.sflag [#allocation5], 1
    %18 = vsyncpa %s17, 0
    loop: start=0, step=1, limit=4
    $region2: #{gpt2_transformer_block.7} parent=1 // loop_pre_header
      _
    $region3: #{gpt2_transformer_block.7} parent=1 // loop_header
      %s20 = sphi 0, %s24
      %p21 = scmp.ge.s32.totalorder %s20, 4
      %s27 = sphi 0, %s39
      %s28 = sphi 0, %s35
      %s29 = sphi 0, %s27
      %s30 = sphi 0, %s28
      %s31 = sphi 0, %s29
      %s32 = sphi 0, %s30
      %s42 = sphi 0, %s44
      %s45 = sphi 0, %s42
      %s46 = sphi 0, %s45
      %s62 = sphi 0, %s46
      %s68 = sphi 0, %s70
      %s71 = sphi 0, %s68
      %s72 = sphi 0, %s71
      %s88 = sphi 0, %s72
      %s94 = sphi 0, %s96
      %s97 = sphi 0, %s94
      %s98 = sphi 0, %s97
      %s114 = sphi 0, %s98
      %s122 = sphi 0, %s124
      %s125 = sphi 0, %s122
      %s126 = sphi 0, %s125
      %s142 = sphi 0, %s126
      %s150 = sphi 0, %s152
      %s153 = sphi 0, %s150
      %s154 = sphi 0, %s153
      %s170 = sphi 0, %s154
    $region4: #{gpt2_transformer_block.7} parent=1 // loop_header_branch
      %23 = sbr.rel (%p21) target = $region8
    $region5: #{gpt2_transformer_block.7} parent=1 // loop_body
      %s25 = ssub.s32 %s20, 1
      %s26 = ssub.s32 %s20, 2
      %s33 = sadd.s32 1, %s28
      %p34 = scmp.ge.s32.totalorder %s33, 1
      %s35 = scalar_select %p34, 0, %s33
      %s36 = sadd.s32 1, %s27
      %s37 = scalar_select %p34, %s36, %s27
      %p38 = scmp.ge.s32.totalorder %s37, 2
      %s39 = scalar_select %p38, 0, %s37
      %s40 = ssub.s32 %s27, %s39
      %p41 = scmp.eq.s32.totalorder %s40, 0
      %s43 = sadd.s32 %s42, 1
      %s44 = scalar_select %p41, %s42, %s43
      %p47 = pneg %p41
      %p48 = scmp.eq.s32.totalorder %s20, 1
      %p49 = por %p47, %p48
      %p50 = scmp.ne.s32.totalorder %s42, %s45
      %p51 = scmp.eq.s32.totalorder %s20, 0
      %p52 = por %p50, %p51
      %p53 = scmp.ne.s32.totalorder %s42, %s45
      %p54 = scmp.eq.s32.totalorder %s25, 1
      %p55 = por %p53, %p54
      %p56 = scmp.ne.s32.totalorder %s45, %s46
      %p57 = scmp.eq.s32.totalorder %s25, 0
      %p58 = por %p56, %p57
      %p59 = scmp.ne.s32.totalorder %s45, %s46
      %p60 = scmp.eq.s32.totalorder %s26, 1
      %p61 = por %p59, %p60
      %p63 = scmp.ne.s32.totalorder %s46, %s62
      %p64 = scmp.eq.s32.totalorder %s26, 0
      %p65 = por %p63, %p64
      %s66 = ssub.s32 %s28, %s35
      %p67 = scmp.eq.s32.totalorder %s66, 0
      %s69 = sadd.s32 %s68, 1
      %s70 = scalar_select %p67, %s68, %s69
      %p73 = pneg %p67
      %p74 = scmp.eq.s32.totalorder %s20, 1
      %p75 = por %p73, %p74
      %p76 = scmp.ne.s32.totalorder %s68, %s71
      %p77 = scmp.eq.s32.totalorder %s20, 0
      %p78 = por %p76, %p77
      %p79 = scmp.ne.s32.totalorder %s68, %s71
      %p80 = scmp.eq.s32.totalorder %s25, 1
      %p81 = por %p79, %p80
      %p82 = scmp.ne.s32.totalorder %s71, %s72
      %p83 = scmp.eq.s32.totalorder %s25, 0
      %p84 = por %p82, %p83
      %p85 = scmp.ne.s32.totalorder %s71, %s72
      %p86 = scmp.eq.s32.totalorder %s26, 1
      %p87 = por %p85, %p86
      %p89 = scmp.ne.s32.totalorder %s72, %s88
      %p90 = scmp.eq.s32.totalorder %s26, 0
      %p91 = por %p89, %p90
      %s92 = ssub.s32 %s28, %s35
      %p93 = scmp.eq.s32.totalorder %s92, 0
      %s95 = sadd.s32 %s94, 1
      %s96 = scalar_select %p93, %s94, %s95
      %p99 = pneg %p93
      %p100 = scmp.eq.s32.totalorder %s20, 1
      %p101 = por %p99, %p100
      %p102 = scmp.ne.s32.totalorder %s94, %s97
      %p103 = scmp.eq.s32.totalorder %s20, 0
      %p104 = por %p102, %p103
      %p105 = scmp.ne.s32.totalorder %s94, %s97
      %p106 = scmp.eq.s32.totalorder %s25, 1
      %p107 = por %p105, %p106
      %p108 = scmp.ne.s32.totalorder %s97, %s98
      %p109 = scmp.eq.s32.totalorder %s25, 0
      %p110 = por %p108, %p109
      %p111 = scmp.ne.s32.totalorder %s97, %s98
      %p112 = scmp.eq.s32.totalorder %s26, 1
      %p113 = por %p111, %p112
      %p115 = scmp.ne.s32.totalorder %s98, %s114
      %p116 = scmp.eq.s32.totalorder %s26, 0
      %p117 = por %p115, %p116
      %s118 = ssub.s32 %s27, %s39
      %s119 = ssub.s32 %s28, %s35
      %s120 = sor.u32 %s118, %s119
      %p121 = scmp.eq.s32.totalorder %s120, 0
      %s123 = sadd.s32 %s122, 1
      %s124 = scalar_select %p121, %s122, %s123
      %p127 = pneg %p121
      %p128 = scmp.eq.s32.totalorder %s20, 1
      %p129 = por %p127, %p128
      %p130 = scmp.ne.s32.totalorder %s122, %s125
      %p131 = scmp.eq.s32.totalorder %s20, 0
      %p132 = por %p130, %p131
      %p133 = scmp.ne.s32.totalorder %s122, %s125
      %p134 = scmp.eq.s32.totalorder %s25, 1
      %p135 = por %p133, %p134
      %p136 = scmp.ne.s32.totalorder %s125, %s126
      %p137 = scmp.eq.s32.totalorder %s25, 0
      %p138 = por %p136, %p137
      %p139 = scmp.ne.s32.totalorder %s125, %s126
      %p140 = scmp.eq.s32.totalorder %s26, 1
      %p141 = por %p139, %p140
      %p143 = scmp.ne.s32.totalorder %s126, %s142
      %p144 = scmp.eq.s32.totalorder %s26, 0
      %p145 = por %p143, %p144
      %s146 = ssub.s32 %s27, %s39
      %s147 = ssub.s32 %s28, %s35
      %s148 = sor.u32 %s146, %s147
      %p149 = scmp.eq.s32.totalorder %s148, 0
      %s151 = sadd.s32 %s150, 1
      %s152 = scalar_select %p149, %s150, %s151
      %p155 = pneg %p149
      %p156 = scmp.eq.s32.totalorder %s20, 1
      %p157 = por %p155, %p156
      %p158 = scmp.ne.s32.totalorder %s150, %s153
      %p159 = scmp.eq.s32.totalorder %s20, 0
      %p160 = por %p158, %p159
      %p161 = scmp.ne.s32.totalorder %s150, %s153
      %p162 = scmp.eq.s32.totalorder %s25, 1
      %p163 = por %p161, %p162
      %p164 = scmp.ne.s32.totalorder %s153, %s154
      %p165 = scmp.eq.s32.totalorder %s25, 0
      %p166 = por %p164, %p165
      %p167 = scmp.ne.s32.totalorder %s153, %s154
      %p168 = scmp.eq.s32.totalorder %s26, 1
      %p169 = por %p167, %p168
      %p171 = scmp.ne.s32.totalorder %s154, %s170
      %p172 = scmp.eq.s32.totalorder %s26, 0
      %p173 = por %p171, %p172
      %p174 = scmp.le.s32.totalorder 1, %s20
      %p175 = scmp.lt.s32.totalorder %s20, 3
      %p176 = pnand %p174, %p175
      %p177 = pneg %p176
      // Predicated region
      $region9: #{gpt2_transformer_block.7} parent=5 // pred_check
        _
      $region10: #{gpt2_transformer_block.7} parent=5 // pred_check_branch
        %179 = sbr.rel (%p176) target = $region12
      $region11: #{gpt2_transformer_block.7} parent=5 // pred_region
        %s180 = ssub.s32 %s20, 1
        // Predicated region
        $region13: #{gpt2_transformer_block.7} parent=11 // pred_check
          %p181 = pneg %p84
        $region14: #{gpt2_transformer_block.7} parent=11 // pred_check_branch
          %183 = sbr.rel (%p181) target = $region16
        $region15: #{gpt2_transformer_block.7} parent=11 // pred_region
          %s185 = ssub.s32 1024, 1024
          %186 = vsyncadd [#allocation7], %s185
          %s187 = smul.addr %s30, 64
          %s188 = scalar_lea.hbm %s1, %s187
          %s189 = sshll.u32 [#allocation6], 4
          %s190 = int_to_ptr.vmem [resolvable:$true] %s189
          %195 = dma.hbm_to_vmem [thread:$0]  %s188, 1024, %s190, [#allocation7], 64, 64, 4
        $region16: #{gpt2_transformer_block.7} parent=11 // pred_fallthru
          _
        // Predicated region
        $region17: #{gpt2_transformer_block.7} parent=11 // pred_check
          %p196 = pneg %p110
        $region18: #{gpt2_transformer_block.7} parent=11 // pred_check_branch
          %198 = sbr.rel (%p196) target = $region20
        $region19: #{gpt2_transformer_block.7} parent=11 // pred_region
          %s200 = ssub.s32 16, 16
          %201 = vsyncadd [#allocation7], %s200
          %s202 = smul.addr %s30, 16
          %s203 = scalar_lea.hbm %s2, %s202
          %s205 = sshll.u32 [#allocation8], 4
          %s206 = int_to_ptr.vmem [resolvable:$true] %s205
          %208 = dma.hbm_to_vmem [thread:$0]  %s203, 16, %s206, [#allocation7]
        $region20: #{gpt2_transformer_block.7} parent=11 // pred_fallthru
          _
      $region12: #{gpt2_transformer_block.7} parent=5 // pred_fallthru
        _
      %p209 = scmp.lt.s32.totalorder %s20, 2
      // Predicated region
      $region21: #{gpt2_transformer_block.7} parent=5 // pred_check
        %p210 = pneg %p209
      $region22: #{gpt2_transformer_block.7} parent=5 // pred_check_branch
        %212 = sbr.rel (%p210) target = $region24
      $region23: #{gpt2_transformer_block.7} parent=5 // pred_region
        // Predicated region
        $region25: #{gpt2_transformer_block.7} parent=23 // pred_check
          %p213 = pneg %p52
        $region26: #{gpt2_transformer_block.7} parent=23 // pred_check_branch
          %215 = sbr.rel (%p213) target = $region28
        $region27: #{gpt2_transformer_block.7} parent=23 // pred_region
          %s216 = sand.u32 %s42, 1
          %s217 = scalar_lea.sflag [#allocation4], %s216
          %s218 = sand.u32 %s42, 1
          %s219 = smul.addr %s218, 128
          %s220 = scalar_lea.vmem [#allocation3], %s219
          %s221 = smul.u32 16, %s27
          %s223 = ssub.s32 2048, 2048
          %224 = vsyncadd %s217, %s223
          %s225 = smul.addr %s221, 128
          %s226 = scalar_lea.hbm %s0, %s225
          %s227 = sshll.u32 %s220, 4
          %s228 = int_to_ptr.vmem [resolvable:$true] %s227
          %233 = dma.hbm_to_vmem [thread:$0]  %s226, 2048, %s228, %s217, 128, 128, 8
        $region28: #{gpt2_transformer_block.7} parent=23 // pred_fallthru
          _
        // Predicated region
        $region29: #{gpt2_transformer_block.7} parent=23 // pred_check
          %p234 = pneg %p132
        $region30: #{gpt2_transformer_block.7} parent=23 // pred_check_branch
          %236 = sbr.rel (%p234) target = $region32
        $region31: #{gpt2_transformer_block.7} parent=23 // pred_region
          %s237 = sand.u32 %s122, 1
          %s238 = scalar_lea.sflag [#allocation10], %s237
          %s239 = sand.u32 %s122, 1
          %s240 = smul.addr %s239, 128
          %s241 = scalar_lea.vmem [#allocation9], %s240
          %s242 = smul.u32 16, %s27
          %s244 = ssub.s32 2048, 2048
          %245 = vsyncadd %s238, %s244
          %s246 = sadd.s32 %s28, %s242
          %s247 = smul.addr %s246, 128
          %s248 = scalar_lea.hbm %s3, %s247
          %s249 = sshll.u32 %s241, 4
          %s250 = int_to_ptr.vmem [resolvable:$true] %s249
          %255 = dma.hbm_to_vmem [thread:$0]  %s248, 2048, %s250, %s238, 128, 128, 8
        $region32: #{gpt2_transformer_block.7} parent=23 // pred_fallthru
          _
      $region24: #{gpt2_transformer_block.7} parent=5 // pred_fallthru
        _
      %p256 = scmp.le.s32.totalorder 1, %s20
      %p257 = scmp.lt.s32.totalorder %s20, 3
      %p258 = pnand %p256, %p257
      %p259 = pneg %p258
      // Predicated region
      $region33: #{gpt2_transformer_block.7} parent=5 // pred_check
        _
      $region34: #{gpt2_transformer_block.7} parent=5 // pred_check_branch
        %261 = sbr.rel (%p258) target = $region36
      $region35: #{gpt2_transformer_block.7} parent=5 // pred_region
        %s262 = ssub.s32 %s20, 1
        %s263 = sand.u32 %s45, 1
        %s264 = scalar_lea.sflag [#allocation4], %s263
        %s265 = sand.u32 %s45, 1
        %s266 = smul.addr %s265, 128
        %s267 = scalar_lea.vmem [#allocation3], %s266
        // Predicated region
        $region37: #{gpt2_transformer_block.7} parent=35 // pred_check
          %p268 = pneg %p58
        $region38: #{gpt2_transformer_block.7} parent=35 // pred_check_branch
          %270 = sbr.rel (%p268) target = $region40
        $region39: #{gpt2_transformer_block.7} parent=35 // pred_region
          %271 = dma.done %s264, 2048
        $region40: #{gpt2_transformer_block.7} parent=35 // pred_fallthru
          _
        // Predicated region
        $region41: #{gpt2_transformer_block.7} parent=35 // pred_check
          %p272 = pneg %p84
        $region42: #{gpt2_transformer_block.7} parent=35 // pred_check_branch
          %274 = sbr.rel (%p272) target = $region44
        $region43: #{gpt2_transformer_block.7} parent=35 // pred_region
          %275 = dma.done [#allocation7], 1024
        $region44: #{gpt2_transformer_block.7} parent=35 // pred_fallthru
          _
        // Predicated region
        $region45: #{gpt2_transformer_block.7} parent=35 // pred_check
          %p276 = pneg %p110
        $region46: #{gpt2_transformer_block.7} parent=35 // pred_check_branch
          %278 = sbr.rel (%p276) target = $region48
        $region47: #{gpt2_transformer_block.7} parent=35 // pred_region
          %279 = dma.done [#allocation7], 16
        $region48: #{gpt2_transformer_block.7} parent=35 // pred_fallthru
          _
        %s280 = sand.u32 %s125, 1
        %s281 = scalar_lea.sflag [#allocation10], %s280
        %s282 = sand.u32 %s125, 1
        %s283 = smul.addr %s282, 128
        %s284 = scalar_lea.vmem [#allocation9], %s283
        // Predicated region
        $region49: #{gpt2_transformer_block.7} parent=35 // pred_check
          %p285 = pneg %p138
        $region50: #{gpt2_transformer_block.7} parent=35 // pred_check_branch
          %287 = sbr.rel (%p285) target = $region52
        $region51: #{gpt2_transformer_block.7} parent=35 // pred_region
          %288 = dma.done %s281, 2048
        $region52: #{gpt2_transformer_block.7} parent=35 // pred_fallthru
          _
        %s289 = sand.u32 %s45, 1
        %s290 = scalar_lea.sflag [#allocation4], %s289
        %s291 = sand.u32 %s45, 1
        %s292 = smul.addr %s291, 128
        %s293 = scalar_lea.vmem [#allocation3], %s292
        %p294 = pneg %p58
        %p295 = pneg %p55
        %p296 = pneg %p84
        %p297 = pneg %p81
        %p298 = pneg %p110
        %p299 = pneg %p107
        %s300 = sand.u32 %s125, 1
        %s301 = scalar_lea.sflag [#allocation10], %s300
        %s302 = sand.u32 %s125, 1
        %s303 = smul.addr %s302, 128
        %s304 = scalar_lea.vmem [#allocation9], %s303
        %p305 = pneg %p138
        %p306 = pneg %p135
        %p307 = pneg %p166
        %p308 = pneg %p163
        %s309 = sand.u32 %s153, 1
        %s310 = scalar_lea.sflag [#allocation5], %s309
        %s311 = sand.u32 %s153, 1
        %s312 = smul.addr %s311, 128
        %s313 = scalar_lea.vmem [#allocation11], %s312
        %s314 = smul.u32 16, %s29
        %s315 = smul.u32 16, %s29
        %s316 = smul.u32 16, %s29
        %p318 = scmp.eq.s32.totalorder %s30, 0
        // Predicated region
        $region53: #{gpt2_transformer_block.7} parent=35 // pred_check
          %p319 = pneg %p318
        $region54: #{gpt2_transformer_block.7} parent=35 // pred_check_branch
          %321 = sbr.rel (%p319) target = $region56
        $region55: #{gpt2_transformer_block.7} parent=35 // pred_region
          %v322 = vld [vmem:[%s267] sm:$0xff]
          %v323 = vld [vmem:[%s267 + $0x8] sm:$0xff]
          %v324 = vld [vmem:[%s267 + $0x10] sm:$0xff]
          %v325 = vld [vmem:[%s267 + $0x18] sm:$0xff]
          %v326 = vld [vmem:[%s267 + $0x20] sm:$0xff]
          %v327 = vld [vmem:[%s267 + $0x28] sm:$0xff]
          %v328 = vld [vmem:[%s267 + $0x30] sm:$0xff]
          %v329 = vld [vmem:[%s267 + $0x38] sm:$0xff]
          %v330 = vld [vmem:[%s267 + $0x40] sm:$0xff]
          %v331 = vld [vmem:[%s267 + $0x48] sm:$0xff]
          %v332 = vld [vmem:[%s267 + $0x50] sm:$0xff]
          %v333 = vld [vmem:[%s267 + $0x58] sm:$0xff]
          %v334 = vld [vmem:[%s267 + $0x60] sm:$0xff]
          %v335 = vld [vmem:[%s267 + $0x68] sm:$0xff]
          %v336 = vld [vmem:[%s267 + $0x70] sm:$0xff]
          %v337 = vld [vmem:[%s267 + $0x78] sm:$0xff]
          %v338 = vpack.c.bf16 %v323, %v322
          %v339 = vpack.c.bf16 %v325, %v324
          %v340 = vpack.c.bf16 %v327, %v326
          %v341 = vpack.c.bf16 %v329, %v328
          %v342 = vpack.c.bf16 %v331, %v330
          %v343 = vpack.c.bf16 %v333, %v332
          %v344 = vpack.c.bf16 %v335, %v334
          %v345 = vpack.c.bf16 %v337, %v336
          %346 = vst [vmem:[#allocation2] sm:$0xff] %v338
          %347 = vst [vmem:[#allocation2 + $0x8] sm:$0xff] %v339
          %348 = vst [vmem:[#allocation2 + $0x10] sm:$0xff] %v340
          %349 = vst [vmem:[#allocation2 + $0x18] sm:$0xff] %v341
          %350 = vst [vmem:[#allocation2 + $0x20] sm:$0xff] %v342
          %351 = vst [vmem:[#allocation2 + $0x28] sm:$0xff] %v343
          %352 = vst [vmem:[#allocation2 + $0x30] sm:$0xff] %v344
          %353 = vst [vmem:[#allocation2 + $0x38] sm:$0xff] %v345
        $region56: #{gpt2_transformer_block.7} parent=35 // pred_fallthru
          _
        %v354 = vld [vmem:[#allocation2] sm:$0xff]
        %v355 = vld [vmem:[#allocation2 + $0x8] sm:$0xff]
        %v356 = vld [vmem:[#allocation2 + $0x10] sm:$0xff]
        %v357 = vld [vmem:[#allocation2 + $0x18] sm:$0xff]
        %v358 = vld [vmem:[#allocation2 + $0x20] sm:$0xff]
        %v359 = vld [vmem:[#allocation2 + $0x28] sm:$0xff]
        %v360 = vld [vmem:[#allocation2 + $0x30] sm:$0xff]
        %v361 = vld [vmem:[#allocation2 + $0x38] sm:$0xff]
        %v362 = vld [vmem:[#allocation6] sm:$0xf]
        %v363 = vld [vmem:[#allocation6 + $0x4] sm:$0xf]
        %v364 = vld [vmem:[#allocation6 + $0x8] sm:$0xf]
        %v365 = vld [vmem:[#allocation6 + $0xc] sm:$0xf]
        %v366 = vld [vmem:[#allocation6 + $0x10] sm:$0xf]
        %v367 = vld [vmem:[#allocation6 + $0x14] sm:$0xf]
        %v368 = vld [vmem:[#allocation6 + $0x18] sm:$0xf]
        %v369 = vld [vmem:[#allocation6 + $0x1c] sm:$0xf]
        %v370 = vld [vmem:[#allocation6 + $0x20] sm:$0xf]
        %v371 = vld [vmem:[#allocation6 + $0x24] sm:$0xf]
        %v372 = vld [vmem:[#allocation6 + $0x28] sm:$0xf]
        %v373 = vld [vmem:[#allocation6 + $0x2c] sm:$0xf]
        %v374 = vld [vmem:[#allocation6 + $0x30] sm:$0xf]
        %v375 = vld [vmem:[#allocation6 + $0x34] sm:$0xf]
        %v376 = vld [vmem:[#allocation6 + $0x38] sm:$0xf]
        %v377 = vld [vmem:[#allocation6 + $0x3c] sm:$0xf]
        %v378 = vld [vmem:[#allocation8] sm:$0x1]
        %v380 = vlaneseq
        %v381 = vshrl.u32 %v380, 7
        %v382 = vsub.s32 0, %v381
        %v383 = vrot.slane %v378, %v382
        %v401 = vunpack.c.l.b16 %v362
        %v402 = vunpack.c.l.b16 %v363
        %v403 = vunpack.c.l.b16 %v364
        %v404 = vunpack.c.l.b16 %v365
        %v405 = vunpack.c.l.b16 %v366
        %v406 = vunpack.c.l.b16 %v367
        %v407 = vunpack.c.l.b16 %v368
        %v408 = vunpack.c.l.b16 %v369
        %v409 = vunpack.c.l.b16 %v370
        %v410 = vunpack.c.l.b16 %v371
        %v411 = vunpack.c.l.b16 %v372
        %v412 = vunpack.c.l.b16 %v373
        %v413 = vunpack.c.l.b16 %v374
        %v414 = vunpack.c.l.b16 %v375
        %v415 = vunpack.c.l.b16 %v376
        %v416 = vunpack.c.l.b16 %v377
        %v417 = vpack.c.b16 %v402, %v401
        %v418 = vpack.c.b16 %v404, %v403
        %v419 = vpack.c.b16 %v406, %v405
        %v420 = vpack.c.b16 %v408, %v407
        %v421 = vpack.c.b16 %v410, %v409
        %v422 = vpack.c.b16 %v412, %v411
        %v423 = vpack.c.b16 %v414, %v413
        %v424 = vpack.c.b16 %v416, %v415
        %433 = vmatprep.subr.bf16.mxu0 0
        %434 = vmatpush1.bf16.msra.mxu0 %v417
        %435 = vmatprep.subr.bf16.mxu0 0
        %436 = vmatpush1.bf16.msra.mxu0 %v418
        %437 = vmatprep.subr.bf16.mxu0 0
        %438 = vmatpush1.bf16.msra.mxu0 %v419
        %439 = vmatprep.subr.bf16.mxu0 0
        %440 = vmatpush1.bf16.msra.mxu0 %v420
        %441 = vmatprep.subr.bf16.mxu0 0
        %442 = vmatpush1.bf16.msra.mxu0 %v421
        %443 = vmatprep.subr.bf16.mxu0 0
        %444 = vmatpush1.bf16.msra.mxu0 %v422
        %445 = vmatprep.subr.bf16.mxu0 0
        %446 = vmatpush1.bf16.msra.mxu0 %v423
        %447 = vmatprep.subr.bf16.mxu0 0
        %448 = vmatpush1.bf16.msra.mxu0 %v424
        %449 = vmatprep.subr.bf16.mxu0 0
        %450 = vmatpush1.bf16.msra.mxu0 0
        %451 = vmatprep.subr.bf16.mxu0 0
        %452 = vmatpush1.bf16.msra.mxu0 0
        %453 = vmatprep.subr.bf16.mxu0 0
        %454 = vmatpush1.bf16.msra.mxu0 0
        %455 = vmatprep.subr.bf16.mxu0 0
        %456 = vmatpush1.bf16.msra.mxu0 0
        %457 = vmatprep.subr.bf16.mxu0 0
        %458 = vmatpush1.bf16.msra.mxu0 0
        %459 = vmatprep.subr.bf16.mxu0 0
        %460 = vmatpush1.bf16.msra.mxu0 0
        %461 = vmatprep.subr.bf16.mxu0 0
        %462 = vmatpush1.bf16.msra.mxu0 0
        %463 = vmatprep.subr.bf16.mxu0 0
        %464 = vmatpush1.bf16.msra.mxu0 0
        %465 = vmatprep.mubr.bf16.mxu0 0
        %466 = vmatmul.mubr.bf16.gmra.mrb[0].mxu0 %v354
        %v467 = vpop.f32.mrb[0].mxu0
        %v468 = vadd.f32 %v383, %v467
        %v469 = vpop.f32.mrb[0].mxu0
        %v470 = vpop.f32.mrb[0].mxu0
        %v471 = vadd.f32 %v383, %v470
        %v472 = vpop.f32.mrb[0].mxu0
        %473 = vmatprep.mubr.bf16.mxu0 0
        %474 = vmatmul.mubr.bf16.gmra.mrb[0].mxu0 %v355
        %v475 = vpop.f32.mrb[0].mxu0
        %v476 = vadd.f32 %v383, %v475
        %v477 = vpop.f32.mrb[0].mxu0
        %v478 = vpop.f32.mrb[0].mxu0
        %v479 = vadd.f32 %v383, %v478
        %v480 = vpop.f32.mrb[0].mxu0
        %481 = vmatprep.mubr.bf16.mxu0 0
        %482 = vmatmul.mubr.bf16.gmra.mrb[0].mxu0 %v356
        %v483 = vpop.f32.mrb[0].mxu0
        %v484 = vadd.f32 %v383, %v483
        %v485 = vpop.f32.mrb[0].mxu0
        %v486 = vpop.f32.mrb[0].mxu0
        %v487 = vadd.f32 %v383, %v486
        %v488 = vpop.f32.mrb[0].mxu0
        %489 = vmatprep.mubr.bf16.mxu0 0
        %490 = vmatmul.mubr.bf16.gmra.mrb[0].mxu0 %v357
        %v491 = vpop.f32.mrb[0].mxu0
        %v492 = vadd.f32 %v383, %v491
        %v493 = vpop.f32.mrb[0].mxu0
        %v494 = vpop.f32.mrb[0].mxu0
        %v495 = vadd.f32 %v383, %v494
        %v496 = vpop.f32.mrb[0].mxu0
        %497 = vmatprep.mubr.bf16.mxu0 0
        %498 = vmatmul.mubr.bf16.gmra.mrb[0].mxu0 %v358
        %v499 = vpop.f32.mrb[0].mxu0
        %v500 = vadd.f32 %v383, %v499
        %v501 = vpop.f32.mrb[0].mxu0
        %v502 = vpop.f32.mrb[0].mxu0
        %v503 = vadd.f32 %v383, %v502
        %v504 = vpop.f32.mrb[0].mxu0
        %505 = vmatprep.mubr.bf16.mxu0 0
        %506 = vmatmul.mubr.bf16.gmra.mrb[0].mxu0 %v359
        %v507 = vpop.f32.mrb[0].mxu0
        %v508 = vadd.f32 %v383, %v507
        %v509 = vpop.f32.mrb[0].mxu0
        %v510 = vpop.f32.mrb[0].mxu0
        %v511 = vadd.f32 %v383, %v510
        %v512 = vpop.f32.mrb[0].mxu0
        %513 = vmatprep.mubr.bf16.mxu0 0
        %514 = vmatmul.mubr.bf16.gmra.mrb[0].mxu0 %v360
        %v515 = vpop.f32.mrb[0].mxu0
        %v516 = vadd.f32 %v383, %v515
        %v517 = vpop.f32.mrb[0].mxu0
        %v518 = vpop.f32.mrb[0].mxu0
        %v519 = vadd.f32 %v383, %v518
        %v520 = vpop.f32.mrb[0].mxu0
        %521 = vmatprep.mubr.bf16.mxu0 0
        %522 = vmatmul.mubr.bf16.gmra.mrb[0].mxu0 %v361
        %v523 = vpop.f32.mrb[0].mxu0
        %v524 = vadd.f32 %v383, %v523
        %v525 = vpop.f32.mrb[0].mxu0
        %v526 = vpop.f32.mrb[0].mxu0
        %v527 = vadd.f32 %v383, %v526
        %v528 = vpop.f32.mrb[0].mxu0
        %529 = vdwg.mxu0
        %v530 = vld [vmem:[%s284] sm:$0xff]
        %v531 = vld [vmem:[%s284 + $0x8] sm:$0xff]
        %v532 = vld [vmem:[%s284 + $0x10] sm:$0xff]
        %v533 = vld [vmem:[%s284 + $0x18] sm:$0xff]
        %v534 = vld [vmem:[%s284 + $0x20] sm:$0xff]
        %v535 = vld [vmem:[%s284 + $0x28] sm:$0xff]
        %v536 = vld [vmem:[%s284 + $0x30] sm:$0xff]
        %v537 = vld [vmem:[%s284 + $0x38] sm:$0xff]
        %v538 = vld [vmem:[%s284 + $0x40] sm:$0xff]
        %v539 = vld [vmem:[%s284 + $0x48] sm:$0xff]
        %v540 = vld [vmem:[%s284 + $0x50] sm:$0xff]
        %v541 = vld [vmem:[%s284 + $0x58] sm:$0xff]
        %v542 = vld [vmem:[%s284 + $0x60] sm:$0xff]
        %v543 = vld [vmem:[%s284 + $0x68] sm:$0xff]
        %v544 = vld [vmem:[%s284 + $0x70] sm:$0xff]
        %v545 = vld [vmem:[%s284 + $0x78] sm:$0xff]
        %v546 = vadd.f32 %v468, %v530
        %v547 = vadd.f32 %v471, %v531
        %v548 = vadd.f32 %v476, %v532
        %v549 = vadd.f32 %v479, %v533
        %v550 = vadd.f32 %v484, %v534
        %v551 = vadd.f32 %v487, %v535
        %v552 = vadd.f32 %v492, %v536
        %v553 = vadd.f32 %v495, %v537
        %v554 = vadd.f32 %v500, %v538
        %v555 = vadd.f32 %v503, %v539
        %v556 = vadd.f32 %v508, %v540
        %v557 = vadd.f32 %v511, %v541
        %v558 = vadd.f32 %v516, %v542
        %v559 = vadd.f32 %v519, %v543
        %v560 = vadd.f32 %v524, %v544
        %v561 = vadd.f32 %v527, %v545
        %562 = vst [vmem:[%s313] sm:$0xff] %v546
        %563 = vst [vmem:[%s313 + $0x8] sm:$0xff] %v547
        %564 = vst [vmem:[%s313 + $0x10] sm:$0xff] %v548
        %565 = vst [vmem:[%s313 + $0x18] sm:$0xff] %v549
        %566 = vst [vmem:[%s313 + $0x20] sm:$0xff] %v550
        %567 = vst [vmem:[%s313 + $0x28] sm:$0xff] %v551
        %568 = vst [vmem:[%s313 + $0x30] sm:$0xff] %v552
        %569 = vst [vmem:[%s313 + $0x38] sm:$0xff] %v553
        %570 = vst [vmem:[%s313 + $0x40] sm:$0xff] %v554
        %571 = vst [vmem:[%s313 + $0x48] sm:$0xff] %v555
        %572 = vst [vmem:[%s313 + $0x50] sm:$0xff] %v556
        %573 = vst [vmem:[%s313 + $0x58] sm:$0xff] %v557
        %574 = vst [vmem:[%s313 + $0x60] sm:$0xff] %v558
        %575 = vst [vmem:[%s313 + $0x68] sm:$0xff] %v559
        %576 = vst [vmem:[%s313 + $0x70] sm:$0xff] %v560
        %577 = vst [vmem:[%s313 + $0x78] sm:$0xff] %v561
        %s578 = sand.u32 %s153, 1
        %s579 = scalar_lea.sflag [#allocation5], %s578
        %s580 = sand.u32 %s153, 1
        %s581 = smul.addr %s580, 128
        %s582 = scalar_lea.vmem [#allocation11], %s581
        // Predicated region
        $region57: #{gpt2_transformer_block.7} parent=35 // pred_check
          %p583 = pneg %p163
        $region58: #{gpt2_transformer_block.7} parent=35 // pred_check_branch
          %585 = sbr.rel (%p583) target = $region60
        $region59: #{gpt2_transformer_block.7} parent=35 // pred_region
          %s586 = smul.u32 16, %s29
          %s588 = ssub.s32 2048, 2048
          %589 = vsyncadd %s579, %s588
          %s590 = sadd.s32 %s30, %s586
          %s591 = smul.addr %s590, 128
          %s592 = scalar_lea.hbm %s4, %s591
          %s593 = sshll.u32 %s582, 4
          %s594 = int_to_ptr.vmem [resolvable:$true] %s593
          %599 = dma.vmem_to_hbm [thread:$0]  %s594, 2048, %s592, %s579, 128, 128, 8
        $region60: #{gpt2_transformer_block.7} parent=35 // pred_fallthru
          _
      $region36: #{gpt2_transformer_block.7} parent=5 // pred_fallthru
        _
      %p600 = scmp.le.s32.totalorder 2, %s20
      // Predicated region
      $region61: #{gpt2_transformer_block.7} parent=5 // pred_check
        %p601 = pneg %p600
      $region62: #{gpt2_transformer_block.7} parent=5 // pred_check_branch
        %603 = sbr.rel (%p601) target = $region64
      $region63: #{gpt2_transformer_block.7} parent=5 // pred_region
        %s604 = ssub.s32 %s20, 2
        // Predicated region
        $region65: #{gpt2_transformer_block.7} parent=63 // pred_check
          %p605 = pneg %p169
        $region66: #{gpt2_transformer_block.7} parent=63 // pred_check_branch
          %607 = sbr.rel (%p605) target = $region68
        $region67: #{gpt2_transformer_block.7} parent=63 // pred_region
          %s608 = sand.u32 %s154, 1
          %s609 = scalar_lea.sflag [#allocation5], %s608
          %s610 = sand.u32 %s154, 1
          %s611 = smul.addr %s610, 128
          %s612 = scalar_lea.vmem [#allocation11], %s611
          %613 = dma.done %s609, 2048
        $region68: #{gpt2_transformer_block.7} parent=63 // pred_fallthru
          _
      $region64: #{gpt2_transformer_block.7} parent=5 // pred_fallthru
        _
    $region6: #{gpt2_transformer_block.7} parent=1 // loop_footer
      %s24 = sadd.s32 1, %s20
    $region7: #{gpt2_transformer_block.7} parent=1 // loop_footer_branch
      %19 = sbr.rel target = $region3
    $region8: #{gpt2_transformer_block.7} parent=1 // loop_exit
      _
    %614 = vsyncpa [#allocation4], 1
    %s615 = scalar_lea.sflag [#allocation4], 1
    %616 = vsyncpa %s615, 1
    %617 = vsyncpa [#allocation7], 1
    %618 = vsyncpa [#allocation10], 1
    %s619 = scalar_lea.sflag [#allocation10], 1
    %620 = vsyncpa %s619, 1
    %621 = vsyncpa [#allocation5], 1
    %s622 = scalar_lea.sflag [#allocation5], 1
    %623 = vsyncpa %s622, 1

// kernel: gpt2_transformer_block.8
$region0: #{gpt2_transformer_block.8}
  #allocation0 [shape = 'u32[]', space=smem, size = 0x4, offset = 0x4, fixed_abs, tag = 'smem constant byte address 0x4 - core index']
  #allocation1 [shape = 'u32[144,128]{1,0:T(1,128)}', space=vmem, size = 0x12000, scoped, tag = 'internal scratch']
  #allocation2 [shape = 'bf16[128,128]{1,0:T(16,128)(2,1)}', space=vmem, size = 0x8000, scoped, tag = 'scratch operand']
  %s0 = inlined_call_operand.hbm [shape: f32[256,128], index: 0, kind: input, shape index: {}]
  %s1 = inlined_call_operand.hbm [shape: bf16[128,2048], index: 1, kind: input, shape index: {}]
  %s2 = inlined_call_operand.hbm [shape: f32[1,2048], index: 2, kind: input, shape index: {}]
  %s3 = inlined_call_operand.hbm [shape: f32[1,128], index: 3, kind: input, shape index: {}]
  %s4 = inlined_call_operand.hbm [shape: f32[1,128], index: 4, kind: input, shape index: {}]
  %s5 = inlined_call_operand.hbm [shape: f32[256,2048], index: 5, kind: output, shape index: {}]
  %s6 = sld [smem:[#allocation0]]
  $region77: #{gpt2_transformer_block.8} parent=0
    _
  %s8 = ssub.s32 1, %s6
  %s9 = scalar_select 0, %s8, %s6
  $region1: #{gpt2_transformer_block.8} parent=0
    #allocation3 [shape = 'u8[131072]{0}', space=vmem, size = 0x20000, scoped, tag = 'input window, operand 0']
    #allocation4 [shape = 's32[2]{0}', space=sflag, size = 0x8, scoped, tag = 'scoped memory for gpt2_transformer_block.8']
    #allocation5 [shape = 's32[2]{0}', space=sflag, size = 0x8, scoped, tag = 'scoped memory for gpt2_transformer_block.8']
    #allocation6 [shape = 'u8[262144]{0}', space=vmem, size = 0x40000, scoped, tag = 'input window, operand 1']
    #allocation7 [shape = 's32[2]{0}', space=sflag, size = 0x8, scoped, tag = 'scoped memory for gpt2_transformer_block.8']
    #allocation8 [shape = 'u8[4096]{0}', space=vmem, size = 0x1000, scoped, tag = 'input window, operand 2']
    #allocation9 [shape = 'u8[512]{0}', space=vmem, size = 0x400, scoped, tag = 'input window, operand 3, single buffered']
    #allocation10 [shape = 's32[1]{0}', space=sflag, size = 0x4, scoped, tag = 'scoped memory for gpt2_transformer_block.8']
    #allocation11 [shape = 'u8[512]{0}', space=vmem, size = 0x400, scoped, tag = 'input window, operand 4, single buffered']
    #allocation12 [shape = 'u8[524288]{0}', space=vmem, size = 0x80000, scoped, tag = 'output window, operand 0']
    %10 = vsyncpa [#allocation4], 0
    %s11 = scalar_lea.sflag [#allocation4], 1
    %12 = vsyncpa %s11, 0
    %13 = vsyncpa [#allocation7], 0
    %s14 = scalar_lea.sflag [#allocation7], 1
    %15 = vsyncpa %s14, 0
    %16 = vsyncpa [#allocation10], 0
    %17 = vsyncpa [#allocation5], 0
    %s18 = scalar_lea.sflag [#allocation5], 1
    %19 = vsyncpa %s18, 0
    loop: start=0, step=1, limit=10
    $region2: #{gpt2_transformer_block.8} parent=1 // loop_pre_header
      _
    $region3: #{gpt2_transformer_block.8} parent=1 // loop_header
      %s21 = sphi 0, %s25
      %p22 = scmp.ge.s32.totalorder %s21, 10
      %s28 = sphi 0, %s40
      %s29 = sphi 0, %s36
      %s30 = sphi 0, %s28
      %s31 = sphi 0, %s29
      %s32 = sphi 0, %s30
      %s33 = sphi 0, %s31
      %s43 = sphi 0, %s45
      %s46 = sphi 0, %s43
      %s47 = sphi 0, %s46
      %s63 = sphi 0, %s47
      %s69 = sphi 0, %s71
      %s72 = sphi 0, %s69
      %s73 = sphi 0, %s72
      %s89 = sphi 0, %s73
      %s95 = sphi 0, %s97
      %s98 = sphi 0, %s95
      %s99 = sphi 0, %s98
      %s115 = sphi 0, %s99
      %s119 = sphi 0, %s119
      %s121 = sphi 0, %s119
      %s122 = sphi 0, %s121
      %s136 = sphi 0, %s122
      %s140 = sphi 0, %s140
      %s142 = sphi 0, %s140
      %s143 = sphi 0, %s142
      %s157 = sphi 0, %s143
      %s165 = sphi 0, %s167
      %s168 = sphi 0, %s165
      %s169 = sphi 0, %s168
      %s185 = sphi 0, %s169
    $region4: #{gpt2_transformer_block.8} parent=1 // loop_header_branch
      %24 = sbr.rel (%p22) target = $region8
    $region5: #{gpt2_transformer_block.8} parent=1 // loop_body
      %s26 = ssub.s32 %s21, 1
      %s27 = ssub.s32 %s21, 2
      %s34 = sadd.s32 1, %s29
      %p35 = scmp.ge.s32.totalorder %s34, 4
      %s36 = scalar_select %p35, 0, %s34
      %s37 = sadd.s32 1, %s28
      %s38 = scalar_select %p35, %s37, %s28
      %p39 = scmp.ge.s32.totalorder %s38, 2
      %s40 = scalar_select %p39, 0, %s38
      %s41 = ssub.s32 %s28, %s40
      %p42 = scmp.eq.s32.totalorder %s41, 0
      %s44 = sadd.s32 %s43, 1
      %s45 = scalar_select %p42, %s43, %s44
      %p48 = pneg %p42
      %p49 = scmp.eq.s32.totalorder %s21, 7
      %p50 = por %p48, %p49
      %p51 = scmp.ne.s32.totalorder %s43, %s46
      %p52 = scmp.eq.s32.totalorder %s21, 0
      %p53 = por %p51, %p52
      %p54 = scmp.ne.s32.totalorder %s43, %s46
      %p55 = scmp.eq.s32.totalorder %s26, 7
      %p56 = por %p54, %p55
      %p57 = scmp.ne.s32.totalorder %s46, %s47
      %p58 = scmp.eq.s32.totalorder %s26, 0
      %p59 = por %p57, %p58
      %p60 = scmp.ne.s32.totalorder %s46, %s47
      %p61 = scmp.eq.s32.totalorder %s27, 7
      %p62 = por %p60, %p61
      %p64 = scmp.ne.s32.totalorder %s47, %s63
      %p65 = scmp.eq.s32.totalorder %s27, 0
      %p66 = por %p64, %p65
      %s67 = ssub.s32 %s29, %s36
      %p68 = scmp.eq.s32.totalorder %s67, 0
      %s70 = sadd.s32 %s69, 1
      %s71 = scalar_select %p68, %s69, %s70
      %p74 = pneg %p68
      %p75 = scmp.eq.s32.totalorder %s21, 7
      %p76 = por %p74, %p75
      %p77 = scmp.ne.s32.totalorder %s69, %s72
      %p78 = scmp.eq.s32.totalorder %s21, 0
      %p79 = por %p77, %p78
      %p80 = scmp.ne.s32.totalorder %s69, %s72
      %p81 = scmp.eq.s32.totalorder %s26, 7
      %p82 = por %p80, %p81
      %p83 = scmp.ne.s32.totalorder %s72, %s73
      %p84 = scmp.eq.s32.totalorder %s26, 0
      %p85 = por %p83, %p84
      %p86 = scmp.ne.s32.totalorder %s72, %s73
      %p87 = scmp.eq.s32.totalorder %s27, 7
      %p88 = por %p86, %p87
      %p90 = scmp.ne.s32.totalorder %s73, %s89
      %p91 = scmp.eq.s32.totalorder %s27, 0
      %p92 = por %p90, %p91
      %s93 = ssub.s32 %s29, %s36
      %p94 = scmp.eq.s32.totalorder %s93, 0
      %s96 = sadd.s32 %s95, 1
      %s97 = scalar_select %p94, %s95, %s96
      %p100 = pneg %p94
      %p101 = scmp.eq.s32.totalorder %s21, 7
      %p102 = por %p100, %p101
      %p103 = scmp.ne.s32.totalorder %s95, %s98
      %p104 = scmp.eq.s32.totalorder %s21, 0
      %p105 = por %p103, %p104
      %p106 = scmp.ne.s32.totalorder %s95, %s98
      %p107 = scmp.eq.s32.totalorder %s26, 7
      %p108 = por %p106, %p107
      %p109 = scmp.ne.s32.totalorder %s98, %s99
      %p110 = scmp.eq.s32.totalorder %s26, 0
      %p111 = por %p109, %p110
      %p112 = scmp.ne.s32.totalorder %s98, %s99
      %p113 = scmp.eq.s32.totalorder %s27, 7
      %p114 = por %p112, %p113
      %p116 = scmp.ne.s32.totalorder %s99, %s115
      %p117 = scmp.eq.s32.totalorder %s27, 0
      %p118 = por %p116, %p117
      %s120 = sadd.s32 %s119, 1
      %p123 = scmp.eq.s32.totalorder %s21, 7
      %p124 = scmp.ne.s32.totalorder %s119, %s121
      %p125 = scmp.eq.s32.totalorder %s21, 0
      %p126 = por %p124, %p125
      %p127 = scmp.ne.s32.totalorder %s119, %s121
      %p128 = scmp.eq.s32.totalorder %s26, 7
      %p129 = por %p127, %p128
      %p130 = scmp.ne.s32.totalorder %s121, %s122
      %p131 = scmp.eq.s32.totalorder %s26, 0
      %p132 = por %p130, %p131
      %p133 = scmp.ne.s32.totalorder %s121, %s122
      %p134 = scmp.eq.s32.totalorder %s27, 7
      %p135 = por %p133, %p134
      %p137 = scmp.ne.s32.totalorder %s122, %s136
      %p138 = scmp.eq.s32.totalorder %s27, 0
      %p139 = por %p137, %p138
      %s141 = sadd.s32 %s140, 1
      %p144 = scmp.eq.s32.totalorder %s21, 7
      %p145 = scmp.ne.s32.totalorder %s140, %s142
      %p146 = scmp.eq.s32.totalorder %s21, 0
      %p147 = por %p145, %p146
      %p148 = scmp.ne.s32.totalorder %s140, %s142
      %p149 = scmp.eq.s32.totalorder %s26, 7
      %p150 = por %p148, %p149
      %p151 = scmp.ne.s32.totalorder %s142, %s143
      %p152 = scmp.eq.s32.totalorder %s26, 0
      %p153 = por %p151, %p152
      %p154 = scmp.ne.s32.totalorder %s142, %s143
      %p155 = scmp.eq.s32.totalorder %s27, 7
      %p156 = por %p154, %p155
      %p158 = scmp.ne.s32.totalorder %s143, %s157
      %p159 = scmp.eq.s32.totalorder %s27, 0
      %p160 = por %p158, %p159
      %s161 = ssub.s32 %s28, %s40
      %s162 = ssub.s32 %s29, %s36
      %s163 = sor.u32 %s161, %s162
      %p164 = scmp.eq.s32.totalorder %s163, 0
      %s166 = sadd.s32 %s165, 1
      %s167 = scalar_select %p164, %s165, %s166
      %p170 = pneg %p164
      %p171 = scmp.eq.s32.totalorder %s21, 7
      %p172 = por %p170, %p171
      %p173 = scmp.ne.s32.totalorder %s165, %s168
      %p174 = scmp.eq.s32.totalorder %s21, 0
      %p175 = por %p173, %p174
      %p176 = scmp.ne.s32.totalorder %s165, %s168
      %p177 = scmp.eq.s32.totalorder %s26, 7
      %p178 = por %p176, %p177
      %p179 = scmp.ne.s32.totalorder %s168, %s169
      %p180 = scmp.eq.s32.totalorder %s26, 0
      %p181 = por %p179, %p180
      %p182 = scmp.ne.s32.totalorder %s168, %s169
      %p183 = scmp.eq.s32.totalorder %s27, 7
      %p184 = por %p182, %p183
      %p186 = scmp.ne.s32.totalorder %s169, %s185
      %p187 = scmp.eq.s32.totalorder %s27, 0
      %p188 = por %p186, %p187
      %p189 = scmp.le.s32.totalorder 1, %s21
      %p190 = scmp.lt.s32.totalorder %s21, 9
      %p191 = pnand %p189, %p190
      %p192 = pneg %p191
      // Predicated region
      $region9: #{gpt2_transformer_block.8} parent=5 // pred_check
        _
      $region10: #{gpt2_transformer_block.8} parent=5 // pred_check_branch
        %194 = sbr.rel (%p191) target = $region12
      $region11: #{gpt2_transformer_block.8} parent=5 // pred_region
        %s195 = ssub.s32 %s21, 1
        // Predicated region
        $region13: #{gpt2_transformer_block.8} parent=11 // pred_check
          %p196 = pneg %p132
        $region14: #{gpt2_transformer_block.8} parent=11 // pred_check_branch
          %198 = sbr.rel (%p196) target = $region16
        $region15: #{gpt2_transformer_block.8} parent=11 // pred_region
          %s200 = ssub.s32 16, 16
          %201 = vsyncadd [#allocation10], %s200
          %s203 = sshll.u32 [#allocation9], 4
          %s204 = int_to_ptr.vmem [resolvable:$true] %s203
          %206 = dma.hbm_to_vmem [thread:$0]  %s3, 16, %s204, [#allocation10]
        $region16: #{gpt2_transformer_block.8} parent=11 // pred_fallthru
          _
        // Predicated region
        $region17: #{gpt2_transformer_block.8} parent=11 // pred_check
          %p207 = pneg %p153
        $region18: #{gpt2_transformer_block.8} parent=11 // pred_check_branch
          %209 = sbr.rel (%p207) target = $region20
        $region19: #{gpt2_transformer_block.8} parent=11 // pred_region
          %s211 = ssub.s32 16, 16
          %212 = vsyncadd [#allocation10], %s211
          %s214 = sshll.u32 [#allocation11], 4
          %s215 = int_to_ptr.vmem [resolvable:$true] %s214
          %217 = dma.hbm_to_vmem [thread:$0]  %s4, 16, %s215, [#allocation10]
        $region20: #{gpt2_transformer_block.8} parent=11 // pred_fallthru
          _
      $region12: #{gpt2_transformer_block.8} parent=5 // pred_fallthru
        _
      %p218 = scmp.lt.s32.totalorder %s21, 8
      // Predicated region
      $region21: #{gpt2_transformer_block.8} parent=5 // pred_check
        %p219 = pneg %p218
      $region22: #{gpt2_transformer_block.8} parent=5 // pred_check_branch
        %221 = sbr.rel (%p219) target = $region24
      $region23: #{gpt2_transformer_block.8} parent=5 // pred_region
        // Predicated region
        $region25: #{gpt2_transformer_block.8} parent=23 // pred_check
          %p222 = pneg %p53
        $region26: #{gpt2_transformer_block.8} parent=23 // pred_check_branch
          %224 = sbr.rel (%p222) target = $region28
        $region27: #{gpt2_transformer_block.8} parent=23 // pred_region
          %s225 = sand.u32 %s43, 1
          %s226 = scalar_lea.sflag [#allocation4], %s225
          %s227 = sand.u32 %s43, 1
          %s228 = smul.addr %s227, 128
          %s229 = scalar_lea.vmem [#allocation3], %s228
          %s230 = smul.u32 16, %s28
          %s232 = ssub.s32 2048, 2048
          %233 = vsyncadd %s226, %s232
          %s234 = smul.addr %s230, 128
          %s235 = scalar_lea.hbm %s0, %s234
          %s236 = sshll.u32 %s229, 4
          %s237 = int_to_ptr.vmem [resolvable:$true] %s236
          %242 = dma.hbm_to_vmem [thread:$0]  %s235, 2048, %s237, %s226, 128, 128, 8
        $region28: #{gpt2_transformer_block.8} parent=23 // pred_fallthru
          _
        // Predicated region
        $region29: #{gpt2_transformer_block.8} parent=23 // pred_check
          %p243 = pneg %p79
        $region30: #{gpt2_transformer_block.8} parent=23 // pred_check_branch
          %245 = sbr.rel (%p243) target = $region32
        $region31: #{gpt2_transformer_block.8} parent=23 // pred_region
          %s246 = sand.u32 %s21, 1
          %s247 = scalar_lea.sflag [#allocation7], %s246
          %s248 = sand.u32 %s69, 1
          %s249 = smul.addr %s248, 256
          %s250 = scalar_lea.vmem [#allocation6], %s249
          %s251 = smul.u32 4, %s29
          %s253 = ssub.s32 4096, 4096
          %254 = vsyncadd %s247, %s253
          %s255 = smul.addr %s251, 64
          %s256 = scalar_lea.hbm %s1, %s255
          %s257 = sshll.u32 %s250, 4
          %s258 = int_to_ptr.vmem [resolvable:$true] %s257
          %263 = dma.hbm_to_vmem [thread:$0]  %s256, 4096, %s258, %s247, 1024, 256, 16
        $region32: #{gpt2_transformer_block.8} parent=23 // pred_fallthru
          _
        // Predicated region
        $region33: #{gpt2_transformer_block.8} parent=23 // pred_check
          %p264 = pneg %p105
        $region34: #{gpt2_transformer_block.8} parent=23 // pred_check_branch
          %266 = sbr.rel (%p264) target = $region36
        $region35: #{gpt2_transformer_block.8} parent=23 // pred_region
          %s267 = sand.u32 %s21, 1
          %s268 = scalar_lea.sflag [#allocation7], %s267
          %s269 = sand.u32 %s95, 1
          %s270 = smul.addr %s269, 4
          %s271 = scalar_lea.vmem [#allocation8], %s270
          %s272 = smul.u32 4, %s29
          %s274 = ssub.s32 64, 64
          %275 = vsyncadd %s268, %s274
          %s276 = smul.addr %s272, 16
          %s277 = scalar_lea.hbm %s2, %s276
          %s279 = sshll.u32 %s271, 4
          %s280 = int_to_ptr.vmem [resolvable:$true] %s279
          %282 = dma.hbm_to_vmem [thread:$0]  %s277, 64, %s280, %s268
        $region36: #{gpt2_transformer_block.8} parent=23 // pred_fallthru
          _
      $region24: #{gpt2_transformer_block.8} parent=5 // pred_fallthru
        _
      %p283 = scmp.le.s32.totalorder 1, %s21
      %p284 = scmp.lt.s32.totalorder %s21, 9
      %p285 = pnand %p283, %p284
      %p286 = pneg %p285
      // Predicated region
      $region37: #{gpt2_transformer_block.8} parent=5 // pred_check
        _
      $region38: #{gpt2_transformer_block.8} parent=5 // pred_check_branch
        %288 = sbr.rel (%p285) target = $region40
      $region39: #{gpt2_transformer_block.8} parent=5 // pred_region
        %s289 = ssub.s32 %s21, 1
        %s290 = sand.u32 %s46, 1
        %s291 = scalar_lea.sflag [#allocation4], %s290
        %s292 = sand.u32 %s46, 1
        %s293 = smul.addr %s292, 128
        %s294 = scalar_lea.vmem [#allocation3], %s293
        // Predicated region
        $region41: #{gpt2_transformer_block.8} parent=39 // pred_check
          %p295 = pneg %p59
        $region42: #{gpt2_transformer_block.8} parent=39 // pred_check_branch
          %297 = sbr.rel (%p295) target = $region44
        $region43: #{gpt2_transformer_block.8} parent=39 // pred_region
          %298 = dma.done %s291, 2048
        $region44: #{gpt2_transformer_block.8} parent=39 // pred_fallthru
          _
        %s299 = sand.u32 %s26, 1
        %s300 = scalar_lea.sflag [#allocation7], %s299
        %s301 = sand.u32 %s72, 1
        %s302 = smul.addr %s301, 256
        %s303 = scalar_lea.vmem [#allocation6], %s302
        // Predicated region
        $region45: #{gpt2_transformer_block.8} parent=39 // pred_check
          %p304 = pneg %p85
        $region46: #{gpt2_transformer_block.8} parent=39 // pred_check_branch
          %306 = sbr.rel (%p304) target = $region48
        $region47: #{gpt2_transformer_block.8} parent=39 // pred_region
          %307 = dma.done %s300, 4096
        $region48: #{gpt2_transformer_block.8} parent=39 // pred_fallthru
          _
        %s308 = sand.u32 %s26, 1
        %s309 = scalar_lea.sflag [#allocation7], %s308
        %s310 = sand.u32 %s98, 1
        %s311 = smul.addr %s310, 4
        %s312 = scalar_lea.vmem [#allocation8], %s311
        // Predicated region
        $region49: #{gpt2_transformer_block.8} parent=39 // pred_check
          %p313 = pneg %p111
        $region50: #{gpt2_transformer_block.8} parent=39 // pred_check_branch
          %315 = sbr.rel (%p313) target = $region52
        $region51: #{gpt2_transformer_block.8} parent=39 // pred_region
          %316 = dma.done %s309, 64
        $region52: #{gpt2_transformer_block.8} parent=39 // pred_fallthru
          _
        // Predicated region
        $region53: #{gpt2_transformer_block.8} parent=39 // pred_check
          %p317 = pneg %p132
        $region54: #{gpt2_transformer_block.8} parent=39 // pred_check_branch
          %319 = sbr.rel (%p317) target = $region56
        $region55: #{gpt2_transformer_block.8} parent=39 // pred_region
          %320 = dma.done [#allocation10], 16
        $region56: #{gpt2_transformer_block.8} parent=39 // pred_fallthru
          _
        // Predicated region
        $region57: #{gpt2_transformer_block.8} parent=39 // pred_check
          %p321 = pneg %p153
        $region58: #{gpt2_transformer_block.8} parent=39 // pred_check_branch
          %323 = sbr.rel (%p321) target = $region60
        $region59: #{gpt2_transformer_block.8} parent=39 // pred_region
          %324 = dma.done [#allocation10], 16
        $region60: #{gpt2_transformer_block.8} parent=39 // pred_fallthru
          _
        %s325 = sand.u32 %s46, 1
        %s326 = scalar_lea.sflag [#allocation4], %s325
        %s327 = sand.u32 %s46, 1
        %s328 = smul.addr %s327, 128
        %s329 = scalar_lea.vmem [#allocation3], %s328
        %p330 = pneg %p59
        %p331 = pneg %p56
        %s332 = sand.u32 %s26, 1
        %s333 = scalar_lea.sflag [#allocation7], %s332
        %s334 = sand.u32 %s72, 1
        %s335 = smul.addr %s334, 256
        %s336 = scalar_lea.vmem [#allocation6], %s335
        %p337 = pneg %p85
        %p338 = pneg %p82
        %s339 = sand.u32 %s26, 1
        %s340 = scalar_lea.sflag [#allocation7], %s339
        %s341 = sand.u32 %s98, 1
        %s342 = smul.addr %s341, 4
        %s343 = scalar_lea.vmem [#allocation8], %s342
        %p344 = pneg %p111
        %p345 = pneg %p108
        %p346 = pneg %p132
        %p347 = pneg %p129
        %p348 = pneg %p153
        %p349 = pneg %p150
        %p350 = pneg %p181
        %p351 = pneg %p178
        %s352 = sand.u32 %s168, 1
        %s353 = scalar_lea.sflag [#allocation5], %s352
        %s354 = sand.u32 %s168, 1
        %s355 = smul.addr %s354, 512
        %s356 = scalar_lea.vmem [#allocation12], %s355
        %s357 = smul.u32 16, %s30
        %s358 = smul.u32 4, %s31
        %s359 = smul.u32 4, %s31
        %s360 = smul.u32 16, %s30
        %s361 = smul.u32 4, %s31
        %p363 = scmp.eq.s32.totalorder %s31, 0
        // Predicated region
        $region61: #{gpt2_transformer_block.8} parent=39 // pred_check
          %p364 = pneg %p363
        $region62: #{gpt2_transformer_block.8} parent=39 // pred_check_branch
          %366 = sbr.rel (%p364) target = $region64
        $region63: #{gpt2_transformer_block.8} parent=39 // pred_region
          %v367 = vld [vmem:[%s294] sm:$0xff]
          %v368 = vld [vmem:[%s294 + $0x8] sm:$0xff]
          %v369 = vld [vmem:[%s294 + $0x10] sm:$0xff]
          %v370 = vld [vmem:[%s294 + $0x18] sm:$0xff]
          %v371 = vld [vmem:[%s294 + $0x20] sm:$0xff]
          %v372 = vld [vmem:[%s294 + $0x28] sm:$0xff]
          %v373 = vld [vmem:[%s294 + $0x30] sm:$0xff]
          %v374 = vld [vmem:[%s294 + $0x38] sm:$0xff]
          %v375 = vld [vmem:[%s294 + $0x40] sm:$0xff]
          %v376 = vld [vmem:[%s294 + $0x48] sm:$0xff]
          %v377 = vld [vmem:[%s294 + $0x50] sm:$0xff]
          %v378 = vld [vmem:[%s294 + $0x58] sm:$0xff]
          %v379 = vld [vmem:[%s294 + $0x60] sm:$0xff]
          %v380 = vld [vmem:[%s294 + $0x68] sm:$0xff]
          %v381 = vld [vmem:[%s294 + $0x70] sm:$0xff]
          %v382 = vld [vmem:[%s294 + $0x78] sm:$0xff]
          %383 = vadd.xlane.f32.xlu0 %v367
          %v384 = vpop.xlane.xlu0 %383
          %385 = vadd.xlane.f32.xlu0 %v368
          %v386 = vpop.xlane.xlu0 %385
          %387 = vadd.xlane.f32.xlu0 %v369
          %v388 = vpop.xlane.xlu0 %387
          %389 = vadd.xlane.f32.xlu0 %v370
          %v390 = vpop.xlane.xlu0 %389
          %391 = vadd.xlane.f32.xlu0 %v371
          %v392 = vpop.xlane.xlu0 %391
          %393 = vadd.xlane.f32.xlu0 %v372
          %v394 = vpop.xlane.xlu0 %393
          %395 = vadd.xlane.f32.xlu0 %v373
          %v396 = vpop.xlane.xlu0 %395
          %397 = vadd.xlane.f32.xlu0 %v374
          %v398 = vpop.xlane.xlu0 %397
          %399 = vadd.xlane.f32.xlu0 %v375
          %v400 = vpop.xlane.xlu0 %399
          %401 = vadd.xlane.f32.xlu0 %v376
          %v402 = vpop.xlane.xlu0 %401
          %403 = vadd.xlane.f32.xlu0 %v377
          %v404 = vpop.xlane.xlu0 %403
          %405 = vadd.xlane.f32.xlu0 %v378
          %v406 = vpop.xlane.xlu0 %405
          %407 = vadd.xlane.f32.xlu0 %v379
          %v408 = vpop.xlane.xlu0 %407
          %409 = vadd.xlane.f32.xlu0 %v380
          %v410 = vpop.xlane.xlu0 %409
          %411 = vadd.xlane.f32.xlu0 %v381
          %v412 = vpop.xlane.xlu0 %411
          %413 = vadd.xlane.f32.xlu0 %v382
          %v414 = vpop.xlane.xlu0 %413
          %v415 = vrcp.pop 128.0
          %v416 = vmul.f32 %v384, %v415
          %v417 = vmul.f32 %v386, %v415
          %v418 = vmul.f32 %v388, %v415
          %v419 = vmul.f32 %v390, %v415
          %v420 = vmul.f32 %v392, %v415
          %v421 = vmul.f32 %v394, %v415
          %v422 = vmul.f32 %v396, %v415
          %v423 = vmul.f32 %v398, %v415
          %v424 = vmul.f32 %v400, %v415
          %v425 = vmul.f32 %v402, %v415
          %v426 = vmul.f32 %v404, %v415
          %v427 = vmul.f32 %v406, %v415
          %v428 = vmul.f32 %v408, %v415
          %v429 = vmul.f32 %v410, %v415
          %v430 = vmul.f32 %v412, %v415
          %v431 = vmul.f32 %v414, %v415
          %v432 = vsub.f32 %v367, %v416
          %v433 = vsub.f32 %v368, %v417
          %v434 = vsub.f32 %v369, %v418
          %v435 = vsub.f32 %v370, %v419
          %v436 = vsub.f32 %v371, %v420
          %v437 = vsub.f32 %v372, %v421
          %v438 = vsub.f32 %v373, %v422
          %v439 = vsub.f32 %v374, %v423
          %v440 = vsub.f32 %v375, %v424
          %v441 = vsub.f32 %v376, %v425
          %v442 = vsub.f32 %v377, %v426
          %v443 = vsub.f32 %v378, %v427
          %v444 = vsub.f32 %v379, %v428
          %v445 = vsub.f32 %v380, %v429
          %v446 = vsub.f32 %v381, %v430
          %v447 = vsub.f32 %v382, %v431
          %v448 = vmul.f32 %v432, %v432
          %v449 = vmul.f32 %v433, %v433
          %v450 = vmul.f32 %v434, %v434
          %v451 = vmul.f32 %v435, %v435
          %v452 = vmul.f32 %v436, %v436
          %v453 = vmul.f32 %v437, %v437
          %v454 = vmul.f32 %v438, %v438
          %v455 = vmul.f32 %v439, %v439
          %v456 = vmul.f32 %v440, %v440
          %v457 = vmul.f32 %v441, %v441
          %v458 = vmul.f32 %v442, %v442
          %v459 = vmul.f32 %v443, %v443
          %v460 = vmul.f32 %v444, %v444
          %v461 = vmul.f32 %v445, %v445
          %v462 = vmul.f32 %v446, %v446
          %v463 = vmul.f32 %v447, %v447
          %464 = vadd.xlane.f32.xlu0 %v448
          %v465 = vpop.xlane.xlu0 %464
          %466 = vadd.xlane.f32.xlu0 %v449
          %v467 = vpop.xlane.xlu0 %466
          %468 = vadd.xlane.f32.xlu0 %v450
          %v469 = vpop.xlane.xlu0 %468
          %470 = vadd.xlane.f32.xlu0 %v451
          %v471 = vpop.xlane.xlu0 %470
          %472 = vadd.xlane.f32.xlu0 %v452
          %v473 = vpop.xlane.xlu0 %472
          %474 = vadd.xlane.f32.xlu0 %v453
          %v475 = vpop.xlane.xlu0 %474
          %476 = vadd.xlane.f32.xlu0 %v454
          %v477 = vpop.xlane.xlu0 %476
          %478 = vadd.xlane.f32.xlu0 %v455
          %v479 = vpop.xlane.xlu0 %478
          %480 = vadd.xlane.f32.xlu0 %v456
          %v481 = vpop.xlane.xlu0 %480
          %482 = vadd.xlane.f32.xlu0 %v457
          %v483 = vpop.xlane.xlu0 %482
          %484 = vadd.xlane.f32.xlu0 %v458
          %v485 = vpop.xlane.xlu0 %484
          %486 = vadd.xlane.f32.xlu0 %v459
          %v487 = vpop.xlane.xlu0 %486
          %488 = vadd.xlane.f32.xlu0 %v460
          %v489 = vpop.xlane.xlu0 %488
          %490 = vadd.xlane.f32.xlu0 %v461
          %v491 = vpop.xlane.xlu0 %490
          %492 = vadd.xlane.f32.xlu0 %v462
          %v493 = vpop.xlane.xlu0 %492
          %494 = vadd.xlane.f32.xlu0 %v463
          %v495 = vpop.xlane.xlu0 %494
          %v496 = vmul.f32 %v465, 0.007874016
          %v497 = vmul.f32 %v467, 0.007874016
          %v498 = vmul.f32 %v469, 0.007874016
          %v499 = vmul.f32 %v471, 0.007874016
          %v500 = vmul.f32 %v473, 0.007874016
          %v501 = vmul.f32 %v475, 0.007874016
          %v502 = vmul.f32 %v477, 0.007874016
          %v503 = vmul.f32 %v479, 0.007874016
          %v504 = vmul.f32 %v481, 0.007874016
          %v505 = vmul.f32 %v483, 0.007874016
          %v506 = vmul.f32 %v485, 0.007874016
          %v507 = vmul.f32 %v487, 0.007874016
          %v508 = vmul.f32 %v489, 0.007874016
          %v509 = vmul.f32 %v491, 0.007874016
          %v510 = vmul.f32 %v493, 0.007874016
          %v511 = vmul.f32 %v495, 0.007874016
          %v512 = vrsqrt.pop %v496
          %v513 = vmul.f32 %v496, %v512
          %vm514 = vcmp.eq.f32.partialorder %v496, inf
          %v515 = vsel %vm514, %v496, %v513
          %vm516 = vcmp.eq.f32.partialorder %v496, 0.0
          %v517 = vand.u32 %v496, 2147483648
          %v518 = vsel %vm516, %v517, %v515
          %v519 = vrsqrt.pop %v497
          %v520 = vmul.f32 %v497, %v519
          %vm521 = vcmp.eq.f32.partialorder %v497, inf
          %v522 = vsel %vm521, %v497, %v520
          %vm523 = vcmp.eq.f32.partialorder %v497, 0.0
          %v524 = vand.u32 %v497, 2147483648
          %v525 = vsel %vm523, %v524, %v522
          %v526 = vrsqrt.pop %v498
          %v527 = vmul.f32 %v498, %v526
          %vm528 = vcmp.eq.f32.partialorder %v498, inf
          %v529 = vsel %vm528, %v498, %v527
          %vm530 = vcmp.eq.f32.partialorder %v498, 0.0
          %v531 = vand.u32 %v498, 2147483648
          %v532 = vsel %vm530, %v531, %v529
          %v533 = vrsqrt.pop %v499
          %v534 = vmul.f32 %v499, %v533
          %vm535 = vcmp.eq.f32.partialorder %v499, inf
          %v536 = vsel %vm535, %v499, %v534
          %vm537 = vcmp.eq.f32.partialorder %v499, 0.0
          %v538 = vand.u32 %v499, 2147483648
          %v539 = vsel %vm537, %v538, %v536
          %v540 = vrsqrt.pop %v500
          %v541 = vmul.f32 %v500, %v540
          %vm542 = vcmp.eq.f32.partialorder %v500, inf
          %v543 = vsel %vm542, %v500, %v541
          %vm544 = vcmp.eq.f32.partialorder %v500, 0.0
          %v545 = vand.u32 %v500, 2147483648
          %v546 = vsel %vm544, %v545, %v543
          %v547 = vrsqrt.pop %v501
          %v548 = vmul.f32 %v501, %v547
          %vm549 = vcmp.eq.f32.partialorder %v501, inf
          %v550 = vsel %vm549, %v501, %v548
          %vm551 = vcmp.eq.f32.partialorder %v501, 0.0
          %v552 = vand.u32 %v501, 2147483648
          %v553 = vsel %vm551, %v552, %v550
          %v554 = vrsqrt.pop %v502
          %v555 = vmul.f32 %v502, %v554
          %vm556 = vcmp.eq.f32.partialorder %v502, inf
          %v557 = vsel %vm556, %v502, %v555
          %vm558 = vcmp.eq.f32.partialorder %v502, 0.0
          %v559 = vand.u32 %v502, 2147483648
          %v560 = vsel %vm558, %v559, %v557
          %v561 = vrsqrt.pop %v503
          %v562 = vmul.f32 %v503, %v561
          %vm563 = vcmp.eq.f32.partialorder %v503, inf
          %v564 = vsel %vm563, %v503, %v562
          %vm565 = vcmp.eq.f32.partialorder %v503, 0.0
          %v566 = vand.u32 %v503, 2147483648
          %v567 = vsel %vm565, %v566, %v564
          %v568 = vrsqrt.pop %v504
          %v569 = vmul.f32 %v504, %v568
          %vm570 = vcmp.eq.f32.partialorder %v504, inf
          %v571 = vsel %vm570, %v504, %v569
          %vm572 = vcmp.eq.f32.partialorder %v504, 0.0
          %v573 = vand.u32 %v504, 2147483648
          %v574 = vsel %vm572, %v573, %v571
          %v575 = vrsqrt.pop %v505
          %v576 = vmul.f32 %v505, %v575
          %vm577 = vcmp.eq.f32.partialorder %v505, inf
          %v578 = vsel %vm577, %v505, %v576
          %vm579 = vcmp.eq.f32.partialorder %v505, 0.0
          %v580 = vand.u32 %v505, 2147483648
          %v581 = vsel %vm579, %v580, %v578
          %v582 = vrsqrt.pop %v506
          %v583 = vmul.f32 %v506, %v582
          %vm584 = vcmp.eq.f32.partialorder %v506, inf
          %v585 = vsel %vm584, %v506, %v583
          %vm586 = vcmp.eq.f32.partialorder %v506, 0.0
          %v587 = vand.u32 %v506, 2147483648
          %v588 = vsel %vm586, %v587, %v585
          %v589 = vrsqrt.pop %v507
          %v590 = vmul.f32 %v507, %v589
          %vm591 = vcmp.eq.f32.partialorder %v507, inf
          %v592 = vsel %vm591, %v507, %v590
          %vm593 = vcmp.eq.f32.partialorder %v507, 0.0
          %v594 = vand.u32 %v507, 2147483648
          %v595 = vsel %vm593, %v594, %v592
          %v596 = vrsqrt.pop %v508
          %v597 = vmul.f32 %v508, %v596
          %vm598 = vcmp.eq.f32.partialorder %v508, inf
          %v599 = vsel %vm598, %v508, %v597
          %vm600 = vcmp.eq.f32.partialorder %v508, 0.0
          %v601 = vand.u32 %v508, 2147483648
          %v602 = vsel %vm600, %v601, %v599
          %v603 = vrsqrt.pop %v509
          %v604 = vmul.f32 %v509, %v603
          %vm605 = vcmp.eq.f32.partialorder %v509, inf
          %v606 = vsel %vm605, %v509, %v604
          %vm607 = vcmp.eq.f32.partialorder %v509, 0.0
          %v608 = vand.u32 %v509, 2147483648
          %v609 = vsel %vm607, %v608, %v606
          %v610 = vrsqrt.pop %v510
          %v611 = vmul.f32 %v510, %v610
          %vm612 = vcmp.eq.f32.partialorder %v510, inf
          %v613 = vsel %vm612, %v510, %v611
          %vm614 = vcmp.eq.f32.partialorder %v510, 0.0
          %v615 = vand.u32 %v510, 2147483648
          %v616 = vsel %vm614, %v615, %v613
          %v617 = vrsqrt.pop %v511
          %v618 = vmul.f32 %v511, %v617
          %vm619 = vcmp.eq.f32.partialorder %v511, inf
          %v620 = vsel %vm619, %v511, %v618
          %vm621 = vcmp.eq.f32.partialorder %v511, 0.0
          %v622 = vand.u32 %v511, 2147483648
          %v623 = vsel %vm621, %v622, %v620
          %v624 = vadd.f32 %v518, 1e-06
          %v625 = vadd.f32 %v525, 1e-06
          %v626 = vadd.f32 %v532, 1e-06
          %v627 = vadd.f32 %v539, 1e-06
          %v628 = vadd.f32 %v546, 1e-06
          %v629 = vadd.f32 %v553, 1e-06
          %v630 = vadd.f32 %v560, 1e-06
          %v631 = vadd.f32 %v567, 1e-06
          %v632 = vadd.f32 %v574, 1e-06
          %v633 = vadd.f32 %v581, 1e-06
          %v634 = vadd.f32 %v588, 1e-06
          %v635 = vadd.f32 %v595, 1e-06
          %v636 = vadd.f32 %v602, 1e-06
          %v637 = vadd.f32 %v609, 1e-06
          %v638 = vadd.f32 %v616, 1e-06
          %v639 = vadd.f32 %v623, 1e-06
          %v640 = vrcp.pop %v624
          %v641 = vrcp.pop %v625
          %v642 = vrcp.pop %v626
          %v643 = vrcp.pop %v627
          %v644 = vrcp.pop %v628
          %v645 = vrcp.pop %v629
          %v646 = vrcp.pop %v630
          %v647 = vrcp.pop %v631
          %v648 = vrcp.pop %v632
          %v649 = vrcp.pop %v633
          %v650 = vrcp.pop %v634
          %v651 = vrcp.pop %v635
          %v652 = vrcp.pop %v636
          %v653 = vrcp.pop %v637
          %v654 = vrcp.pop %v638
          %v655 = vrcp.pop %v639
          %v656 = vld [vmem:[#allocation9] sm:$0x1]
          %v657 = vld [vmem:[#allocation11] sm:$0x1]
          %v658 = vmul.f32 %v432, %v640
          %v659 = vmul.f32 %v433, %v641
          %v660 = vmul.f32 %v434, %v642
          %v661 = vmul.f32 %v435, %v643
          %v662 = vmul.f32 %v436, %v644
          %v663 = vmul.f32 %v437, %v645
          %v664 = vmul.f32 %v438, %v646
          %v665 = vmul.f32 %v439, %v647
          %v666 = vmul.f32 %v440, %v648
          %v667 = vmul.f32 %v441, %v649
          %v668 = vmul.f32 %v442, %v650
          %v669 = vmul.f32 %v443, %v651
          %v670 = vmul.f32 %v444, %v652
          %v671 = vmul.f32 %v445, %v653
          %v672 = vmul.f32 %v446, %v654
          %v673 = vmul.f32 %v447, %v655
          %v675 = vlaneseq
          %v676 = vshrl.u32 %v675, 7
          %v677 = vsub.s32 0, %v676
          %v678 = vrot.slane %v656, %v677
          %v680 = vmul.f32 %v678, %v658
          %v681 = vmul.f32 %v678, %v659
          %v682 = vmul.f32 %v678, %v660
          %v683 = vmul.f32 %v678, %v661
          %v684 = vmul.f32 %v678, %v662
          %v685 = vmul.f32 %v678, %v663
          %v686 = vmul.f32 %v678, %v664
          %v687 = vmul.f32 %v678, %v665
          %v688 = vmul.f32 %v678, %v666
          %v689 = vmul.f32 %v678, %v667
          %v690 = vmul.f32 %v678, %v668
          %v691 = vmul.f32 %v678, %v669
          %v692 = vmul.f32 %v678, %v670
          %v693 = vmul.f32 %v678, %v671
          %v694 = vmul.f32 %v678, %v672
          %v695 = vmul.f32 %v678, %v673
          %v697 = vlaneseq
          %v698 = vshrl.u32 %v697, 7
          %v699 = vsub.s32 0, %v698
          %v700 = vrot.slane %v657, %v699
          %v702 = vadd.f32 %v680, %v700
          %v703 = vadd.f32 %v681, %v700
          %v704 = vadd.f32 %v682, %v700
          %v705 = vadd.f32 %v683, %v700
          %v706 = vadd.f32 %v684, %v700
          %v707 = vadd.f32 %v685, %v700
          %v708 = vadd.f32 %v686, %v700
          %v709 = vadd.f32 %v687, %v700
          %v710 = vadd.f32 %v688, %v700
          %v711 = vadd.f32 %v689, %v700
          %v712 = vadd.f32 %v690, %v700
          %v713 = vadd.f32 %v691, %v700
          %v714 = vadd.f32 %v692, %v700
          %v715 = vadd.f32 %v693, %v700
          %v716 = vadd.f32 %v694, %v700
          %v717 = vadd.f32 %v695, %v700
          %v718 = vpack.c.bf16 %v703, %v702
          %v719 = vpack.c.bf16 %v705, %v704
          %v720 = vpack.c.bf16 %v707, %v706
          %v721 = vpack.c.bf16 %v709, %v708
          %v722 = vpack.c.bf16 %v711, %v710
          %v723 = vpack.c.bf16 %v713, %v712
          %v724 = vpack.c.bf16 %v715, %v714
          %v725 = vpack.c.bf16 %v717, %v716
          %726 = vst [vmem:[#allocation2] sm:$0xff] %v718
          %727 = vst [vmem:[#allocation2 + $0x8] sm:$0xff] %v719
          %728 = vst [vmem:[#allocation2 + $0x10] sm:$0xff] %v720
          %729 = vst [vmem:[#allocation2 + $0x18] sm:$0xff] %v721
          %730 = vst [vmem:[#allocation2 + $0x20] sm:$0xff] %v722
          %731 = vst [vmem:[#allocation2 + $0x28] sm:$0xff] %v723
          %732 = vst [vmem:[#allocation2 + $0x30] sm:$0xff] %v724
          %733 = vst [vmem:[#allocation2 + $0x38] sm:$0xff] %v725
        $region64: #{gpt2_transformer_block.8} parent=39 // pred_fallthru
          _
        %v734 = vld [vmem:[#allocation2] sm:$0xff]
        %v735 = vld [vmem:[#allocation2 + $0x8] sm:$0xff]
        %v736 = vld [vmem:[#allocation2 + $0x10] sm:$0xff]
        %v737 = vld [vmem:[#allocation2 + $0x18] sm:$0xff]
        %v738 = vld [vmem:[#allocation2 + $0x20] sm:$0xff]
        %v739 = vld [vmem:[#allocation2 + $0x28] sm:$0xff]
        %v740 = vld [vmem:[#allocation2 + $0x30] sm:$0xff]
        %v741 = vld [vmem:[#allocation2 + $0x38] sm:$0xff]
        %v742 = vld [vmem:[%s303] sm:$0xff]
        %v743 = vld [vmem:[%s303 + $0x8] sm:$0xff]
        %v744 = vld [vmem:[%s303 + $0x10] sm:$0xff]
        %v745 = vld [vmem:[%s303 + $0x18] sm:$0xff]
        %v746 = vld [vmem:[%s303 + $0x20] sm:$0xff]
        %v747 = vld [vmem:[%s303 + $0x28] sm:$0xff]
        %v748 = vld [vmem:[%s303 + $0x30] sm:$0xff]
        %v749 = vld [vmem:[%s303 + $0x38] sm:$0xff]
        %v750 = vld [vmem:[%s303 + $0x40] sm:$0xff]
        %v751 = vld [vmem:[%s303 + $0x48] sm:$0xff]
        %v752 = vld [vmem:[%s303 + $0x50] sm:$0xff]
        %v753 = vld [vmem:[%s303 + $0x58] sm:$0xff]
        %v754 = vld [vmem:[%s303 + $0x60] sm:$0xff]
        %v755 = vld [vmem:[%s303 + $0x68] sm:$0xff]
        %v756 = vld [vmem:[%s303 + $0x70] sm:$0xff]
        %v757 = vld [vmem:[%s303 + $0x78] sm:$0xff]
        %v758 = vld [vmem:[%s303 + $0x80] sm:$0xff]
        %v759 = vld [vmem:[%s303 + $0x88] sm:$0xff]
        %v760 = vld [vmem:[%s303 + $0x90] sm:$0xff]
        %v761 = vld [vmem:[%s303 + $0x98] sm:$0xff]
        %v762 = vld [vmem:[%s303 + $0xa0] sm:$0xff]
        %v763 = vld [vmem:[%s303 + $0xa8] sm:$0xff]
        %v764 = vld [vmem:[%s303 + $0xb0] sm:$0xff]
        %v765 = vld [vmem:[%s303 + $0xb8] sm:$0xff]
        %v766 = vld [vmem:[%s303 + $0xc0] sm:$0xff]
        %v767 = vld [vmem:[%s303 + $0xc8] sm:$0xff]
        %v768 = vld [vmem:[%s303 + $0xd0] sm:$0xff]
        %v769 = vld [vmem:[%s303 + $0xd8] sm:$0xff]
        %v770 = vld [vmem:[%s303 + $0xe0] sm:$0xff]
        %v771 = vld [vmem:[%s303 + $0xe8] sm:$0xff]
        %v772 = vld [vmem:[%s303 + $0xf0] sm:$0xff]
        %v773 = vld [vmem:[%s303 + $0xf8] sm:$0xff]
        %v774 = vld [vmem:[%s312] sm:$0xf]
        %v776 = vlaneseq
        %v777 = vshrl.u32 %v776, 7
        %v778 = vsub.s32 0, %v777
        %v779 = vrot.slane %v774, %v778
        %v780 = vlaneseq
        %v781 = vshrl.u32 %v780, 7
        %v782 = vsub.s32 1, %v781
        %v783 = vrot.slane %v774, %v782
        %v784 = vlaneseq
        %v785 = vshrl.u32 %v784, 7
        %v786 = vsub.s32 2, %v785
        %v787 = vrot.slane %v774, %v786
        %v788 = vlaneseq
        %v789 = vshrl.u32 %v788, 7
        %v790 = vsub.s32 3, %v789
        %v791 = vrot.slane %v774, %v790
        %v828 = vunpack.c.l.b16 %v742
        %v829 = vunpack.c.h.b16 %v742
        %v830 = vunpack.c.l.b16 %v743
        %v831 = vunpack.c.h.b16 %v743
        %v832 = vunpack.c.l.b16 %v744
        %v833 = vunpack.c.h.b16 %v744
        %v834 = vunpack.c.l.b16 %v745
        %v835 = vunpack.c.h.b16 %v745
        %v836 = vunpack.c.l.b16 %v746
        %v837 = vunpack.c.h.b16 %v746
        %v838 = vunpack.c.l.b16 %v747
        %v839 = vunpack.c.h.b16 %v747
        %v840 = vunpack.c.l.b16 %v748
        %v841 = vunpack.c.h.b16 %v748
        %v842 = vunpack.c.l.b16 %v749
        %v843 = vunpack.c.h.b16 %v749
        %v844 = vunpack.c.l.b16 %v750
        %v845 = vunpack.c.h.b16 %v750
        %v846 = vunpack.c.l.b16 %v751
        %v847 = vunpack.c.h.b16 %v751
        %v848 = vunpack.c.l.b16 %v752
        %v849 = vunpack.c.h.b16 %v752
        %v850 = vunpack.c.l.b16 %v753
        %v851 = vunpack.c.h.b16 %v753
        %v852 = vunpack.c.l.b16 %v754
        %v853 = vunpack.c.h.b16 %v754
        %v854 = vunpack.c.l.b16 %v755
        %v855 = vunpack.c.h.b16 %v755
        %v856 = vunpack.c.l.b16 %v756
        %v857 = vunpack.c.h.b16 %v756
        %v858 = vunpack.c.l.b16 %v757
        %v859 = vunpack.c.h.b16 %v757
        %v860 = vunpack.c.l.b16 %v758
        %v861 = vunpack.c.h.b16 %v758
        %v862 = vunpack.c.l.b16 %v759
        %v863 = vunpack.c.h.b16 %v759
        %v864 = vunpack.c.l.b16 %v760
        %v865 = vunpack.c.h.b16 %v760
        %v866 = vunpack.c.l.b16 %v761
        %v867 = vunpack.c.h.b16 %v761
        %v868 = vunpack.c.l.b16 %v762
        %v869 = vunpack.c.h.b16 %v762
        %v870 = vunpack.c.l.b16 %v763
        %v871 = vunpack.c.h.b16 %v763
        %v872 = vunpack.c.l.b16 %v764
        %v873 = vunpack.c.h.b16 %v764
        %v874 = vunpack.c.l.b16 %v765
        %v875 = vunpack.c.h.b16 %v765
        %v876 = vunpack.c.l.b16 %v766
        %v877 = vunpack.c.h.b16 %v766
        %v878 = vunpack.c.l.b16 %v767
        %v879 = vunpack.c.h.b16 %v767
        %v880 = vunpack.c.l.b16 %v768
        %v881 = vunpack.c.h.b16 %v768
        %v882 = vunpack.c.l.b16 %v769
        %v883 = vunpack.c.h.b16 %v769
        %v884 = vunpack.c.l.b16 %v770
        %v885 = vunpack.c.h.b16 %v770
        %v886 = vunpack.c.l.b16 %v771
        %v887 = vunpack.c.h.b16 %v771
        %v888 = vunpack.c.l.b16 %v772
        %v889 = vunpack.c.h.b16 %v772
        %v890 = vunpack.c.l.b16 %v773
        %v891 = vunpack.c.h.b16 %v773
        %v892 = vpack.c.b16 %v832, %v828
        %v893 = vpack.c.b16 %v833, %v829
        %v894 = vpack.c.b16 %v834, %v830
        %v895 = vpack.c.b16 %v835, %v831
        %v896 = vpack.c.b16 %v840, %v836
        %v897 = vpack.c.b16 %v841, %v837
        %v898 = vpack.c.b16 %v842, %v838
        %v899 = vpack.c.b16 %v843, %v839
        %v900 = vpack.c.b16 %v848, %v844
        %v901 = vpack.c.b16 %v849, %v845
        %v902 = vpack.c.b16 %v850, %v846
        %v903 = vpack.c.b16 %v851, %v847
        %v904 = vpack.c.b16 %v856, %v852
        %v905 = vpack.c.b16 %v857, %v853
        %v906 = vpack.c.b16 %v858, %v854
        %v907 = vpack.c.b16 %v859, %v855
        %v908 = vpack.c.b16 %v864, %v860
        %v909 = vpack.c.b16 %v865, %v861
        %v910 = vpack.c.b16 %v866, %v862
        %v911 = vpack.c.b16 %v867, %v863
        %v912 = vpack.c.b16 %v872, %v868
        %v913 = vpack.c.b16 %v873, %v869
        %v914 = vpack.c.b16 %v874, %v870
        %v915 = vpack.c.b16 %v875, %v871
        %v916 = vpack.c.b16 %v880, %v876
        %v917 = vpack.c.b16 %v881, %v877
        %v918 = vpack.c.b16 %v882, %v878
        %v919 = vpack.c.b16 %v883, %v879
        %v920 = vpack.c.b16 %v888, %v884
        %v921 = vpack.c.b16 %v889, %v885
        %v922 = vpack.c.b16 %v890, %v886
        %v923 = vpack.c.b16 %v891, %v887
        %956 = vmatprep.subr.bf16.mxu0 %v893
        %957 = vmatpush1.bf16.msra.mxu0 %v892
        %958 = vmatprep.subr.bf16.mxu0 %v897
        %959 = vmatpush1.bf16.msra.mxu0 %v896
        %960 = vmatprep.subr.bf16.mxu0 %v901
        %961 = vmatpush1.bf16.msra.mxu0 %v900
        %962 = vmatprep.subr.bf16.mxu0 %v905
        %963 = vmatpush1.bf16.msra.mxu0 %v904
        %964 = vmatprep.subr.bf16.mxu0 %v909
        %965 = vmatpush1.bf16.msra.mxu0 %v908
        %966 = vmatprep.subr.bf16.mxu0 %v913
        %967 = vmatpush1.bf16.msra.mxu0 %v912
        %968 = vmatprep.subr.bf16.mxu0 %v917
        %969 = vmatpush1.bf16.msra.mxu0 %v916
        %970 = vmatprep.subr.bf16.mxu0 %v921
        %971 = vmatpush1.bf16.msra.mxu0 %v920
        %972 = vmatprep.subr.bf16.mxu0 0
        %973 = vmatpush1.bf16.msra.mxu0 0
        %974 = vmatprep.subr.bf16.mxu0 0
        %975 = vmatpush1.bf16.msra.mxu0 0
        %976 = vmatprep.subr.bf16.mxu0 0
        %977 = vmatpush1.bf16.msra.mxu0 0
        %978 = vmatprep.subr.bf16.mxu0 0
        %979 = vmatpush1.bf16.msra.mxu0 0
        %980 = vmatprep.subr.bf16.mxu0 0
        %981 = vmatpush1.bf16.msra.mxu0 0
        %982 = vmatprep.subr.bf16.mxu0 0
        %983 = vmatpush1.bf16.msra.mxu0 0
        %984 = vmatprep.subr.bf16.mxu0 0
        %985 = vmatpush1.bf16.msra.mxu0 0
        %986 = vmatprep.subr.bf16.mxu0 0
        %987 = vmatpush1.bf16.msra.mxu0 0
        %988 = vmatprep.mubr.bf16.mxu0 0
        %989 = vmatmul.mubr.bf16.gmra.mrb[0].mxu0 %v734
        %v990 = vpop.f32.mrb[0].mxu0
        %v991 = vadd.f32 %v779, %v990
        %v992 = vpop.f32.mrb[0].mxu0
        %v993 = vadd.f32 %v783, %v992
        %v994 = vpop.f32.mrb[0].mxu0
        %v995 = vadd.f32 %v779, %v994
        %v996 = vpop.f32.mrb[0].mxu0
        %v997 = vadd.f32 %v783, %v996
        %998 = vmatprep.mubr.bf16.mxu0 0
        %999 = vmatmul.mubr.bf16.gmra.mrb[0].mxu0 %v735
        %v1000 = vpop.f32.mrb[0].mxu0
        %v1001 = vadd.f32 %v779, %v1000
        %v1002 = vpop.f32.mrb[0].mxu0
        %v1003 = vadd.f32 %v783, %v1002
        %v1004 = vpop.f32.mrb[0].mxu0
        %v1005 = vadd.f32 %v779, %v1004
        %v1006 = vpop.f32.mrb[0].mxu0
        %v1007 = vadd.f32 %v783, %v1006
        %1008 = vmatprep.mubr.bf16.mxu0 0
        %1009 = vmatmul.mubr.bf16.gmra.mrb[0].mxu0 %v736
        %v1010 = vpop.f32.mrb[0].mxu0
        %v1011 = vadd.f32 %v779, %v1010
        %v1012 = vpop.f32.mrb[0].mxu0
        %v1013 = vadd.f32 %v783, %v1012
        %v1014 = vpop.f32.mrb[0].mxu0
        %v1015 = vadd.f32 %v779, %v1014
        %v1016 = vpop.f32.mrb[0].mxu0
        %v1017 = vadd.f32 %v783, %v1016
        %1018 = vmatprep.mubr.bf16.mxu0 0
        %1019 = vmatmul.mubr.bf16.gmra.mrb[0].mxu0 %v737
        %v1020 = vpop.f32.mrb[0].mxu0
        %v1021 = vadd.f32 %v779, %v1020
        %v1022 = vpop.f32.mrb[0].mxu0
        %v1023 = vadd.f32 %v783, %v1022
        %v1024 = vpop.f32.mrb[0].mxu0
        %v1025 = vadd.f32 %v779, %v1024
        %v1026 = vpop.f32.mrb[0].mxu0
        %v1027 = vadd.f32 %v783, %v1026
        %1028 = vmatprep.mubr.bf16.mxu0 0
        %1029 = vmatmul.mubr.bf16.gmra.mrb[0].mxu0 %v738
        %v1030 = vpop.f32.mrb[0].mxu0
        %v1031 = vadd.f32 %v779, %v1030
        %v1032 = vpop.f32.mrb[0].mxu0
        %v1033 = vadd.f32 %v783, %v1032
        %v1034 = vpop.f32.mrb[0].mxu0
        %v1035 = vadd.f32 %v779, %v1034
        %v1036 = vpop.f32.mrb[0].mxu0
        %v1037 = vadd.f32 %v783, %v1036
        %1038 = vmatprep.mubr.bf16.mxu0 0
        %1039 = vmatmul.mubr.bf16.gmra.mrb[0].mxu0 %v739
        %v1040 = vpop.f32.mrb[0].mxu0
        %v1041 = vadd.f32 %v779, %v1040
        %v1042 = vpop.f32.mrb[0].mxu0
        %v1043 = vadd.f32 %v783, %v1042
        %v1044 = vpop.f32.mrb[0].mxu0
        %v1045 = vadd.f32 %v779, %v1044
        %v1046 = vpop.f32.mrb[0].mxu0
        %v1047 = vadd.f32 %v783, %v1046
        %1048 = vmatprep.mubr.bf16.mxu0 0
        %1049 = vmatmul.mubr.bf16.gmra.mrb[0].mxu0 %v740
        %v1050 = vpop.f32.mrb[0].mxu0
        %v1051 = vadd.f32 %v779, %v1050
        %v1052 = vpop.f32.mrb[0].mxu0
        %v1053 = vadd.f32 %v783, %v1052
        %v1054 = vpop.f32.mrb[0].mxu0
        %v1055 = vadd.f32 %v779, %v1054
        %v1056 = vpop.f32.mrb[0].mxu0
        %v1057 = vadd.f32 %v783, %v1056
        %1058 = vmatprep.mubr.bf16.mxu0 0
        %1059 = vmatmul.mubr.bf16.gmra.mrb[0].mxu0 %v741
        %v1060 = vpop.f32.mrb[0].mxu0
        %v1061 = vadd.f32 %v779, %v1060
        %v1062 = vpop.f32.mrb[0].mxu0
        %v1063 = vadd.f32 %v783, %v1062
        %v1064 = vpop.f32.mrb[0].mxu0
        %v1065 = vadd.f32 %v779, %v1064
        %v1066 = vpop.f32.mrb[0].mxu0
        %v1067 = vadd.f32 %v783, %v1066
        %1068 = vdwg.mxu0
        %1069 = vmatprep.subr.bf16.mxu0 %v895
        %1070 = vmatpush1.bf16.msra.mxu0 %v894
        %1071 = vmatprep.subr.bf16.mxu0 %v899
        %1072 = vmatpush1.bf16.msra.mxu0 %v898
        %1073 = vmatprep.subr.bf16.mxu0 %v903
        %1074 = vmatpush1.bf16.msra.mxu0 %v902
        %1075 = vmatprep.subr.bf16.mxu0 %v907
        %1076 = vmatpush1.bf16.msra.mxu0 %v906
        %1077 = vmatprep.subr.bf16.mxu0 %v911
        %1078 = vmatpush1.bf16.msra.mxu0 %v910
        %1079 = vmatprep.subr.bf16.mxu0 %v915
        %1080 = vmatpush1.bf16.msra.mxu0 %v914
        %1081 = vmatprep.subr.bf16.mxu0 %v919
        %1082 = vmatpush1.bf16.msra.mxu0 %v918
        %1083 = vmatprep.subr.bf16.mxu0 %v923
        %1084 = vmatpush1.bf16.msra.mxu0 %v922
        %1085 = vmatprep.subr.bf16.mxu0 0
        %1086 = vmatpush1.bf16.msra.mxu0 0
        %1087 = vmatprep.subr.bf16.mxu0 0
        %1088 = vmatpush1.bf16.msra.mxu0 0
        %1089 = vmatprep.subr.bf16.mxu0 0
        %1090 = vmatpush1.bf16.msra.mxu0 0
        %1091 = vmatprep.subr.bf16.mxu0 0
        %1092 = vmatpush1.bf16.msra.mxu0 0
        %1093 = vmatprep.subr.bf16.mxu0 0
        %1094 = vmatpush1.bf16.msra.mxu0 0
        %1095 = vmatprep.subr.bf16.mxu0 0
        %1096 = vmatpush1.bf16.msra.mxu0 0
        %1097 = vmatprep.subr.bf16.mxu0 0
        %1098 = vmatpush1.bf16.msra.mxu0 0
        %1099 = vmatprep.subr.bf16.mxu0 0
        %1100 = vmatpush1.bf16.msra.mxu0 0
        %1101 = vmatprep.mubr.bf16.mxu0 0
        %1102 = vmatmul.mubr.bf16.gmra.mrb[0].mxu0 %v734
        %v1103 = vpop.f32.mrb[0].mxu0
        %v1104 = vadd.f32 %v787, %v1103
        %v1105 = vpop.f32.mrb[0].mxu0
        %v1106 = vadd.f32 %v791, %v1105
        %v1107 = vpop.f32.mrb[0].mxu0
        %v1108 = vadd.f32 %v787, %v1107
        %v1109 = vpop.f32.mrb[0].mxu0
        %v1110 = vadd.f32 %v791, %v1109
        %1111 = vmatprep.mubr.bf16.mxu0 0
        %1112 = vmatmul.mubr.bf16.gmra.mrb[0].mxu0 %v735
        %v1113 = vpop.f32.mrb[0].mxu0
        %v1114 = vadd.f32 %v787, %v1113
        %v1115 = vpop.f32.mrb[0].mxu0
        %v1116 = vadd.f32 %v791, %v1115
        %v1117 = vpop.f32.mrb[0].mxu0
        %v1118 = vadd.f32 %v787, %v1117
        %v1119 = vpop.f32.mrb[0].mxu0
        %v1120 = vadd.f32 %v791, %v1119
        %1121 = vmatprep.mubr.bf16.mxu0 0
        %1122 = vmatmul.mubr.bf16.gmra.mrb[0].mxu0 %v736
        %v1123 = vpop.f32.mrb[0].mxu0
        %v1124 = vadd.f32 %v787, %v1123
        %v1125 = vpop.f32.mrb[0].mxu0
        %v1126 = vadd.f32 %v791, %v1125
        %v1127 = vpop.f32.mrb[0].mxu0
        %v1128 = vadd.f32 %v787, %v1127
        %v1129 = vpop.f32.mrb[0].mxu0
        %v1130 = vadd.f32 %v791, %v1129
        %1131 = vmatprep.mubr.bf16.mxu0 0
        %1132 = vmatmul.mubr.bf16.gmra.mrb[0].mxu0 %v737
        %v1133 = vpop.f32.mrb[0].mxu0
        %v1134 = vadd.f32 %v787, %v1133
        %v1135 = vpop.f32.mrb[0].mxu0
        %v1136 = vadd.f32 %v791, %v1135
        %v1137 = vpop.f32.mrb[0].mxu0
        %v1138 = vadd.f32 %v787, %v1137
        %v1139 = vpop.f32.mrb[0].mxu0
        %v1140 = vadd.f32 %v791, %v1139
        %1141 = vmatprep.mubr.bf16.mxu0 0
        %1142 = vmatmul.mubr.bf16.gmra.mrb[0].mxu0 %v738
        %v1143 = vpop.f32.mrb[0].mxu0
        %v1144 = vadd.f32 %v787, %v1143
        %v1145 = vpop.f32.mrb[0].mxu0
        %v1146 = vadd.f32 %v791, %v1145
        %v1147 = vpop.f32.mrb[0].mxu0
        %v1148 = vadd.f32 %v787, %v1147
        %v1149 = vpop.f32.mrb[0].mxu0
        %v1150 = vadd.f32 %v791, %v1149
        %1151 = vmatprep.mubr.bf16.mxu0 0
        %1152 = vmatmul.mubr.bf16.gmra.mrb[0].mxu0 %v739
        %v1153 = vpop.f32.mrb[0].mxu0
        %v1154 = vadd.f32 %v787, %v1153
        %v1155 = vpop.f32.mrb[0].mxu0
        %v1156 = vadd.f32 %v791, %v1155
        %v1157 = vpop.f32.mrb[0].mxu0
        %v1158 = vadd.f32 %v787, %v1157
        %v1159 = vpop.f32.mrb[0].mxu0
        %v1160 = vadd.f32 %v791, %v1159
        %1161 = vmatprep.mubr.bf16.mxu0 0
        %1162 = vmatmul.mubr.bf16.gmra.mrb[0].mxu0 %v740
        %v1163 = vpop.f32.mrb[0].mxu0
        %v1164 = vadd.f32 %v787, %v1163
        %v1165 = vpop.f32.mrb[0].mxu0
        %v1166 = vadd.f32 %v791, %v1165
        %v1167 = vpop.f32.mrb[0].mxu0
        %v1168 = vadd.f32 %v787, %v1167
        %v1169 = vpop.f32.mrb[0].mxu0
        %v1170 = vadd.f32 %v791, %v1169
        %1171 = vmatprep.mubr.bf16.mxu0 0
        %1172 = vmatmul.mubr.bf16.gmra.mrb[0].mxu0 %v741
        %v1173 = vpop.f32.mrb[0].mxu0
        %v1174 = vadd.f32 %v787, %v1173
        %v1175 = vpop.f32.mrb[0].mxu0
        %v1176 = vadd.f32 %v791, %v1175
        %v1177 = vpop.f32.mrb[0].mxu0
        %v1178 = vadd.f32 %v787, %v1177
        %v1179 = vpop.f32.mrb[0].mxu0
        %v1180 = vadd.f32 %v791, %v1179
        %1181 = vdwg.mxu0
        %v1182 = vmax.f32 %v991, 0.0
        %v1183 = vmax.f32 %v993, 0.0
        %v1184 = vmax.f32 %v1104, 0.0
        %v1185 = vmax.f32 %v1106, 0.0
        %v1186 = vmax.f32 %v995, 0.0
        %v1187 = vmax.f32 %v997, 0.0
        %v1188 = vmax.f32 %v1108, 0.0
        %v1189 = vmax.f32 %v1110, 0.0
        %v1190 = vmax.f32 %v1001, 0.0
        %v1191 = vmax.f32 %v1003, 0.0
        %v1192 = vmax.f32 %v1114, 0.0
        %v1193 = vmax.f32 %v1116, 0.0
        %v1194 = vmax.f32 %v1005, 0.0
        %v1195 = vmax.f32 %v1007, 0.0
        %v1196 = vmax.f32 %v1118, 0.0
        %v1197 = vmax.f32 %v1120, 0.0
        %v1198 = vmax.f32 %v1011, 0.0
        %v1199 = vmax.f32 %v1013, 0.0
        %v1200 = vmax.f32 %v1124, 0.0
        %v1201 = vmax.f32 %v1126, 0.0
        %v1202 = vmax.f32 %v1015, 0.0
        %v1203 = vmax.f32 %v1017, 0.0
        %v1204 = vmax.f32 %v1128, 0.0
        %v1205 = vmax.f32 %v1130, 0.0
        %v1206 = vmax.f32 %v1021, 0.0
        %v1207 = vmax.f32 %v1023, 0.0
        %v1208 = vmax.f32 %v1134, 0.0
        %v1209 = vmax.f32 %v1136, 0.0
        %v1210 = vmax.f32 %v1025, 0.0
        %v1211 = vmax.f32 %v1027, 0.0
        %v1212 = vmax.f32 %v1138, 0.0
        %v1213 = vmax.f32 %v1140, 0.0
        %v1214 = vmax.f32 %v1031, 0.0
        %v1215 = vmax.f32 %v1033, 0.0
        %v1216 = vmax.f32 %v1144, 0.0
        %v1217 = vmax.f32 %v1146, 0.0
        %v1218 = vmax.f32 %v1035, 0.0
        %v1219 = vmax.f32 %v1037, 0.0
        %v1220 = vmax.f32 %v1148, 0.0
        %v1221 = vmax.f32 %v1150, 0.0
        %v1222 = vmax.f32 %v1041, 0.0
        %v1223 = vmax.f32 %v1043, 0.0
        %v1224 = vmax.f32 %v1154, 0.0
        %v1225 = vmax.f32 %v1156, 0.0
        %v1226 = vmax.f32 %v1045, 0.0
        %v1227 = vmax.f32 %v1047, 0.0
        %v1228 = vmax.f32 %v1158, 0.0
        %v1229 = vmax.f32 %v1160, 0.0
        %v1230 = vmax.f32 %v1051, 0.0
        %v1231 = vmax.f32 %v1053, 0.0
        %v1232 = vmax.f32 %v1164, 0.0
        %v1233 = vmax.f32 %v1166, 0.0
        %v1234 = vmax.f32 %v1055, 0.0
        %v1235 = vmax.f32 %v1057, 0.0
        %v1236 = vmax.f32 %v1168, 0.0
        %v1237 = vmax.f32 %v1170, 0.0
        %v1238 = vmax.f32 %v1061, 0.0
        %v1239 = vmax.f32 %v1063, 0.0
        %v1240 = vmax.f32 %v1174, 0.0
        %v1241 = vmax.f32 %v1176, 0.0
        %v1242 = vmax.f32 %v1065, 0.0
        %v1243 = vmax.f32 %v1067, 0.0
        %v1244 = vmax.f32 %v1178, 0.0
        %v1245 = vmax.f32 %v1180, 0.0
        %1246 = vst [vmem:[%s356] sm:$0xff] %v1182
        %1247 = vst [vmem:[%s356 + $0x8] sm:$0xff] %v1183
        %1248 = vst [vmem:[%s356 + $0x10] sm:$0xff] %v1184
        %1249 = vst [vmem:[%s356 + $0x18] sm:$0xff] %v1185
        %1250 = vst [vmem:[%s356 + $0x20] sm:$0xff] %v1186
        %1251 = vst [vmem:[%s356 + $0x28] sm:$0xff] %v1187
        %1252 = vst [vmem:[%s356 + $0x30] sm:$0xff] %v1188
        %1253 = vst [vmem:[%s356 + $0x38] sm:$0xff] %v1189
        %1254 = vst [vmem:[%s356 + $0x40] sm:$0xff] %v1190
        %1255 = vst [vmem:[%s356 + $0x48] sm:$0xff] %v1191
        %1256 = vst [vmem:[%s356 + $0x50] sm:$0xff] %v1192
        %1257 = vst [vmem:[%s356 + $0x58] sm:$0xff] %v1193
        %1258 = vst [vmem:[%s356 + $0x60] sm:$0xff] %v1194
        %1259 = vst [vmem:[%s356 + $0x68] sm:$0xff] %v1195
        %1260 = vst [vmem:[%s356 + $0x70] sm:$0xff] %v1196
        %1261 = vst [vmem:[%s356 + $0x78] sm:$0xff] %v1197
        %1262 = vst [vmem:[%s356 + $0x80] sm:$0xff] %v1198
        %1263 = vst [vmem:[%s356 + $0x88] sm:$0xff] %v1199
        %1264 = vst [vmem:[%s356 + $0x90] sm:$0xff] %v1200
        %1265 = vst [vmem:[%s356 + $0x98] sm:$0xff] %v1201
        %1266 = vst [vmem:[%s356 + $0xa0] sm:$0xff] %v1202
        %1267 = vst [vmem:[%s356 + $0xa8] sm:$0xff] %v1203
        %1268 = vst [vmem:[%s356 + $0xb0] sm:$0xff] %v1204
        %1269 = vst [vmem:[%s356 + $0xb8] sm:$0xff] %v1205
        %1270 = vst [vmem:[%s356 + $0xc0] sm:$0xff] %v1206
        %1271 = vst [vmem:[%s356 + $0xc8] sm:$0xff] %v1207
        %1272 = vst [vmem:[%s356 + $0xd0] sm:$0xff] %v1208
        %1273 = vst [vmem:[%s356 + $0xd8] sm:$0xff] %v1209
        %1274 = vst [vmem:[%s356 + $0xe0] sm:$0xff] %v1210
        %1275 = vst [vmem:[%s356 + $0xe8] sm:$0xff] %v1211
        %1276 = vst [vmem:[%s356 + $0xf0] sm:$0xff] %v1212
        %1277 = vst [vmem:[%s356 + $0xf8] sm:$0xff] %v1213
        %1278 = vst [vmem:[%s356 + $0x100] sm:$0xff] %v1214
        %1279 = vst [vmem:[%s356 + $0x108] sm:$0xff] %v1215
        %1280 = vst [vmem:[%s356 + $0x110] sm:$0xff] %v1216
        %1281 = vst [vmem:[%s356 + $0x118] sm:$0xff] %v1217
        %1282 = vst [vmem:[%s356 + $0x120] sm:$0xff] %v1218
        %1283 = vst [vmem:[%s356 + $0x128] sm:$0xff] %v1219
        %1284 = vst [vmem:[%s356 + $0x130] sm:$0xff] %v1220
        %1285 = vst [vmem:[%s356 + $0x138] sm:$0xff] %v1221
        %1286 = vst [vmem:[%s356 + $0x140] sm:$0xff] %v1222
        %1287 = vst [vmem:[%s356 + $0x148] sm:$0xff] %v1223
        %1288 = vst [vmem:[%s356 + $0x150] sm:$0xff] %v1224
        %1289 = vst [vmem:[%s356 + $0x158] sm:$0xff] %v1225
        %1290 = vst [vmem:[%s356 + $0x160] sm:$0xff] %v1226
        %1291 = vst [vmem:[%s356 + $0x168] sm:$0xff] %v1227
        %1292 = vst [vmem:[%s356 + $0x170] sm:$0xff] %v1228
        %1293 = vst [vmem:[%s356 + $0x178] sm:$0xff] %v1229
        %1294 = vst [vmem:[%s356 + $0x180] sm:$0xff] %v1230
        %1295 = vst [vmem:[%s356 + $0x188] sm:$0xff] %v1231
        %1296 = vst [vmem:[%s356 + $0x190] sm:$0xff] %v1232
        %1297 = vst [vmem:[%s356 + $0x198] sm:$0xff] %v1233
        %1298 = vst [vmem:[%s356 + $0x1a0] sm:$0xff] %v1234
        %1299 = vst [vmem:[%s356 + $0x1a8] sm:$0xff] %v1235
        %1300 = vst [vmem:[%s356 + $0x1b0] sm:$0xff] %v1236
        %1301 = vst [vmem:[%s356 + $0x1b8] sm:$0xff] %v1237
        %1302 = vst [vmem:[%s356 + $0x1c0] sm:$0xff] %v1238
        %1303 = vst [vmem:[%s356 + $0x1c8] sm:$0xff] %v1239
        %1304 = vst [vmem:[%s356 + $0x1d0] sm:$0xff] %v1240
        %1305 = vst [vmem:[%s356 + $0x1d8] sm:$0xff] %v1241
        %1306 = vst [vmem:[%s356 + $0x1e0] sm:$0xff] %v1242
        %1307 = vst [vmem:[%s356 + $0x1e8] sm:$0xff] %v1243
        %1308 = vst [vmem:[%s356 + $0x1f0] sm:$0xff] %v1244
        %1309 = vst [vmem:[%s356 + $0x1f8] sm:$0xff] %v1245
        %s1310 = sand.u32 %s168, 1
        %s1311 = scalar_lea.sflag [#allocation5], %s1310
        %s1312 = sand.u32 %s168, 1
        %s1313 = smul.addr %s1312, 512
        %s1314 = scalar_lea.vmem [#allocation12], %s1313
        // Predicated region
        $region65: #{gpt2_transformer_block.8} parent=39 // pred_check
          %p1315 = pneg %p178
        $region66: #{gpt2_transformer_block.8} parent=39 // pred_check_branch
          %1317 = sbr.rel (%p1315) target = $region68
        $region67: #{gpt2_transformer_block.8} parent=39 // pred_region
          %s1318 = smul.u32 16, %s30
          %s1319 = smul.u32 4, %s31
          %s1321 = ssub.s32 8192, 8192
          %1322 = vsyncadd %s1311, %s1321
          %s1323 = smul.addr %s1318, 16
          %s1324 = sadd.s32 %s1319, %s1323
          %s1325 = smul.addr %s1324, 128
          %s1326 = scalar_lea.hbm %s5, %s1325
          %s1327 = sshll.u32 %s1314, 4
          %s1328 = int_to_ptr.vmem [resolvable:$true] %s1327
          %1333 = dma.vmem_to_hbm [thread:$0]  %s1328, 8192, %s1326, %s1311, 512, 2048, 32
        $region68: #{gpt2_transformer_block.8} parent=39 // pred_fallthru
          _
      $region40: #{gpt2_transformer_block.8} parent=5 // pred_fallthru
        _
      %p1334 = scmp.le.s32.totalorder 2, %s21
      // Predicated region
      $region69: #{gpt2_transformer_block.8} parent=5 // pred_check
        %p1335 = pneg %p1334
      $region70: #{gpt2_transformer_block.8} parent=5 // pred_check_branch
        %1337 = sbr.rel (%p1335) target = $region72
      $region71: #{gpt2_transformer_block.8} parent=5 // pred_region
        %s1338 = ssub.s32 %s21, 2
        // Predicated region
        $region73: #{gpt2_transformer_block.8} parent=71 // pred_check
          %p1339 = pneg %p184
        $region74: #{gpt2_transformer_block.8} parent=71 // pred_check_branch
          %1341 = sbr.rel (%p1339) target = $region76
        $region75: #{gpt2_transformer_block.8} parent=71 // pred_region
          %s1342 = sand.u32 %s169, 1
          %s1343 = scalar_lea.sflag [#allocation5], %s1342
          %s1344 = sand.u32 %s169, 1
          %s1345 = smul.addr %s1344, 512
          %s1346 = scalar_lea.vmem [#allocation12], %s1345
          %1347 = dma.done %s1343, 8192
        $region76: #{gpt2_transformer_block.8} parent=71 // pred_fallthru
          _
      $region72: #{gpt2_transformer_block.8} parent=5 // pred_fallthru
        _
    $region6: #{gpt2_transformer_block.8} parent=1 // loop_footer
      %s25 = sadd.s32 1, %s21
    $region7: #{gpt2_transformer_block.8} parent=1 // loop_footer_branch
      %20 = sbr.rel target = $region3
    $region8: #{gpt2_transformer_block.8} parent=1 // loop_exit
      _
    %1348 = vsyncpa [#allocation4], 1
    %s1349 = scalar_lea.sflag [#allocation4], 1
    %1350 = vsyncpa %s1349, 1
    %1351 = vsyncpa [#allocation7], 1
    %s1352 = scalar_lea.sflag [#allocation7], 1
    %1353 = vsyncpa %s1352, 1
    %1354 = vsyncpa [#allocation10], 1
    %1355 = vsyncpa [#allocation5], 1
    %s1356 = scalar_lea.sflag [#allocation5], 1
    %1357 = vsyncpa %s1356, 1

// kernel: gpt2_transformer_block.6
$region0: #{gpt2_transformer_block.6}
  #allocation0 [shape = 'u32[]', space=smem, size = 0x4, offset = 0x4, fixed_abs, tag = 'smem constant byte address 0x4 - core index']
  #allocation1 [shape = 'u32[144,128]{1,0:T(1,128)}', space=vmem, size = 0x12000, scoped, tag = 'internal scratch']
  #allocation2 [shape = 'f32[128,4]{1,0:T(8,128)}', space=vmem, size = 0x10000, scoped, tag = 'scratch operand']
  #allocation3 [shape = 'f32[128,4]{1,0:T(8,128)}', space=vmem, size = 0x10000, scoped, tag = 'scratch operand']
  #allocation4 [shape = 'f32[128,128]{1,0:T(8,128)}', space=vmem, size = 0x10000, scoped, tag = 'scratch operand']
  %s0 = inlined_call_operand.hbm [shape: f32[3,2,128,128], index: 0, kind: input, shape index: {}, may-alias: {0,1,2}]
  %s1 = inlined_call_operand.hbm [shape: f32[3,2,128,128], index: 1, kind: input, shape index: {}, may-alias: {0,1,2}]
  %s2 = inlined_call_operand.hbm [shape: f32[3,2,128,128], index: 2, kind: input, shape index: {}, may-alias: {0,1,2}]
  %s3 = inlined_call_operand.hbm [shape: f32[128,128], index: 3, kind: input, shape index: {}]
  %s4 = inlined_call_operand.hbm [shape: f32[2,1,128], index: 4, kind: input, shape index: {}]
  %s5 = inlined_call_operand.hbm [shape: f32[2,128,128], index: 5, kind: output, shape index: {}]
  %s6 = sld [smem:[#allocation0]]
  $region81: #{gpt2_transformer_block.6} parent=0
    _
  %s8 = ssub.s32 1, %s6
  %s9 = scalar_select 0, %s8, %s6
  $region1: #{gpt2_transformer_block.6} parent=0
    #allocation5 [shape = 'u8[131072]{0}', space=vmem, size = 0x20000, scoped, tag = 'input window, operand 0']
    #allocation6 [shape = 's32[2]{0}', space=sflag, size = 0x8, scoped, tag = 'scoped memory for gpt2_transformer_block.6']
    #allocation7 [shape = 's32[2]{0}', space=sflag, size = 0x8, scoped, tag = 'scoped memory for gpt2_transformer_block.6']
    #allocation8 [shape = 'u8[131072]{0}', space=vmem, size = 0x20000, scoped, tag = 'input window, operand 1']
    #allocation9 [shape = 's32[2]{0}', space=sflag, size = 0x8, scoped, tag = 'scoped memory for gpt2_transformer_block.6']
    #allocation10 [shape = 'u8[131072]{0}', space=vmem, size = 0x20000, scoped, tag = 'input window, operand 2']
    #allocation11 [shape = 'u8[65536]{0}', space=vmem, size = 0x10000, scoped, tag = 'input window, operand 3, single buffered']
    #allocation12 [shape = 's32[1]{0}', space=sflag, size = 0x4, scoped, tag = 'scoped memory for gpt2_transformer_block.6']
    #allocation13 [shape = 'u8[1024]{0}', space=vmem, size = 0x400, scoped, tag = 'input window, operand 4']
    #allocation14 [shape = 'u8[131072]{0}', space=vmem, size = 0x20000, scoped, tag = 'output window, operand 0']
    %10 = vsyncpa [#allocation6], 0
    %s11 = scalar_lea.sflag [#allocation6], 1
    %12 = vsyncpa %s11, 0
    %13 = vsyncpa [#allocation9], 0
    %s14 = scalar_lea.sflag [#allocation9], 1
    %15 = vsyncpa %s14, 0
    %16 = vsyncpa [#allocation12], 0
    %17 = vsyncpa [#allocation7], 0
    %s18 = scalar_lea.sflag [#allocation7], 1
    %19 = vsyncpa %s18, 0
    loop: start=0, step=1, limit=4
    $region2: #{gpt2_transformer_block.6} parent=1 // loop_pre_header
      _
    $region3: #{gpt2_transformer_block.6} parent=1 // loop_header
      %s21 = sphi 0, %s25
      %p22 = scmp.ge.s32.totalorder %s21, 4
      %s28 = sphi 0, %s47
      %s29 = sphi 0, %s43
      %s30 = sphi 0, %s39
      %s31 = sphi 0, %s28
      %s32 = sphi 0, %s29
      %s33 = sphi 0, %s30
      %s34 = sphi 0, %s31
      %s35 = sphi 0, %s32
      %s36 = sphi 0, %s33
      %s52 = sphi 0, %s54
      %s55 = sphi 0, %s52
      %s56 = sphi 0, %s55
      %s72 = sphi 0, %s56
      %s80 = sphi 0, %s82
      %s83 = sphi 0, %s80
      %s84 = sphi 0, %s83
      %s100 = sphi 0, %s84
      %s108 = sphi 0, %s110
      %s111 = sphi 0, %s108
      %s112 = sphi 0, %s111
      %s128 = sphi 0, %s112
      %s136 = sphi 0, %s138
      %s139 = sphi 0, %s136
      %s140 = sphi 0, %s139
      %s156 = sphi 0, %s140
      %s164 = sphi 0, %s166
      %s167 = sphi 0, %s164
      %s168 = sphi 0, %s167
      %s184 = sphi 0, %s168
      %s192 = sphi 0, %s194
      %s195 = sphi 0, %s192
      %s196 = sphi 0, %s195
      %s212 = sphi 0, %s196
    $region4: #{gpt2_transformer_block.6} parent=1 // loop_header_branch
      %24 = sbr.rel (%p22) target = $region8
    $region5: #{gpt2_transformer_block.6} parent=1 // loop_body
      %s26 = ssub.s32 %s21, 1
      %s27 = ssub.s32 %s21, 2
      %s37 = sadd.s32 1, %s30
      %p38 = scmp.ge.s32.totalorder %s37, 1
      %s39 = scalar_select %p38, 0, %s37
      %s40 = sadd.s32 1, %s29
      %s41 = scalar_select %p38, %s40, %s29
      %p42 = scmp.ge.s32.totalorder %s41, 1
      %s43 = scalar_select %p42, 0, %s41
      %s44 = sadd.s32 1, %s28
      %s45 = scalar_select %p42, %s44, %s28
      %p46 = scmp.ge.s32.totalorder %s45, 2
      %s47 = scalar_select %p46, 0, %s45
      %s48 = ssub.s32 %s28, %s47
      %s49 = ssub.s32 %s29, %s43
      %s50 = sor.u32 %s48, %s49
      %p51 = scmp.eq.s32.totalorder %s50, 0
      %s53 = sadd.s32 %s52, 1
      %s54 = scalar_select %p51, %s52, %s53
      %p57 = pneg %p51
      %p58 = scmp.eq.s32.totalorder %s21, 1
      %p59 = por %p57, %p58
      %p60 = scmp.ne.s32.totalorder %s52, %s55
      %p61 = scmp.eq.s32.totalorder %s21, 0
      %p62 = por %p60, %p61
      %p63 = scmp.ne.s32.totalorder %s52, %s55
      %p64 = scmp.eq.s32.totalorder %s26, 1
      %p65 = por %p63, %p64
      %p66 = scmp.ne.s32.totalorder %s55, %s56
      %p67 = scmp.eq.s32.totalorder %s26, 0
      %p68 = por %p66, %p67
      %p69 = scmp.ne.s32.totalorder %s55, %s56
      %p70 = scmp.eq.s32.totalorder %s27, 1
      %p71 = por %p69, %p70
      %p73 = scmp.ne.s32.totalorder %s56, %s72
      %p74 = scmp.eq.s32.totalorder %s27, 0
      %p75 = por %p73, %p74
      %s76 = ssub.s32 %s28, %s47
      %s77 = ssub.s32 %s30, %s39
      %s78 = sor.u32 %s76, %s77
      %p79 = scmp.eq.s32.totalorder %s78, 0
      %s81 = sadd.s32 %s80, 1
      %s82 = scalar_select %p79, %s80, %s81
      %p85 = pneg %p79
      %p86 = scmp.eq.s32.totalorder %s21, 1
      %p87 = por %p85, %p86
      %p88 = scmp.ne.s32.totalorder %s80, %s83
      %p89 = scmp.eq.s32.totalorder %s21, 0
      %p90 = por %p88, %p89
      %p91 = scmp.ne.s32.totalorder %s80, %s83
      %p92 = scmp.eq.s32.totalorder %s26, 1
      %p93 = por %p91, %p92
      %p94 = scmp.ne.s32.totalorder %s83, %s84
      %p95 = scmp.eq.s32.totalorder %s26, 0
      %p96 = por %p94, %p95
      %p97 = scmp.ne.s32.totalorder %s83, %s84
      %p98 = scmp.eq.s32.totalorder %s27, 1
      %p99 = por %p97, %p98
      %p101 = scmp.ne.s32.totalorder %s84, %s100
      %p102 = scmp.eq.s32.totalorder %s27, 0
      %p103 = por %p101, %p102
      %s104 = ssub.s32 %s28, %s47
      %s105 = ssub.s32 %s30, %s39
      %s106 = sor.u32 %s104, %s105
      %p107 = scmp.eq.s32.totalorder %s106, 0
      %s109 = sadd.s32 %s108, 1
      %s110 = scalar_select %p107, %s108, %s109
      %p113 = pneg %p107
      %p114 = scmp.eq.s32.totalorder %s21, 1
      %p115 = por %p113, %p114
      %p116 = scmp.ne.s32.totalorder %s108, %s111
      %p117 = scmp.eq.s32.totalorder %s21, 0
      %p118 = por %p116, %p117
      %p119 = scmp.ne.s32.totalorder %s108, %s111
      %p120 = scmp.eq.s32.totalorder %s26, 1
      %p121 = por %p119, %p120
      %p122 = scmp.ne.s32.totalorder %s111, %s112
      %p123 = scmp.eq.s32.totalorder %s26, 0
      %p124 = por %p122, %p123
      %p125 = scmp.ne.s32.totalorder %s111, %s112
      %p126 = scmp.eq.s32.totalorder %s27, 1
      %p127 = por %p125, %p126
      %p129 = scmp.ne.s32.totalorder %s112, %s128
      %p130 = scmp.eq.s32.totalorder %s27, 0
      %p131 = por %p129, %p130
      %s132 = ssub.s32 %s29, %s43
      %s133 = ssub.s32 %s30, %s39
      %s134 = sor.u32 %s132, %s133
      %p135 = scmp.eq.s32.totalorder %s134, 0
      %s137 = sadd.s32 %s136, 1
      %s138 = scalar_select %p135, %s136, %s137
      %p141 = pneg %p135
      %p142 = scmp.eq.s32.totalorder %s21, 1
      %p143 = por %p141, %p142
      %p144 = scmp.ne.s32.totalorder %s136, %s139
      %p145 = scmp.eq.s32.totalorder %s21, 0
      %p146 = por %p144, %p145
      %p147 = scmp.ne.s32.totalorder %s136, %s139
      %p148 = scmp.eq.s32.totalorder %s26, 1
      %p149 = por %p147, %p148
      %p150 = scmp.ne.s32.totalorder %s139, %s140
      %p151 = scmp.eq.s32.totalorder %s26, 0
      %p152 = por %p150, %p151
      %p153 = scmp.ne.s32.totalorder %s139, %s140
      %p154 = scmp.eq.s32.totalorder %s27, 1
      %p155 = por %p153, %p154
      %p157 = scmp.ne.s32.totalorder %s140, %s156
      %p158 = scmp.eq.s32.totalorder %s27, 0
      %p159 = por %p157, %p158
      %s160 = ssub.s32 %s28, %s47
      %s161 = ssub.s32 %s30, %s39
      %s162 = sor.u32 %s160, %s161
      %p163 = scmp.eq.s32.totalorder %s162, 0
      %s165 = sadd.s32 %s164, 1
      %s166 = scalar_select %p163, %s164, %s165
      %p169 = pneg %p163
      %p170 = scmp.eq.s32.totalorder %s21, 1
      %p171 = por %p169, %p170
      %p172 = scmp.ne.s32.totalorder %s164, %s167
      %p173 = scmp.eq.s32.totalorder %s21, 0
      %p174 = por %p172, %p173
      %p175 = scmp.ne.s32.totalorder %s164, %s167
      %p176 = scmp.eq.s32.totalorder %s26, 1
      %p177 = por %p175, %p176
      %p178 = scmp.ne.s32.totalorder %s167, %s168
      %p179 = scmp.eq.s32.totalorder %s26, 0
      %p180 = por %p178, %p179
      %p181 = scmp.ne.s32.totalorder %s167, %s168
      %p182 = scmp.eq.s32.totalorder %s27, 1
      %p183 = por %p181, %p182
      %p185 = scmp.ne.s32.totalorder %s168, %s184
      %p186 = scmp.eq.s32.totalorder %s27, 0
      %p187 = por %p185, %p186
      %s188 = ssub.s32 %s28, %s47
      %s189 = ssub.s32 %s29, %s43
      %s190 = sor.u32 %s188, %s189
      %p191 = scmp.eq.s32.totalorder %s190, 0
      %s193 = sadd.s32 %s192, 1
      %s194 = scalar_select %p191, %s192, %s193
      %p197 = pneg %p191
      %p198 = scmp.eq.s32.totalorder %s21, 1
      %p199 = por %p197, %p198
      %p200 = scmp.ne.s32.totalorder %s192, %s195
      %p201 = scmp.eq.s32.totalorder %s21, 0
      %p202 = por %p200, %p201
      %p203 = scmp.ne.s32.totalorder %s192, %s195
      %p204 = scmp.eq.s32.totalorder %s26, 1
      %p205 = por %p203, %p204
      %p206 = scmp.ne.s32.totalorder %s195, %s196
      %p207 = scmp.eq.s32.totalorder %s26, 0
      %p208 = por %p206, %p207
      %p209 = scmp.ne.s32.totalorder %s195, %s196
      %p210 = scmp.eq.s32.totalorder %s27, 1
      %p211 = por %p209, %p210
      %p213 = scmp.ne.s32.totalorder %s196, %s212
      %p214 = scmp.eq.s32.totalorder %s27, 0
      %p215 = por %p213, %p214
      %p216 = scmp.le.s32.totalorder 1, %s21
      %p217 = scmp.lt.s32.totalorder %s21, 3
      %p218 = pnand %p216, %p217
      %p219 = pneg %p218
      // Predicated region
      $region9: #{gpt2_transformer_block.6} parent=5 // pred_check
        _
      $region10: #{gpt2_transformer_block.6} parent=5 // pred_check_branch
        %221 = sbr.rel (%p218) target = $region12
      $region11: #{gpt2_transformer_block.6} parent=5 // pred_region
        %s222 = ssub.s32 %s21, 1
        // Predicated region
        $region13: #{gpt2_transformer_block.6} parent=11 // pred_check
          %p223 = pneg %p152
        $region14: #{gpt2_transformer_block.6} parent=11 // pred_check_branch
          %225 = sbr.rel (%p223) target = $region16
        $region15: #{gpt2_transformer_block.6} parent=11 // pred_region
          %s226 = smul.u32 16, %s32
          %s228 = ssub.s32 2048, 2048
          %229 = vsyncadd [#allocation12], %s228
          %s230 = sadd.s32 %s33, %s226
          %s231 = smul.addr %s230, 128
          %s232 = scalar_lea.hbm %s3, %s231
          %s233 = sshll.u32 [#allocation11], 4
          %s234 = int_to_ptr.vmem [resolvable:$true] %s233
          %239 = dma.hbm_to_vmem [thread:$0]  %s232, 2048, %s234, [#allocation12], 128, 128, 8
        $region16: #{gpt2_transformer_block.6} parent=11 // pred_fallthru
          _
      $region12: #{gpt2_transformer_block.6} parent=5 // pred_fallthru
        _
      %p240 = scmp.lt.s32.totalorder %s21, 2
      // Predicated region
      $region17: #{gpt2_transformer_block.6} parent=5 // pred_check
        %p241 = pneg %p240
      $region18: #{gpt2_transformer_block.6} parent=5 // pred_check_branch
        %243 = sbr.rel (%p241) target = $region20
      $region19: #{gpt2_transformer_block.6} parent=5 // pred_region
        // Predicated region
        $region21: #{gpt2_transformer_block.6} parent=19 // pred_check
          %p244 = pneg %p62
        $region22: #{gpt2_transformer_block.6} parent=19 // pred_check_branch
          %246 = sbr.rel (%p244) target = $region24
        $region23: #{gpt2_transformer_block.6} parent=19 // pred_region
          %s247 = sand.u32 %s21, 1
          %s248 = scalar_lea.sflag [#allocation6], %s247
          %s249 = sand.u32 %s52, 1
          %s250 = smul.addr %s249, 128
          %s251 = scalar_lea.vmem [#allocation5], %s250
          %s252 = smul.u32 16, %s29
          %s254 = ssub.s32 2048, 2048
          %255 = vsyncadd %s248, %s254
          %s256 = smul.addr %s28, 16
          %s257 = sadd.s32 %s252, %s256
          %s258 = smul.addr %s257, 128
          %s259 = scalar_lea.hbm %s0, %s258
          %s260 = sshll.u32 %s251, 4
          %s261 = int_to_ptr.vmem [resolvable:$true] %s260
          %266 = dma.hbm_to_vmem [thread:$0]  %s259, 2048, %s261, %s248, 128, 128, 8
        $region24: #{gpt2_transformer_block.6} parent=19 // pred_fallthru
          _
        // Predicated region
        $region25: #{gpt2_transformer_block.6} parent=19 // pred_check
          %p267 = pneg %p90
        $region26: #{gpt2_transformer_block.6} parent=19 // pred_check_branch
          %269 = sbr.rel (%p267) target = $region28
        $region27: #{gpt2_transformer_block.6} parent=19 // pred_region
          %s270 = sand.u32 %s21, 1
          %s271 = scalar_lea.sflag [#allocation9], %s270
          %s272 = sand.u32 %s80, 1
          %s273 = smul.addr %s272, 128
          %s274 = scalar_lea.vmem [#allocation8], %s273
          %s275 = smul.u32 16, %s30
          %s277 = ssub.s32 2048, 2048
          %278 = vsyncadd %s271, %s277
          %s279 = smul.addr %s28, 16
          %s280 = sadd.s32 %s275, %s279
          %s281 = sadd.s32 %s280, 32
          %s282 = smul.addr %s281, 128
          %s283 = scalar_lea.hbm %s1, %s282
          %s284 = sshll.u32 %s274, 4
          %s285 = int_to_ptr.vmem [resolvable:$true] %s284
          %290 = dma.hbm_to_vmem [thread:$0]  %s283, 2048, %s285, %s271, 128, 128, 8
        $region28: #{gpt2_transformer_block.6} parent=19 // pred_fallthru
          _
        // Predicated region
        $region29: #{gpt2_transformer_block.6} parent=19 // pred_check
          %p291 = pneg %p118
        $region30: #{gpt2_transformer_block.6} parent=19 // pred_check_branch
          %293 = sbr.rel (%p291) target = $region32
        $region31: #{gpt2_transformer_block.6} parent=19 // pred_region
          %s294 = sand.u32 %s21, 1
          %s295 = scalar_lea.sflag [#allocation9], %s294
          %s296 = sand.u32 %s108, 1
          %s297 = smul.addr %s296, 128
          %s298 = scalar_lea.vmem [#allocation10], %s297
          %s299 = smul.u32 16, %s30
          %s301 = ssub.s32 2048, 2048
          %302 = vsyncadd %s295, %s301
          %s303 = smul.addr %s28, 16
          %s304 = sadd.s32 %s299, %s303
          %s305 = sadd.s32 %s304, 64
          %s306 = smul.addr %s305, 128
          %s307 = scalar_lea.hbm %s2, %s306
          %s308 = sshll.u32 %s298, 4
          %s309 = int_to_ptr.vmem [resolvable:$true] %s308
          %314 = dma.hbm_to_vmem [thread:$0]  %s307, 2048, %s309, %s295, 128, 128, 8
        $region32: #{gpt2_transformer_block.6} parent=19 // pred_fallthru
          _
        // Predicated region
        $region33: #{gpt2_transformer_block.6} parent=19 // pred_check
          %p315 = pneg %p174
        $region34: #{gpt2_transformer_block.6} parent=19 // pred_check_branch
          %317 = sbr.rel (%p315) target = $region36
        $region35: #{gpt2_transformer_block.6} parent=19 // pred_region
          %s318 = sand.u32 %s21, 1
          %s319 = scalar_lea.sflag [#allocation6], %s318
          %s320 = sand.u32 %s164, 1
          %s321 = scalar_lea.vmem [#allocation13], %s320
          %s323 = ssub.s32 16, 16
          %324 = vsyncadd %s319, %s323
          %s325 = sadd.s32 %s30, %s28
          %s326 = smul.addr %s325, 16
          %s327 = scalar_lea.hbm %s4, %s326
          %s329 = sshll.u32 %s321, 4
          %s330 = int_to_ptr.vmem [resolvable:$true] %s329
          %332 = dma.hbm_to_vmem [thread:$0]  %s327, 16, %s330, %s319
        $region36: #{gpt2_transformer_block.6} parent=19 // pred_fallthru
          _
      $region20: #{gpt2_transformer_block.6} parent=5 // pred_fallthru
        _
      %p333 = scmp.le.s32.totalorder 1, %s21
      %p334 = scmp.lt.s32.totalorder %s21, 3
      %p335 = pnand %p333, %p334
      %p336 = pneg %p335
      // Predicated region
      $region37: #{gpt2_transformer_block.6} parent=5 // pred_check
        _
      $region38: #{gpt2_transformer_block.6} parent=5 // pred_check_branch
        %338 = sbr.rel (%p335) target = $region40
      $region39: #{gpt2_transformer_block.6} parent=5 // pred_region
        %s339 = ssub.s32 %s21, 1
        %s340 = sand.u32 %s26, 1
        %s341 = scalar_lea.sflag [#allocation6], %s340
        %s342 = sand.u32 %s55, 1
        %s343 = smul.addr %s342, 128
        %s344 = scalar_lea.vmem [#allocation5], %s343
        // Predicated region
        $region41: #{gpt2_transformer_block.6} parent=39 // pred_check
          %p345 = pneg %p68
        $region42: #{gpt2_transformer_block.6} parent=39 // pred_check_branch
          %347 = sbr.rel (%p345) target = $region44
        $region43: #{gpt2_transformer_block.6} parent=39 // pred_region
          %348 = dma.done %s341, 2048
        $region44: #{gpt2_transformer_block.6} parent=39 // pred_fallthru
          _
        %s349 = sand.u32 %s26, 1
        %s350 = scalar_lea.sflag [#allocation9], %s349
        %s351 = sand.u32 %s83, 1
        %s352 = smul.addr %s351, 128
        %s353 = scalar_lea.vmem [#allocation8], %s352
        // Predicated region
        $region45: #{gpt2_transformer_block.6} parent=39 // pred_check
          %p354 = pneg %p96
        $region46: #{gpt2_transformer_block.6} parent=39 // pred_check_branch
          %356 = sbr.rel (%p354) target = $region48
        $region47: #{gpt2_transformer_block.6} parent=39 // pred_region
          %357 = dma.done %s350, 2048
        $region48: #{gpt2_transformer_block.6} parent=39 // pred_fallthru
          _
        %s358 = sand.u32 %s26, 1
        %s359 = scalar_lea.sflag [#allocation9], %s358
        %s360 = sand.u32 %s111, 1
        %s361 = smul.addr %s360, 128
        %s362 = scalar_lea.vmem [#allocation10], %s361
        // Predicated region
        $region49: #{gpt2_transformer_block.6} parent=39 // pred_check
          %p363 = pneg %p124
        $region50: #{gpt2_transformer_block.6} parent=39 // pred_check_branch
          %365 = sbr.rel (%p363) target = $region52
        $region51: #{gpt2_transformer_block.6} parent=39 // pred_region
          %366 = dma.done %s359, 2048
        $region52: #{gpt2_transformer_block.6} parent=39 // pred_fallthru
          _
        // Predicated region
        $region53: #{gpt2_transformer_block.6} parent=39 // pred_check
          %p367 = pneg %p152
        $region54: #{gpt2_transformer_block.6} parent=39 // pred_check_branch
          %369 = sbr.rel (%p367) target = $region56
        $region55: #{gpt2_transformer_block.6} parent=39 // pred_region
          %370 = dma.done [#allocation12], 2048
        $region56: #{gpt2_transformer_block.6} parent=39 // pred_fallthru
          _
        %s371 = sand.u32 %s26, 1
        %s372 = scalar_lea.sflag [#allocation6], %s371
        %s373 = sand.u32 %s167, 1
        %s374 = scalar_lea.vmem [#allocation13], %s373
        // Predicated region
        $region57: #{gpt2_transformer_block.6} parent=39 // pred_check
          %p375 = pneg %p180
        $region58: #{gpt2_transformer_block.6} parent=39 // pred_check_branch
          %377 = sbr.rel (%p375) target = $region60
        $region59: #{gpt2_transformer_block.6} parent=39 // pred_region
          %378 = dma.done %s372, 16
        $region60: #{gpt2_transformer_block.6} parent=39 // pred_fallthru
          _
        %s379 = sand.u32 %s26, 1
        %s380 = scalar_lea.sflag [#allocation6], %s379
        %s381 = sand.u32 %s55, 1
        %s382 = smul.addr %s381, 128
        %s383 = scalar_lea.vmem [#allocation5], %s382
        %p384 = pneg %p68
        %p385 = pneg %p65
        %s386 = sand.u32 %s26, 1
        %s387 = scalar_lea.sflag [#allocation9], %s386
        %s388 = sand.u32 %s83, 1
        %s389 = smul.addr %s388, 128
        %s390 = scalar_lea.vmem [#allocation8], %s389
        %p391 = pneg %p96
        %p392 = pneg %p93
        %s393 = sand.u32 %s26, 1
        %s394 = scalar_lea.sflag [#allocation9], %s393
        %s395 = sand.u32 %s111, 1
        %s396 = smul.addr %s395, 128
        %s397 = scalar_lea.vmem [#allocation10], %s396
        %p398 = pneg %p124
        %p399 = pneg %p121
        %p400 = pneg %p152
        %p401 = pneg %p149
        %s402 = sand.u32 %s26, 1
        %s403 = scalar_lea.sflag [#allocation6], %s402
        %s404 = sand.u32 %s167, 1
        %s405 = scalar_lea.vmem [#allocation13], %s404
        %p406 = pneg %p180
        %p407 = pneg %p177
        %p408 = pneg %p208
        %p409 = pneg %p205
        %s410 = sand.u32 %s195, 1
        %s411 = scalar_lea.sflag [#allocation7], %s410
        %s412 = sand.u32 %s195, 1
        %s413 = smul.addr %s412, 128
        %s414 = scalar_lea.vmem [#allocation14], %s413
        %s415 = smul.u32 16, %s32
        %s416 = smul.u32 16, %s33
        %s417 = smul.u32 16, %s33
        %s418 = smul.u32 16, %s32
        %s419 = smul.u32 16, %s32
        %p421 = scmp.eq.s32.totalorder %s33, 0
        // Predicated region
        $region61: #{gpt2_transformer_block.6} parent=39 // pred_check
          %p422 = pneg %p421
        $region62: #{gpt2_transformer_block.6} parent=39 // pred_check_branch
          %424 = sbr.rel (%p422) target = $region64
        $region63: #{gpt2_transformer_block.6} parent=39 // pred_region
          %vm425 = vcmask 31744
          %426 = vst.msk [vmem:[#allocation2] sm:$0xff] %vm425, -1e+30
          %427 = vst.msk [vmem:[#allocation2 + $0x8] sm:$0xff] %vm425, -1e+30
          %428 = vst.msk [vmem:[#allocation2 + $0x10] sm:$0xff] %vm425, -1e+30
          %429 = vst.msk [vmem:[#allocation2 + $0x18] sm:$0xff] %vm425, -1e+30
          %430 = vst.msk [vmem:[#allocation2 + $0x20] sm:$0xff] %vm425, -1e+30
          %431 = vst.msk [vmem:[#allocation2 + $0x28] sm:$0xff] %vm425, -1e+30
          %432 = vst.msk [vmem:[#allocation2 + $0x30] sm:$0xff] %vm425, -1e+30
          %433 = vst.msk [vmem:[#allocation2 + $0x38] sm:$0xff] %vm425, -1e+30
          %434 = vst.msk [vmem:[#allocation2 + $0x40] sm:$0xff] %vm425, -1e+30
          %435 = vst.msk [vmem:[#allocation2 + $0x48] sm:$0xff] %vm425, -1e+30
          %436 = vst.msk [vmem:[#allocation2 + $0x50] sm:$0xff] %vm425, -1e+30
          %437 = vst.msk [vmem:[#allocation2 + $0x58] sm:$0xff] %vm425, -1e+30
          %438 = vst.msk [vmem:[#allocation2 + $0x60] sm:$0xff] %vm425, -1e+30
          %439 = vst.msk [vmem:[#allocation2 + $0x68] sm:$0xff] %vm425, -1e+30
          %440 = vst.msk [vmem:[#allocation2 + $0x70] sm:$0xff] %vm425, -1e+30
          %441 = vst.msk [vmem:[#allocation2 + $0x78] sm:$0xff] %vm425, -1e+30
          %442 = vst.msk [vmem:[#allocation3] sm:$0xff] %vm425, 0.0
          %443 = vst.msk [vmem:[#allocation3 + $0x8] sm:$0xff] %vm425, 0.0
          %444 = vst.msk [vmem:[#allocation3 + $0x10] sm:$0xff] %vm425, 0.0
          %445 = vst.msk [vmem:[#allocation3 + $0x18] sm:$0xff] %vm425, 0.0
          %446 = vst.msk [vmem:[#allocation3 + $0x20] sm:$0xff] %vm425, 0.0
          %447 = vst.msk [vmem:[#allocation3 + $0x28] sm:$0xff] %vm425, 0.0
          %448 = vst.msk [vmem:[#allocation3 + $0x30] sm:$0xff] %vm425, 0.0
          %449 = vst.msk [vmem:[#allocation3 + $0x38] sm:$0xff] %vm425, 0.0
          %450 = vst.msk [vmem:[#allocation3 + $0x40] sm:$0xff] %vm425, 0.0
          %451 = vst.msk [vmem:[#allocation3 + $0x48] sm:$0xff] %vm425, 0.0
          %452 = vst.msk [vmem:[#allocation3 + $0x50] sm:$0xff] %vm425, 0.0
          %453 = vst.msk [vmem:[#allocation3 + $0x58] sm:$0xff] %vm425, 0.0
          %454 = vst.msk [vmem:[#allocation3 + $0x60] sm:$0xff] %vm425, 0.0
          %455 = vst.msk [vmem:[#allocation3 + $0x68] sm:$0xff] %vm425, 0.0
          %456 = vst.msk [vmem:[#allocation3 + $0x70] sm:$0xff] %vm425, 0.0
          %457 = vst.msk [vmem:[#allocation3 + $0x78] sm:$0xff] %vm425, 0.0
          %458 = vst [vmem:[#allocation4] sm:$0xff] 0.0
          %459 = vst [vmem:[#allocation4 + $0x8] sm:$0xff] 0.0
          %460 = vst [vmem:[#allocation4 + $0x10] sm:$0xff] 0.0
          %461 = vst [vmem:[#allocation4 + $0x18] sm:$0xff] 0.0
          %462 = vst [vmem:[#allocation4 + $0x20] sm:$0xff] 0.0
          %463 = vst [vmem:[#allocation4 + $0x28] sm:$0xff] 0.0
          %464 = vst [vmem:[#allocation4 + $0x30] sm:$0xff] 0.0
          %465 = vst [vmem:[#allocation4 + $0x38] sm:$0xff] 0.0
          %466 = vst [vmem:[#allocation4 + $0x40] sm:$0xff] 0.0
          %467 = vst [vmem:[#allocation4 + $0x48] sm:$0xff] 0.0
          %468 = vst [vmem:[#allocation4 + $0x50] sm:$0xff] 0.0
          %469 = vst [vmem:[#allocation4 + $0x58] sm:$0xff] 0.0
          %470 = vst [vmem:[#allocation4 + $0x60] sm:$0xff] 0.0
          %471 = vst [vmem:[#allocation4 + $0x68] sm:$0xff] 0.0
          %472 = vst [vmem:[#allocation4 + $0x70] sm:$0xff] 0.0
          %473 = vst [vmem:[#allocation4 + $0x78] sm:$0xff] 0.0
        $region64: #{gpt2_transformer_block.6} parent=39 // pred_fallthru
          _
        %v474 = vld [vmem:[#allocation11] sm:$0xff]
        %v475 = vld [vmem:[#allocation11 + $0x8] sm:$0xff]
        %v476 = vld [vmem:[#allocation11 + $0x10] sm:$0xff]
        %v477 = vld [vmem:[#allocation11 + $0x18] sm:$0xff]
        %v478 = vld [vmem:[#allocation11 + $0x20] sm:$0xff]
        %v479 = vld [vmem:[#allocation11 + $0x28] sm:$0xff]
        %v480 = vld [vmem:[#allocation11 + $0x30] sm:$0xff]
        %v481 = vld [vmem:[#allocation11 + $0x38] sm:$0xff]
        %v482 = vld [vmem:[#allocation11 + $0x40] sm:$0xff]
        %v483 = vld [vmem:[#allocation11 + $0x48] sm:$0xff]
        %v484 = vld [vmem:[#allocation11 + $0x50] sm:$0xff]
        %v485 = vld [vmem:[#allocation11 + $0x58] sm:$0xff]
        %v486 = vld [vmem:[#allocation11 + $0x60] sm:$0xff]
        %v487 = vld [vmem:[#allocation11 + $0x68] sm:$0xff]
        %v488 = vld [vmem:[#allocation11 + $0x70] sm:$0xff]
        %v489 = vld [vmem:[#allocation11 + $0x78] sm:$0xff]
        %v490 = vld [vmem:[%s374] sm:$0x1]
        %v492 = vlaneseq
        %v493 = vshrl.u32 %v492, 7
        %v494 = vsub.s32 0, %v493
        %v495 = vrot.slane %v490, %v494
        %v497 = vadd.f32 %v474, %v495
        %v498 = vadd.f32 %v475, %v495
        %v499 = vadd.f32 %v476, %v495
        %v500 = vadd.f32 %v477, %v495
        %v501 = vadd.f32 %v478, %v495
        %v502 = vadd.f32 %v479, %v495
        %v503 = vadd.f32 %v480, %v495
        %v504 = vadd.f32 %v481, %v495
        %v505 = vadd.f32 %v482, %v495
        %v506 = vadd.f32 %v483, %v495
        %v507 = vadd.f32 %v484, %v495
        %v508 = vadd.f32 %v485, %v495
        %v509 = vadd.f32 %v486, %v495
        %v510 = vadd.f32 %v487, %v495
        %v511 = vadd.f32 %v488, %v495
        %v512 = vadd.f32 %v489, %v495
        %v513 = vld [vmem:[%s344] sm:$0xff]
        %v514 = vld [vmem:[%s344 + $0x8] sm:$0xff]
        %v515 = vld [vmem:[%s344 + $0x10] sm:$0xff]
        %v516 = vld [vmem:[%s344 + $0x18] sm:$0xff]
        %v517 = vld [vmem:[%s344 + $0x20] sm:$0xff]
        %v518 = vld [vmem:[%s344 + $0x28] sm:$0xff]
        %v519 = vld [vmem:[%s344 + $0x30] sm:$0xff]
        %v520 = vld [vmem:[%s344 + $0x38] sm:$0xff]
        %v521 = vld [vmem:[%s344 + $0x40] sm:$0xff]
        %v522 = vld [vmem:[%s344 + $0x48] sm:$0xff]
        %v523 = vld [vmem:[%s344 + $0x50] sm:$0xff]
        %v524 = vld [vmem:[%s344 + $0x58] sm:$0xff]
        %v525 = vld [vmem:[%s344 + $0x60] sm:$0xff]
        %v526 = vld [vmem:[%s344 + $0x68] sm:$0xff]
        %v527 = vld [vmem:[%s344 + $0x70] sm:$0xff]
        %v528 = vld [vmem:[%s344 + $0x78] sm:$0xff]
        %v529 = vld [vmem:[%s353] sm:$0xff]
        %v530 = vld [vmem:[%s353 + $0x8] sm:$0xff]
        %v531 = vld [vmem:[%s353 + $0x10] sm:$0xff]
        %v532 = vld [vmem:[%s353 + $0x18] sm:$0xff]
        %v533 = vld [vmem:[%s353 + $0x20] sm:$0xff]
        %v534 = vld [vmem:[%s353 + $0x28] sm:$0xff]
        %v535 = vld [vmem:[%s353 + $0x30] sm:$0xff]
        %v536 = vld [vmem:[%s353 + $0x38] sm:$0xff]
        %v537 = vld [vmem:[%s353 + $0x40] sm:$0xff]
        %v538 = vld [vmem:[%s353 + $0x48] sm:$0xff]
        %v539 = vld [vmem:[%s353 + $0x50] sm:$0xff]
        %v540 = vld [vmem:[%s353 + $0x58] sm:$0xff]
        %v541 = vld [vmem:[%s353 + $0x60] sm:$0xff]
        %v542 = vld [vmem:[%s353 + $0x68] sm:$0xff]
        %v543 = vld [vmem:[%s353 + $0x70] sm:$0xff]
        %v544 = vld [vmem:[%s353 + $0x78] sm:$0xff]
        %v545 = vld [vmem:[%s362] sm:$0xff]
        %v546 = vld [vmem:[%s362 + $0x8] sm:$0xff]
        %v547 = vld [vmem:[%s362 + $0x10] sm:$0xff]
        %v548 = vld [vmem:[%s362 + $0x18] sm:$0xff]
        %v549 = vld [vmem:[%s362 + $0x20] sm:$0xff]
        %v550 = vld [vmem:[%s362 + $0x28] sm:$0xff]
        %v551 = vld [vmem:[%s362 + $0x30] sm:$0xff]
        %v552 = vld [vmem:[%s362 + $0x38] sm:$0xff]
        %v553 = vld [vmem:[%s362 + $0x40] sm:$0xff]
        %v554 = vld [vmem:[%s362 + $0x48] sm:$0xff]
        %v555 = vld [vmem:[%s362 + $0x50] sm:$0xff]
        %v556 = vld [vmem:[%s362 + $0x58] sm:$0xff]
        %v557 = vld [vmem:[%s362 + $0x60] sm:$0xff]
        %v558 = vld [vmem:[%s362 + $0x68] sm:$0xff]
        %v559 = vld [vmem:[%s362 + $0x70] sm:$0xff]
        %v560 = vld [vmem:[%s362 + $0x78] sm:$0xff]
        %v561 = vld [vmem:[#allocation2] sm:$0xff]
        %v562 = vld [vmem:[#allocation2 + $0x8] sm:$0xff]
        %v563 = vld [vmem:[#allocation2 + $0x10] sm:$0xff]
        %v564 = vld [vmem:[#allocation2 + $0x18] sm:$0xff]
        %v565 = vld [vmem:[#allocation2 + $0x20] sm:$0xff]
        %v566 = vld [vmem:[#allocation2 + $0x28] sm:$0xff]
        %v567 = vld [vmem:[#allocation2 + $0x30] sm:$0xff]
        %v568 = vld [vmem:[#allocation2 + $0x38] sm:$0xff]
        %v569 = vld [vmem:[#allocation2 + $0x40] sm:$0xff]
        %v570 = vld [vmem:[#allocation2 + $0x48] sm:$0xff]
        %v571 = vld [vmem:[#allocation2 + $0x50] sm:$0xff]
        %v572 = vld [vmem:[#allocation2 + $0x58] sm:$0xff]
        %v573 = vld [vmem:[#allocation2 + $0x60] sm:$0xff]
        %v574 = vld [vmem:[#allocation2 + $0x68] sm:$0xff]
        %v575 = vld [vmem:[#allocation2 + $0x70] sm:$0xff]
        %v576 = vld [vmem:[#allocation2 + $0x78] sm:$0xff]
        %v577 = vld [vmem:[#allocation3] sm:$0xff]
        %v578 = vld [vmem:[#allocation3 + $0x8] sm:$0xff]
        %v579 = vld [vmem:[#allocation3 + $0x10] sm:$0xff]
        %v580 = vld [vmem:[#allocation3 + $0x18] sm:$0xff]
        %v581 = vld [vmem:[#allocation3 + $0x20] sm:$0xff]
        %v582 = vld [vmem:[#allocation3 + $0x28] sm:$0xff]
        %v583 = vld [vmem:[#allocation3 + $0x30] sm:$0xff]
        %v584 = vld [vmem:[#allocation3 + $0x38] sm:$0xff]
        %v585 = vld [vmem:[#allocation3 + $0x40] sm:$0xff]
        %v586 = vld [vmem:[#allocation3 + $0x48] sm:$0xff]
        %v587 = vld [vmem:[#allocation3 + $0x50] sm:$0xff]
        %v588 = vld [vmem:[#allocation3 + $0x58] sm:$0xff]
        %v589 = vld [vmem:[#allocation3 + $0x60] sm:$0xff]
        %v590 = vld [vmem:[#allocation3 + $0x68] sm:$0xff]
        %v591 = vld [vmem:[#allocation3 + $0x70] sm:$0xff]
        %v592 = vld [vmem:[#allocation3 + $0x78] sm:$0xff]
        %v593 = vmul.f32 %v513, 0.17677669
        %v594 = vmul.f32 %v514, 0.17677669
        %v595 = vmul.f32 %v515, 0.17677669
        %v596 = vmul.f32 %v516, 0.17677669
        %v597 = vmul.f32 %v517, 0.17677669
        %v598 = vmul.f32 %v518, 0.17677669
        %v599 = vmul.f32 %v519, 0.17677669
        %v600 = vmul.f32 %v520, 0.17677669
        %v601 = vmul.f32 %v521, 0.17677669
        %v602 = vmul.f32 %v522, 0.17677669
        %v603 = vmul.f32 %v523, 0.17677669
        %v604 = vmul.f32 %v524, 0.17677669
        %v605 = vmul.f32 %v525, 0.17677669
        %v606 = vmul.f32 %v526, 0.17677669
        %v607 = vmul.f32 %v527, 0.17677669
        %v608 = vmul.f32 %v528, 0.17677669
        %v609 = vpack.c.bf16 %v594, %v593
        %v610 = vpack.c.bf16 %v596, %v595
        %v611 = vpack.c.bf16 %v598, %v597
        %v612 = vpack.c.bf16 %v600, %v599
        %v613 = vpack.c.bf16 %v602, %v601
        %v614 = vpack.c.bf16 %v604, %v603
        %v615 = vpack.c.bf16 %v606, %v605
        %v616 = vpack.c.bf16 %v608, %v607
        %v617 = vpack.c.bf16 %v530, %v529
        %v618 = vpack.c.bf16 %v532, %v531
        %v619 = vpack.c.bf16 %v534, %v533
        %v620 = vpack.c.bf16 %v536, %v535
        %v621 = vpack.c.bf16 %v538, %v537
        %v622 = vpack.c.bf16 %v540, %v539
        %v623 = vpack.c.bf16 %v542, %v541
        %v624 = vpack.c.bf16 %v544, %v543
        %vm625 = vcmask 261120
        %v627 = vsel %vm625, %v609, 0
        %v630 = vsel %vm625, %v610, 0
        %v633 = vsel %vm625, %v611, 0
        %v636 = vsel %vm625, %v612, 0
        %v639 = vsel %vm625, %v613, 0
        %v642 = vsel %vm625, %v614, 0
        %v645 = vsel %vm625, %v615, 0
        %v648 = vsel %vm625, %v616, 0
        %v651 = vsel %vm625, %v617, 0
        %v654 = vsel %vm625, %v618, 0
        %v657 = vsel %vm625, %v619, 0
        %v660 = vsel %vm625, %v620, 0
        %v663 = vsel %vm625, %v621, 0
        %v666 = vsel %vm625, %v622, 0
        %v669 = vsel %vm625, %v623, 0
        %v672 = vsel %vm625, %v624, 0
        %674 = vmatprep.subr.bf16.mxu0 0
        %675 = vmatpush1.bf16.xpose.msra.mxu0 %v651
        %676 = vmatprep.subr.bf16.mxu0 0
        %677 = vmatpush1.bf16.xpose.msra.mxu0 %v654
        %678 = vmatprep.subr.bf16.mxu0 0
        %679 = vmatpush1.bf16.xpose.msra.mxu0 %v657
        %680 = vmatprep.subr.bf16.mxu0 0
        %681 = vmatpush1.bf16.xpose.msra.mxu0 %v660
        %682 = vmatprep.subr.bf16.mxu0 0
        %683 = vmatpush1.bf16.xpose.msra.mxu0 %v663
        %684 = vmatprep.subr.bf16.mxu0 0
        %685 = vmatpush1.bf16.xpose.msra.mxu0 %v666
        %686 = vmatprep.subr.bf16.mxu0 0
        %687 = vmatpush1.bf16.xpose.msra.mxu0 %v669
        %688 = vmatprep.subr.bf16.mxu0 0
        %689 = vmatpush1.bf16.xpose.msra.mxu0 %v672
        %690 = vmatprep.subr.bf16.mxu0 0
        %691 = vmatpush1.bf16.xpose.msra.mxu0 0
        %692 = vmatprep.subr.bf16.mxu0 0
        %693 = vmatpush1.bf16.xpose.msra.mxu0 0
        %694 = vmatprep.subr.bf16.mxu0 0
        %695 = vmatpush1.bf16.xpose.msra.mxu0 0
        %696 = vmatprep.subr.bf16.mxu0 0
        %697 = vmatpush1.bf16.xpose.msra.mxu0 0
        %698 = vmatprep.subr.bf16.mxu0 0
        %699 = vmatpush1.bf16.xpose.msra.mxu0 0
        %700 = vmatprep.subr.bf16.mxu0 0
        %701 = vmatpush1.bf16.xpose.msra.mxu0 0
        %702 = vmatprep.subr.bf16.mxu0 0
        %703 = vmatpush1.bf16.xpose.msra.mxu0 0
        %704 = vmatprep.subr.bf16.mxu0 0
        %705 = vmatpush1.bf16.xpose.msra.mxu0 0
        %706 = vmatprep.mubr.bf16.mxu0 0
        %707 = vmatmul.mubr.bf16.gmra.mrb[0].mxu0 %v627
        %v708 = vpop.f32.mrb[0].mxu0
        %v709 = vadd.f32 %v497, %v708
        %v710 = vpop.f32.mrb[0].mxu0
        %v711 = vpop.f32.mrb[0].mxu0
        %v712 = vadd.f32 %v498, %v711
        %v713 = vpop.f32.mrb[0].mxu0
        %714 = vmatprep.mubr.bf16.mxu0 0
        %715 = vmatmul.mubr.bf16.gmra.mrb[0].mxu0 %v630
        %v716 = vpop.f32.mrb[0].mxu0
        %v717 = vadd.f32 %v499, %v716
        %v718 = vpop.f32.mrb[0].mxu0
        %v719 = vpop.f32.mrb[0].mxu0
        %v720 = vadd.f32 %v500, %v719
        %v721 = vpop.f32.mrb[0].mxu0
        %722 = vmatprep.mubr.bf16.mxu0 0
        %723 = vmatmul.mubr.bf16.gmra.mrb[0].mxu0 %v633
        %v724 = vpop.f32.mrb[0].mxu0
        %v725 = vadd.f32 %v501, %v724
        %v726 = vpop.f32.mrb[0].mxu0
        %v727 = vpop.f32.mrb[0].mxu0
        %v728 = vadd.f32 %v502, %v727
        %v729 = vpop.f32.mrb[0].mxu0
        %730 = vmatprep.mubr.bf16.mxu0 0
        %731 = vmatmul.mubr.bf16.gmra.mrb[0].mxu0 %v636
        %v732 = vpop.f32.mrb[0].mxu0
        %v733 = vadd.f32 %v503, %v732
        %v734 = vpop.f32.mrb[0].mxu0
        %v735 = vpop.f32.mrb[0].mxu0
        %v736 = vadd.f32 %v504, %v735
        %v737 = vpop.f32.mrb[0].mxu0
        %738 = vmatprep.mubr.bf16.mxu0 0
        %739 = vmatmul.mubr.bf16.gmra.mrb[0].mxu0 %v639
        %v740 = vpop.f32.mrb[0].mxu0
        %v741 = vadd.f32 %v505, %v740
        %v742 = vpop.f32.mrb[0].mxu0
        %v743 = vpop.f32.mrb[0].mxu0
        %v744 = vadd.f32 %v506, %v743
        %v745 = vpop.f32.mrb[0].mxu0
        %746 = vmatprep.mubr.bf16.mxu0 0
        %747 = vmatmul.mubr.bf16.gmra.mrb[0].mxu0 %v642
        %v748 = vpop.f32.mrb[0].mxu0
        %v749 = vadd.f32 %v507, %v748
        %v750 = vpop.f32.mrb[0].mxu0
        %v751 = vpop.f32.mrb[0].mxu0
        %v752 = vadd.f32 %v508, %v751
        %v753 = vpop.f32.mrb[0].mxu0
        %754 = vmatprep.mubr.bf16.mxu0 0
        %755 = vmatmul.mubr.bf16.gmra.mrb[0].mxu0 %v645
        %v756 = vpop.f32.mrb[0].mxu0
        %v757 = vadd.f32 %v509, %v756
        %v758 = vpop.f32.mrb[0].mxu0
        %v759 = vpop.f32.mrb[0].mxu0
        %v760 = vadd.f32 %v510, %v759
        %v761 = vpop.f32.mrb[0].mxu0
        %762 = vmatprep.mubr.bf16.mxu0 0
        %763 = vmatmul.mubr.bf16.gmra.mrb[0].mxu0 %v648
        %v764 = vpop.f32.mrb[0].mxu0
        %v765 = vadd.f32 %v511, %v764
        %v766 = vpop.f32.mrb[0].mxu0
        %v767 = vpop.f32.mrb[0].mxu0
        %v768 = vadd.f32 %v512, %v767
        %v769 = vpop.f32.mrb[0].mxu0
        %770 = vdwg.mxu0
        %771 = vmax.xlane.f32.xlu0 %v709
        %v772 = vpop.xlane.xlu0 %771
        %773 = vmax.xlane.f32.xlu0 %v712
        %v774 = vpop.xlane.xlu0 %773
        %775 = vmax.xlane.f32.xlu0 %v717
        %v776 = vpop.xlane.xlu0 %775
        %777 = vmax.xlane.f32.xlu0 %v720
        %v778 = vpop.xlane.xlu0 %777
        %779 = vmax.xlane.f32.xlu0 %v725
        %v780 = vpop.xlane.xlu0 %779
        %781 = vmax.xlane.f32.xlu0 %v728
        %v782 = vpop.xlane.xlu0 %781
        %783 = vmax.xlane.f32.xlu0 %v733
        %v784 = vpop.xlane.xlu0 %783
        %785 = vmax.xlane.f32.xlu0 %v736
        %v786 = vpop.xlane.xlu0 %785
        %787 = vmax.xlane.f32.xlu0 %v741
        %v788 = vpop.xlane.xlu0 %787
        %789 = vmax.xlane.f32.xlu0 %v744
        %v790 = vpop.xlane.xlu0 %789
        %791 = vmax.xlane.f32.xlu0 %v749
        %v792 = vpop.xlane.xlu0 %791
        %793 = vmax.xlane.f32.xlu0 %v752
        %v794 = vpop.xlane.xlu0 %793
        %795 = vmax.xlane.f32.xlu0 %v757
        %v796 = vpop.xlane.xlu0 %795
        %797 = vmax.xlane.f32.xlu0 %v760
        %v798 = vpop.xlane.xlu0 %797
        %799 = vmax.xlane.f32.xlu0 %v765
        %v800 = vpop.xlane.xlu0 %799
        %801 = vmax.xlane.f32.xlu0 %v768
        %v802 = vpop.xlane.xlu0 %801
        %v803 = vmax.f32 %v561, %v772
        %v804 = vmax.f32 %v562, %v774
        %v805 = vmax.f32 %v563, %v776
        %v806 = vmax.f32 %v564, %v778
        %v807 = vmax.f32 %v565, %v780
        %v808 = vmax.f32 %v566, %v782
        %v809 = vmax.f32 %v567, %v784
        %v810 = vmax.f32 %v568, %v786
        %v811 = vmax.f32 %v569, %v788
        %v812 = vmax.f32 %v570, %v790
        %v813 = vmax.f32 %v571, %v792
        %v814 = vmax.f32 %v572, %v794
        %v815 = vmax.f32 %v573, %v796
        %v816 = vmax.f32 %v574, %v798
        %v817 = vmax.f32 %v575, %v800
        %v818 = vmax.f32 %v576, %v802
        %v819 = vsub.f32 %v561, %v803
        %v820 = vsub.f32 %v562, %v804
        %v821 = vsub.f32 %v563, %v805
        %v822 = vsub.f32 %v564, %v806
        %v823 = vsub.f32 %v565, %v807
        %v824 = vsub.f32 %v566, %v808
        %v825 = vsub.f32 %v567, %v809
        %v826 = vsub.f32 %v568, %v810
        %v827 = vsub.f32 %v569, %v811
        %v828 = vsub.f32 %v570, %v812
        %v829 = vsub.f32 %v571, %v813
        %v830 = vsub.f32 %v572, %v814
        %v831 = vsub.f32 %v573, %v815
        %v832 = vsub.f32 %v574, %v816
        %v833 = vsub.f32 %v575, %v817
        %v834 = vsub.f32 %v576, %v818
        %v835 = vmul.f32 %v819, 1.442695
        %v836 = vpow.pop %v835
        %v837 = vmul.f32 %v820, 1.442695
        %v838 = vpow.pop %v837
        %v839 = vmul.f32 %v821, 1.442695
        %v840 = vpow.pop %v839
        %v841 = vmul.f32 %v822, 1.442695
        %v842 = vpow.pop %v841
        %v843 = vmul.f32 %v823, 1.442695
        %v844 = vpow.pop %v843
        %v845 = vmul.f32 %v824, 1.442695
        %v846 = vpow.pop %v845
        %v847 = vmul.f32 %v825, 1.442695
        %v848 = vpow.pop %v847
        %v849 = vmul.f32 %v826, 1.442695
        %v850 = vpow.pop %v849
        %v851 = vmul.f32 %v827, 1.442695
        %v852 = vpow.pop %v851
        %v853 = vmul.f32 %v828, 1.442695
        %v854 = vpow.pop %v853
        %v855 = vmul.f32 %v829, 1.442695
        %v856 = vpow.pop %v855
        %v857 = vmul.f32 %v830, 1.442695
        %v858 = vpow.pop %v857
        %v859 = vmul.f32 %v831, 1.442695
        %v860 = vpow.pop %v859
        %v861 = vmul.f32 %v832, 1.442695
        %v862 = vpow.pop %v861
        %v863 = vmul.f32 %v833, 1.442695
        %v864 = vpow.pop %v863
        %v865 = vmul.f32 %v834, 1.442695
        %v866 = vpow.pop %v865
        %868 = vset.pattern.permute.xlu0 0
        %869 = vperm.xlu0 %868, %v803
        %v870 = vpop.permute.xlu0 %869
        %873 = vset.pattern.permute.xlu0 0
        %874 = vperm.xlu0 %873, %v804
        %v875 = vpop.permute.xlu0 %874
        %878 = vset.pattern.permute.xlu0 0
        %879 = vperm.xlu0 %878, %v805
        %v880 = vpop.permute.xlu0 %879
        %883 = vset.pattern.permute.xlu0 0
        %884 = vperm.xlu0 %883, %v806
        %v885 = vpop.permute.xlu0 %884
        %888 = vset.pattern.permute.xlu0 0
        %889 = vperm.xlu0 %888, %v807
        %v890 = vpop.permute.xlu0 %889
        %893 = vset.pattern.permute.xlu0 0
        %894 = vperm.xlu0 %893, %v808
        %v895 = vpop.permute.xlu0 %894
        %898 = vset.pattern.permute.xlu0 0
        %899 = vperm.xlu0 %898, %v809
        %v900 = vpop.permute.xlu0 %899
        %903 = vset.pattern.permute.xlu0 0
        %904 = vperm.xlu0 %903, %v810
        %v905 = vpop.permute.xlu0 %904
        %908 = vset.pattern.permute.xlu0 0
        %909 = vperm.xlu0 %908, %v811
        %v910 = vpop.permute.xlu0 %909
        %913 = vset.pattern.permute.xlu0 0
        %914 = vperm.xlu0 %913, %v812
        %v915 = vpop.permute.xlu0 %914
        %918 = vset.pattern.permute.xlu0 0
        %919 = vperm.xlu0 %918, %v813
        %v920 = vpop.permute.xlu0 %919
        %923 = vset.pattern.permute.xlu0 0
        %924 = vperm.xlu0 %923, %v814
        %v925 = vpop.permute.xlu0 %924
        %928 = vset.pattern.permute.xlu0 0
        %929 = vperm.xlu0 %928, %v815
        %v930 = vpop.permute.xlu0 %929
        %933 = vset.pattern.permute.xlu0 0
        %934 = vperm.xlu0 %933, %v816
        %v935 = vpop.permute.xlu0 %934
        %938 = vset.pattern.permute.xlu0 0
        %939 = vperm.xlu0 %938, %v817
        %v940 = vpop.permute.xlu0 %939
        %943 = vset.pattern.permute.xlu0 0
        %944 = vperm.xlu0 %943, %v818
        %v945 = vpop.permute.xlu0 %944
        %v947 = vsub.f32 %v709, %v870
        %v948 = vsub.f32 %v712, %v875
        %v949 = vsub.f32 %v717, %v880
        %v950 = vsub.f32 %v720, %v885
        %v951 = vsub.f32 %v725, %v890
        %v952 = vsub.f32 %v728, %v895
        %v953 = vsub.f32 %v733, %v900
        %v954 = vsub.f32 %v736, %v905
        %v955 = vsub.f32 %v741, %v910
        %v956 = vsub.f32 %v744, %v915
        %v957 = vsub.f32 %v749, %v920
        %v958 = vsub.f32 %v752, %v925
        %v959 = vsub.f32 %v757, %v930
        %v960 = vsub.f32 %v760, %v935
        %v961 = vsub.f32 %v765, %v940
        %v962 = vsub.f32 %v768, %v945
        %v963 = vmul.f32 %v947, 1.442695
        %v964 = vpow.pop %v963
        %v965 = vmul.f32 %v948, 1.442695
        %v966 = vpow.pop %v965
        %v967 = vmul.f32 %v949, 1.442695
        %v968 = vpow.pop %v967
        %v969 = vmul.f32 %v950, 1.442695
        %v970 = vpow.pop %v969
        %v971 = vmul.f32 %v951, 1.442695
        %v972 = vpow.pop %v971
        %v973 = vmul.f32 %v952, 1.442695
        %v974 = vpow.pop %v973
        %v975 = vmul.f32 %v953, 1.442695
        %v976 = vpow.pop %v975
        %v977 = vmul.f32 %v954, 1.442695
        %v978 = vpow.pop %v977
        %v979 = vmul.f32 %v955, 1.442695
        %v980 = vpow.pop %v979
        %v981 = vmul.f32 %v956, 1.442695
        %v982 = vpow.pop %v981
        %v983 = vmul.f32 %v957, 1.442695
        %v984 = vpow.pop %v983
        %v985 = vmul.f32 %v958, 1.442695
        %v986 = vpow.pop %v985
        %v987 = vmul.f32 %v959, 1.442695
        %v988 = vpow.pop %v987
        %v989 = vmul.f32 %v960, 1.442695
        %v990 = vpow.pop %v989
        %v991 = vmul.f32 %v961, 1.442695
        %v992 = vpow.pop %v991
        %v993 = vmul.f32 %v962, 1.442695
        %v994 = vpow.pop %v993
        %v995 = vmul.f32 %v836, %v577
        %v996 = vmul.f32 %v838, %v578
        %v997 = vmul.f32 %v840, %v579
        %v998 = vmul.f32 %v842, %v580
        %v999 = vmul.f32 %v844, %v581
        %v1000 = vmul.f32 %v846, %v582
        %v1001 = vmul.f32 %v848, %v583
        %v1002 = vmul.f32 %v850, %v584
        %v1003 = vmul.f32 %v852, %v585
        %v1004 = vmul.f32 %v854, %v586
        %v1005 = vmul.f32 %v856, %v587
        %v1006 = vmul.f32 %v858, %v588
        %v1007 = vmul.f32 %v860, %v589
        %v1008 = vmul.f32 %v862, %v590
        %v1009 = vmul.f32 %v864, %v591
        %v1010 = vmul.f32 %v866, %v592
        %1011 = vadd.xlane.f32.xlu0 %v964
        %v1012 = vpop.xlane.xlu0 %1011
        %1013 = vadd.xlane.f32.xlu0 %v966
        %v1014 = vpop.xlane.xlu0 %1013
        %1015 = vadd.xlane.f32.xlu0 %v968
        %v1016 = vpop.xlane.xlu0 %1015
        %1017 = vadd.xlane.f32.xlu0 %v970
        %v1018 = vpop.xlane.xlu0 %1017
        %1019 = vadd.xlane.f32.xlu0 %v972
        %v1020 = vpop.xlane.xlu0 %1019
        %1021 = vadd.xlane.f32.xlu0 %v974
        %v1022 = vpop.xlane.xlu0 %1021
        %1023 = vadd.xlane.f32.xlu0 %v976
        %v1024 = vpop.xlane.xlu0 %1023
        %1025 = vadd.xlane.f32.xlu0 %v978
        %v1026 = vpop.xlane.xlu0 %1025
        %1027 = vadd.xlane.f32.xlu0 %v980
        %v1028 = vpop.xlane.xlu0 %1027
        %1029 = vadd.xlane.f32.xlu0 %v982
        %v1030 = vpop.xlane.xlu0 %1029
        %1031 = vadd.xlane.f32.xlu0 %v984
        %v1032 = vpop.xlane.xlu0 %1031
        %1033 = vadd.xlane.f32.xlu0 %v986
        %v1034 = vpop.xlane.xlu0 %1033
        %1035 = vadd.xlane.f32.xlu0 %v988
        %v1036 = vpop.xlane.xlu0 %1035
        %1037 = vadd.xlane.f32.xlu0 %v990
        %v1038 = vpop.xlane.xlu0 %1037
        %1039 = vadd.xlane.f32.xlu0 %v992
        %v1040 = vpop.xlane.xlu0 %1039
        %1041 = vadd.xlane.f32.xlu0 %v994
        %v1042 = vpop.xlane.xlu0 %1041
        %v1043 = vadd.f32 %v995, %v1012
        %v1044 = vadd.f32 %v996, %v1014
        %v1045 = vadd.f32 %v997, %v1016
        %v1046 = vadd.f32 %v998, %v1018
        %v1047 = vadd.f32 %v999, %v1020
        %v1048 = vadd.f32 %v1000, %v1022
        %v1049 = vadd.f32 %v1001, %v1024
        %v1050 = vadd.f32 %v1002, %v1026
        %v1051 = vadd.f32 %v1003, %v1028
        %v1052 = vadd.f32 %v1004, %v1030
        %v1053 = vadd.f32 %v1005, %v1032
        %v1054 = vadd.f32 %v1006, %v1034
        %v1055 = vadd.f32 %v1007, %v1036
        %v1056 = vadd.f32 %v1008, %v1038
        %v1057 = vadd.f32 %v1009, %v1040
        %v1058 = vadd.f32 %v1010, %v1042
        %v1059 = vpack.c.bf16 %v966, %v964
        %v1060 = vpack.c.bf16 %v970, %v968
        %v1061 = vpack.c.bf16 %v974, %v972
        %v1062 = vpack.c.bf16 %v978, %v976
        %v1063 = vpack.c.bf16 %v982, %v980
        %v1064 = vpack.c.bf16 %v986, %v984
        %v1065 = vpack.c.bf16 %v990, %v988
        %v1066 = vpack.c.bf16 %v994, %v992
        %v1067 = vpack.c.bf16 %v546, %v545
        %v1068 = vpack.c.bf16 %v548, %v547
        %v1069 = vpack.c.bf16 %v550, %v549
        %v1070 = vpack.c.bf16 %v552, %v551
        %v1071 = vpack.c.bf16 %v554, %v553
        %v1072 = vpack.c.bf16 %v556, %v555
        %v1073 = vpack.c.bf16 %v558, %v557
        %v1074 = vpack.c.bf16 %v560, %v559
        %1075 = vmatprep.subr.bf16.mxu0 0
        %1076 = vmatpush1.bf16.msra.mxu0 %v1067
        %1077 = vmatprep.subr.bf16.mxu0 0
        %1078 = vmatpush1.bf16.msra.mxu0 %v1068
        %1079 = vmatprep.subr.bf16.mxu0 0
        %1080 = vmatpush1.bf16.msra.mxu0 %v1069
        %1081 = vmatprep.subr.bf16.mxu0 0
        %1082 = vmatpush1.bf16.msra.mxu0 %v1070
        %1083 = vmatprep.subr.bf16.mxu0 0
        %1084 = vmatpush1.bf16.msra.mxu0 %v1071
        %1085 = vmatprep.subr.bf16.mxu0 0
        %1086 = vmatpush1.bf16.msra.mxu0 %v1072
        %1087 = vmatprep.subr.bf16.mxu0 0
        %1088 = vmatpush1.bf16.msra.mxu0 %v1073
        %1089 = vmatprep.subr.bf16.mxu0 0
        %1090 = vmatpush1.bf16.msra.mxu0 %v1074
        %1091 = vmatprep.subr.bf16.mxu0 0
        %1092 = vmatpush1.bf16.msra.mxu0 0
        %1093 = vmatprep.subr.bf16.mxu0 0
        %1094 = vmatpush1.bf16.msra.mxu0 0
        %1095 = vmatprep.subr.bf16.mxu0 0
        %1096 = vmatpush1.bf16.msra.mxu0 0
        %1097 = vmatprep.subr.bf16.mxu0 0
        %1098 = vmatpush1.bf16.msra.mxu0 0
        %1099 = vmatprep.subr.bf16.mxu0 0
        %1100 = vmatpush1.bf16.msra.mxu0 0
        %1101 = vmatprep.subr.bf16.mxu0 0
        %1102 = vmatpush1.bf16.msra.mxu0 0
        %1103 = vmatprep.subr.bf16.mxu0 0
        %1104 = vmatpush1.bf16.msra.mxu0 0
        %1105 = vmatprep.subr.bf16.mxu0 0
        %1106 = vmatpush1.bf16.msra.mxu0 0
        %1107 = vmatprep.mubr.bf16.mxu0 0
        %1108 = vmatmul.mubr.bf16.gmra.mrb[0].mxu0 %v1059
        %v1109 = vpop.f32.mrb[0].mxu0
        %v1110 = vadd.f32 0.0, %v1109
        %v1111 = vpop.f32.mrb[0].mxu0
        %v1112 = vpop.f32.mrb[0].mxu0
        %v1113 = vadd.f32 0.0, %v1112
        %v1114 = vpop.f32.mrb[0].mxu0
        %1115 = vmatprep.mubr.bf16.mxu0 0
        %1116 = vmatmul.mubr.bf16.gmra.mrb[0].mxu0 %v1060
        %v1117 = vpop.f32.mrb[0].mxu0
        %v1118 = vadd.f32 0.0, %v1117
        %v1119 = vpop.f32.mrb[0].mxu0
        %v1120 = vpop.f32.mrb[0].mxu0
        %v1121 = vadd.f32 0.0, %v1120
        %v1122 = vpop.f32.mrb[0].mxu0
        %1123 = vmatprep.mubr.bf16.mxu0 0
        %1124 = vmatmul.mubr.bf16.gmra.mrb[0].mxu0 %v1061
        %v1125 = vpop.f32.mrb[0].mxu0
        %v1126 = vadd.f32 0.0, %v1125
        %v1127 = vpop.f32.mrb[0].mxu0
        %v1128 = vpop.f32.mrb[0].mxu0
        %v1129 = vadd.f32 0.0, %v1128
        %v1130 = vpop.f32.mrb[0].mxu0
        %1131 = vmatprep.mubr.bf16.mxu0 0
        %1132 = vmatmul.mubr.bf16.gmra.mrb[0].mxu0 %v1062
        %v1133 = vpop.f32.mrb[0].mxu0
        %v1134 = vadd.f32 0.0, %v1133
        %v1135 = vpop.f32.mrb[0].mxu0
        %v1136 = vpop.f32.mrb[0].mxu0
        %v1137 = vadd.f32 0.0, %v1136
        %v1138 = vpop.f32.mrb[0].mxu0
        %1139 = vmatprep.mubr.bf16.mxu0 0
        %1140 = vmatmul.mubr.bf16.gmra.mrb[0].mxu0 %v1063
        %v1141 = vpop.f32.mrb[0].mxu0
        %v1142 = vadd.f32 0.0, %v1141
        %v1143 = vpop.f32.mrb[0].mxu0
        %v1144 = vpop.f32.mrb[0].mxu0
        %v1145 = vadd.f32 0.0, %v1144
        %v1146 = vpop.f32.mrb[0].mxu0
        %1147 = vmatprep.mubr.bf16.mxu0 0
        %1148 = vmatmul.mubr.bf16.gmra.mrb[0].mxu0 %v1064
        %v1149 = vpop.f32.mrb[0].mxu0
        %v1150 = vadd.f32 0.0, %v1149
        %v1151 = vpop.f32.mrb[0].mxu0
        %v1152 = vpop.f32.mrb[0].mxu0
        %v1153 = vadd.f32 0.0, %v1152
        %v1154 = vpop.f32.mrb[0].mxu0
        %1155 = vmatprep.mubr.bf16.mxu0 0
        %1156 = vmatmul.mubr.bf16.gmra.mrb[0].mxu0 %v1065
        %v1157 = vpop.f32.mrb[0].mxu0
        %v1158 = vadd.f32 0.0, %v1157
        %v1159 = vpop.f32.mrb[0].mxu0
        %v1160 = vpop.f32.mrb[0].mxu0
        %v1161 = vadd.f32 0.0, %v1160
        %v1162 = vpop.f32.mrb[0].mxu0
        %1163 = vmatprep.mubr.bf16.mxu0 0
        %1164 = vmatmul.mubr.bf16.gmra.mrb[0].mxu0 %v1066
        %v1165 = vpop.f32.mrb[0].mxu0
        %v1166 = vadd.f32 0.0, %v1165
        %v1167 = vpop.f32.mrb[0].mxu0
        %v1168 = vpop.f32.mrb[0].mxu0
        %v1169 = vadd.f32 0.0, %v1168
        %v1170 = vpop.f32.mrb[0].mxu0
        %1171 = vdwg.mxu0
        %1173 = vset.pattern.permute.xlu0 0
        %1174 = vperm.xlu0 %1173, %v836
        %v1175 = vpop.permute.xlu0 %1174
        %1178 = vset.pattern.permute.xlu0 0
        %1179 = vperm.xlu0 %1178, %v838
        %v1180 = vpop.permute.xlu0 %1179
        %1183 = vset.pattern.permute.xlu0 0
        %1184 = vperm.xlu0 %1183, %v840
        %v1185 = vpop.permute.xlu0 %1184
        %1188 = vset.pattern.permute.xlu0 0
        %1189 = vperm.xlu0 %1188, %v842
        %v1190 = vpop.permute.xlu0 %1189
        %1193 = vset.pattern.permute.xlu0 0
        %1194 = vperm.xlu0 %1193, %v844
        %v1195 = vpop.permute.xlu0 %1194
        %1198 = vset.pattern.permute.xlu0 0
        %1199 = vperm.xlu0 %1198, %v846
        %v1200 = vpop.permute.xlu0 %1199
        %1203 = vset.pattern.permute.xlu0 0
        %1204 = vperm.xlu0 %1203, %v848
        %v1205 = vpop.permute.xlu0 %1204
        %1208 = vset.pattern.permute.xlu0 0
        %1209 = vperm.xlu0 %1208, %v850
        %v1210 = vpop.permute.xlu0 %1209
        %1213 = vset.pattern.permute.xlu0 0
        %1214 = vperm.xlu0 %1213, %v852
        %v1215 = vpop.permute.xlu0 %1214
        %1218 = vset.pattern.permute.xlu0 0
        %1219 = vperm.xlu0 %1218, %v854
        %v1220 = vpop.permute.xlu0 %1219
        %1223 = vset.pattern.permute.xlu0 0
        %1224 = vperm.xlu0 %1223, %v856
        %v1225 = vpop.permute.xlu0 %1224
        %1228 = vset.pattern.permute.xlu0 0
        %1229 = vperm.xlu0 %1228, %v858
        %v1230 = vpop.permute.xlu0 %1229
        %1233 = vset.pattern.permute.xlu0 0
        %1234 = vperm.xlu0 %1233, %v860
        %v1235 = vpop.permute.xlu0 %1234
        %1238 = vset.pattern.permute.xlu0 0
        %1239 = vperm.xlu0 %1238, %v862
        %v1240 = vpop.permute.xlu0 %1239
        %1243 = vset.pattern.permute.xlu0 0
        %1244 = vperm.xlu0 %1243, %v864
        %v1245 = vpop.permute.xlu0 %1244
        %1248 = vset.pattern.permute.xlu0 0
        %1249 = vperm.xlu0 %1248, %v866
        %v1250 = vpop.permute.xlu0 %1249
        %1260 = vrot.lane.b32.xlu0 %v609, 96
        %v1261 = vpop.permute.xlu0 %1260
        %1262 = vrot.lane.b32.xlu0 %v610, 96
        %v1263 = vpop.permute.xlu0 %1262
        %1264 = vrot.lane.b32.xlu0 %v611, 96
        %v1265 = vpop.permute.xlu0 %1264
        %1266 = vrot.lane.b32.xlu0 %v612, 96
        %v1267 = vpop.permute.xlu0 %1266
        %1268 = vrot.lane.b32.xlu0 %v613, 96
        %v1269 = vpop.permute.xlu0 %1268
        %1270 = vrot.lane.b32.xlu0 %v614, 96
        %v1271 = vpop.permute.xlu0 %1270
        %1272 = vrot.lane.b32.xlu0 %v615, 96
        %v1273 = vpop.permute.xlu0 %1272
        %1274 = vrot.lane.b32.xlu0 %v616, 96
        %v1275 = vpop.permute.xlu0 %1274
        %1284 = vrot.lane.b32.xlu0 %v617, 96
        %v1285 = vpop.permute.xlu0 %1284
        %1286 = vrot.lane.b32.xlu0 %v618, 96
        %v1287 = vpop.permute.xlu0 %1286
        %1288 = vrot.lane.b32.xlu0 %v619, 96
        %v1289 = vpop.permute.xlu0 %1288
        %1290 = vrot.lane.b32.xlu0 %v620, 96
        %v1291 = vpop.permute.xlu0 %1290
        %1292 = vrot.lane.b32.xlu0 %v621, 96
        %v1293 = vpop.permute.xlu0 %1292
        %1294 = vrot.lane.b32.xlu0 %v622, 96
        %v1295 = vpop.permute.xlu0 %1294
        %1296 = vrot.lane.b32.xlu0 %v623, 96
        %v1297 = vpop.permute.xlu0 %1296
        %1298 = vrot.lane.b32.xlu0 %v624, 96
        %v1299 = vpop.permute.xlu0 %1298
        %v1301 = vsel %vm625, %v1261, 0
        %v1304 = vsel %vm625, %v1263, 0
        %v1307 = vsel %vm625, %v1265, 0
        %v1310 = vsel %vm625, %v1267, 0
        %v1313 = vsel %vm625, %v1269, 0
        %v1316 = vsel %vm625, %v1271, 0
        %v1319 = vsel %vm625, %v1273, 0
        %v1322 = vsel %vm625, %v1275, 0
        %v1325 = vsel %vm625, %v1285, 0
        %v1328 = vsel %vm625, %v1287, 0
        %v1331 = vsel %vm625, %v1289, 0
        %v1334 = vsel %vm625, %v1291, 0
        %v1337 = vsel %vm625, %v1293, 0
        %v1340 = vsel %vm625, %v1295, 0
        %v1343 = vsel %vm625, %v1297, 0
        %v1346 = vsel %vm625, %v1299, 0
        %1348 = vmatprep.subr.bf16.mxu0 0
        %1349 = vmatpush1.bf16.xpose.msra.mxu0 %v1325
        %1350 = vmatprep.subr.bf16.mxu0 0
        %1351 = vmatpush1.bf16.xpose.msra.mxu0 %v1328
        %1352 = vmatprep.subr.bf16.mxu0 0
        %1353 = vmatpush1.bf16.xpose.msra.mxu0 %v1331
        %1354 = vmatprep.subr.bf16.mxu0 0
        %1355 = vmatpush1.bf16.xpose.msra.mxu0 %v1334
        %1356 = vmatprep.subr.bf16.mxu0 0
        %1357 = vmatpush1.bf16.xpose.msra.mxu0 %v1337
        %1358 = vmatprep.subr.bf16.mxu0 0
        %1359 = vmatpush1.bf16.xpose.msra.mxu0 %v1340
        %1360 = vmatprep.subr.bf16.mxu0 0
        %1361 = vmatpush1.bf16.xpose.msra.mxu0 %v1343
        %1362 = vmatprep.subr.bf16.mxu0 0
        %1363 = vmatpush1.bf16.xpose.msra.mxu0 %v1346
        %1364 = vmatprep.subr.bf16.mxu0 0
        %1365 = vmatpush1.bf16.xpose.msra.mxu0 0
        %1366 = vmatprep.subr.bf16.mxu0 0
        %1367 = vmatpush1.bf16.xpose.msra.mxu0 0
        %1368 = vmatprep.subr.bf16.mxu0 0
        %1369 = vmatpush1.bf16.xpose.msra.mxu0 0
        %1370 = vmatprep.subr.bf16.mxu0 0
        %1371 = vmatpush1.bf16.xpose.msra.mxu0 0
        %1372 = vmatprep.subr.bf16.mxu0 0
        %1373 = vmatpush1.bf16.xpose.msra.mxu0 0
        %1374 = vmatprep.subr.bf16.mxu0 0
        %1375 = vmatpush1.bf16.xpose.msra.mxu0 0
        %1376 = vmatprep.subr.bf16.mxu0 0
        %1377 = vmatpush1.bf16.xpose.msra.mxu0 0
        %1378 = vmatprep.subr.bf16.mxu0 0
        %1379 = vmatpush1.bf16.xpose.msra.mxu0 0
        %1380 = vmatprep.mubr.bf16.mxu0 0
        %1381 = vmatmul.mubr.bf16.gmra.mrb[0].mxu0 %v1301
        %v1382 = vpop.f32.mrb[0].mxu0
        %v1383 = vadd.f32 %v497, %v1382
        %v1384 = vpop.f32.mrb[0].mxu0
        %v1385 = vpop.f32.mrb[0].mxu0
        %v1386 = vadd.f32 %v498, %v1385
        %v1387 = vpop.f32.mrb[0].mxu0
        %1388 = vmatprep.mubr.bf16.mxu0 0
        %1389 = vmatmul.mubr.bf16.gmra.mrb[0].mxu0 %v1304
        %v1390 = vpop.f32.mrb[0].mxu0
        %v1391 = vadd.f32 %v499, %v1390
        %v1392 = vpop.f32.mrb[0].mxu0
        %v1393 = vpop.f32.mrb[0].mxu0
        %v1394 = vadd.f32 %v500, %v1393
        %v1395 = vpop.f32.mrb[0].mxu0
        %1396 = vmatprep.mubr.bf16.mxu0 0
        %1397 = vmatmul.mubr.bf16.gmra.mrb[0].mxu0 %v1307
        %v1398 = vpop.f32.mrb[0].mxu0
        %v1399 = vadd.f32 %v501, %v1398
        %v1400 = vpop.f32.mrb[0].mxu0
        %v1401 = vpop.f32.mrb[0].mxu0
        %v1402 = vadd.f32 %v502, %v1401
        %v1403 = vpop.f32.mrb[0].mxu0
        %1404 = vmatprep.mubr.bf16.mxu0 0
        %1405 = vmatmul.mubr.bf16.gmra.mrb[0].mxu0 %v1310
        %v1406 = vpop.f32.mrb[0].mxu0
        %v1407 = vadd.f32 %v503, %v1406
        %v1408 = vpop.f32.mrb[0].mxu0
        %v1409 = vpop.f32.mrb[0].mxu0
        %v1410 = vadd.f32 %v504, %v1409
        %v1411 = vpop.f32.mrb[0].mxu0
        %1412 = vmatprep.mubr.bf16.mxu0 0
        %1413 = vmatmul.mubr.bf16.gmra.mrb[0].mxu0 %v1313
        %v1414 = vpop.f32.mrb[0].mxu0
        %v1415 = vadd.f32 %v505, %v1414
        %v1416 = vpop.f32.mrb[0].mxu0
        %v1417 = vpop.f32.mrb[0].mxu0
        %v1418 = vadd.f32 %v506, %v1417
        %v1419 = vpop.f32.mrb[0].mxu0
        %1420 = vmatprep.mubr.bf16.mxu0 0
        %1421 = vmatmul.mubr.bf16.gmra.mrb[0].mxu0 %v1316
        %v1422 = vpop.f32.mrb[0].mxu0
        %v1423 = vadd.f32 %v507, %v1422
        %v1424 = vpop.f32.mrb[0].mxu0
        %v1425 = vpop.f32.mrb[0].mxu0
        %v1426 = vadd.f32 %v508, %v1425
        %v1427 = vpop.f32.mrb[0].mxu0
        %1428 = vmatprep.mubr.bf16.mxu0 0
        %1429 = vmatmul.mubr.bf16.gmra.mrb[0].mxu0 %v1319
        %v1430 = vpop.f32.mrb[0].mxu0
        %v1431 = vadd.f32 %v509, %v1430
        %v1432 = vpop.f32.mrb[0].mxu0
        %v1433 = vpop.f32.mrb[0].mxu0
        %v1434 = vadd.f32 %v510, %v1433
        %v1435 = vpop.f32.mrb[0].mxu0
        %1436 = vmatprep.mubr.bf16.mxu0 0
        %1437 = vmatmul.mubr.bf16.gmra.mrb[0].mxu0 %v1322
        %v1438 = vpop.f32.mrb[0].mxu0
        %v1439 = vadd.f32 %v511, %v1438
        %v1440 = vpop.f32.mrb[0].mxu0
        %v1441 = vpop.f32.mrb[0].mxu0
        %v1442 = vadd.f32 %v512, %v1441
        %v1443 = vpop.f32.mrb[0].mxu0
        %1444 = vdwg.mxu0
        %1445 = vmax.xlane.f32.xlu0 %v1383
        %v1446 = vpop.xlane.xlu0 %1445
        %1447 = vmax.xlane.f32.xlu0 %v1386
        %v1448 = vpop.xlane.xlu0 %1447
        %1449 = vmax.xlane.f32.xlu0 %v1391
        %v1450 = vpop.xlane.xlu0 %1449
        %1451 = vmax.xlane.f32.xlu0 %v1394
        %v1452 = vpop.xlane.xlu0 %1451
        %1453 = vmax.xlane.f32.xlu0 %v1399
        %v1454 = vpop.xlane.xlu0 %1453
        %1455 = vmax.xlane.f32.xlu0 %v1402
        %v1456 = vpop.xlane.xlu0 %1455
        %1457 = vmax.xlane.f32.xlu0 %v1407
        %v1458 = vpop.xlane.xlu0 %1457
        %1459 = vmax.xlane.f32.xlu0 %v1410
        %v1460 = vpop.xlane.xlu0 %1459
        %1461 = vmax.xlane.f32.xlu0 %v1415
        %v1462 = vpop.xlane.xlu0 %1461
        %1463 = vmax.xlane.f32.xlu0 %v1418
        %v1464 = vpop.xlane.xlu0 %1463
        %1465 = vmax.xlane.f32.xlu0 %v1423
        %v1466 = vpop.xlane.xlu0 %1465
        %1467 = vmax.xlane.f32.xlu0 %v1426
        %v1468 = vpop.xlane.xlu0 %1467
        %1469 = vmax.xlane.f32.xlu0 %v1431
        %v1470 = vpop.xlane.xlu0 %1469
        %1471 = vmax.xlane.f32.xlu0 %v1434
        %v1472 = vpop.xlane.xlu0 %1471
        %1473 = vmax.xlane.f32.xlu0 %v1439
        %v1474 = vpop.xlane.xlu0 %1473
        %1475 = vmax.xlane.f32.xlu0 %v1442
        %v1476 = vpop.xlane.xlu0 %1475
        %v1477 = vmax.f32 %v561, %v1446
        %v1478 = vmax.f32 %v562, %v1448
        %v1479 = vmax.f32 %v563, %v1450
        %v1480 = vmax.f32 %v564, %v1452
        %v1481 = vmax.f32 %v565, %v1454
        %v1482 = vmax.f32 %v566, %v1456
        %v1483 = vmax.f32 %v567, %v1458
        %v1484 = vmax.f32 %v568, %v1460
        %v1485 = vmax.f32 %v569, %v1462
        %v1486 = vmax.f32 %v570, %v1464
        %v1487 = vmax.f32 %v571, %v1466
        %v1488 = vmax.f32 %v572, %v1468
        %v1489 = vmax.f32 %v573, %v1470
        %v1490 = vmax.f32 %v574, %v1472
        %v1491 = vmax.f32 %v575, %v1474
        %v1492 = vmax.f32 %v576, %v1476
        %v1493 = vsub.f32 %v561, %v1477
        %v1494 = vsub.f32 %v562, %v1478
        %v1495 = vsub.f32 %v563, %v1479
        %v1496 = vsub.f32 %v564, %v1480
        %v1497 = vsub.f32 %v565, %v1481
        %v1498 = vsub.f32 %v566, %v1482
        %v1499 = vsub.f32 %v567, %v1483
        %v1500 = vsub.f32 %v568, %v1484
        %v1501 = vsub.f32 %v569, %v1485
        %v1502 = vsub.f32 %v570, %v1486
        %v1503 = vsub.f32 %v571, %v1487
        %v1504 = vsub.f32 %v572, %v1488
        %v1505 = vsub.f32 %v573, %v1489
        %v1506 = vsub.f32 %v574, %v1490
        %v1507 = vsub.f32 %v575, %v1491
        %v1508 = vsub.f32 %v576, %v1492
        %v1509 = vmul.f32 %v1493, 1.442695
        %v1510 = vpow.pop %v1509
        %v1511 = vmul.f32 %v1494, 1.442695
        %v1512 = vpow.pop %v1511
        %v1513 = vmul.f32 %v1495, 1.442695
        %v1514 = vpow.pop %v1513
        %v1515 = vmul.f32 %v1496, 1.442695
        %v1516 = vpow.pop %v1515
        %v1517 = vmul.f32 %v1497, 1.442695
        %v1518 = vpow.pop %v1517
        %v1519 = vmul.f32 %v1498, 1.442695
        %v1520 = vpow.pop %v1519
        %v1521 = vmul.f32 %v1499, 1.442695
        %v1522 = vpow.pop %v1521
        %v1523 = vmul.f32 %v1500, 1.442695
        %v1524 = vpow.pop %v1523
        %v1525 = vmul.f32 %v1501, 1.442695
        %v1526 = vpow.pop %v1525
        %v1527 = vmul.f32 %v1502, 1.442695
        %v1528 = vpow.pop %v1527
        %v1529 = vmul.f32 %v1503, 1.442695
        %v1530 = vpow.pop %v1529
        %v1531 = vmul.f32 %v1504, 1.442695
        %v1532 = vpow.pop %v1531
        %v1533 = vmul.f32 %v1505, 1.442695
        %v1534 = vpow.pop %v1533
        %v1535 = vmul.f32 %v1506, 1.442695
        %v1536 = vpow.pop %v1535
        %v1537 = vmul.f32 %v1507, 1.442695
        %v1538 = vpow.pop %v1537
        %v1539 = vmul.f32 %v1508, 1.442695
        %v1540 = vpow.pop %v1539
        %1542 = vset.pattern.permute.xlu0 1
        %1543 = vperm.xlu0 %1542, %v1477
        %v1544 = vpop.permute.xlu0 %1543
        %1547 = vset.pattern.permute.xlu0 1
        %1548 = vperm.xlu0 %1547, %v1478
        %v1549 = vpop.permute.xlu0 %1548
        %1552 = vset.pattern.permute.xlu0 1
        %1553 = vperm.xlu0 %1552, %v1479
        %v1554 = vpop.permute.xlu0 %1553
        %1557 = vset.pattern.permute.xlu0 1
        %1558 = vperm.xlu0 %1557, %v1480
        %v1559 = vpop.permute.xlu0 %1558
        %1562 = vset.pattern.permute.xlu0 1
        %1563 = vperm.xlu0 %1562, %v1481
        %v1564 = vpop.permute.xlu0 %1563
        %1567 = vset.pattern.permute.xlu0 1
        %1568 = vperm.xlu0 %1567, %v1482
        %v1569 = vpop.permute.xlu0 %1568
        %1572 = vset.pattern.permute.xlu0 1
        %1573 = vperm.xlu0 %1572, %v1483
        %v1574 = vpop.permute.xlu0 %1573
        %1577 = vset.pattern.permute.xlu0 1
        %1578 = vperm.xlu0 %1577, %v1484
        %v1579 = vpop.permute.xlu0 %1578
        %1582 = vset.pattern.permute.xlu0 1
        %1583 = vperm.xlu0 %1582, %v1485
        %v1584 = vpop.permute.xlu0 %1583
        %1587 = vset.pattern.permute.xlu0 1
        %1588 = vperm.xlu0 %1587, %v1486
        %v1589 = vpop.permute.xlu0 %1588
        %1592 = vset.pattern.permute.xlu0 1
        %1593 = vperm.xlu0 %1592, %v1487
        %v1594 = vpop.permute.xlu0 %1593
        %1597 = vset.pattern.permute.xlu0 1
        %1598 = vperm.xlu0 %1597, %v1488
        %v1599 = vpop.permute.xlu0 %1598
        %1602 = vset.pattern.permute.xlu0 1
        %1603 = vperm.xlu0 %1602, %v1489
        %v1604 = vpop.permute.xlu0 %1603
        %1607 = vset.pattern.permute.xlu0 1
        %1608 = vperm.xlu0 %1607, %v1490
        %v1609 = vpop.permute.xlu0 %1608
        %1612 = vset.pattern.permute.xlu0 1
        %1613 = vperm.xlu0 %1612, %v1491
        %v1614 = vpop.permute.xlu0 %1613
        %1617 = vset.pattern.permute.xlu0 1
        %1618 = vperm.xlu0 %1617, %v1492
        %v1619 = vpop.permute.xlu0 %1618
        %v1621 = vsub.f32 %v1383, %v1544
        %v1622 = vsub.f32 %v1386, %v1549
        %v1623 = vsub.f32 %v1391, %v1554
        %v1624 = vsub.f32 %v1394, %v1559
        %v1625 = vsub.f32 %v1399, %v1564
        %v1626 = vsub.f32 %v1402, %v1569
        %v1627 = vsub.f32 %v1407, %v1574
        %v1628 = vsub.f32 %v1410, %v1579
        %v1629 = vsub.f32 %v1415, %v1584
        %v1630 = vsub.f32 %v1418, %v1589
        %v1631 = vsub.f32 %v1423, %v1594
        %v1632 = vsub.f32 %v1426, %v1599
        %v1633 = vsub.f32 %v1431, %v1604
        %v1634 = vsub.f32 %v1434, %v1609
        %v1635 = vsub.f32 %v1439, %v1614
        %v1636 = vsub.f32 %v1442, %v1619
        %v1637 = vmul.f32 %v1621, 1.442695
        %v1638 = vpow.pop %v1637
        %v1639 = vmul.f32 %v1622, 1.442695
        %v1640 = vpow.pop %v1639
        %v1641 = vmul.f32 %v1623, 1.442695
        %v1642 = vpow.pop %v1641
        %v1643 = vmul.f32 %v1624, 1.442695
        %v1644 = vpow.pop %v1643
        %v1645 = vmul.f32 %v1625, 1.442695
        %v1646 = vpow.pop %v1645
        %v1647 = vmul.f32 %v1626, 1.442695
        %v1648 = vpow.pop %v1647
        %v1649 = vmul.f32 %v1627, 1.442695
        %v1650 = vpow.pop %v1649
        %v1651 = vmul.f32 %v1628, 1.442695
        %v1652 = vpow.pop %v1651
        %v1653 = vmul.f32 %v1629, 1.442695
        %v1654 = vpow.pop %v1653
        %v1655 = vmul.f32 %v1630, 1.442695
        %v1656 = vpow.pop %v1655
        %v1657 = vmul.f32 %v1631, 1.442695
        %v1658 = vpow.pop %v1657
        %v1659 = vmul.f32 %v1632, 1.442695
        %v1660 = vpow.pop %v1659
        %v1661 = vmul.f32 %v1633, 1.442695
        %v1662 = vpow.pop %v1661
        %v1663 = vmul.f32 %v1634, 1.442695
        %v1664 = vpow.pop %v1663
        %v1665 = vmul.f32 %v1635, 1.442695
        %v1666 = vpow.pop %v1665
        %v1667 = vmul.f32 %v1636, 1.442695
        %v1668 = vpow.pop %v1667
        %v1669 = vmul.f32 %v1510, %v577
        %v1670 = vmul.f32 %v1512, %v578
        %v1671 = vmul.f32 %v1514, %v579
        %v1672 = vmul.f32 %v1516, %v580
        %v1673 = vmul.f32 %v1518, %v581
        %v1674 = vmul.f32 %v1520, %v582
        %v1675 = vmul.f32 %v1522, %v583
        %v1676 = vmul.f32 %v1524, %v584
        %v1677 = vmul.f32 %v1526, %v585
        %v1678 = vmul.f32 %v1528, %v586
        %v1679 = vmul.f32 %v1530, %v587
        %v1680 = vmul.f32 %v1532, %v588
        %v1681 = vmul.f32 %v1534, %v589
        %v1682 = vmul.f32 %v1536, %v590
        %v1683 = vmul.f32 %v1538, %v591
        %v1684 = vmul.f32 %v1540, %v592
        %1685 = vadd.xlane.f32.xlu0 %v1638
        %v1686 = vpop.xlane.xlu0 %1685
        %1687 = vadd.xlane.f32.xlu0 %v1640
        %v1688 = vpop.xlane.xlu0 %1687
        %1689 = vadd.xlane.f32.xlu0 %v1642
        %v1690 = vpop.xlane.xlu0 %1689
        %1691 = vadd.xlane.f32.xlu0 %v1644
        %v1692 = vpop.xlane.xlu0 %1691
        %1693 = vadd.xlane.f32.xlu0 %v1646
        %v1694 = vpop.xlane.xlu0 %1693
        %1695 = vadd.xlane.f32.xlu0 %v1648
        %v1696 = vpop.xlane.xlu0 %1695
        %1697 = vadd.xlane.f32.xlu0 %v1650
        %v1698 = vpop.xlane.xlu0 %1697
        %1699 = vadd.xlane.f32.xlu0 %v1652
        %v1700 = vpop.xlane.xlu0 %1699
        %1701 = vadd.xlane.f32.xlu0 %v1654
        %v1702 = vpop.xlane.xlu0 %1701
        %1703 = vadd.xlane.f32.xlu0 %v1656
        %v1704 = vpop.xlane.xlu0 %1703
        %1705 = vadd.xlane.f32.xlu0 %v1658
        %v1706 = vpop.xlane.xlu0 %1705
        %1707 = vadd.xlane.f32.xlu0 %v1660
        %v1708 = vpop.xlane.xlu0 %1707
        %1709 = vadd.xlane.f32.xlu0 %v1662
        %v1710 = vpop.xlane.xlu0 %1709
        %1711 = vadd.xlane.f32.xlu0 %v1664
        %v1712 = vpop.xlane.xlu0 %1711
        %1713 = vadd.xlane.f32.xlu0 %v1666
        %v1714 = vpop.xlane.xlu0 %1713
        %1715 = vadd.xlane.f32.xlu0 %v1668
        %v1716 = vpop.xlane.xlu0 %1715
        %v1717 = vadd.f32 %v1669, %v1686
        %v1718 = vadd.f32 %v1670, %v1688
        %v1719 = vadd.f32 %v1671, %v1690
        %v1720 = vadd.f32 %v1672, %v1692
        %v1721 = vadd.f32 %v1673, %v1694
        %v1722 = vadd.f32 %v1674, %v1696
        %v1723 = vadd.f32 %v1675, %v1698
        %v1724 = vadd.f32 %v1676, %v1700
        %v1725 = vadd.f32 %v1677, %v1702
        %v1726 = vadd.f32 %v1678, %v1704
        %v1727 = vadd.f32 %v1679, %v1706
        %v1728 = vadd.f32 %v1680, %v1708
        %v1729 = vadd.f32 %v1681, %v1710
        %v1730 = vadd.f32 %v1682, %v1712
        %v1731 = vadd.f32 %v1683, %v1714
        %v1732 = vadd.f32 %v1684, %v1716
        %v1733 = vpack.c.bf16 %v1640, %v1638
        %v1734 = vpack.c.bf16 %v1644, %v1642
        %v1735 = vpack.c.bf16 %v1648, %v1646
        %v1736 = vpack.c.bf16 %v1652, %v1650
        %v1737 = vpack.c.bf16 %v1656, %v1654
        %v1738 = vpack.c.bf16 %v1660, %v1658
        %v1739 = vpack.c.bf16 %v1664, %v1662
        %v1740 = vpack.c.bf16 %v1668, %v1666
        %1749 = vrot.lane.b32.xlu0 %v1067, 96
        %v1750 = vpop.permute.xlu0 %1749
        %1751 = vrot.lane.b32.xlu0 %v1068, 96
        %v1752 = vpop.permute.xlu0 %1751
        %1753 = vrot.lane.b32.xlu0 %v1069, 96
        %v1754 = vpop.permute.xlu0 %1753
        %1755 = vrot.lane.b32.xlu0 %v1070, 96
        %v1756 = vpop.permute.xlu0 %1755
        %1757 = vrot.lane.b32.xlu0 %v1071, 96
        %v1758 = vpop.permute.xlu0 %1757
        %1759 = vrot.lane.b32.xlu0 %v1072, 96
        %v1760 = vpop.permute.xlu0 %1759
        %1761 = vrot.lane.b32.xlu0 %v1073, 96
        %v1762 = vpop.permute.xlu0 %1761
        %1763 = vrot.lane.b32.xlu0 %v1074, 96
        %v1764 = vpop.permute.xlu0 %1763
        %1773 = vmatprep.subr.bf16.mxu0 0
        %1774 = vmatpush1.bf16.msra.mxu0 %v1750
        %1775 = vmatprep.subr.bf16.mxu0 0
        %1776 = vmatpush1.bf16.msra.mxu0 %v1752
        %1777 = vmatprep.subr.bf16.mxu0 0
        %1778 = vmatpush1.bf16.msra.mxu0 %v1754
        %1779 = vmatprep.subr.bf16.mxu0 0
        %1780 = vmatpush1.bf16.msra.mxu0 %v1756
        %1781 = vmatprep.subr.bf16.mxu0 0
        %1782 = vmatpush1.bf16.msra.mxu0 %v1758
        %1783 = vmatprep.subr.bf16.mxu0 0
        %1784 = vmatpush1.bf16.msra.mxu0 %v1760
        %1785 = vmatprep.subr.bf16.mxu0 0
        %1786 = vmatpush1.bf16.msra.mxu0 %v1762
        %1787 = vmatprep.subr.bf16.mxu0 0
        %1788 = vmatpush1.bf16.msra.mxu0 %v1764
        %1789 = vmatprep.subr.bf16.mxu0 0
        %1790 = vmatpush1.bf16.msra.mxu0 0
        %1791 = vmatprep.subr.bf16.mxu0 0
        %1792 = vmatpush1.bf16.msra.mxu0 0
        %1793 = vmatprep.subr.bf16.mxu0 0
        %1794 = vmatpush1.bf16.msra.mxu0 0
        %1795 = vmatprep.subr.bf16.mxu0 0
        %1796 = vmatpush1.bf16.msra.mxu0 0
        %1797 = vmatprep.subr.bf16.mxu0 0
        %1798 = vmatpush1.bf16.msra.mxu0 0
        %1799 = vmatprep.subr.bf16.mxu0 0
        %1800 = vmatpush1.bf16.msra.mxu0 0
        %1801 = vmatprep.subr.bf16.mxu0 0
        %1802 = vmatpush1.bf16.msra.mxu0 0
        %1803 = vmatprep.subr.bf16.mxu0 0
        %1804 = vmatpush1.bf16.msra.mxu0 0
        %1805 = vmatprep.mubr.bf16.mxu0 0
        %1806 = vmatmul.mubr.bf16.gmra.mrb[0].mxu0 %v1733
        %v1807 = vpop.f32.mrb[0].mxu0
        %v1808 = vadd.f32 0.0, %v1807
        %v1809 = vpop.f32.mrb[0].mxu0
        %v1810 = vpop.f32.mrb[0].mxu0
        %v1811 = vadd.f32 0.0, %v1810
        %v1812 = vpop.f32.mrb[0].mxu0
        %1813 = vmatprep.mubr.bf16.mxu0 0
        %1814 = vmatmul.mubr.bf16.gmra.mrb[0].mxu0 %v1734
        %v1815 = vpop.f32.mrb[0].mxu0
        %v1816 = vadd.f32 0.0, %v1815
        %v1817 = vpop.f32.mrb[0].mxu0
        %v1818 = vpop.f32.mrb[0].mxu0
        %v1819 = vadd.f32 0.0, %v1818
        %v1820 = vpop.f32.mrb[0].mxu0
        %1821 = vmatprep.mubr.bf16.mxu0 0
        %1822 = vmatmul.mubr.bf16.gmra.mrb[0].mxu0 %v1735
        %v1823 = vpop.f32.mrb[0].mxu0
        %v1824 = vadd.f32 0.0, %v1823
        %v1825 = vpop.f32.mrb[0].mxu0
        %v1826 = vpop.f32.mrb[0].mxu0
        %v1827 = vadd.f32 0.0, %v1826
        %v1828 = vpop.f32.mrb[0].mxu0
        %1829 = vmatprep.mubr.bf16.mxu0 0
        %1830 = vmatmul.mubr.bf16.gmra.mrb[0].mxu0 %v1736
        %v1831 = vpop.f32.mrb[0].mxu0
        %v1832 = vadd.f32 0.0, %v1831
        %v1833 = vpop.f32.mrb[0].mxu0
        %v1834 = vpop.f32.mrb[0].mxu0
        %v1835 = vadd.f32 0.0, %v1834
        %v1836 = vpop.f32.mrb[0].mxu0
        %1837 = vmatprep.mubr.bf16.mxu0 0
        %1838 = vmatmul.mubr.bf16.gmra.mrb[0].mxu0 %v1737
        %v1839 = vpop.f32.mrb[0].mxu0
        %v1840 = vadd.f32 0.0, %v1839
        %v1841 = vpop.f32.mrb[0].mxu0
        %v1842 = vpop.f32.mrb[0].mxu0
        %v1843 = vadd.f32 0.0, %v1842
        %v1844 = vpop.f32.mrb[0].mxu0
        %1845 = vmatprep.mubr.bf16.mxu0 0
        %1846 = vmatmul.mubr.bf16.gmra.mrb[0].mxu0 %v1738
        %v1847 = vpop.f32.mrb[0].mxu0
        %v1848 = vadd.f32 0.0, %v1847
        %v1849 = vpop.f32.mrb[0].mxu0
        %v1850 = vpop.f32.mrb[0].mxu0
        %v1851 = vadd.f32 0.0, %v1850
        %v1852 = vpop.f32.mrb[0].mxu0
        %1853 = vmatprep.mubr.bf16.mxu0 0
        %1854 = vmatmul.mubr.bf16.gmra.mrb[0].mxu0 %v1739
        %v1855 = vpop.f32.mrb[0].mxu0
        %v1856 = vadd.f32 0.0, %v1855
        %v1857 = vpop.f32.mrb[0].mxu0
        %v1858 = vpop.f32.mrb[0].mxu0
        %v1859 = vadd.f32 0.0, %v1858
        %v1860 = vpop.f32.mrb[0].mxu0
        %1861 = vmatprep.mubr.bf16.mxu0 0
        %1862 = vmatmul.mubr.bf16.gmra.mrb[0].mxu0 %v1740
        %v1863 = vpop.f32.mrb[0].mxu0
        %v1864 = vadd.f32 0.0, %v1863
        %v1865 = vpop.f32.mrb[0].mxu0
        %v1866 = vpop.f32.mrb[0].mxu0
        %v1867 = vadd.f32 0.0, %v1866
        %v1868 = vpop.f32.mrb[0].mxu0
        %1869 = vdwg.mxu0
        %1871 = vset.pattern.permute.xlu0 1
        %1872 = vperm.xlu0 %1871, %v1510
        %v1873 = vpop.permute.xlu0 %1872
        %1876 = vset.pattern.permute.xlu0 1
        %1877 = vperm.xlu0 %1876, %v1512
        %v1878 = vpop.permute.xlu0 %1877
        %1881 = vset.pattern.permute.xlu0 1
        %1882 = vperm.xlu0 %1881, %v1514
        %v1883 = vpop.permute.xlu0 %1882
        %1886 = vset.pattern.permute.xlu0 1
        %1887 = vperm.xlu0 %1886, %v1516
        %v1888 = vpop.permute.xlu0 %1887
        %1891 = vset.pattern.permute.xlu0 1
        %1892 = vperm.xlu0 %1891, %v1518
        %v1893 = vpop.permute.xlu0 %1892
        %1896 = vset.pattern.permute.xlu0 1
        %1897 = vperm.xlu0 %1896, %v1520
        %v1898 = vpop.permute.xlu0 %1897
        %1901 = vset.pattern.permute.xlu0 1
        %1902 = vperm.xlu0 %1901, %v1522
        %v1903 = vpop.permute.xlu0 %1902
        %1906 = vset.pattern.permute.xlu0 1
        %1907 = vperm.xlu0 %1906, %v1524
        %v1908 = vpop.permute.xlu0 %1907
        %1911 = vset.pattern.permute.xlu0 1
        %1912 = vperm.xlu0 %1911, %v1526
        %v1913 = vpop.permute.xlu0 %1912
        %1916 = vset.pattern.permute.xlu0 1
        %1917 = vperm.xlu0 %1916, %v1528
        %v1918 = vpop.permute.xlu0 %1917
        %1921 = vset.pattern.permute.xlu0 1
        %1922 = vperm.xlu0 %1921, %v1530
        %v1923 = vpop.permute.xlu0 %1922
        %1926 = vset.pattern.permute.xlu0 1
        %1927 = vperm.xlu0 %1926, %v1532
        %v1928 = vpop.permute.xlu0 %1927
        %1931 = vset.pattern.permute.xlu0 1
        %1932 = vperm.xlu0 %1931, %v1534
        %v1933 = vpop.permute.xlu0 %1932
        %1936 = vset.pattern.permute.xlu0 1
        %1937 = vperm.xlu0 %1936, %v1536
        %v1938 = vpop.permute.xlu0 %1937
        %1941 = vset.pattern.permute.xlu0 1
        %1942 = vperm.xlu0 %1941, %v1538
        %v1943 = vpop.permute.xlu0 %1942
        %1946 = vset.pattern.permute.xlu0 1
        %1947 = vperm.xlu0 %1946, %v1540
        %v1948 = vpop.permute.xlu0 %1947
        %1950 = vrot.lane.b32.xlu0 %v609, 64
        %v1951 = vpop.permute.xlu0 %1950
        %1952 = vrot.lane.b32.xlu0 %v610, 64
        %v1953 = vpop.permute.xlu0 %1952
        %1954 = vrot.lane.b32.xlu0 %v611, 64
        %v1955 = vpop.permute.xlu0 %1954
        %1956 = vrot.lane.b32.xlu0 %v612, 64
        %v1957 = vpop.permute.xlu0 %1956
        %1958 = vrot.lane.b32.xlu0 %v613, 64
        %v1959 = vpop.permute.xlu0 %1958
        %1960 = vrot.lane.b32.xlu0 %v614, 64
        %v1961 = vpop.permute.xlu0 %1960
        %1962 = vrot.lane.b32.xlu0 %v615, 64
        %v1963 = vpop.permute.xlu0 %1962
        %1964 = vrot.lane.b32.xlu0 %v616, 64
        %v1965 = vpop.permute.xlu0 %1964
        %1966 = vrot.lane.b32.xlu0 %v617, 64
        %v1967 = vpop.permute.xlu0 %1966
        %1968 = vrot.lane.b32.xlu0 %v618, 64
        %v1969 = vpop.permute.xlu0 %1968
        %1970 = vrot.lane.b32.xlu0 %v619, 64
        %v1971 = vpop.permute.xlu0 %1970
        %1972 = vrot.lane.b32.xlu0 %v620, 64
        %v1973 = vpop.permute.xlu0 %1972
        %1974 = vrot.lane.b32.xlu0 %v621, 64
        %v1975 = vpop.permute.xlu0 %1974
        %1976 = vrot.lane.b32.xlu0 %v622, 64
        %v1977 = vpop.permute.xlu0 %1976
        %1978 = vrot.lane.b32.xlu0 %v623, 64
        %v1979 = vpop.permute.xlu0 %1978
        %1980 = vrot.lane.b32.xlu0 %v624, 64
        %v1981 = vpop.permute.xlu0 %1980
        %v1983 = vsel %vm625, %v1951, 0
        %v1986 = vsel %vm625, %v1953, 0
        %v1989 = vsel %vm625, %v1955, 0
        %v1992 = vsel %vm625, %v1957, 0
        %v1995 = vsel %vm625, %v1959, 0
        %v1998 = vsel %vm625, %v1961, 0
        %v2001 = vsel %vm625, %v1963, 0
        %v2004 = vsel %vm625, %v1965, 0
        %v2007 = vsel %vm625, %v1967, 0
        %v2010 = vsel %vm625, %v1969, 0
        %v2013 = vsel %vm625, %v1971, 0
        %v2016 = vsel %vm625, %v1973, 0
        %v2019 = vsel %vm625, %v1975, 0
        %v2022 = vsel %vm625, %v1977, 0
        %v2025 = vsel %vm625, %v1979, 0
        %v2028 = vsel %vm625, %v1981, 0
        %2030 = vmatprep.subr.bf16.mxu0 0
        %2031 = vmatpush1.bf16.xpose.msra.mxu0 %v2007
        %2032 = vmatprep.subr.bf16.mxu0 0
        %2033 = vmatpush1.bf16.xpose.msra.mxu0 %v2010
        %2034 = vmatprep.subr.bf16.mxu0 0
        %2035 = vmatpush1.bf16.xpose.msra.mxu0 %v2013
        %2036 = vmatprep.subr.bf16.mxu0 0
        %2037 = vmatpush1.bf16.xpose.msra.mxu0 %v2016
        %2038 = vmatprep.subr.bf16.mxu0 0
        %2039 = vmatpush1.bf16.xpose.msra.mxu0 %v2019
        %2040 = vmatprep.subr.bf16.mxu0 0
        %2041 = vmatpush1.bf16.xpose.msra.mxu0 %v2022
        %2042 = vmatprep.subr.bf16.mxu0 0
        %2043 = vmatpush1.bf16.xpose.msra.mxu0 %v2025
        %2044 = vmatprep.subr.bf16.mxu0 0
        %2045 = vmatpush1.bf16.xpose.msra.mxu0 %v2028
        %2046 = vmatprep.subr.bf16.mxu0 0
        %2047 = vmatpush1.bf16.xpose.msra.mxu0 0
        %2048 = vmatprep.subr.bf16.mxu0 0
        %2049 = vmatpush1.bf16.xpose.msra.mxu0 0
        %2050 = vmatprep.subr.bf16.mxu0 0
        %2051 = vmatpush1.bf16.xpose.msra.mxu0 0
        %2052 = vmatprep.subr.bf16.mxu0 0
        %2053 = vmatpush1.bf16.xpose.msra.mxu0 0
        %2054 = vmatprep.subr.bf16.mxu0 0
        %2055 = vmatpush1.bf16.xpose.msra.mxu0 0
        %2056 = vmatprep.subr.bf16.mxu0 0
        %2057 = vmatpush1.bf16.xpose.msra.mxu0 0
        %2058 = vmatprep.subr.bf16.mxu0 0
        %2059 = vmatpush1.bf16.xpose.msra.mxu0 0
        %2060 = vmatprep.subr.bf16.mxu0 0
        %2061 = vmatpush1.bf16.xpose.msra.mxu0 0
        %2062 = vmatprep.mubr.bf16.mxu0 0
        %2063 = vmatmul.mubr.bf16.gmra.mrb[0].mxu0 %v1983
        %v2064 = vpop.f32.mrb[0].mxu0
        %v2065 = vadd.f32 %v497, %v2064
        %v2066 = vpop.f32.mrb[0].mxu0
        %v2067 = vpop.f32.mrb[0].mxu0
        %v2068 = vadd.f32 %v498, %v2067
        %v2069 = vpop.f32.mrb[0].mxu0
        %2070 = vmatprep.mubr.bf16.mxu0 0
        %2071 = vmatmul.mubr.bf16.gmra.mrb[0].mxu0 %v1986
        %v2072 = vpop.f32.mrb[0].mxu0
        %v2073 = vadd.f32 %v499, %v2072
        %v2074 = vpop.f32.mrb[0].mxu0
        %v2075 = vpop.f32.mrb[0].mxu0
        %v2076 = vadd.f32 %v500, %v2075
        %v2077 = vpop.f32.mrb[0].mxu0
        %2078 = vmatprep.mubr.bf16.mxu0 0
        %2079 = vmatmul.mubr.bf16.gmra.mrb[0].mxu0 %v1989
        %v2080 = vpop.f32.mrb[0].mxu0
        %v2081 = vadd.f32 %v501, %v2080
        %v2082 = vpop.f32.mrb[0].mxu0
        %v2083 = vpop.f32.mrb[0].mxu0
        %v2084 = vadd.f32 %v502, %v2083
        %v2085 = vpop.f32.mrb[0].mxu0
        %2086 = vmatprep.mubr.bf16.mxu0 0
        %2087 = vmatmul.mubr.bf16.gmra.mrb[0].mxu0 %v1992
        %v2088 = vpop.f32.mrb[0].mxu0
        %v2089 = vadd.f32 %v503, %v2088
        %v2090 = vpop.f32.mrb[0].mxu0
        %v2091 = vpop.f32.mrb[0].mxu0
        %v2092 = vadd.f32 %v504, %v2091
        %v2093 = vpop.f32.mrb[0].mxu0
        %2094 = vmatprep.mubr.bf16.mxu0 0
        %2095 = vmatmul.mubr.bf16.gmra.mrb[0].mxu0 %v1995
        %v2096 = vpop.f32.mrb[0].mxu0
        %v2097 = vadd.f32 %v505, %v2096
        %v2098 = vpop.f32.mrb[0].mxu0
        %v2099 = vpop.f32.mrb[0].mxu0
        %v2100 = vadd.f32 %v506, %v2099
        %v2101 = vpop.f32.mrb[0].mxu0
        %2102 = vmatprep.mubr.bf16.mxu0 0
        %2103 = vmatmul.mubr.bf16.gmra.mrb[0].mxu0 %v1998
        %v2104 = vpop.f32.mrb[0].mxu0
        %v2105 = vadd.f32 %v507, %v2104
        %v2106 = vpop.f32.mrb[0].mxu0
        %v2107 = vpop.f32.mrb[0].mxu0
        %v2108 = vadd.f32 %v508, %v2107
        %v2109 = vpop.f32.mrb[0].mxu0
        %2110 = vmatprep.mubr.bf16.mxu0 0
        %2111 = vmatmul.mubr.bf16.gmra.mrb[0].mxu0 %v2001
        %v2112 = vpop.f32.mrb[0].mxu0
        %v2113 = vadd.f32 %v509, %v2112
        %v2114 = vpop.f32.mrb[0].mxu0
        %v2115 = vpop.f32.mrb[0].mxu0
        %v2116 = vadd.f32 %v510, %v2115
        %v2117 = vpop.f32.mrb[0].mxu0
        %2118 = vmatprep.mubr.bf16.mxu0 0
        %2119 = vmatmul.mubr.bf16.gmra.mrb[0].mxu0 %v2004
        %v2120 = vpop.f32.mrb[0].mxu0
        %v2121 = vadd.f32 %v511, %v2120
        %v2122 = vpop.f32.mrb[0].mxu0
        %v2123 = vpop.f32.mrb[0].mxu0
        %v2124 = vadd.f32 %v512, %v2123
        %v2125 = vpop.f32.mrb[0].mxu0
        %2126 = vdwg.mxu0
        %2127 = vmax.xlane.f32.xlu0 %v2065
        %v2128 = vpop.xlane.xlu0 %2127
        %2129 = vmax.xlane.f32.xlu0 %v2068
        %v2130 = vpop.xlane.xlu0 %2129
        %2131 = vmax.xlane.f32.xlu0 %v2073
        %v2132 = vpop.xlane.xlu0 %2131
        %2133 = vmax.xlane.f32.xlu0 %v2076
        %v2134 = vpop.xlane.xlu0 %2133
        %2135 = vmax.xlane.f32.xlu0 %v2081
        %v2136 = vpop.xlane.xlu0 %2135
        %2137 = vmax.xlane.f32.xlu0 %v2084
        %v2138 = vpop.xlane.xlu0 %2137
        %2139 = vmax.xlane.f32.xlu0 %v2089
        %v2140 = vpop.xlane.xlu0 %2139
        %2141 = vmax.xlane.f32.xlu0 %v2092
        %v2142 = vpop.xlane.xlu0 %2141
        %2143 = vmax.xlane.f32.xlu0 %v2097
        %v2144 = vpop.xlane.xlu0 %2143
        %2145 = vmax.xlane.f32.xlu0 %v2100
        %v2146 = vpop.xlane.xlu0 %2145
        %2147 = vmax.xlane.f32.xlu0 %v2105
        %v2148 = vpop.xlane.xlu0 %2147
        %2149 = vmax.xlane.f32.xlu0 %v2108
        %v2150 = vpop.xlane.xlu0 %2149
        %2151 = vmax.xlane.f32.xlu0 %v2113
        %v2152 = vpop.xlane.xlu0 %2151
        %2153 = vmax.xlane.f32.xlu0 %v2116
        %v2154 = vpop.xlane.xlu0 %2153
        %2155 = vmax.xlane.f32.xlu0 %v2121
        %v2156 = vpop.xlane.xlu0 %2155
        %2157 = vmax.xlane.f32.xlu0 %v2124
        %v2158 = vpop.xlane.xlu0 %2157
        %v2159 = vmax.f32 %v561, %v2128
        %v2160 = vmax.f32 %v562, %v2130
        %v2161 = vmax.f32 %v563, %v2132
        %v2162 = vmax.f32 %v564, %v2134
        %v2163 = vmax.f32 %v565, %v2136
        %v2164 = vmax.f32 %v566, %v2138
        %v2165 = vmax.f32 %v567, %v2140
        %v2166 = vmax.f32 %v568, %v2142
        %v2167 = vmax.f32 %v569, %v2144
        %v2168 = vmax.f32 %v570, %v2146
        %v2169 = vmax.f32 %v571, %v2148
        %v2170 = vmax.f32 %v572, %v2150
        %v2171 = vmax.f32 %v573, %v2152
        %v2172 = vmax.f32 %v574, %v2154
        %v2173 = vmax.f32 %v575, %v2156
        %v2174 = vmax.f32 %v576, %v2158
        %v2175 = vsub.f32 %v561, %v2159
        %v2176 = vsub.f32 %v562, %v2160
        %v2177 = vsub.f32 %v563, %v2161
        %v2178 = vsub.f32 %v564, %v2162
        %v2179 = vsub.f32 %v565, %v2163
        %v2180 = vsub.f32 %v566, %v2164
        %v2181 = vsub.f32 %v567, %v2165
        %v2182 = vsub.f32 %v568, %v2166
        %v2183 = vsub.f32 %v569, %v2167
        %v2184 = vsub.f32 %v570, %v2168
        %v2185 = vsub.f32 %v571, %v2169
        %v2186 = vsub.f32 %v572, %v2170
        %v2187 = vsub.f32 %v573, %v2171
        %v2188 = vsub.f32 %v574, %v2172
        %v2189 = vsub.f32 %v575, %v2173
        %v2190 = vsub.f32 %v576, %v2174
        %v2191 = vmul.f32 %v2175, 1.442695
        %v2192 = vpow.pop %v2191
        %v2193 = vmul.f32 %v2176, 1.442695
        %v2194 = vpow.pop %v2193
        %v2195 = vmul.f32 %v2177, 1.442695
        %v2196 = vpow.pop %v2195
        %v2197 = vmul.f32 %v2178, 1.442695
        %v2198 = vpow.pop %v2197
        %v2199 = vmul.f32 %v2179, 1.442695
        %v2200 = vpow.pop %v2199
        %v2201 = vmul.f32 %v2180, 1.442695
        %v2202 = vpow.pop %v2201
        %v2203 = vmul.f32 %v2181, 1.442695
        %v2204 = vpow.pop %v2203
        %v2205 = vmul.f32 %v2182, 1.442695
        %v2206 = vpow.pop %v2205
        %v2207 = vmul.f32 %v2183, 1.442695
        %v2208 = vpow.pop %v2207
        %v2209 = vmul.f32 %v2184, 1.442695
        %v2210 = vpow.pop %v2209
        %v2211 = vmul.f32 %v2185, 1.442695
        %v2212 = vpow.pop %v2211
        %v2213 = vmul.f32 %v2186, 1.442695
        %v2214 = vpow.pop %v2213
        %v2215 = vmul.f32 %v2187, 1.442695
        %v2216 = vpow.pop %v2215
        %v2217 = vmul.f32 %v2188, 1.442695
        %v2218 = vpow.pop %v2217
        %v2219 = vmul.f32 %v2189, 1.442695
        %v2220 = vpow.pop %v2219
        %v2221 = vmul.f32 %v2190, 1.442695
        %v2222 = vpow.pop %v2221
        %2224 = vset.pattern.permute.xlu0 2
        %2225 = vperm.xlu0 %2224, %v2159
        %v2226 = vpop.permute.xlu0 %2225
        %2229 = vset.pattern.permute.xlu0 2
        %2230 = vperm.xlu0 %2229, %v2160
        %v2231 = vpop.permute.xlu0 %2230
        %2234 = vset.pattern.permute.xlu0 2
        %2235 = vperm.xlu0 %2234, %v2161
        %v2236 = vpop.permute.xlu0 %2235
        %2239 = vset.pattern.permute.xlu0 2
        %2240 = vperm.xlu0 %2239, %v2162
        %v2241 = vpop.permute.xlu0 %2240
        %2244 = vset.pattern.permute.xlu0 2
        %2245 = vperm.xlu0 %2244, %v2163
        %v2246 = vpop.permute.xlu0 %2245
        %2249 = vset.pattern.permute.xlu0 2
        %2250 = vperm.xlu0 %2249, %v2164
        %v2251 = vpop.permute.xlu0 %2250
        %2254 = vset.pattern.permute.xlu0 2
        %2255 = vperm.xlu0 %2254, %v2165
        %v2256 = vpop.permute.xlu0 %2255
        %2259 = vset.pattern.permute.xlu0 2
        %2260 = vperm.xlu0 %2259, %v2166
        %v2261 = vpop.permute.xlu0 %2260
        %2264 = vset.pattern.permute.xlu0 2
        %2265 = vperm.xlu0 %2264, %v2167
        %v2266 = vpop.permute.xlu0 %2265
        %2269 = vset.pattern.permute.xlu0 2
        %2270 = vperm.xlu0 %2269, %v2168
        %v2271 = vpop.permute.xlu0 %2270
        %2274 = vset.pattern.permute.xlu0 2
        %2275 = vperm.xlu0 %2274, %v2169
        %v2276 = vpop.permute.xlu0 %2275
        %2279 = vset.pattern.permute.xlu0 2
        %2280 = vperm.xlu0 %2279, %v2170
        %v2281 = vpop.permute.xlu0 %2280
        %2284 = vset.pattern.permute.xlu0 2
        %2285 = vperm.xlu0 %2284, %v2171
        %v2286 = vpop.permute.xlu0 %2285
        %2289 = vset.pattern.permute.xlu0 2
        %2290 = vperm.xlu0 %2289, %v2172
        %v2291 = vpop.permute.xlu0 %2290
        %2294 = vset.pattern.permute.xlu0 2
        %2295 = vperm.xlu0 %2294, %v2173
        %v2296 = vpop.permute.xlu0 %2295
        %2299 = vset.pattern.permute.xlu0 2
        %2300 = vperm.xlu0 %2299, %v2174
        %v2301 = vpop.permute.xlu0 %2300
        %v2303 = vsub.f32 %v2065, %v2226
        %v2304 = vsub.f32 %v2068, %v2231
        %v2305 = vsub.f32 %v2073, %v2236
        %v2306 = vsub.f32 %v2076, %v2241
        %v2307 = vsub.f32 %v2081, %v2246
        %v2308 = vsub.f32 %v2084, %v2251
        %v2309 = vsub.f32 %v2089, %v2256
        %v2310 = vsub.f32 %v2092, %v2261
        %v2311 = vsub.f32 %v2097, %v2266
        %v2312 = vsub.f32 %v2100, %v2271
        %v2313 = vsub.f32 %v2105, %v2276
        %v2314 = vsub.f32 %v2108, %v2281
        %v2315 = vsub.f32 %v2113, %v2286
        %v2316 = vsub.f32 %v2116, %v2291
        %v2317 = vsub.f32 %v2121, %v2296
        %v2318 = vsub.f32 %v2124, %v2301
        %v2319 = vmul.f32 %v2303, 1.442695
        %v2320 = vpow.pop %v2319
        %v2321 = vmul.f32 %v2304, 1.442695
        %v2322 = vpow.pop %v2321
        %v2323 = vmul.f32 %v2305, 1.442695
        %v2324 = vpow.pop %v2323
        %v2325 = vmul.f32 %v2306, 1.442695
        %v2326 = vpow.pop %v2325
        %v2327 = vmul.f32 %v2307, 1.442695
        %v2328 = vpow.pop %v2327
        %v2329 = vmul.f32 %v2308, 1.442695
        %v2330 = vpow.pop %v2329
        %v2331 = vmul.f32 %v2309, 1.442695
        %v2332 = vpow.pop %v2331
        %v2333 = vmul.f32 %v2310, 1.442695
        %v2334 = vpow.pop %v2333
        %v2335 = vmul.f32 %v2311, 1.442695
        %v2336 = vpow.pop %v2335
        %v2337 = vmul.f32 %v2312, 1.442695
        %v2338 = vpow.pop %v2337
        %v2339 = vmul.f32 %v2313, 1.442695
        %v2340 = vpow.pop %v2339
        %v2341 = vmul.f32 %v2314, 1.442695
        %v2342 = vpow.pop %v2341
        %v2343 = vmul.f32 %v2315, 1.442695
        %v2344 = vpow.pop %v2343
        %v2345 = vmul.f32 %v2316, 1.442695
        %v2346 = vpow.pop %v2345
        %v2347 = vmul.f32 %v2317, 1.442695
        %v2348 = vpow.pop %v2347
        %v2349 = vmul.f32 %v2318, 1.442695
        %v2350 = vpow.pop %v2349
        %v2351 = vmul.f32 %v2192, %v577
        %v2352 = vmul.f32 %v2194, %v578
        %v2353 = vmul.f32 %v2196, %v579
        %v2354 = vmul.f32 %v2198, %v580
        %v2355 = vmul.f32 %v2200, %v581
        %v2356 = vmul.f32 %v2202, %v582
        %v2357 = vmul.f32 %v2204, %v583
        %v2358 = vmul.f32 %v2206, %v584
        %v2359 = vmul.f32 %v2208, %v585
        %v2360 = vmul.f32 %v2210, %v586
        %v2361 = vmul.f32 %v2212, %v587
        %v2362 = vmul.f32 %v2214, %v588
        %v2363 = vmul.f32 %v2216, %v589
        %v2364 = vmul.f32 %v2218, %v590
        %v2365 = vmul.f32 %v2220, %v591
        %v2366 = vmul.f32 %v2222, %v592
        %2367 = vadd.xlane.f32.xlu0 %v2320
        %v2368 = vpop.xlane.xlu0 %2367
        %2369 = vadd.xlane.f32.xlu0 %v2322
        %v2370 = vpop.xlane.xlu0 %2369
        %2371 = vadd.xlane.f32.xlu0 %v2324
        %v2372 = vpop.xlane.xlu0 %2371
        %2373 = vadd.xlane.f32.xlu0 %v2326
        %v2374 = vpop.xlane.xlu0 %2373
        %2375 = vadd.xlane.f32.xlu0 %v2328
        %v2376 = vpop.xlane.xlu0 %2375
        %2377 = vadd.xlane.f32.xlu0 %v2330
        %v2378 = vpop.xlane.xlu0 %2377
        %2379 = vadd.xlane.f32.xlu0 %v2332
        %v2380 = vpop.xlane.xlu0 %2379
        %2381 = vadd.xlane.f32.xlu0 %v2334
        %v2382 = vpop.xlane.xlu0 %2381
        %2383 = vadd.xlane.f32.xlu0 %v2336
        %v2384 = vpop.xlane.xlu0 %2383
        %2385 = vadd.xlane.f32.xlu0 %v2338
        %v2386 = vpop.xlane.xlu0 %2385
        %2387 = vadd.xlane.f32.xlu0 %v2340
        %v2388 = vpop.xlane.xlu0 %2387
        %2389 = vadd.xlane.f32.xlu0 %v2342
        %v2390 = vpop.xlane.xlu0 %2389
        %2391 = vadd.xlane.f32.xlu0 %v2344
        %v2392 = vpop.xlane.xlu0 %2391
        %2393 = vadd.xlane.f32.xlu0 %v2346
        %v2394 = vpop.xlane.xlu0 %2393
        %2395 = vadd.xlane.f32.xlu0 %v2348
        %v2396 = vpop.xlane.xlu0 %2395
        %2397 = vadd.xlane.f32.xlu0 %v2350
        %v2398 = vpop.xlane.xlu0 %2397
        %v2399 = vadd.f32 %v2351, %v2368
        %v2400 = vadd.f32 %v2352, %v2370
        %v2401 = vadd.f32 %v2353, %v2372
        %v2402 = vadd.f32 %v2354, %v2374
        %v2403 = vadd.f32 %v2355, %v2376
        %v2404 = vadd.f32 %v2356, %v2378
        %v2405 = vadd.f32 %v2357, %v2380
        %v2406 = vadd.f32 %v2358, %v2382
        %v2407 = vadd.f32 %v2359, %v2384
        %v2408 = vadd.f32 %v2360, %v2386
        %v2409 = vadd.f32 %v2361, %v2388
        %v2410 = vadd.f32 %v2362, %v2390
        %v2411 = vadd.f32 %v2363, %v2392
        %v2412 = vadd.f32 %v2364, %v2394
        %v2413 = vadd.f32 %v2365, %v2396
        %v2414 = vadd.f32 %v2366, %v2398
        %v2415 = vpack.c.bf16 %v2322, %v2320
        %v2416 = vpack.c.bf16 %v2326, %v2324
        %v2417 = vpack.c.bf16 %v2330, %v2328
        %v2418 = vpack.c.bf16 %v2334, %v2332
        %v2419 = vpack.c.bf16 %v2338, %v2336
        %v2420 = vpack.c.bf16 %v2342, %v2340
        %v2421 = vpack.c.bf16 %v2346, %v2344
        %v2422 = vpack.c.bf16 %v2350, %v2348
        %2423 = vrot.lane.b32.xlu0 %v1067, 64
        %v2424 = vpop.permute.xlu0 %2423
        %2425 = vrot.lane.b32.xlu0 %v1068, 64
        %v2426 = vpop.permute.xlu0 %2425
        %2427 = vrot.lane.b32.xlu0 %v1069, 64
        %v2428 = vpop.permute.xlu0 %2427
        %2429 = vrot.lane.b32.xlu0 %v1070, 64
        %v2430 = vpop.permute.xlu0 %2429
        %2431 = vrot.lane.b32.xlu0 %v1071, 64
        %v2432 = vpop.permute.xlu0 %2431
        %2433 = vrot.lane.b32.xlu0 %v1072, 64
        %v2434 = vpop.permute.xlu0 %2433
        %2435 = vrot.lane.b32.xlu0 %v1073, 64
        %v2436 = vpop.permute.xlu0 %2435
        %2437 = vrot.lane.b32.xlu0 %v1074, 64
        %v2438 = vpop.permute.xlu0 %2437
        %2447 = vmatprep.subr.bf16.mxu0 0
        %2448 = vmatpush1.bf16.msra.mxu0 %v2424
        %2449 = vmatprep.subr.bf16.mxu0 0
        %2450 = vmatpush1.bf16.msra.mxu0 %v2426
        %2451 = vmatprep.subr.bf16.mxu0 0
        %2452 = vmatpush1.bf16.msra.mxu0 %v2428
        %2453 = vmatprep.subr.bf16.mxu0 0
        %2454 = vmatpush1.bf16.msra.mxu0 %v2430
        %2455 = vmatprep.subr.bf16.mxu0 0
        %2456 = vmatpush1.bf16.msra.mxu0 %v2432
        %2457 = vmatprep.subr.bf16.mxu0 0
        %2458 = vmatpush1.bf16.msra.mxu0 %v2434
        %2459 = vmatprep.subr.bf16.mxu0 0
        %2460 = vmatpush1.bf16.msra.mxu0 %v2436
        %2461 = vmatprep.subr.bf16.mxu0 0
        %2462 = vmatpush1.bf16.msra.mxu0 %v2438
        %2463 = vmatprep.subr.bf16.mxu0 0
        %2464 = vmatpush1.bf16.msra.mxu0 0
        %2465 = vmatprep.subr.bf16.mxu0 0
        %2466 = vmatpush1.bf16.msra.mxu0 0
        %2467 = vmatprep.subr.bf16.mxu0 0
        %2468 = vmatpush1.bf16.msra.mxu0 0
        %2469 = vmatprep.subr.bf16.mxu0 0
        %2470 = vmatpush1.bf16.msra.mxu0 0
        %2471 = vmatprep.subr.bf16.mxu0 0
        %2472 = vmatpush1.bf16.msra.mxu0 0
        %2473 = vmatprep.subr.bf16.mxu0 0
        %2474 = vmatpush1.bf16.msra.mxu0 0
        %2475 = vmatprep.subr.bf16.mxu0 0
        %2476 = vmatpush1.bf16.msra.mxu0 0
        %2477 = vmatprep.subr.bf16.mxu0 0
        %2478 = vmatpush1.bf16.msra.mxu0 0
        %2479 = vmatprep.mubr.bf16.mxu0 0
        %2480 = vmatmul.mubr.bf16.gmra.mrb[0].mxu0 %v2415
        %v2481 = vpop.f32.mrb[0].mxu0
        %v2482 = vadd.f32 0.0, %v2481
        %v2483 = vpop.f32.mrb[0].mxu0
        %v2484 = vpop.f32.mrb[0].mxu0
        %v2485 = vadd.f32 0.0, %v2484
        %v2486 = vpop.f32.mrb[0].mxu0
        %2487 = vmatprep.mubr.bf16.mxu0 0
        %2488 = vmatmul.mubr.bf16.gmra.mrb[0].mxu0 %v2416
        %v2489 = vpop.f32.mrb[0].mxu0
        %v2490 = vadd.f32 0.0, %v2489
        %v2491 = vpop.f32.mrb[0].mxu0
        %v2492 = vpop.f32.mrb[0].mxu0
        %v2493 = vadd.f32 0.0, %v2492
        %v2494 = vpop.f32.mrb[0].mxu0
        %2495 = vmatprep.mubr.bf16.mxu0 0
        %2496 = vmatmul.mubr.bf16.gmra.mrb[0].mxu0 %v2417
        %v2497 = vpop.f32.mrb[0].mxu0
        %v2498 = vadd.f32 0.0, %v2497
        %v2499 = vpop.f32.mrb[0].mxu0
        %v2500 = vpop.f32.mrb[0].mxu0
        %v2501 = vadd.f32 0.0, %v2500
        %v2502 = vpop.f32.mrb[0].mxu0
        %2503 = vmatprep.mubr.bf16.mxu0 0
        %2504 = vmatmul.mubr.bf16.gmra.mrb[0].mxu0 %v2418
        %v2505 = vpop.f32.mrb[0].mxu0
        %v2506 = vadd.f32 0.0, %v2505
        %v2507 = vpop.f32.mrb[0].mxu0
        %v2508 = vpop.f32.mrb[0].mxu0
        %v2509 = vadd.f32 0.0, %v2508
        %v2510 = vpop.f32.mrb[0].mxu0
        %2511 = vmatprep.mubr.bf16.mxu0 0
        %2512 = vmatmul.mubr.bf16.gmra.mrb[0].mxu0 %v2419
        %v2513 = vpop.f32.mrb[0].mxu0
        %v2514 = vadd.f32 0.0, %v2513
        %v2515 = vpop.f32.mrb[0].mxu0
        %v2516 = vpop.f32.mrb[0].mxu0
        %v2517 = vadd.f32 0.0, %v2516
        %v2518 = vpop.f32.mrb[0].mxu0
        %2519 = vmatprep.mubr.bf16.mxu0 0
        %2520 = vmatmul.mubr.bf16.gmra.mrb[0].mxu0 %v2420
        %v2521 = vpop.f32.mrb[0].mxu0
        %v2522 = vadd.f32 0.0, %v2521
        %v2523 = vpop.f32.mrb[0].mxu0
        %v2524 = vpop.f32.mrb[0].mxu0
        %v2525 = vadd.f32 0.0, %v2524
        %v2526 = vpop.f32.mrb[0].mxu0
        %2527 = vmatprep.mubr.bf16.mxu0 0
        %2528 = vmatmul.mubr.bf16.gmra.mrb[0].mxu0 %v2421
        %v2529 = vpop.f32.mrb[0].mxu0
        %v2530 = vadd.f32 0.0, %v2529
        %v2531 = vpop.f32.mrb[0].mxu0
        %v2532 = vpop.f32.mrb[0].mxu0
        %v2533 = vadd.f32 0.0, %v2532
        %v2534 = vpop.f32.mrb[0].mxu0
        %2535 = vmatprep.mubr.bf16.mxu0 0
        %2536 = vmatmul.mubr.bf16.gmra.mrb[0].mxu0 %v2422
        %v2537 = vpop.f32.mrb[0].mxu0
        %v2538 = vadd.f32 0.0, %v2537
        %v2539 = vpop.f32.mrb[0].mxu0
        %v2540 = vpop.f32.mrb[0].mxu0
        %v2541 = vadd.f32 0.0, %v2540
        %v2542 = vpop.f32.mrb[0].mxu0
        %2543 = vdwg.mxu0
        %2545 = vset.pattern.permute.xlu0 2
        %2546 = vperm.xlu0 %2545, %v2192
        %v2547 = vpop.permute.xlu0 %2546
        %2550 = vset.pattern.permute.xlu0 2
        %2551 = vperm.xlu0 %2550, %v2194
        %v2552 = vpop.permute.xlu0 %2551
        %2555 = vset.pattern.permute.xlu0 2
        %2556 = vperm.xlu0 %2555, %v2196
        %v2557 = vpop.permute.xlu0 %2556
        %2560 = vset.pattern.permute.xlu0 2
        %2561 = vperm.xlu0 %2560, %v2198
        %v2562 = vpop.permute.xlu0 %2561
        %2565 = vset.pattern.permute.xlu0 2
        %2566 = vperm.xlu0 %2565, %v2200
        %v2567 = vpop.permute.xlu0 %2566
        %2570 = vset.pattern.permute.xlu0 2
        %2571 = vperm.xlu0 %2570, %v2202
        %v2572 = vpop.permute.xlu0 %2571
        %2575 = vset.pattern.permute.xlu0 2
        %2576 = vperm.xlu0 %2575, %v2204
        %v2577 = vpop.permute.xlu0 %2576
        %2580 = vset.pattern.permute.xlu0 2
        %2581 = vperm.xlu0 %2580, %v2206
        %v2582 = vpop.permute.xlu0 %2581
        %2585 = vset.pattern.permute.xlu0 2
        %2586 = vperm.xlu0 %2585, %v2208
        %v2587 = vpop.permute.xlu0 %2586
        %2590 = vset.pattern.permute.xlu0 2
        %2591 = vperm.xlu0 %2590, %v2210
        %v2592 = vpop.permute.xlu0 %2591
        %2595 = vset.pattern.permute.xlu0 2
        %2596 = vperm.xlu0 %2595, %v2212
        %v2597 = vpop.permute.xlu0 %2596
        %2600 = vset.pattern.permute.xlu0 2
        %2601 = vperm.xlu0 %2600, %v2214
        %v2602 = vpop.permute.xlu0 %2601
        %2605 = vset.pattern.permute.xlu0 2
        %2606 = vperm.xlu0 %2605, %v2216
        %v2607 = vpop.permute.xlu0 %2606
        %2610 = vset.pattern.permute.xlu0 2
        %2611 = vperm.xlu0 %2610, %v2218
        %v2612 = vpop.permute.xlu0 %2611
        %2615 = vset.pattern.permute.xlu0 2
        %2616 = vperm.xlu0 %2615, %v2220
        %v2617 = vpop.permute.xlu0 %2616
        %2620 = vset.pattern.permute.xlu0 2
        %2621 = vperm.xlu0 %2620, %v2222
        %v2622 = vpop.permute.xlu0 %2621
        %2624 = vrot.lane.b32.xlu0 %v609, 32
        %v2625 = vpop.permute.xlu0 %2624
        %2626 = vrot.lane.b32.xlu0 %v610, 32
        %v2627 = vpop.permute.xlu0 %2626
        %2628 = vrot.lane.b32.xlu0 %v611, 32
        %v2629 = vpop.permute.xlu0 %2628
        %2630 = vrot.lane.b32.xlu0 %v612, 32
        %v2631 = vpop.permute.xlu0 %2630
        %2632 = vrot.lane.b32.xlu0 %v613, 32
        %v2633 = vpop.permute.xlu0 %2632
        %2634 = vrot.lane.b32.xlu0 %v614, 32
        %v2635 = vpop.permute.xlu0 %2634
        %2636 = vrot.lane.b32.xlu0 %v615, 32
        %v2637 = vpop.permute.xlu0 %2636
        %2638 = vrot.lane.b32.xlu0 %v616, 32
        %v2639 = vpop.permute.xlu0 %2638
        %2640 = vrot.lane.b32.xlu0 %v617, 32
        %v2641 = vpop.permute.xlu0 %2640
        %2642 = vrot.lane.b32.xlu0 %v618, 32
        %v2643 = vpop.permute.xlu0 %2642
        %2644 = vrot.lane.b32.xlu0 %v619, 32
        %v2645 = vpop.permute.xlu0 %2644
        %2646 = vrot.lane.b32.xlu0 %v620, 32
        %v2647 = vpop.permute.xlu0 %2646
        %2648 = vrot.lane.b32.xlu0 %v621, 32
        %v2649 = vpop.permute.xlu0 %2648
        %2650 = vrot.lane.b32.xlu0 %v622, 32
        %v2651 = vpop.permute.xlu0 %2650
        %2652 = vrot.lane.b32.xlu0 %v623, 32
        %v2653 = vpop.permute.xlu0 %2652
        %2654 = vrot.lane.b32.xlu0 %v624, 32
        %v2655 = vpop.permute.xlu0 %2654
        %v2657 = vsel %vm625, %v2625, 0
        %v2660 = vsel %vm625, %v2627, 0
        %v2663 = vsel %vm625, %v2629, 0
        %v2666 = vsel %vm625, %v2631, 0
        %v2669 = vsel %vm625, %v2633, 0
        %v2672 = vsel %vm625, %v2635, 0
        %v2675 = vsel %vm625, %v2637, 0
        %v2678 = vsel %vm625, %v2639, 0
        %v2681 = vsel %vm625, %v2641, 0
        %v2684 = vsel %vm625, %v2643, 0
        %v2687 = vsel %vm625, %v2645, 0
        %v2690 = vsel %vm625, %v2647, 0
        %v2693 = vsel %vm625, %v2649, 0
        %v2696 = vsel %vm625, %v2651, 0
        %v2699 = vsel %vm625, %v2653, 0
        %v2702 = vsel %vm625, %v2655, 0
        %2704 = vmatprep.subr.bf16.mxu0 0
        %2705 = vmatpush1.bf16.xpose.msra.mxu0 %v2681
        %2706 = vmatprep.subr.bf16.mxu0 0
        %2707 = vmatpush1.bf16.xpose.msra.mxu0 %v2684
        %2708 = vmatprep.subr.bf16.mxu0 0
        %2709 = vmatpush1.bf16.xpose.msra.mxu0 %v2687
        %2710 = vmatprep.subr.bf16.mxu0 0
        %2711 = vmatpush1.bf16.xpose.msra.mxu0 %v2690
        %2712 = vmatprep.subr.bf16.mxu0 0
        %2713 = vmatpush1.bf16.xpose.msra.mxu0 %v2693
        %2714 = vmatprep.subr.bf16.mxu0 0
        %2715 = vmatpush1.bf16.xpose.msra.mxu0 %v2696
        %2716 = vmatprep.subr.bf16.mxu0 0
        %2717 = vmatpush1.bf16.xpose.msra.mxu0 %v2699
        %2718 = vmatprep.subr.bf16.mxu0 0
        %2719 = vmatpush1.bf16.xpose.msra.mxu0 %v2702
        %2720 = vmatprep.subr.bf16.mxu0 0
        %2721 = vmatpush1.bf16.xpose.msra.mxu0 0
        %2722 = vmatprep.subr.bf16.mxu0 0
        %2723 = vmatpush1.bf16.xpose.msra.mxu0 0
        %2724 = vmatprep.subr.bf16.mxu0 0
        %2725 = vmatpush1.bf16.xpose.msra.mxu0 0
        %2726 = vmatprep.subr.bf16.mxu0 0
        %2727 = vmatpush1.bf16.xpose.msra.mxu0 0
        %2728 = vmatprep.subr.bf16.mxu0 0
        %2729 = vmatpush1.bf16.xpose.msra.mxu0 0
        %2730 = vmatprep.subr.bf16.mxu0 0
        %2731 = vmatpush1.bf16.xpose.msra.mxu0 0
        %2732 = vmatprep.subr.bf16.mxu0 0
        %2733 = vmatpush1.bf16.xpose.msra.mxu0 0
        %2734 = vmatprep.subr.bf16.mxu0 0
        %2735 = vmatpush1.bf16.xpose.msra.mxu0 0
        %2736 = vmatprep.mubr.bf16.mxu0 0
        %2737 = vmatmul.mubr.bf16.gmra.mrb[0].mxu0 %v2657
        %v2738 = vpop.f32.mrb[0].mxu0
        %v2739 = vadd.f32 %v497, %v2738
        %v2740 = vpop.f32.mrb[0].mxu0
        %v2741 = vpop.f32.mrb[0].mxu0
        %v2742 = vadd.f32 %v498, %v2741
        %v2743 = vpop.f32.mrb[0].mxu0
        %2744 = vmatprep.mubr.bf16.mxu0 0
        %2745 = vmatmul.mubr.bf16.gmra.mrb[0].mxu0 %v2660
        %v2746 = vpop.f32.mrb[0].mxu0
        %v2747 = vadd.f32 %v499, %v2746
        %v2748 = vpop.f32.mrb[0].mxu0
        %v2749 = vpop.f32.mrb[0].mxu0
        %v2750 = vadd.f32 %v500, %v2749
        %v2751 = vpop.f32.mrb[0].mxu0
        %2752 = vmatprep.mubr.bf16.mxu0 0
        %2753 = vmatmul.mubr.bf16.gmra.mrb[0].mxu0 %v2663
        %v2754 = vpop.f32.mrb[0].mxu0
        %v2755 = vadd.f32 %v501, %v2754
        %v2756 = vpop.f32.mrb[0].mxu0
        %v2757 = vpop.f32.mrb[0].mxu0
        %v2758 = vadd.f32 %v502, %v2757
        %v2759 = vpop.f32.mrb[0].mxu0
        %2760 = vmatprep.mubr.bf16.mxu0 0
        %2761 = vmatmul.mubr.bf16.gmra.mrb[0].mxu0 %v2666
        %v2762 = vpop.f32.mrb[0].mxu0
        %v2763 = vadd.f32 %v503, %v2762
        %v2764 = vpop.f32.mrb[0].mxu0
        %v2765 = vpop.f32.mrb[0].mxu0
        %v2766 = vadd.f32 %v504, %v2765
        %v2767 = vpop.f32.mrb[0].mxu0
        %2768 = vmatprep.mubr.bf16.mxu0 0
        %2769 = vmatmul.mubr.bf16.gmra.mrb[0].mxu0 %v2669
        %v2770 = vpop.f32.mrb[0].mxu0
        %v2771 = vadd.f32 %v505, %v2770
        %v2772 = vpop.f32.mrb[0].mxu0
        %v2773 = vpop.f32.mrb[0].mxu0
        %v2774 = vadd.f32 %v506, %v2773
        %v2775 = vpop.f32.mrb[0].mxu0
        %2776 = vmatprep.mubr.bf16.mxu0 0
        %2777 = vmatmul.mubr.bf16.gmra.mrb[0].mxu0 %v2672
        %v2778 = vpop.f32.mrb[0].mxu0
        %v2779 = vadd.f32 %v507, %v2778
        %v2780 = vpop.f32.mrb[0].mxu0
        %v2781 = vpop.f32.mrb[0].mxu0
        %v2782 = vadd.f32 %v508, %v2781
        %v2783 = vpop.f32.mrb[0].mxu0
        %2784 = vmatprep.mubr.bf16.mxu0 0
        %2785 = vmatmul.mubr.bf16.gmra.mrb[0].mxu0 %v2675
        %v2786 = vpop.f32.mrb[0].mxu0
        %v2787 = vadd.f32 %v509, %v2786
        %v2788 = vpop.f32.mrb[0].mxu0
        %v2789 = vpop.f32.mrb[0].mxu0
        %v2790 = vadd.f32 %v510, %v2789
        %v2791 = vpop.f32.mrb[0].mxu0
        %2792 = vmatprep.mubr.bf16.mxu0 0
        %2793 = vmatmul.mubr.bf16.gmra.mrb[0].mxu0 %v2678
        %v2794 = vpop.f32.mrb[0].mxu0
        %v2795 = vadd.f32 %v511, %v2794
        %v2796 = vpop.f32.mrb[0].mxu0
        %v2797 = vpop.f32.mrb[0].mxu0
        %v2798 = vadd.f32 %v512, %v2797
        %v2799 = vpop.f32.mrb[0].mxu0
        %2800 = vdwg.mxu0
        %2801 = vmax.xlane.f32.xlu0 %v2739
        %v2802 = vpop.xlane.xlu0 %2801
        %2803 = vmax.xlane.f32.xlu0 %v2742
        %v2804 = vpop.xlane.xlu0 %2803
        %2805 = vmax.xlane.f32.xlu0 %v2747
        %v2806 = vpop.xlane.xlu0 %2805
        %2807 = vmax.xlane.f32.xlu0 %v2750
        %v2808 = vpop.xlane.xlu0 %2807
        %2809 = vmax.xlane.f32.xlu0 %v2755
        %v2810 = vpop.xlane.xlu0 %2809
        %2811 = vmax.xlane.f32.xlu0 %v2758
        %v2812 = vpop.xlane.xlu0 %2811
        %2813 = vmax.xlane.f32.xlu0 %v2763
        %v2814 = vpop.xlane.xlu0 %2813
        %2815 = vmax.xlane.f32.xlu0 %v2766
        %v2816 = vpop.xlane.xlu0 %2815
        %2817 = vmax.xlane.f32.xlu0 %v2771
        %v2818 = vpop.xlane.xlu0 %2817
        %2819 = vmax.xlane.f32.xlu0 %v2774
        %v2820 = vpop.xlane.xlu0 %2819
        %2821 = vmax.xlane.f32.xlu0 %v2779
        %v2822 = vpop.xlane.xlu0 %2821
        %2823 = vmax.xlane.f32.xlu0 %v2782
        %v2824 = vpop.xlane.xlu0 %2823
        %2825 = vmax.xlane.f32.xlu0 %v2787
        %v2826 = vpop.xlane.xlu0 %2825
        %2827 = vmax.xlane.f32.xlu0 %v2790
        %v2828 = vpop.xlane.xlu0 %2827
        %2829 = vmax.xlane.f32.xlu0 %v2795
        %v2830 = vpop.xlane.xlu0 %2829
        %2831 = vmax.xlane.f32.xlu0 %v2798
        %v2832 = vpop.xlane.xlu0 %2831
        %v2833 = vmax.f32 %v561, %v2802
        %v2834 = vmax.f32 %v562, %v2804
        %v2835 = vmax.f32 %v563, %v2806
        %v2836 = vmax.f32 %v564, %v2808
        %v2837 = vmax.f32 %v565, %v2810
        %v2838 = vmax.f32 %v566, %v2812
        %v2839 = vmax.f32 %v567, %v2814
        %v2840 = vmax.f32 %v568, %v2816
        %v2841 = vmax.f32 %v569, %v2818
        %v2842 = vmax.f32 %v570, %v2820
        %v2843 = vmax.f32 %v571, %v2822
        %v2844 = vmax.f32 %v572, %v2824
        %v2845 = vmax.f32 %v573, %v2826
        %v2846 = vmax.f32 %v574, %v2828
        %v2847 = vmax.f32 %v575, %v2830
        %v2848 = vmax.f32 %v576, %v2832
        %v2849 = vsub.f32 %v561, %v2833
        %v2850 = vsub.f32 %v562, %v2834
        %v2851 = vsub.f32 %v563, %v2835
        %v2852 = vsub.f32 %v564, %v2836
        %v2853 = vsub.f32 %v565, %v2837
        %v2854 = vsub.f32 %v566, %v2838
        %v2855 = vsub.f32 %v567, %v2839
        %v2856 = vsub.f32 %v568, %v2840
        %v2857 = vsub.f32 %v569, %v2841
        %v2858 = vsub.f32 %v570, %v2842
        %v2859 = vsub.f32 %v571, %v2843
        %v2860 = vsub.f32 %v572, %v2844
        %v2861 = vsub.f32 %v573, %v2845
        %v2862 = vsub.f32 %v574, %v2846
        %v2863 = vsub.f32 %v575, %v2847
        %v2864 = vsub.f32 %v576, %v2848
        %v2865 = vmul.f32 %v2849, 1.442695
        %v2866 = vpow.pop %v2865
        %v2867 = vmul.f32 %v2850, 1.442695
        %v2868 = vpow.pop %v2867
        %v2869 = vmul.f32 %v2851, 1.442695
        %v2870 = vpow.pop %v2869
        %v2871 = vmul.f32 %v2852, 1.442695
        %v2872 = vpow.pop %v2871
        %v2873 = vmul.f32 %v2853, 1.442695
        %v2874 = vpow.pop %v2873
        %v2875 = vmul.f32 %v2854, 1.442695
        %v2876 = vpow.pop %v2875
        %v2877 = vmul.f32 %v2855, 1.442695
        %v2878 = vpow.pop %v2877
        %v2879 = vmul.f32 %v2856, 1.442695
        %v2880 = vpow.pop %v2879
        %v2881 = vmul.f32 %v2857, 1.442695
        %v2882 = vpow.pop %v2881
        %v2883 = vmul.f32 %v2858, 1.442695
        %v2884 = vpow.pop %v2883
        %v2885 = vmul.f32 %v2859, 1.442695
        %v2886 = vpow.pop %v2885
        %v2887 = vmul.f32 %v2860, 1.442695
        %v2888 = vpow.pop %v2887
        %v2889 = vmul.f32 %v2861, 1.442695
        %v2890 = vpow.pop %v2889
        %v2891 = vmul.f32 %v2862, 1.442695
        %v2892 = vpow.pop %v2891
        %v2893 = vmul.f32 %v2863, 1.442695
        %v2894 = vpow.pop %v2893
        %v2895 = vmul.f32 %v2864, 1.442695
        %v2896 = vpow.pop %v2895
        %2898 = vset.pattern.permute.xlu0 3
        %2899 = vperm.xlu0 %2898, %v2833
        %v2900 = vpop.permute.xlu0 %2899
        %2903 = vset.pattern.permute.xlu0 3
        %2904 = vperm.xlu0 %2903, %v2834
        %v2905 = vpop.permute.xlu0 %2904
        %2908 = vset.pattern.permute.xlu0 3
        %2909 = vperm.xlu0 %2908, %v2835
        %v2910 = vpop.permute.xlu0 %2909
        %2913 = vset.pattern.permute.xlu0 3
        %2914 = vperm.xlu0 %2913, %v2836
        %v2915 = vpop.permute.xlu0 %2914
        %2918 = vset.pattern.permute.xlu0 3
        %2919 = vperm.xlu0 %2918, %v2837
        %v2920 = vpop.permute.xlu0 %2919
        %2923 = vset.pattern.permute.xlu0 3
        %2924 = vperm.xlu0 %2923, %v2838
        %v2925 = vpop.permute.xlu0 %2924
        %2928 = vset.pattern.permute.xlu0 3
        %2929 = vperm.xlu0 %2928, %v2839
        %v2930 = vpop.permute.xlu0 %2929
        %2933 = vset.pattern.permute.xlu0 3
        %2934 = vperm.xlu0 %2933, %v2840
        %v2935 = vpop.permute.xlu0 %2934
        %2938 = vset.pattern.permute.xlu0 3
        %2939 = vperm.xlu0 %2938, %v2841
        %v2940 = vpop.permute.xlu0 %2939
        %2943 = vset.pattern.permute.xlu0 3
        %2944 = vperm.xlu0 %2943, %v2842
        %v2945 = vpop.permute.xlu0 %2944
        %2948 = vset.pattern.permute.xlu0 3
        %2949 = vperm.xlu0 %2948, %v2843
        %v2950 = vpop.permute.xlu0 %2949
        %2953 = vset.pattern.permute.xlu0 3
        %2954 = vperm.xlu0 %2953, %v2844
        %v2955 = vpop.permute.xlu0 %2954
        %2958 = vset.pattern.permute.xlu0 3
        %2959 = vperm.xlu0 %2958, %v2845
        %v2960 = vpop.permute.xlu0 %2959
        %2963 = vset.pattern.permute.xlu0 3
        %2964 = vperm.xlu0 %2963, %v2846
        %v2965 = vpop.permute.xlu0 %2964
        %2968 = vset.pattern.permute.xlu0 3
        %2969 = vperm.xlu0 %2968, %v2847
        %v2970 = vpop.permute.xlu0 %2969
        %2973 = vset.pattern.permute.xlu0 3
        %2974 = vperm.xlu0 %2973, %v2848
        %v2975 = vpop.permute.xlu0 %2974
        %v2977 = vsub.f32 %v2739, %v2900
        %v2978 = vsub.f32 %v2742, %v2905
        %v2979 = vsub.f32 %v2747, %v2910
        %v2980 = vsub.f32 %v2750, %v2915
        %v2981 = vsub.f32 %v2755, %v2920
        %v2982 = vsub.f32 %v2758, %v2925
        %v2983 = vsub.f32 %v2763, %v2930
        %v2984 = vsub.f32 %v2766, %v2935
        %v2985 = vsub.f32 %v2771, %v2940
        %v2986 = vsub.f32 %v2774, %v2945
        %v2987 = vsub.f32 %v2779, %v2950
        %v2988 = vsub.f32 %v2782, %v2955
        %v2989 = vsub.f32 %v2787, %v2960
        %v2990 = vsub.f32 %v2790, %v2965
        %v2991 = vsub.f32 %v2795, %v2970
        %v2992 = vsub.f32 %v2798, %v2975
        %v2993 = vmul.f32 %v2977, 1.442695
        %v2994 = vpow.pop %v2993
        %v2995 = vmul.f32 %v2978, 1.442695
        %v2996 = vpow.pop %v2995
        %v2997 = vmul.f32 %v2979, 1.442695
        %v2998 = vpow.pop %v2997
        %v2999 = vmul.f32 %v2980, 1.442695
        %v3000 = vpow.pop %v2999
        %v3001 = vmul.f32 %v2981, 1.442695
        %v3002 = vpow.pop %v3001
        %v3003 = vmul.f32 %v2982, 1.442695
        %v3004 = vpow.pop %v3003
        %v3005 = vmul.f32 %v2983, 1.442695
        %v3006 = vpow.pop %v3005
        %v3007 = vmul.f32 %v2984, 1.442695
        %v3008 = vpow.pop %v3007
        %v3009 = vmul.f32 %v2985, 1.442695
        %v3010 = vpow.pop %v3009
        %v3011 = vmul.f32 %v2986, 1.442695
        %v3012 = vpow.pop %v3011
        %v3013 = vmul.f32 %v2987, 1.442695
        %v3014 = vpow.pop %v3013
        %v3015 = vmul.f32 %v2988, 1.442695
        %v3016 = vpow.pop %v3015
        %v3017 = vmul.f32 %v2989, 1.442695
        %v3018 = vpow.pop %v3017
        %v3019 = vmul.f32 %v2990, 1.442695
        %v3020 = vpow.pop %v3019
        %v3021 = vmul.f32 %v2991, 1.442695
        %v3022 = vpow.pop %v3021
        %v3023 = vmul.f32 %v2992, 1.442695
        %v3024 = vpow.pop %v3023
        %v3025 = vmul.f32 %v2866, %v577
        %v3026 = vmul.f32 %v2868, %v578
        %v3027 = vmul.f32 %v2870, %v579
        %v3028 = vmul.f32 %v2872, %v580
        %v3029 = vmul.f32 %v2874, %v581
        %v3030 = vmul.f32 %v2876, %v582
        %v3031 = vmul.f32 %v2878, %v583
        %v3032 = vmul.f32 %v2880, %v584
        %v3033 = vmul.f32 %v2882, %v585
        %v3034 = vmul.f32 %v2884, %v586
        %v3035 = vmul.f32 %v2886, %v587
        %v3036 = vmul.f32 %v2888, %v588
        %v3037 = vmul.f32 %v2890, %v589
        %v3038 = vmul.f32 %v2892, %v590
        %v3039 = vmul.f32 %v2894, %v591
        %v3040 = vmul.f32 %v2896, %v592
        %3041 = vadd.xlane.f32.xlu0 %v2994
        %v3042 = vpop.xlane.xlu0 %3041
        %3043 = vadd.xlane.f32.xlu0 %v2996
        %v3044 = vpop.xlane.xlu0 %3043
        %3045 = vadd.xlane.f32.xlu0 %v2998
        %v3046 = vpop.xlane.xlu0 %3045
        %3047 = vadd.xlane.f32.xlu0 %v3000
        %v3048 = vpop.xlane.xlu0 %3047
        %3049 = vadd.xlane.f32.xlu0 %v3002
        %v3050 = vpop.xlane.xlu0 %3049
        %3051 = vadd.xlane.f32.xlu0 %v3004
        %v3052 = vpop.xlane.xlu0 %3051
        %3053 = vadd.xlane.f32.xlu0 %v3006
        %v3054 = vpop.xlane.xlu0 %3053
        %3055 = vadd.xlane.f32.xlu0 %v3008
        %v3056 = vpop.xlane.xlu0 %3055
        %3057 = vadd.xlane.f32.xlu0 %v3010
        %v3058 = vpop.xlane.xlu0 %3057
        %3059 = vadd.xlane.f32.xlu0 %v3012
        %v3060 = vpop.xlane.xlu0 %3059
        %3061 = vadd.xlane.f32.xlu0 %v3014
        %v3062 = vpop.xlane.xlu0 %3061
        %3063 = vadd.xlane.f32.xlu0 %v3016
        %v3064 = vpop.xlane.xlu0 %3063
        %3065 = vadd.xlane.f32.xlu0 %v3018
        %v3066 = vpop.xlane.xlu0 %3065
        %3067 = vadd.xlane.f32.xlu0 %v3020
        %v3068 = vpop.xlane.xlu0 %3067
        %3069 = vadd.xlane.f32.xlu0 %v3022
        %v3070 = vpop.xlane.xlu0 %3069
        %3071 = vadd.xlane.f32.xlu0 %v3024
        %v3072 = vpop.xlane.xlu0 %3071
        %v3073 = vadd.f32 %v3025, %v3042
        %v3074 = vadd.f32 %v3026, %v3044
        %v3075 = vadd.f32 %v3027, %v3046
        %v3076 = vadd.f32 %v3028, %v3048
        %v3077 = vadd.f32 %v3029, %v3050
        %v3078 = vadd.f32 %v3030, %v3052
        %v3079 = vadd.f32 %v3031, %v3054
        %v3080 = vadd.f32 %v3032, %v3056
        %v3081 = vadd.f32 %v3033, %v3058
        %v3082 = vadd.f32 %v3034, %v3060
        %v3083 = vadd.f32 %v3035, %v3062
        %v3084 = vadd.f32 %v3036, %v3064
        %v3085 = vadd.f32 %v3037, %v3066
        %v3086 = vadd.f32 %v3038, %v3068
        %v3087 = vadd.f32 %v3039, %v3070
        %v3088 = vadd.f32 %v3040, %v3072
        %v3089 = vpack.c.bf16 %v2996, %v2994
        %v3090 = vpack.c.bf16 %v3000, %v2998
        %v3091 = vpack.c.bf16 %v3004, %v3002
        %v3092 = vpack.c.bf16 %v3008, %v3006
        %v3093 = vpack.c.bf16 %v3012, %v3010
        %v3094 = vpack.c.bf16 %v3016, %v3014
        %v3095 = vpack.c.bf16 %v3020, %v3018
        %v3096 = vpack.c.bf16 %v3024, %v3022
        %3097 = vrot.lane.b32.xlu0 %v1067, 32
        %v3098 = vpop.permute.xlu0 %3097
        %3099 = vrot.lane.b32.xlu0 %v1068, 32
        %v3100 = vpop.permute.xlu0 %3099
        %3101 = vrot.lane.b32.xlu0 %v1069, 32
        %v3102 = vpop.permute.xlu0 %3101
        %3103 = vrot.lane.b32.xlu0 %v1070, 32
        %v3104 = vpop.permute.xlu0 %3103
        %3105 = vrot.lane.b32.xlu0 %v1071, 32
        %v3106 = vpop.permute.xlu0 %3105
        %3107 = vrot.lane.b32.xlu0 %v1072, 32
        %v3108 = vpop.permute.xlu0 %3107
        %3109 = vrot.lane.b32.xlu0 %v1073, 32
        %v3110 = vpop.permute.xlu0 %3109
        %3111 = vrot.lane.b32.xlu0 %v1074, 32
        %v3112 = vpop.permute.xlu0 %3111
        %3121 = vmatprep.subr.bf16.mxu0 0
        %3122 = vmatpush1.bf16.msra.mxu0 %v3098
        %3123 = vmatprep.subr.bf16.mxu0 0
        %3124 = vmatpush1.bf16.msra.mxu0 %v3100
        %3125 = vmatprep.subr.bf16.mxu0 0
        %3126 = vmatpush1.bf16.msra.mxu0 %v3102
        %3127 = vmatprep.subr.bf16.mxu0 0
        %3128 = vmatpush1.bf16.msra.mxu0 %v3104
        %3129 = vmatprep.subr.bf16.mxu0 0
        %3130 = vmatpush1.bf16.msra.mxu0 %v3106
        %3131 = vmatprep.subr.bf16.mxu0 0
        %3132 = vmatpush1.bf16.msra.mxu0 %v3108
        %3133 = vmatprep.subr.bf16.mxu0 0
        %3134 = vmatpush1.bf16.msra.mxu0 %v3110
        %3135 = vmatprep.subr.bf16.mxu0 0
        %3136 = vmatpush1.bf16.msra.mxu0 %v3112
        %3137 = vmatprep.subr.bf16.mxu0 0
        %3138 = vmatpush1.bf16.msra.mxu0 0
        %3139 = vmatprep.subr.bf16.mxu0 0
        %3140 = vmatpush1.bf16.msra.mxu0 0
        %3141 = vmatprep.subr.bf16.mxu0 0
        %3142 = vmatpush1.bf16.msra.mxu0 0
        %3143 = vmatprep.subr.bf16.mxu0 0
        %3144 = vmatpush1.bf16.msra.mxu0 0
        %3145 = vmatprep.subr.bf16.mxu0 0
        %3146 = vmatpush1.bf16.msra.mxu0 0
        %3147 = vmatprep.subr.bf16.mxu0 0
        %3148 = vmatpush1.bf16.msra.mxu0 0
        %3149 = vmatprep.subr.bf16.mxu0 0
        %3150 = vmatpush1.bf16.msra.mxu0 0
        %3151 = vmatprep.subr.bf16.mxu0 0
        %3152 = vmatpush1.bf16.msra.mxu0 0
        %3153 = vmatprep.mubr.bf16.mxu0 0
        %3154 = vmatmul.mubr.bf16.gmra.mrb[0].mxu0 %v3089
        %v3155 = vpop.f32.mrb[0].mxu0
        %v3156 = vadd.f32 0.0, %v3155
        %v3157 = vpop.f32.mrb[0].mxu0
        %v3158 = vpop.f32.mrb[0].mxu0
        %v3159 = vadd.f32 0.0, %v3158
        %v3160 = vpop.f32.mrb[0].mxu0
        %3161 = vmatprep.mubr.bf16.mxu0 0
        %3162 = vmatmul.mubr.bf16.gmra.mrb[0].mxu0 %v3090
        %v3163 = vpop.f32.mrb[0].mxu0
        %v3164 = vadd.f32 0.0, %v3163
        %v3165 = vpop.f32.mrb[0].mxu0
        %v3166 = vpop.f32.mrb[0].mxu0
        %v3167 = vadd.f32 0.0, %v3166
        %v3168 = vpop.f32.mrb[0].mxu0
        %3169 = vmatprep.mubr.bf16.mxu0 0
        %3170 = vmatmul.mubr.bf16.gmra.mrb[0].mxu0 %v3091
        %v3171 = vpop.f32.mrb[0].mxu0
        %v3172 = vadd.f32 0.0, %v3171
        %v3173 = vpop.f32.mrb[0].mxu0
        %v3174 = vpop.f32.mrb[0].mxu0
        %v3175 = vadd.f32 0.0, %v3174
        %v3176 = vpop.f32.mrb[0].mxu0
        %3177 = vmatprep.mubr.bf16.mxu0 0
        %3178 = vmatmul.mubr.bf16.gmra.mrb[0].mxu0 %v3092
        %v3179 = vpop.f32.mrb[0].mxu0
        %v3180 = vadd.f32 0.0, %v3179
        %v3181 = vpop.f32.mrb[0].mxu0
        %v3182 = vpop.f32.mrb[0].mxu0
        %v3183 = vadd.f32 0.0, %v3182
        %v3184 = vpop.f32.mrb[0].mxu0
        %3185 = vmatprep.mubr.bf16.mxu0 0
        %3186 = vmatmul.mubr.bf16.gmra.mrb[0].mxu0 %v3093
        %v3187 = vpop.f32.mrb[0].mxu0
        %v3188 = vadd.f32 0.0, %v3187
        %v3189 = vpop.f32.mrb[0].mxu0
        %v3190 = vpop.f32.mrb[0].mxu0
        %v3191 = vadd.f32 0.0, %v3190
        %v3192 = vpop.f32.mrb[0].mxu0
        %3193 = vmatprep.mubr.bf16.mxu0 0
        %3194 = vmatmul.mubr.bf16.gmra.mrb[0].mxu0 %v3094
        %v3195 = vpop.f32.mrb[0].mxu0
        %v3196 = vadd.f32 0.0, %v3195
        %v3197 = vpop.f32.mrb[0].mxu0
        %v3198 = vpop.f32.mrb[0].mxu0
        %v3199 = vadd.f32 0.0, %v3198
        %v3200 = vpop.f32.mrb[0].mxu0
        %3201 = vmatprep.mubr.bf16.mxu0 0
        %3202 = vmatmul.mubr.bf16.gmra.mrb[0].mxu0 %v3095
        %v3203 = vpop.f32.mrb[0].mxu0
        %v3204 = vadd.f32 0.0, %v3203
        %v3205 = vpop.f32.mrb[0].mxu0
        %v3206 = vpop.f32.mrb[0].mxu0
        %v3207 = vadd.f32 0.0, %v3206
        %v3208 = vpop.f32.mrb[0].mxu0
        %3209 = vmatprep.mubr.bf16.mxu0 0
        %3210 = vmatmul.mubr.bf16.gmra.mrb[0].mxu0 %v3096
        %v3211 = vpop.f32.mrb[0].mxu0
        %v3212 = vadd.f32 0.0, %v3211
        %v3213 = vpop.f32.mrb[0].mxu0
        %v3214 = vpop.f32.mrb[0].mxu0
        %v3215 = vadd.f32 0.0, %v3214
        %v3216 = vpop.f32.mrb[0].mxu0
        %3217 = vdwg.mxu0
        %3219 = vset.pattern.permute.xlu0 3
        %3220 = vperm.xlu0 %3219, %v2866
        %v3221 = vpop.permute.xlu0 %3220
        %3224 = vset.pattern.permute.xlu0 3
        %3225 = vperm.xlu0 %3224, %v2868
        %v3226 = vpop.permute.xlu0 %3225
        %3229 = vset.pattern.permute.xlu0 3
        %3230 = vperm.xlu0 %3229, %v2870
        %v3231 = vpop.permute.xlu0 %3230
        %3234 = vset.pattern.permute.xlu0 3
        %3235 = vperm.xlu0 %3234, %v2872
        %v3236 = vpop.permute.xlu0 %3235
        %3239 = vset.pattern.permute.xlu0 3
        %3240 = vperm.xlu0 %3239, %v2874
        %v3241 = vpop.permute.xlu0 %3240
        %3244 = vset.pattern.permute.xlu0 3
        %3245 = vperm.xlu0 %3244, %v2876
        %v3246 = vpop.permute.xlu0 %3245
        %3249 = vset.pattern.permute.xlu0 3
        %3250 = vperm.xlu0 %3249, %v2878
        %v3251 = vpop.permute.xlu0 %3250
        %3254 = vset.pattern.permute.xlu0 3
        %3255 = vperm.xlu0 %3254, %v2880
        %v3256 = vpop.permute.xlu0 %3255
        %3259 = vset.pattern.permute.xlu0 3
        %3260 = vperm.xlu0 %3259, %v2882
        %v3261 = vpop.permute.xlu0 %3260
        %3264 = vset.pattern.permute.xlu0 3
        %3265 = vperm.xlu0 %3264, %v2884
        %v3266 = vpop.permute.xlu0 %3265
        %3269 = vset.pattern.permute.xlu0 3
        %3270 = vperm.xlu0 %3269, %v2886
        %v3271 = vpop.permute.xlu0 %3270
        %3274 = vset.pattern.permute.xlu0 3
        %3275 = vperm.xlu0 %3274, %v2888
        %v3276 = vpop.permute.xlu0 %3275
        %3279 = vset.pattern.permute.xlu0 3
        %3280 = vperm.xlu0 %3279, %v2890
        %v3281 = vpop.permute.xlu0 %3280
        %3284 = vset.pattern.permute.xlu0 3
        %3285 = vperm.xlu0 %3284, %v2892
        %v3286 = vpop.permute.xlu0 %3285
        %3289 = vset.pattern.permute.xlu0 3
        %3290 = vperm.xlu0 %3289, %v2894
        %v3291 = vpop.permute.xlu0 %3290
        %3294 = vset.pattern.permute.xlu0 3
        %3295 = vperm.xlu0 %3294, %v2896
        %v3296 = vpop.permute.xlu0 %3295
        %vm3298 = vcmask 7168
        %v3299 = vsel %vm3298, %v803, %v1477
        %v3300 = vsel %vm3298, %v804, %v1478
        %v3301 = vsel %vm3298, %v805, %v1479
        %v3302 = vsel %vm3298, %v806, %v1480
        %v3303 = vsel %vm3298, %v807, %v1481
        %v3304 = vsel %vm3298, %v808, %v1482
        %v3305 = vsel %vm3298, %v809, %v1483
        %v3306 = vsel %vm3298, %v810, %v1484
        %v3307 = vsel %vm3298, %v811, %v1485
        %v3308 = vsel %vm3298, %v812, %v1486
        %v3309 = vsel %vm3298, %v813, %v1487
        %v3310 = vsel %vm3298, %v814, %v1488
        %v3311 = vsel %vm3298, %v815, %v1489
        %v3312 = vsel %vm3298, %v816, %v1490
        %v3313 = vsel %vm3298, %v817, %v1491
        %v3314 = vsel %vm3298, %v818, %v1492
        %vm3315 = vcmask 15360
        %v3316 = vsel %vm3315, %v3299, %v2159
        %v3317 = vsel %vm3315, %v3300, %v2160
        %v3318 = vsel %vm3315, %v3301, %v2161
        %v3319 = vsel %vm3315, %v3302, %v2162
        %v3320 = vsel %vm3315, %v3303, %v2163
        %v3321 = vsel %vm3315, %v3304, %v2164
        %v3322 = vsel %vm3315, %v3305, %v2165
        %v3323 = vsel %vm3315, %v3306, %v2166
        %v3324 = vsel %vm3315, %v3307, %v2167
        %v3325 = vsel %vm3315, %v3308, %v2168
        %v3326 = vsel %vm3315, %v3309, %v2169
        %v3327 = vsel %vm3315, %v3310, %v2170
        %v3328 = vsel %vm3315, %v3311, %v2171
        %v3329 = vsel %vm3315, %v3312, %v2172
        %v3330 = vsel %vm3315, %v3313, %v2173
        %v3331 = vsel %vm3315, %v3314, %v2174
        %vm3332 = vcmask 23552
        %v3333 = vsel %vm3332, %v3316, %v2833
        %v3334 = vsel %vm3332, %v3317, %v2834
        %v3335 = vsel %vm3332, %v3318, %v2835
        %v3336 = vsel %vm3332, %v3319, %v2836
        %v3337 = vsel %vm3332, %v3320, %v2837
        %v3338 = vsel %vm3332, %v3321, %v2838
        %v3339 = vsel %vm3332, %v3322, %v2839
        %v3340 = vsel %vm3332, %v3323, %v2840
        %v3341 = vsel %vm3332, %v3324, %v2841
        %v3342 = vsel %vm3332, %v3325, %v2842
        %v3343 = vsel %vm3332, %v3326, %v2843
        %v3344 = vsel %vm3332, %v3327, %v2844
        %v3345 = vsel %vm3332, %v3328, %v2845
        %v3346 = vsel %vm3332, %v3329, %v2846
        %v3347 = vsel %vm3332, %v3330, %v2847
        %v3348 = vsel %vm3332, %v3331, %v2848
        %vm3349 = vcmask 31744
        %3350 = vst.msk [vmem:[#allocation2] sm:$0xff] %vm3349, %v3333
        %3351 = vst.msk [vmem:[#allocation2 + $0x8] sm:$0xff] %vm3349, %v3334
        %3352 = vst.msk [vmem:[#allocation2 + $0x10] sm:$0xff] %vm3349, %v3335
        %3353 = vst.msk [vmem:[#allocation2 + $0x18] sm:$0xff] %vm3349, %v3336
        %3354 = vst.msk [vmem:[#allocation2 + $0x20] sm:$0xff] %vm3349, %v3337
        %3355 = vst.msk [vmem:[#allocation2 + $0x28] sm:$0xff] %vm3349, %v3338
        %3356 = vst.msk [vmem:[#allocation2 + $0x30] sm:$0xff] %vm3349, %v3339
        %3357 = vst.msk [vmem:[#allocation2 + $0x38] sm:$0xff] %vm3349, %v3340
        %3358 = vst.msk [vmem:[#allocation2 + $0x40] sm:$0xff] %vm3349, %v3341
        %3359 = vst.msk [vmem:[#allocation2 + $0x48] sm:$0xff] %vm3349, %v3342
        %3360 = vst.msk [vmem:[#allocation2 + $0x50] sm:$0xff] %vm3349, %v3343
        %3361 = vst.msk [vmem:[#allocation2 + $0x58] sm:$0xff] %vm3349, %v3344
        %3362 = vst.msk [vmem:[#allocation2 + $0x60] sm:$0xff] %vm3349, %v3345
        %3363 = vst.msk [vmem:[#allocation2 + $0x68] sm:$0xff] %vm3349, %v3346
        %3364 = vst.msk [vmem:[#allocation2 + $0x70] sm:$0xff] %vm3349, %v3347
        %3365 = vst.msk [vmem:[#allocation2 + $0x78] sm:$0xff] %vm3349, %v3348
        %v3366 = vsel %vm3298, %v1043, %v1717
        %v3367 = vsel %vm3298, %v1044, %v1718
        %v3368 = vsel %vm3298, %v1045, %v1719
        %v3369 = vsel %vm3298, %v1046, %v1720
        %v3370 = vsel %vm3298, %v1047, %v1721
        %v3371 = vsel %vm3298, %v1048, %v1722
        %v3372 = vsel %vm3298, %v1049, %v1723
        %v3373 = vsel %vm3298, %v1050, %v1724
        %v3374 = vsel %vm3298, %v1051, %v1725
        %v3375 = vsel %vm3298, %v1052, %v1726
        %v3376 = vsel %vm3298, %v1053, %v1727
        %v3377 = vsel %vm3298, %v1054, %v1728
        %v3378 = vsel %vm3298, %v1055, %v1729
        %v3379 = vsel %vm3298, %v1056, %v1730
        %v3380 = vsel %vm3298, %v1057, %v1731
        %v3381 = vsel %vm3298, %v1058, %v1732
        %v3382 = vsel %vm3315, %v3366, %v2399
        %v3383 = vsel %vm3315, %v3367, %v2400
        %v3384 = vsel %vm3315, %v3368, %v2401
        %v3385 = vsel %vm3315, %v3369, %v2402
        %v3386 = vsel %vm3315, %v3370, %v2403
        %v3387 = vsel %vm3315, %v3371, %v2404
        %v3388 = vsel %vm3315, %v3372, %v2405
        %v3389 = vsel %vm3315, %v3373, %v2406
        %v3390 = vsel %vm3315, %v3374, %v2407
        %v3391 = vsel %vm3315, %v3375, %v2408
        %v3392 = vsel %vm3315, %v3376, %v2409
        %v3393 = vsel %vm3315, %v3377, %v2410
        %v3394 = vsel %vm3315, %v3378, %v2411
        %v3395 = vsel %vm3315, %v3379, %v2412
        %v3396 = vsel %vm3315, %v3380, %v2413
        %v3397 = vsel %vm3315, %v3381, %v2414
        %v3398 = vsel %vm3332, %v3382, %v3073
        %v3399 = vsel %vm3332, %v3383, %v3074
        %v3400 = vsel %vm3332, %v3384, %v3075
        %v3401 = vsel %vm3332, %v3385, %v3076
        %v3402 = vsel %vm3332, %v3386, %v3077
        %v3403 = vsel %vm3332, %v3387, %v3078
        %v3404 = vsel %vm3332, %v3388, %v3079
        %v3405 = vsel %vm3332, %v3389, %v3080
        %v3406 = vsel %vm3332, %v3390, %v3081
        %v3407 = vsel %vm3332, %v3391, %v3082
        %v3408 = vsel %vm3332, %v3392, %v3083
        %v3409 = vsel %vm3332, %v3393, %v3084
        %v3410 = vsel %vm3332, %v3394, %v3085
        %v3411 = vsel %vm3332, %v3395, %v3086
        %v3412 = vsel %vm3332, %v3396, %v3087
        %v3413 = vsel %vm3332, %v3397, %v3088
        %3414 = vst.msk [vmem:[#allocation3] sm:$0xff] %vm3349, %v3398
        %3415 = vst.msk [vmem:[#allocation3 + $0x8] sm:$0xff] %vm3349, %v3399
        %3416 = vst.msk [vmem:[#allocation3 + $0x10] sm:$0xff] %vm3349, %v3400
        %3417 = vst.msk [vmem:[#allocation3 + $0x18] sm:$0xff] %vm3349, %v3401
        %3418 = vst.msk [vmem:[#allocation3 + $0x20] sm:$0xff] %vm3349, %v3402
        %3419 = vst.msk [vmem:[#allocation3 + $0x28] sm:$0xff] %vm3349, %v3403
        %3420 = vst.msk [vmem:[#allocation3 + $0x30] sm:$0xff] %vm3349, %v3404
        %3421 = vst.msk [vmem:[#allocation3 + $0x38] sm:$0xff] %vm3349, %v3405
        %3422 = vst.msk [vmem:[#allocation3 + $0x40] sm:$0xff] %vm3349, %v3406
        %3423 = vst.msk [vmem:[#allocation3 + $0x48] sm:$0xff] %vm3349, %v3407
        %3424 = vst.msk [vmem:[#allocation3 + $0x50] sm:$0xff] %vm3349, %v3408
        %3425 = vst.msk [vmem:[#allocation3 + $0x58] sm:$0xff] %vm3349, %v3409
        %3426 = vst.msk [vmem:[#allocation3 + $0x60] sm:$0xff] %vm3349, %v3410
        %3427 = vst.msk [vmem:[#allocation3 + $0x68] sm:$0xff] %vm3349, %v3411
        %3428 = vst.msk [vmem:[#allocation3 + $0x70] sm:$0xff] %vm3349, %v3412
        %3429 = vst.msk [vmem:[#allocation3 + $0x78] sm:$0xff] %vm3349, %v3413
        %v3430 = vsel %vm625, %v1175, %v1873
        %v3431 = vsel %vm625, %v1180, %v1878
        %v3432 = vsel %vm625, %v1185, %v1883
        %v3433 = vsel %vm625, %v1190, %v1888
        %v3434 = vsel %vm625, %v1195, %v1893
        %v3435 = vsel %vm625, %v1200, %v1898
        %v3436 = vsel %vm625, %v1205, %v1903
        %v3437 = vsel %vm625, %v1210, %v1908
        %v3438 = vsel %vm625, %v1215, %v1913
        %v3439 = vsel %vm625, %v1220, %v1918
        %v3440 = vsel %vm625, %v1225, %v1923
        %v3441 = vsel %vm625, %v1230, %v1928
        %v3442 = vsel %vm625, %v1235, %v1933
        %v3443 = vsel %vm625, %v1240, %v1938
        %v3444 = vsel %vm625, %v1245, %v1943
        %v3445 = vsel %vm625, %v1250, %v1948
        %vm3446 = vcmask 523264
        %v3447 = vsel %vm3446, %v3430, %v2547
        %v3448 = vsel %vm3446, %v3431, %v2552
        %v3449 = vsel %vm3446, %v3432, %v2557
        %v3450 = vsel %vm3446, %v3433, %v2562
        %v3451 = vsel %vm3446, %v3434, %v2567
        %v3452 = vsel %vm3446, %v3435, %v2572
        %v3453 = vsel %vm3446, %v3436, %v2577
        %v3454 = vsel %vm3446, %v3437, %v2582
        %v3455 = vsel %vm3446, %v3438, %v2587
        %v3456 = vsel %vm3446, %v3439, %v2592
        %v3457 = vsel %vm3446, %v3440, %v2597
        %v3458 = vsel %vm3446, %v3441, %v2602
        %v3459 = vsel %vm3446, %v3442, %v2607
        %v3460 = vsel %vm3446, %v3443, %v2612
        %v3461 = vsel %vm3446, %v3444, %v2617
        %v3462 = vsel %vm3446, %v3445, %v2622
        %vm3463 = vcmask 785408
        %v3464 = vsel %vm3463, %v3447, %v3221
        %v3465 = vsel %vm3463, %v3448, %v3226
        %v3466 = vsel %vm3463, %v3449, %v3231
        %v3467 = vsel %vm3463, %v3450, %v3236
        %v3468 = vsel %vm3463, %v3451, %v3241
        %v3469 = vsel %vm3463, %v3452, %v3246
        %v3470 = vsel %vm3463, %v3453, %v3251
        %v3471 = vsel %vm3463, %v3454, %v3256
        %v3472 = vsel %vm3463, %v3455, %v3261
        %v3473 = vsel %vm3463, %v3456, %v3266
        %v3474 = vsel %vm3463, %v3457, %v3271
        %v3475 = vsel %vm3463, %v3458, %v3276
        %v3476 = vsel %vm3463, %v3459, %v3281
        %v3477 = vsel %vm3463, %v3460, %v3286
        %v3478 = vsel %vm3463, %v3461, %v3291
        %v3479 = vsel %vm3463, %v3462, %v3296
        %v3480 = vld [vmem:[#allocation4] sm:$0xff]
        %v3481 = vld [vmem:[#allocation4 + $0x8] sm:$0xff]
        %v3482 = vld [vmem:[#allocation4 + $0x10] sm:$0xff]
        %v3483 = vld [vmem:[#allocation4 + $0x18] sm:$0xff]
        %v3484 = vld [vmem:[#allocation4 + $0x20] sm:$0xff]
        %v3485 = vld [vmem:[#allocation4 + $0x28] sm:$0xff]
        %v3486 = vld [vmem:[#allocation4 + $0x30] sm:$0xff]
        %v3487 = vld [vmem:[#allocation4 + $0x38] sm:$0xff]
        %v3488 = vld [vmem:[#allocation4 + $0x40] sm:$0xff]
        %v3489 = vld [vmem:[#allocation4 + $0x48] sm:$0xff]
        %v3490 = vld [vmem:[#allocation4 + $0x50] sm:$0xff]
        %v3491 = vld [vmem:[#allocation4 + $0x58] sm:$0xff]
        %v3492 = vld [vmem:[#allocation4 + $0x60] sm:$0xff]
        %v3493 = vld [vmem:[#allocation4 + $0x68] sm:$0xff]
        %v3494 = vld [vmem:[#allocation4 + $0x70] sm:$0xff]
        %v3495 = vld [vmem:[#allocation4 + $0x78] sm:$0xff]
        %v3496 = vmul.f32 %v3464, %v3480
        %v3497 = vmul.f32 %v3465, %v3481
        %v3498 = vmul.f32 %v3466, %v3482
        %v3499 = vmul.f32 %v3467, %v3483
        %v3500 = vmul.f32 %v3468, %v3484
        %v3501 = vmul.f32 %v3469, %v3485
        %v3502 = vmul.f32 %v3470, %v3486
        %v3503 = vmul.f32 %v3471, %v3487
        %v3504 = vmul.f32 %v3472, %v3488
        %v3505 = vmul.f32 %v3473, %v3489
        %v3506 = vmul.f32 %v3474, %v3490
        %v3507 = vmul.f32 %v3475, %v3491
        %v3508 = vmul.f32 %v3476, %v3492
        %v3509 = vmul.f32 %v3477, %v3493
        %v3510 = vmul.f32 %v3478, %v3494
        %v3511 = vmul.f32 %v3479, %v3495
        %3528 = vrot.lane.b32.xlu0 %v1808, 32
        %v3529 = vpop.permute.xlu0 %3528
        %3530 = vrot.lane.b32.xlu0 %v1811, 32
        %v3531 = vpop.permute.xlu0 %3530
        %3532 = vrot.lane.b32.xlu0 %v1816, 32
        %v3533 = vpop.permute.xlu0 %3532
        %3534 = vrot.lane.b32.xlu0 %v1819, 32
        %v3535 = vpop.permute.xlu0 %3534
        %3536 = vrot.lane.b32.xlu0 %v1824, 32
        %v3537 = vpop.permute.xlu0 %3536
        %3538 = vrot.lane.b32.xlu0 %v1827, 32
        %v3539 = vpop.permute.xlu0 %3538
        %3540 = vrot.lane.b32.xlu0 %v1832, 32
        %v3541 = vpop.permute.xlu0 %3540
        %3542 = vrot.lane.b32.xlu0 %v1835, 32
        %v3543 = vpop.permute.xlu0 %3542
        %3544 = vrot.lane.b32.xlu0 %v1840, 32
        %v3545 = vpop.permute.xlu0 %3544
        %3546 = vrot.lane.b32.xlu0 %v1843, 32
        %v3547 = vpop.permute.xlu0 %3546
        %3548 = vrot.lane.b32.xlu0 %v1848, 32
        %v3549 = vpop.permute.xlu0 %3548
        %3550 = vrot.lane.b32.xlu0 %v1851, 32
        %v3551 = vpop.permute.xlu0 %3550
        %3552 = vrot.lane.b32.xlu0 %v1856, 32
        %v3553 = vpop.permute.xlu0 %3552
        %3554 = vrot.lane.b32.xlu0 %v1859, 32
        %v3555 = vpop.permute.xlu0 %3554
        %3556 = vrot.lane.b32.xlu0 %v1864, 32
        %v3557 = vpop.permute.xlu0 %3556
        %3558 = vrot.lane.b32.xlu0 %v1867, 32
        %v3559 = vpop.permute.xlu0 %3558
        %3592 = vrot.lane.b32.xlu0 %v2482, 64
        %v3593 = vpop.permute.xlu0 %3592
        %3594 = vrot.lane.b32.xlu0 %v2485, 64
        %v3595 = vpop.permute.xlu0 %3594
        %3596 = vrot.lane.b32.xlu0 %v2490, 64
        %v3597 = vpop.permute.xlu0 %3596
        %3598 = vrot.lane.b32.xlu0 %v2493, 64
        %v3599 = vpop.permute.xlu0 %3598
        %3600 = vrot.lane.b32.xlu0 %v2498, 64
        %v3601 = vpop.permute.xlu0 %3600
        %3602 = vrot.lane.b32.xlu0 %v2501, 64
        %v3603 = vpop.permute.xlu0 %3602
        %3604 = vrot.lane.b32.xlu0 %v2506, 64
        %v3605 = vpop.permute.xlu0 %3604
        %3606 = vrot.lane.b32.xlu0 %v2509, 64
        %v3607 = vpop.permute.xlu0 %3606
        %3608 = vrot.lane.b32.xlu0 %v2514, 64
        %v3609 = vpop.permute.xlu0 %3608
        %3610 = vrot.lane.b32.xlu0 %v2517, 64
        %v3611 = vpop.permute.xlu0 %3610
        %3612 = vrot.lane.b32.xlu0 %v2522, 64
        %v3613 = vpop.permute.xlu0 %3612
        %3614 = vrot.lane.b32.xlu0 %v2525, 64
        %v3615 = vpop.permute.xlu0 %3614
        %3616 = vrot.lane.b32.xlu0 %v2530, 64
        %v3617 = vpop.permute.xlu0 %3616
        %3618 = vrot.lane.b32.xlu0 %v2533, 64
        %v3619 = vpop.permute.xlu0 %3618
        %3620 = vrot.lane.b32.xlu0 %v2538, 64
        %v3621 = vpop.permute.xlu0 %3620
        %3622 = vrot.lane.b32.xlu0 %v2541, 64
        %v3623 = vpop.permute.xlu0 %3622
        %3656 = vrot.lane.b32.xlu0 %v3156, 96
        %v3657 = vpop.permute.xlu0 %3656
        %3658 = vrot.lane.b32.xlu0 %v3159, 96
        %v3659 = vpop.permute.xlu0 %3658
        %3660 = vrot.lane.b32.xlu0 %v3164, 96
        %v3661 = vpop.permute.xlu0 %3660
        %3662 = vrot.lane.b32.xlu0 %v3167, 96
        %v3663 = vpop.permute.xlu0 %3662
        %3664 = vrot.lane.b32.xlu0 %v3172, 96
        %v3665 = vpop.permute.xlu0 %3664
        %3666 = vrot.lane.b32.xlu0 %v3175, 96
        %v3667 = vpop.permute.xlu0 %3666
        %3668 = vrot.lane.b32.xlu0 %v3180, 96
        %v3669 = vpop.permute.xlu0 %3668
        %3670 = vrot.lane.b32.xlu0 %v3183, 96
        %v3671 = vpop.permute.xlu0 %3670
        %3672 = vrot.lane.b32.xlu0 %v3188, 96
        %v3673 = vpop.permute.xlu0 %3672
        %3674 = vrot.lane.b32.xlu0 %v3191, 96
        %v3675 = vpop.permute.xlu0 %3674
        %3676 = vrot.lane.b32.xlu0 %v3196, 96
        %v3677 = vpop.permute.xlu0 %3676
        %3678 = vrot.lane.b32.xlu0 %v3199, 96
        %v3679 = vpop.permute.xlu0 %3678
        %3680 = vrot.lane.b32.xlu0 %v3204, 96
        %v3681 = vpop.permute.xlu0 %3680
        %3682 = vrot.lane.b32.xlu0 %v3207, 96
        %v3683 = vpop.permute.xlu0 %3682
        %3684 = vrot.lane.b32.xlu0 %v3212, 96
        %v3685 = vpop.permute.xlu0 %3684
        %3686 = vrot.lane.b32.xlu0 %v3215, 96
        %v3687 = vpop.permute.xlu0 %3686
        %v3704 = vsel %vm625, %v1110, %v3529
        %v3705 = vsel %vm625, %v1113, %v3531
        %v3706 = vsel %vm625, %v1118, %v3533
        %v3707 = vsel %vm625, %v1121, %v3535
        %v3708 = vsel %vm625, %v1126, %v3537
        %v3709 = vsel %vm625, %v1129, %v3539
        %v3710 = vsel %vm625, %v1134, %v3541
        %v3711 = vsel %vm625, %v1137, %v3543
        %v3712 = vsel %vm625, %v1142, %v3545
        %v3713 = vsel %vm625, %v1145, %v3547
        %v3714 = vsel %vm625, %v1150, %v3549
        %v3715 = vsel %vm625, %v1153, %v3551
        %v3716 = vsel %vm625, %v1158, %v3553
        %v3717 = vsel %vm625, %v1161, %v3555
        %v3718 = vsel %vm625, %v1166, %v3557
        %v3719 = vsel %vm625, %v1169, %v3559
        %v3720 = vsel %vm3446, %v3704, %v3593
        %v3721 = vsel %vm3446, %v3705, %v3595
        %v3722 = vsel %vm3446, %v3706, %v3597
        %v3723 = vsel %vm3446, %v3707, %v3599
        %v3724 = vsel %vm3446, %v3708, %v3601
        %v3725 = vsel %vm3446, %v3709, %v3603
        %v3726 = vsel %vm3446, %v3710, %v3605
        %v3727 = vsel %vm3446, %v3711, %v3607
        %v3728 = vsel %vm3446, %v3712, %v3609
        %v3729 = vsel %vm3446, %v3713, %v3611
        %v3730 = vsel %vm3446, %v3714, %v3613
        %v3731 = vsel %vm3446, %v3715, %v3615
        %v3732 = vsel %vm3446, %v3716, %v3617
        %v3733 = vsel %vm3446, %v3717, %v3619
        %v3734 = vsel %vm3446, %v3718, %v3621
        %v3735 = vsel %vm3446, %v3719, %v3623
        %v3736 = vsel %vm3463, %v3720, %v3657
        %v3737 = vsel %vm3463, %v3721, %v3659
        %v3738 = vsel %vm3463, %v3722, %v3661
        %v3739 = vsel %vm3463, %v3723, %v3663
        %v3740 = vsel %vm3463, %v3724, %v3665
        %v3741 = vsel %vm3463, %v3725, %v3667
        %v3742 = vsel %vm3463, %v3726, %v3669
        %v3743 = vsel %vm3463, %v3727, %v3671
        %v3744 = vsel %vm3463, %v3728, %v3673
        %v3745 = vsel %vm3463, %v3729, %v3675
        %v3746 = vsel %vm3463, %v3730, %v3677
        %v3747 = vsel %vm3463, %v3731, %v3679
        %v3748 = vsel %vm3463, %v3732, %v3681
        %v3749 = vsel %vm3463, %v3733, %v3683
        %v3750 = vsel %vm3463, %v3734, %v3685
        %v3751 = vsel %vm3463, %v3735, %v3687
        %v3752 = vadd.f32 %v3496, %v3736
        %v3753 = vadd.f32 %v3497, %v3737
        %v3754 = vadd.f32 %v3498, %v3738
        %v3755 = vadd.f32 %v3499, %v3739
        %v3756 = vadd.f32 %v3500, %v3740
        %v3757 = vadd.f32 %v3501, %v3741
        %v3758 = vadd.f32 %v3502, %v3742
        %v3759 = vadd.f32 %v3503, %v3743
        %v3760 = vadd.f32 %v3504, %v3744
        %v3761 = vadd.f32 %v3505, %v3745
        %v3762 = vadd.f32 %v3506, %v3746
        %v3763 = vadd.f32 %v3507, %v3747
        %v3764 = vadd.f32 %v3508, %v3748
        %v3765 = vadd.f32 %v3509, %v3749
        %v3766 = vadd.f32 %v3510, %v3750
        %v3767 = vadd.f32 %v3511, %v3751
        %3768 = vst [vmem:[#allocation4] sm:$0xff] %v3752
        %3769 = vst [vmem:[#allocation4 + $0x8] sm:$0xff] %v3753
        %3770 = vst [vmem:[#allocation4 + $0x10] sm:$0xff] %v3754
        %3771 = vst [vmem:[#allocation4 + $0x18] sm:$0xff] %v3755
        %3772 = vst [vmem:[#allocation4 + $0x20] sm:$0xff] %v3756
        %3773 = vst [vmem:[#allocation4 + $0x28] sm:$0xff] %v3757
        %3774 = vst [vmem:[#allocation4 + $0x30] sm:$0xff] %v3758
        %3775 = vst [vmem:[#allocation4 + $0x38] sm:$0xff] %v3759
        %3776 = vst [vmem:[#allocation4 + $0x40] sm:$0xff] %v3760
        %3777 = vst [vmem:[#allocation4 + $0x48] sm:$0xff] %v3761
        %3778 = vst [vmem:[#allocation4 + $0x50] sm:$0xff] %v3762
        %3779 = vst [vmem:[#allocation4 + $0x58] sm:$0xff] %v3763
        %3780 = vst [vmem:[#allocation4 + $0x60] sm:$0xff] %v3764
        %3781 = vst [vmem:[#allocation4 + $0x68] sm:$0xff] %v3765
        %3782 = vst [vmem:[#allocation4 + $0x70] sm:$0xff] %v3766
        %3783 = vst [vmem:[#allocation4 + $0x78] sm:$0xff] %v3767
        // Predicated region
        $region65: #{gpt2_transformer_block.6} parent=39 // pred_check
          %p3784 = pneg %p421
        $region66: #{gpt2_transformer_block.6} parent=39 // pred_check_branch
          %3786 = sbr.rel (%p3784) target = $region68
        $region67: #{gpt2_transformer_block.6} parent=39 // pred_region
          %v3787 = vld [vmem:[#allocation3] sm:$0xff]
          %v3788 = vld [vmem:[#allocation3 + $0x8] sm:$0xff]
          %v3789 = vld [vmem:[#allocation3 + $0x10] sm:$0xff]
          %v3790 = vld [vmem:[#allocation3 + $0x18] sm:$0xff]
          %v3791 = vld [vmem:[#allocation3 + $0x20] sm:$0xff]
          %v3792 = vld [vmem:[#allocation3 + $0x28] sm:$0xff]
          %v3793 = vld [vmem:[#allocation3 + $0x30] sm:$0xff]
          %v3794 = vld [vmem:[#allocation3 + $0x38] sm:$0xff]
          %v3795 = vld [vmem:[#allocation3 + $0x40] sm:$0xff]
          %v3796 = vld [vmem:[#allocation3 + $0x48] sm:$0xff]
          %v3797 = vld [vmem:[#allocation3 + $0x50] sm:$0xff]
          %v3798 = vld [vmem:[#allocation3 + $0x58] sm:$0xff]
          %v3799 = vld [vmem:[#allocation3 + $0x60] sm:$0xff]
          %v3800 = vld [vmem:[#allocation3 + $0x68] sm:$0xff]
          %v3801 = vld [vmem:[#allocation3 + $0x70] sm:$0xff]
          %v3802 = vld [vmem:[#allocation3 + $0x78] sm:$0xff]
          %v3803 = vrcp.pop %v3787
          %v3804 = vrcp.pop %v3788
          %v3805 = vrcp.pop %v3789
          %v3806 = vrcp.pop %v3790
          %v3807 = vrcp.pop %v3791
          %v3808 = vrcp.pop %v3792
          %v3809 = vrcp.pop %v3793
          %v3810 = vrcp.pop %v3794
          %v3811 = vrcp.pop %v3795
          %v3812 = vrcp.pop %v3796
          %v3813 = vrcp.pop %v3797
          %v3814 = vrcp.pop %v3798
          %v3815 = vrcp.pop %v3799
          %v3816 = vrcp.pop %v3800
          %v3817 = vrcp.pop %v3801
          %v3818 = vrcp.pop %v3802
          %3820 = vset.pattern.permute.xlu0 0
          %3821 = vperm.xlu0 %3820, %v3803
          %v3822 = vpop.permute.xlu0 %3821
          %3825 = vset.pattern.permute.xlu0 0
          %3826 = vperm.xlu0 %3825, %v3804
          %v3827 = vpop.permute.xlu0 %3826
          %3830 = vset.pattern.permute.xlu0 0
          %3831 = vperm.xlu0 %3830, %v3805
          %v3832 = vpop.permute.xlu0 %3831
          %3835 = vset.pattern.permute.xlu0 0
          %3836 = vperm.xlu0 %3835, %v3806
          %v3837 = vpop.permute.xlu0 %3836
          %3840 = vset.pattern.permute.xlu0 0
          %3841 = vperm.xlu0 %3840, %v3807
          %v3842 = vpop.permute.xlu0 %3841
          %3845 = vset.pattern.permute.xlu0 0
          %3846 = vperm.xlu0 %3845, %v3808
          %v3847 = vpop.permute.xlu0 %3846
          %3850 = vset.pattern.permute.xlu0 0
          %3851 = vperm.xlu0 %3850, %v3809
          %v3852 = vpop.permute.xlu0 %3851
          %3855 = vset.pattern.permute.xlu0 0
          %3856 = vperm.xlu0 %3855, %v3810
          %v3857 = vpop.permute.xlu0 %3856
          %3860 = vset.pattern.permute.xlu0 0
          %3861 = vperm.xlu0 %3860, %v3811
          %v3862 = vpop.permute.xlu0 %3861
          %3865 = vset.pattern.permute.xlu0 0
          %3866 = vperm.xlu0 %3865, %v3812
          %v3867 = vpop.permute.xlu0 %3866
          %3870 = vset.pattern.permute.xlu0 0
          %3871 = vperm.xlu0 %3870, %v3813
          %v3872 = vpop.permute.xlu0 %3871
          %3875 = vset.pattern.permute.xlu0 0
          %3876 = vperm.xlu0 %3875, %v3814
          %v3877 = vpop.permute.xlu0 %3876
          %3880 = vset.pattern.permute.xlu0 0
          %3881 = vperm.xlu0 %3880, %v3815
          %v3882 = vpop.permute.xlu0 %3881
          %3885 = vset.pattern.permute.xlu0 0
          %3886 = vperm.xlu0 %3885, %v3816
          %v3887 = vpop.permute.xlu0 %3886
          %3890 = vset.pattern.permute.xlu0 0
          %3891 = vperm.xlu0 %3890, %v3817
          %v3892 = vpop.permute.xlu0 %3891
          %3895 = vset.pattern.permute.xlu0 0
          %3896 = vperm.xlu0 %3895, %v3818
          %v3897 = vpop.permute.xlu0 %3896
          %3899 = vset.pattern.permute.xlu0 1
          %3900 = vperm.xlu0 %3899, %v3803
          %v3901 = vpop.permute.xlu0 %3900
          %3903 = vset.pattern.permute.xlu0 1
          %3904 = vperm.xlu0 %3903, %v3804
          %v3905 = vpop.permute.xlu0 %3904
          %3907 = vset.pattern.permute.xlu0 1
          %3908 = vperm.xlu0 %3907, %v3805
          %v3909 = vpop.permute.xlu0 %3908
          %3911 = vset.pattern.permute.xlu0 1
          %3912 = vperm.xlu0 %3911, %v3806
          %v3913 = vpop.permute.xlu0 %3912
          %3915 = vset.pattern.permute.xlu0 1
          %3916 = vperm.xlu0 %3915, %v3807
          %v3917 = vpop.permute.xlu0 %3916
          %3919 = vset.pattern.permute.xlu0 1
          %3920 = vperm.xlu0 %3919, %v3808
          %v3921 = vpop.permute.xlu0 %3920
          %3923 = vset.pattern.permute.xlu0 1
          %3924 = vperm.xlu0 %3923, %v3809
          %v3925 = vpop.permute.xlu0 %3924
          %3927 = vset.pattern.permute.xlu0 1
          %3928 = vperm.xlu0 %3927, %v3810
          %v3929 = vpop.permute.xlu0 %3928
          %3931 = vset.pattern.permute.xlu0 1
          %3932 = vperm.xlu0 %3931, %v3811
          %v3933 = vpop.permute.xlu0 %3932
          %3935 = vset.pattern.permute.xlu0 1
          %3936 = vperm.xlu0 %3935, %v3812
          %v3937 = vpop.permute.xlu0 %3936
          %3939 = vset.pattern.permute.xlu0 1
          %3940 = vperm.xlu0 %3939, %v3813
          %v3941 = vpop.permute.xlu0 %3940
          %3943 = vset.pattern.permute.xlu0 1
          %3944 = vperm.xlu0 %3943, %v3814
          %v3945 = vpop.permute.xlu0 %3944
          %3947 = vset.pattern.permute.xlu0 1
          %3948 = vperm.xlu0 %3947, %v3815
          %v3949 = vpop.permute.xlu0 %3948
          %3951 = vset.pattern.permute.xlu0 1
          %3952 = vperm.xlu0 %3951, %v3816
          %v3953 = vpop.permute.xlu0 %3952
          %3955 = vset.pattern.permute.xlu0 1
          %3956 = vperm.xlu0 %3955, %v3817
          %v3957 = vpop.permute.xlu0 %3956
          %3959 = vset.pattern.permute.xlu0 1
          %3960 = vperm.xlu0 %3959, %v3818
          %v3961 = vpop.permute.xlu0 %3960
          %3963 = vset.pattern.permute.xlu0 2
          %3964 = vperm.xlu0 %3963, %v3803
          %v3965 = vpop.permute.xlu0 %3964
          %3967 = vset.pattern.permute.xlu0 2
          %3968 = vperm.xlu0 %3967, %v3804
          %v3969 = vpop.permute.xlu0 %3968
          %3971 = vset.pattern.permute.xlu0 2
          %3972 = vperm.xlu0 %3971, %v3805
          %v3973 = vpop.permute.xlu0 %3972
          %3975 = vset.pattern.permute.xlu0 2
          %3976 = vperm.xlu0 %3975, %v3806
          %v3977 = vpop.permute.xlu0 %3976
          %3979 = vset.pattern.permute.xlu0 2
          %3980 = vperm.xlu0 %3979, %v3807
          %v3981 = vpop.permute.xlu0 %3980
          %3983 = vset.pattern.permute.xlu0 2
          %3984 = vperm.xlu0 %3983, %v3808
          %v3985 = vpop.permute.xlu0 %3984
          %3987 = vset.pattern.permute.xlu0 2
          %3988 = vperm.xlu0 %3987, %v3809
          %v3989 = vpop.permute.xlu0 %3988
          %3991 = vset.pattern.permute.xlu0 2
          %3992 = vperm.xlu0 %3991, %v3810
          %v3993 = vpop.permute.xlu0 %3992
          %3995 = vset.pattern.permute.xlu0 2
          %3996 = vperm.xlu0 %3995, %v3811
          %v3997 = vpop.permute.xlu0 %3996
          %3999 = vset.pattern.permute.xlu0 2
          %4000 = vperm.xlu0 %3999, %v3812
          %v4001 = vpop.permute.xlu0 %4000
          %4003 = vset.pattern.permute.xlu0 2
          %4004 = vperm.xlu0 %4003, %v3813
          %v4005 = vpop.permute.xlu0 %4004
          %4007 = vset.pattern.permute.xlu0 2
          %4008 = vperm.xlu0 %4007, %v3814
          %v4009 = vpop.permute.xlu0 %4008
          %4011 = vset.pattern.permute.xlu0 2
          %4012 = vperm.xlu0 %4011, %v3815
          %v4013 = vpop.permute.xlu0 %4012
          %4015 = vset.pattern.permute.xlu0 2
          %4016 = vperm.xlu0 %4015, %v3816
          %v4017 = vpop.permute.xlu0 %4016
          %4019 = vset.pattern.permute.xlu0 2
          %4020 = vperm.xlu0 %4019, %v3817
          %v4021 = vpop.permute.xlu0 %4020
          %4023 = vset.pattern.permute.xlu0 2
          %4024 = vperm.xlu0 %4023, %v3818
          %v4025 = vpop.permute.xlu0 %4024
          %4027 = vset.pattern.permute.xlu0 3
          %4028 = vperm.xlu0 %4027, %v3803
          %v4029 = vpop.permute.xlu0 %4028
          %4031 = vset.pattern.permute.xlu0 3
          %4032 = vperm.xlu0 %4031, %v3804
          %v4033 = vpop.permute.xlu0 %4032
          %4035 = vset.pattern.permute.xlu0 3
          %4036 = vperm.xlu0 %4035, %v3805
          %v4037 = vpop.permute.xlu0 %4036
          %4039 = vset.pattern.permute.xlu0 3
          %4040 = vperm.xlu0 %4039, %v3806
          %v4041 = vpop.permute.xlu0 %4040
          %4043 = vset.pattern.permute.xlu0 3
          %4044 = vperm.xlu0 %4043, %v3807
          %v4045 = vpop.permute.xlu0 %4044
          %4047 = vset.pattern.permute.xlu0 3
          %4048 = vperm.xlu0 %4047, %v3808
          %v4049 = vpop.permute.xlu0 %4048
          %4051 = vset.pattern.permute.xlu0 3
          %4052 = vperm.xlu0 %4051, %v3809
          %v4053 = vpop.permute.xlu0 %4052
          %4055 = vset.pattern.permute.xlu0 3
          %4056 = vperm.xlu0 %4055, %v3810
          %v4057 = vpop.permute.xlu0 %4056
          %4059 = vset.pattern.permute.xlu0 3
          %4060 = vperm.xlu0 %4059, %v3811
          %v4061 = vpop.permute.xlu0 %4060
          %4063 = vset.pattern.permute.xlu0 3
          %4064 = vperm.xlu0 %4063, %v3812
          %v4065 = vpop.permute.xlu0 %4064
          %4067 = vset.pattern.permute.xlu0 3
          %4068 = vperm.xlu0 %4067, %v3813
          %v4069 = vpop.permute.xlu0 %4068
          %4071 = vset.pattern.permute.xlu0 3
          %4072 = vperm.xlu0 %4071, %v3814
          %v4073 = vpop.permute.xlu0 %4072
          %4075 = vset.pattern.permute.xlu0 3
          %4076 = vperm.xlu0 %4075, %v3815
          %v4077 = vpop.permute.xlu0 %4076
          %4079 = vset.pattern.permute.xlu0 3
          %4080 = vperm.xlu0 %4079, %v3816
          %v4081 = vpop.permute.xlu0 %4080
          %4083 = vset.pattern.permute.xlu0 3
          %4084 = vperm.xlu0 %4083, %v3817
          %v4085 = vpop.permute.xlu0 %4084
          %4087 = vset.pattern.permute.xlu0 3
          %4088 = vperm.xlu0 %4087, %v3818
          %v4089 = vpop.permute.xlu0 %4088
          %v4091 = vsel %vm625, %v3822, %v3901
          %v4092 = vsel %vm625, %v3827, %v3905
          %v4093 = vsel %vm625, %v3832, %v3909
          %v4094 = vsel %vm625, %v3837, %v3913
          %v4095 = vsel %vm625, %v3842, %v3917
          %v4096 = vsel %vm625, %v3847, %v3921
          %v4097 = vsel %vm625, %v3852, %v3925
          %v4098 = vsel %vm625, %v3857, %v3929
          %v4099 = vsel %vm625, %v3862, %v3933
          %v4100 = vsel %vm625, %v3867, %v3937
          %v4101 = vsel %vm625, %v3872, %v3941
          %v4102 = vsel %vm625, %v3877, %v3945
          %v4103 = vsel %vm625, %v3882, %v3949
          %v4104 = vsel %vm625, %v3887, %v3953
          %v4105 = vsel %vm625, %v3892, %v3957
          %v4106 = vsel %vm625, %v3897, %v3961
          %v4107 = vsel %vm3446, %v4091, %v3965
          %v4108 = vsel %vm3446, %v4092, %v3969
          %v4109 = vsel %vm3446, %v4093, %v3973
          %v4110 = vsel %vm3446, %v4094, %v3977
          %v4111 = vsel %vm3446, %v4095, %v3981
          %v4112 = vsel %vm3446, %v4096, %v3985
          %v4113 = vsel %vm3446, %v4097, %v3989
          %v4114 = vsel %vm3446, %v4098, %v3993
          %v4115 = vsel %vm3446, %v4099, %v3997
          %v4116 = vsel %vm3446, %v4100, %v4001
          %v4117 = vsel %vm3446, %v4101, %v4005
          %v4118 = vsel %vm3446, %v4102, %v4009
          %v4119 = vsel %vm3446, %v4103, %v4013
          %v4120 = vsel %vm3446, %v4104, %v4017
          %v4121 = vsel %vm3446, %v4105, %v4021
          %v4122 = vsel %vm3446, %v4106, %v4025
          %v4123 = vsel %vm3463, %v4107, %v4029
          %v4124 = vsel %vm3463, %v4108, %v4033
          %v4125 = vsel %vm3463, %v4109, %v4037
          %v4126 = vsel %vm3463, %v4110, %v4041
          %v4127 = vsel %vm3463, %v4111, %v4045
          %v4128 = vsel %vm3463, %v4112, %v4049
          %v4129 = vsel %vm3463, %v4113, %v4053
          %v4130 = vsel %vm3463, %v4114, %v4057
          %v4131 = vsel %vm3463, %v4115, %v4061
          %v4132 = vsel %vm3463, %v4116, %v4065
          %v4133 = vsel %vm3463, %v4117, %v4069
          %v4134 = vsel %vm3463, %v4118, %v4073
          %v4135 = vsel %vm3463, %v4119, %v4077
          %v4136 = vsel %vm3463, %v4120, %v4081
          %v4137 = vsel %vm3463, %v4121, %v4085
          %v4138 = vsel %vm3463, %v4122, %v4089
          %v4139 = vld [vmem:[#allocation4] sm:$0xff]
          %v4140 = vld [vmem:[#allocation4 + $0x8] sm:$0xff]
          %v4141 = vld [vmem:[#allocation4 + $0x10] sm:$0xff]
          %v4142 = vld [vmem:[#allocation4 + $0x18] sm:$0xff]
          %v4143 = vld [vmem:[#allocation4 + $0x20] sm:$0xff]
          %v4144 = vld [vmem:[#allocation4 + $0x28] sm:$0xff]
          %v4145 = vld [vmem:[#allocation4 + $0x30] sm:$0xff]
          %v4146 = vld [vmem:[#allocation4 + $0x38] sm:$0xff]
          %v4147 = vld [vmem:[#allocation4 + $0x40] sm:$0xff]
          %v4148 = vld [vmem:[#allocation4 + $0x48] sm:$0xff]
          %v4149 = vld [vmem:[#allocation4 + $0x50] sm:$0xff]
          %v4150 = vld [vmem:[#allocation4 + $0x58] sm:$0xff]
          %v4151 = vld [vmem:[#allocation4 + $0x60] sm:$0xff]
          %v4152 = vld [vmem:[#allocation4 + $0x68] sm:$0xff]
          %v4153 = vld [vmem:[#allocation4 + $0x70] sm:$0xff]
          %v4154 = vld [vmem:[#allocation4 + $0x78] sm:$0xff]
          %v4155 = vmul.f32 %v4139, %v4123
          %v4156 = vmul.f32 %v4140, %v4124
          %v4157 = vmul.f32 %v4141, %v4125
          %v4158 = vmul.f32 %v4142, %v4126
          %v4159 = vmul.f32 %v4143, %v4127
          %v4160 = vmul.f32 %v4144, %v4128
          %v4161 = vmul.f32 %v4145, %v4129
          %v4162 = vmul.f32 %v4146, %v4130
          %v4163 = vmul.f32 %v4147, %v4131
          %v4164 = vmul.f32 %v4148, %v4132
          %v4165 = vmul.f32 %v4149, %v4133
          %v4166 = vmul.f32 %v4150, %v4134
          %v4167 = vmul.f32 %v4151, %v4135
          %v4168 = vmul.f32 %v4152, %v4136
          %v4169 = vmul.f32 %v4153, %v4137
          %v4170 = vmul.f32 %v4154, %v4138
          %4171 = vst [vmem:[%s414] sm:$0xff] %v4155
          %4172 = vst [vmem:[%s414 + $0x8] sm:$0xff] %v4156
          %4173 = vst [vmem:[%s414 + $0x10] sm:$0xff] %v4157
          %4174 = vst [vmem:[%s414 + $0x18] sm:$0xff] %v4158
          %4175 = vst [vmem:[%s414 + $0x20] sm:$0xff] %v4159
          %4176 = vst [vmem:[%s414 + $0x28] sm:$0xff] %v4160
          %4177 = vst [vmem:[%s414 + $0x30] sm:$0xff] %v4161
          %4178 = vst [vmem:[%s414 + $0x38] sm:$0xff] %v4162
          %4179 = vst [vmem:[%s414 + $0x40] sm:$0xff] %v4163
          %4180 = vst [vmem:[%s414 + $0x48] sm:$0xff] %v4164
          %4181 = vst [vmem:[%s414 + $0x50] sm:$0xff] %v4165
          %4182 = vst [vmem:[%s414 + $0x58] sm:$0xff] %v4166
          %4183 = vst [vmem:[%s414 + $0x60] sm:$0xff] %v4167
          %4184 = vst [vmem:[%s414 + $0x68] sm:$0xff] %v4168
          %4185 = vst [vmem:[%s414 + $0x70] sm:$0xff] %v4169
          %4186 = vst [vmem:[%s414 + $0x78] sm:$0xff] %v4170
        $region68: #{gpt2_transformer_block.6} parent=39 // pred_fallthru
          _
        %s4187 = sand.u32 %s195, 1
        %s4188 = scalar_lea.sflag [#allocation7], %s4187
        %s4189 = sand.u32 %s195, 1
        %s4190 = smul.addr %s4189, 128
        %s4191 = scalar_lea.vmem [#allocation14], %s4190
        // Predicated region
        $region69: #{gpt2_transformer_block.6} parent=39 // pred_check
          %p4192 = pneg %p205
        $region70: #{gpt2_transformer_block.6} parent=39 // pred_check_branch
          %4194 = sbr.rel (%p4192) target = $region72
        $region71: #{gpt2_transformer_block.6} parent=39 // pred_region
          %s4195 = smul.u32 16, %s32
          %s4197 = ssub.s32 2048, 2048
          %4198 = vsyncadd %s4188, %s4197
          %s4199 = smul.addr %s31, 16
          %s4200 = sadd.s32 %s4195, %s4199
          %s4201 = smul.addr %s4200, 128
          %s4202 = scalar_lea.hbm %s5, %s4201
          %s4203 = sshll.u32 %s4191, 4
          %s4204 = int_to_ptr.vmem [resolvable:$true] %s4203
          %4209 = dma.vmem_to_hbm [thread:$0]  %s4204, 2048, %s4202, %s4188, 128, 128, 8
        $region72: #{gpt2_transformer_block.6} parent=39 // pred_fallthru
          _
      $region40: #{gpt2_transformer_block.6} parent=5 // pred_fallthru
        _
      %p4210 = scmp.le.s32.totalorder 2, %s21
      // Predicated region
      $region73: #{gpt2_transformer_block.6} parent=5 // pred_check
        %p4211 = pneg %p4210
      $region74: #{gpt2_transformer_block.6} parent=5 // pred_check_branch
        %4213 = sbr.rel (%p4211) target = $region76
      $region75: #{gpt2_transformer_block.6} parent=5 // pred_region
        %s4214 = ssub.s32 %s21, 2
        // Predicated region
        $region77: #{gpt2_transformer_block.6} parent=75 // pred_check
          %p4215 = pneg %p211
        $region78: #{gpt2_transformer_block.6} parent=75 // pred_check_branch
          %4217 = sbr.rel (%p4215) target = $region80
        $region79: #{gpt2_transformer_block.6} parent=75 // pred_region
          %s4218 = sand.u32 %s196, 1
          %s4219 = scalar_lea.sflag [#allocation7], %s4218
          %s4220 = sand.u32 %s196, 1
          %s4221 = smul.addr %s4220, 128
          %s4222 = scalar_lea.vmem [#allocation14], %s4221
          %4223 = dma.done %s4219, 2048
        $region80: #{gpt2_transformer_block.6} parent=75 // pred_fallthru
          _
      $region76: #{gpt2_transformer_block.6} parent=5 // pred_fallthru
        _
    $region6: #{gpt2_transformer_block.6} parent=1 // loop_footer
      %s25 = sadd.s32 1, %s21
    $region7: #{gpt2_transformer_block.6} parent=1 // loop_footer_branch
      %20 = sbr.rel target = $region3
    $region8: #{gpt2_transformer_block.6} parent=1 // loop_exit
      _
    %4224 = vsyncpa [#allocation6], 1
    %s4225 = scalar_lea.sflag [#allocation6], 1
    %4226 = vsyncpa %s4225, 1
    %4227 = vsyncpa [#allocation9], 1
    %s4228 = scalar_lea.sflag [#allocation9], 1
    %4229 = vsyncpa %s4228, 1
    %4230 = vsyncpa [#allocation12], 1
    %4231 = vsyncpa [#allocation7], 1
    %s4232 = scalar_lea.sflag [#allocation7], 1
    %4233 = vsyncpa %s4232, 1

// kernel: gpt2_transformer_block.9
$region0: #{gpt2_transformer_block.9}
  #allocation0 [shape = 'u32[]', space=smem, size = 0x4, offset = 0x4, fixed_abs, tag = 'smem constant byte address 0x4 - core index']
  #allocation1 [shape = 'u32[144,128]{1,0:T(1,128)}', space=vmem, size = 0x12000, scoped, tag = 'internal scratch']
  #allocation2 [shape = 'bf16[128,2048]{1,0:T(16,128)(2,1)}', space=vmem, size = 0x80000, scoped, tag = 'scratch operand']
  %s0 = inlined_call_operand.hbm [shape: f32[256,2048], index: 0, kind: input, shape index: {}]
  %s1 = inlined_call_operand.hbm [shape: bf16[2048,128], index: 1, kind: input, shape index: {}]
  %s2 = inlined_call_operand.hbm [shape: f32[1,128], index: 2, kind: input, shape index: {}]
  %s3 = inlined_call_operand.hbm [shape: f32[256,128], index: 3, kind: input, shape index: {}]
  %s4 = inlined_call_operand.hbm [shape: f32[256,128], index: 4, kind: output, shape index: {}]
  %s5 = sld [smem:[#allocation0]]
  $region69: #{gpt2_transformer_block.9} parent=0
    _
  %s7 = ssub.s32 1, %s5
  %s8 = scalar_select 0, %s7, %s5
  $region1: #{gpt2_transformer_block.9} parent=0
    #allocation3 [shape = 'u8[2097152]{0}', space=vmem, size = 0x200000, scoped, tag = 'input window, operand 0']
    #allocation4 [shape = 's32[2]{0}', space=sflag, size = 0x8, scoped, tag = 'scoped memory for gpt2_transformer_block.9']
    #allocation5 [shape = 's32[2]{0}', space=sflag, size = 0x8, scoped, tag = 'scoped memory for gpt2_transformer_block.9']
    #allocation6 [shape = 'u8[524288]{0}', space=vmem, size = 0x80000, scoped, tag = 'input window, operand 1, single buffered']
    #allocation7 [shape = 's32[1]{0}', space=sflag, size = 0x4, scoped, tag = 'scoped memory for gpt2_transformer_block.9']
    #allocation8 [shape = 'u8[512]{0}', space=vmem, size = 0x400, scoped, tag = 'input window, operand 2, single buffered']
    #allocation9 [shape = 'u8[131072]{0}', space=vmem, size = 0x20000, scoped, tag = 'input window, operand 3']
    #allocation10 [shape = 's32[2]{0}', space=sflag, size = 0x8, scoped, tag = 'scoped memory for gpt2_transformer_block.9']
    #allocation11 [shape = 'u8[131072]{0}', space=vmem, size = 0x20000, scoped, tag = 'output window, operand 0']
    %9 = vsyncpa [#allocation4], 0
    %s10 = scalar_lea.sflag [#allocation4], 1
    %11 = vsyncpa %s10, 0
    %12 = vsyncpa [#allocation7], 0
    %13 = vsyncpa [#allocation10], 0
    %s14 = scalar_lea.sflag [#allocation10], 1
    %15 = vsyncpa %s14, 0
    %16 = vsyncpa [#allocation5], 0
    %s17 = scalar_lea.sflag [#allocation5], 1
    %18 = vsyncpa %s17, 0
    loop: start=0, step=1, limit=4
    $region2: #{gpt2_transformer_block.9} parent=1 // loop_pre_header
      _
    $region3: #{gpt2_transformer_block.9} parent=1 // loop_header
      %s20 = sphi 0, %s24
      %p21 = scmp.ge.s32.totalorder %s20, 4
      %s27 = sphi 0, %s39
      %s28 = sphi 0, %s35
      %s29 = sphi 0, %s27
      %s30 = sphi 0, %s28
      %s31 = sphi 0, %s29
      %s32 = sphi 0, %s30
      %s42 = sphi 0, %s44
      %s45 = sphi 0, %s42
      %s46 = sphi 0, %s45
      %s62 = sphi 0, %s46
      %s68 = sphi 0, %s70
      %s71 = sphi 0, %s68
      %s72 = sphi 0, %s71
      %s88 = sphi 0, %s72
      %s94 = sphi 0, %s96
      %s97 = sphi 0, %s94
      %s98 = sphi 0, %s97
      %s114 = sphi 0, %s98
      %s122 = sphi 0, %s124
      %s125 = sphi 0, %s122
      %s126 = sphi 0, %s125
      %s142 = sphi 0, %s126
      %s150 = sphi 0, %s152
      %s153 = sphi 0, %s150
      %s154 = sphi 0, %s153
      %s170 = sphi 0, %s154
    $region4: #{gpt2_transformer_block.9} parent=1 // loop_header_branch
      %23 = sbr.rel (%p21) target = $region8
    $region5: #{gpt2_transformer_block.9} parent=1 // loop_body
      %s25 = ssub.s32 %s20, 1
      %s26 = ssub.s32 %s20, 2
      %s33 = sadd.s32 1, %s28
      %p34 = scmp.ge.s32.totalorder %s33, 1
      %s35 = scalar_select %p34, 0, %s33
      %s36 = sadd.s32 1, %s27
      %s37 = scalar_select %p34, %s36, %s27
      %p38 = scmp.ge.s32.totalorder %s37, 2
      %s39 = scalar_select %p38, 0, %s37
      %s40 = ssub.s32 %s27, %s39
      %p41 = scmp.eq.s32.totalorder %s40, 0
      %s43 = sadd.s32 %s42, 1
      %s44 = scalar_select %p41, %s42, %s43
      %p47 = pneg %p41
      %p48 = scmp.eq.s32.totalorder %s20, 1
      %p49 = por %p47, %p48
      %p50 = scmp.ne.s32.totalorder %s42, %s45
      %p51 = scmp.eq.s32.totalorder %s20, 0
      %p52 = por %p50, %p51
      %p53 = scmp.ne.s32.totalorder %s42, %s45
      %p54 = scmp.eq.s32.totalorder %s25, 1
      %p55 = por %p53, %p54
      %p56 = scmp.ne.s32.totalorder %s45, %s46
      %p57 = scmp.eq.s32.totalorder %s25, 0
      %p58 = por %p56, %p57
      %p59 = scmp.ne.s32.totalorder %s45, %s46
      %p60 = scmp.eq.s32.totalorder %s26, 1
      %p61 = por %p59, %p60
      %p63 = scmp.ne.s32.totalorder %s46, %s62
      %p64 = scmp.eq.s32.totalorder %s26, 0
      %p65 = por %p63, %p64
      %s66 = ssub.s32 %s28, %s35
      %p67 = scmp.eq.s32.totalorder %s66, 0
      %s69 = sadd.s32 %s68, 1
      %s70 = scalar_select %p67, %s68, %s69
      %p73 = pneg %p67
      %p74 = scmp.eq.s32.totalorder %s20, 1
      %p75 = por %p73, %p74
      %p76 = scmp.ne.s32.totalorder %s68, %s71
      %p77 = scmp.eq.s32.totalorder %s20, 0
      %p78 = por %p76, %p77
      %p79 = scmp.ne.s32.totalorder %s68, %s71
      %p80 = scmp.eq.s32.totalorder %s25, 1
      %p81 = por %p79, %p80
      %p82 = scmp.ne.s32.totalorder %s71, %s72
      %p83 = scmp.eq.s32.totalorder %s25, 0
      %p84 = por %p82, %p83
      %p85 = scmp.ne.s32.totalorder %s71, %s72
      %p86 = scmp.eq.s32.totalorder %s26, 1
      %p87 = por %p85, %p86
      %p89 = scmp.ne.s32.totalorder %s72, %s88
      %p90 = scmp.eq.s32.totalorder %s26, 0
      %p91 = por %p89, %p90
      %s92 = ssub.s32 %s28, %s35
      %p93 = scmp.eq.s32.totalorder %s92, 0
      %s95 = sadd.s32 %s94, 1
      %s96 = scalar_select %p93, %s94, %s95
      %p99 = pneg %p93
      %p100 = scmp.eq.s32.totalorder %s20, 1
      %p101 = por %p99, %p100
      %p102 = scmp.ne.s32.totalorder %s94, %s97
      %p103 = scmp.eq.s32.totalorder %s20, 0
      %p104 = por %p102, %p103
      %p105 = scmp.ne.s32.totalorder %s94, %s97
      %p106 = scmp.eq.s32.totalorder %s25, 1
      %p107 = por %p105, %p106
      %p108 = scmp.ne.s32.totalorder %s97, %s98
      %p109 = scmp.eq.s32.totalorder %s25, 0
      %p110 = por %p108, %p109
      %p111 = scmp.ne.s32.totalorder %s97, %s98
      %p112 = scmp.eq.s32.totalorder %s26, 1
      %p113 = por %p111, %p112
      %p115 = scmp.ne.s32.totalorder %s98, %s114
      %p116 = scmp.eq.s32.totalorder %s26, 0
      %p117 = por %p115, %p116
      %s118 = ssub.s32 %s27, %s39
      %s119 = ssub.s32 %s28, %s35
      %s120 = sor.u32 %s118, %s119
      %p121 = scmp.eq.s32.totalorder %s120, 0
      %s123 = sadd.s32 %s122, 1
      %s124 = scalar_select %p121, %s122, %s123
      %p127 = pneg %p121
      %p128 = scmp.eq.s32.totalorder %s20, 1
      %p129 = por %p127, %p128
      %p130 = scmp.ne.s32.totalorder %s122, %s125
      %p131 = scmp.eq.s32.totalorder %s20, 0
      %p132 = por %p130, %p131
      %p133 = scmp.ne.s32.totalorder %s122, %s125
      %p134 = scmp.eq.s32.totalorder %s25, 1
      %p135 = por %p133, %p134
      %p136 = scmp.ne.s32.totalorder %s125, %s126
      %p137 = scmp.eq.s32.totalorder %s25, 0
      %p138 = por %p136, %p137
      %p139 = scmp.ne.s32.totalorder %s125, %s126
      %p140 = scmp.eq.s32.totalorder %s26, 1
      %p141 = por %p139, %p140
      %p143 = scmp.ne.s32.totalorder %s126, %s142
      %p144 = scmp.eq.s32.totalorder %s26, 0
      %p145 = por %p143, %p144
      %s146 = ssub.s32 %s27, %s39
      %s147 = ssub.s32 %s28, %s35
      %s148 = sor.u32 %s146, %s147
      %p149 = scmp.eq.s32.totalorder %s148, 0
      %s151 = sadd.s32 %s150, 1
      %s152 = scalar_select %p149, %s150, %s151
      %p155 = pneg %p149
      %p156 = scmp.eq.s32.totalorder %s20, 1
      %p157 = por %p155, %p156
      %p158 = scmp.ne.s32.totalorder %s150, %s153
      %p159 = scmp.eq.s32.totalorder %s20, 0
      %p160 = por %p158, %p159
      %p161 = scmp.ne.s32.totalorder %s150, %s153
      %p162 = scmp.eq.s32.totalorder %s25, 1
      %p163 = por %p161, %p162
      %p164 = scmp.ne.s32.totalorder %s153, %s154
      %p165 = scmp.eq.s32.totalorder %s25, 0
      %p166 = por %p164, %p165
      %p167 = scmp.ne.s32.totalorder %s153, %s154
      %p168 = scmp.eq.s32.totalorder %s26, 1
      %p169 = por %p167, %p168
      %p171 = scmp.ne.s32.totalorder %s154, %s170
      %p172 = scmp.eq.s32.totalorder %s26, 0
      %p173 = por %p171, %p172
      %p174 = scmp.le.s32.totalorder 1, %s20
      %p175 = scmp.lt.s32.totalorder %s20, 3
      %p176 = pnand %p174, %p175
      %p177 = pneg %p176
      // Predicated region
      $region9: #{gpt2_transformer_block.9} parent=5 // pred_check
        _
      $region10: #{gpt2_transformer_block.9} parent=5 // pred_check_branch
        %179 = sbr.rel (%p176) target = $region12
      $region11: #{gpt2_transformer_block.9} parent=5 // pred_region
        %s180 = ssub.s32 %s20, 1
        // Predicated region
        $region13: #{gpt2_transformer_block.9} parent=11 // pred_check
          %p181 = pneg %p84
        $region14: #{gpt2_transformer_block.9} parent=11 // pred_check_branch
          %183 = sbr.rel (%p181) target = $region16
        $region15: #{gpt2_transformer_block.9} parent=11 // pred_region
          %s185 = ssub.s32 16384, 16384
          %186 = vsyncadd [#allocation7], %s185
          %s187 = smul.addr %s30, 64
          %s188 = scalar_lea.hbm %s1, %s187
          %s189 = sshll.u32 [#allocation6], 4
          %s190 = int_to_ptr.vmem [resolvable:$true] %s189
          %195 = dma.hbm_to_vmem [thread:$0]  %s188, 16384, %s190, [#allocation7], 64, 64, 4
        $region16: #{gpt2_transformer_block.9} parent=11 // pred_fallthru
          _
        // Predicated region
        $region17: #{gpt2_transformer_block.9} parent=11 // pred_check
          %p196 = pneg %p110
        $region18: #{gpt2_transformer_block.9} parent=11 // pred_check_branch
          %198 = sbr.rel (%p196) target = $region20
        $region19: #{gpt2_transformer_block.9} parent=11 // pred_region
          %s200 = ssub.s32 16, 16
          %201 = vsyncadd [#allocation7], %s200
          %s202 = smul.addr %s30, 16
          %s203 = scalar_lea.hbm %s2, %s202
          %s205 = sshll.u32 [#allocation8], 4
          %s206 = int_to_ptr.vmem [resolvable:$true] %s205
          %208 = dma.hbm_to_vmem [thread:$0]  %s203, 16, %s206, [#allocation7]
        $region20: #{gpt2_transformer_block.9} parent=11 // pred_fallthru
          _
      $region12: #{gpt2_transformer_block.9} parent=5 // pred_fallthru
        _
      %p209 = scmp.lt.s32.totalorder %s20, 2
      // Predicated region
      $region21: #{gpt2_transformer_block.9} parent=5 // pred_check
        %p210 = pneg %p209
      $region22: #{gpt2_transformer_block.9} parent=5 // pred_check_branch
        %212 = sbr.rel (%p210) target = $region24
      $region23: #{gpt2_transformer_block.9} parent=5 // pred_region
        // Predicated region
        $region25: #{gpt2_transformer_block.9} parent=23 // pred_check
          %p213 = pneg %p52
        $region26: #{gpt2_transformer_block.9} parent=23 // pred_check_branch
          %215 = sbr.rel (%p213) target = $region28
        $region27: #{gpt2_transformer_block.9} parent=23 // pred_region
          %s216 = sand.u32 %s42, 1
          %s217 = scalar_lea.sflag [#allocation4], %s216
          %s218 = sand.u32 %s42, 1
          %s219 = smul.addr %s218, 2048
          %s220 = scalar_lea.vmem [#allocation3], %s219
          %s221 = smul.u32 16, %s27
          %s223 = ssub.s32 32768, 32768
          %224 = vsyncadd %s217, %s223
          %s225 = smul.addr %s221, 16
          %s226 = smul.addr %s225, 128
          %s227 = scalar_lea.hbm %s0, %s226
          %s228 = sshll.u32 %s220, 4
          %s229 = int_to_ptr.vmem [resolvable:$true] %s228
          %234 = dma.hbm_to_vmem [thread:$0]  %s227, 32768, %s229, %s217, 2048, 2048, 128
        $region28: #{gpt2_transformer_block.9} parent=23 // pred_fallthru
          _
        // Predicated region
        $region29: #{gpt2_transformer_block.9} parent=23 // pred_check
          %p235 = pneg %p132
        $region30: #{gpt2_transformer_block.9} parent=23 // pred_check_branch
          %237 = sbr.rel (%p235) target = $region32
        $region31: #{gpt2_transformer_block.9} parent=23 // pred_region
          %s238 = sand.u32 %s122, 1
          %s239 = scalar_lea.sflag [#allocation10], %s238
          %s240 = sand.u32 %s122, 1
          %s241 = smul.addr %s240, 128
          %s242 = scalar_lea.vmem [#allocation9], %s241
          %s243 = smul.u32 16, %s27
          %s245 = ssub.s32 2048, 2048
          %246 = vsyncadd %s239, %s245
          %s247 = sadd.s32 %s28, %s243
          %s248 = smul.addr %s247, 128
          %s249 = scalar_lea.hbm %s3, %s248
          %s250 = sshll.u32 %s242, 4
          %s251 = int_to_ptr.vmem [resolvable:$true] %s250
          %256 = dma.hbm_to_vmem [thread:$0]  %s249, 2048, %s251, %s239, 128, 128, 8
        $region32: #{gpt2_transformer_block.9} parent=23 // pred_fallthru
          _
      $region24: #{gpt2_transformer_block.9} parent=5 // pred_fallthru
        _
      %p257 = scmp.le.s32.totalorder 1, %s20
      %p258 = scmp.lt.s32.totalorder %s20, 3
      %p259 = pnand %p257, %p258
      %p260 = pneg %p259
      // Predicated region
      $region33: #{gpt2_transformer_block.9} parent=5 // pred_check
        _
      $region34: #{gpt2_transformer_block.9} parent=5 // pred_check_branch
        %262 = sbr.rel (%p259) target = $region36
      $region35: #{gpt2_transformer_block.9} parent=5 // pred_region
        %s263 = ssub.s32 %s20, 1
        %s264 = sand.u32 %s45, 1
        %s265 = scalar_lea.sflag [#allocation4], %s264
        %s266 = sand.u32 %s45, 1
        %s267 = smul.addr %s266, 2048
        %s268 = scalar_lea.vmem [#allocation3], %s267
        // Predicated region
        $region37: #{gpt2_transformer_block.9} parent=35 // pred_check
          %p269 = pneg %p58
        $region38: #{gpt2_transformer_block.9} parent=35 // pred_check_branch
          %271 = sbr.rel (%p269) target = $region40
        $region39: #{gpt2_transformer_block.9} parent=35 // pred_region
          %272 = dma.done %s265, 32768
        $region40: #{gpt2_transformer_block.9} parent=35 // pred_fallthru
          _
        // Predicated region
        $region41: #{gpt2_transformer_block.9} parent=35 // pred_check
          %p273 = pneg %p84
        $region42: #{gpt2_transformer_block.9} parent=35 // pred_check_branch
          %275 = sbr.rel (%p273) target = $region44
        $region43: #{gpt2_transformer_block.9} parent=35 // pred_region
          %276 = dma.done [#allocation7], 16384
        $region44: #{gpt2_transformer_block.9} parent=35 // pred_fallthru
          _
        // Predicated region
        $region45: #{gpt2_transformer_block.9} parent=35 // pred_check
          %p277 = pneg %p110
        $region46: #{gpt2_transformer_block.9} parent=35 // pred_check_branch
          %279 = sbr.rel (%p277) target = $region48
        $region47: #{gpt2_transformer_block.9} parent=35 // pred_region
          %280 = dma.done [#allocation7], 16
        $region48: #{gpt2_transformer_block.9} parent=35 // pred_fallthru
          _
        %s281 = sand.u32 %s125, 1
        %s282 = scalar_lea.sflag [#allocation10], %s281
        %s283 = sand.u32 %s125, 1
        %s284 = smul.addr %s283, 128
        %s285 = scalar_lea.vmem [#allocation9], %s284
        // Predicated region
        $region49: #{gpt2_transformer_block.9} parent=35 // pred_check
          %p286 = pneg %p138
        $region50: #{gpt2_transformer_block.9} parent=35 // pred_check_branch
          %288 = sbr.rel (%p286) target = $region52
        $region51: #{gpt2_transformer_block.9} parent=35 // pred_region
          %289 = dma.done %s282, 2048
        $region52: #{gpt2_transformer_block.9} parent=35 // pred_fallthru
          _
        %s290 = sand.u32 %s45, 1
        %s291 = scalar_lea.sflag [#allocation4], %s290
        %s292 = sand.u32 %s45, 1
        %s293 = smul.addr %s292, 2048
        %s294 = scalar_lea.vmem [#allocation3], %s293
        %p295 = pneg %p58
        %p296 = pneg %p55
        %p297 = pneg %p84
        %p298 = pneg %p81
        %p299 = pneg %p110
        %p300 = pneg %p107
        %s301 = sand.u32 %s125, 1
        %s302 = scalar_lea.sflag [#allocation10], %s301
        %s303 = sand.u32 %s125, 1
        %s304 = smul.addr %s303, 128
        %s305 = scalar_lea.vmem [#allocation9], %s304
        %p306 = pneg %p138
        %p307 = pneg %p135
        %p308 = pneg %p166
        %p309 = pneg %p163
        %s310 = sand.u32 %s153, 1
        %s311 = scalar_lea.sflag [#allocation5], %s310
        %s312 = sand.u32 %s153, 1
        %s313 = smul.addr %s312, 128
        %s314 = scalar_lea.vmem [#allocation11], %s313
        %s315 = smul.u32 16, %s29
        %s316 = smul.u32 16, %s29
        %s317 = smul.u32 16, %s29
        %p319 = scmp.eq.s32.totalorder %s30, 0
        // Predicated region
        $region53: #{gpt2_transformer_block.9} parent=35 // pred_check
          %p320 = pneg %p319
        $region54: #{gpt2_transformer_block.9} parent=35 // pred_check_branch
          %322 = sbr.rel (%p320) target = $region56
        $region55: #{gpt2_transformer_block.9} parent=35 // pred_region
          %v323 = vld [vmem:[%s268] sm:$0xff]
          %v324 = vld [vmem:[%s268 + $0x8] sm:$0xff]
          %v325 = vld [vmem:[%s268 + $0x10] sm:$0xff]
          %v326 = vld [vmem:[%s268 + $0x18] sm:$0xff]
          %v327 = vld [vmem:[%s268 + $0x20] sm:$0xff]
          %v328 = vld [vmem:[%s268 + $0x28] sm:$0xff]
          %v329 = vld [vmem:[%s268 + $0x30] sm:$0xff]
          %v330 = vld [vmem:[%s268 + $0x38] sm:$0xff]
          %v331 = vld [vmem:[%s268 + $0x40] sm:$0xff]
          %v332 = vld [vmem:[%s268 + $0x48] sm:$0xff]
          %v333 = vld [vmem:[%s268 + $0x50] sm:$0xff]
          %v334 = vld [vmem:[%s268 + $0x58] sm:$0xff]
          %v335 = vld [vmem:[%s268 + $0x60] sm:$0xff]
          %v336 = vld [vmem:[%s268 + $0x68] sm:$0xff]
          %v337 = vld [vmem:[%s268 + $0x70] sm:$0xff]
          %v338 = vld [vmem:[%s268 + $0x78] sm:$0xff]
          %v339 = vld [vmem:[%s268 + $0x80] sm:$0xff]
          %v340 = vld [vmem:[%s268 + $0x88] sm:$0xff]
          %v341 = vld [vmem:[%s268 + $0x90] sm:$0xff]
          %v342 = vld [vmem:[%s268 + $0x98] sm:$0xff]
          %v343 = vld [vmem:[%s268 + $0xa0] sm:$0xff]
          %v344 = vld [vmem:[%s268 + $0xa8] sm:$0xff]
          %v345 = vld [vmem:[%s268 + $0xb0] sm:$0xff]
          %v346 = vld [vmem:[%s268 + $0xb8] sm:$0xff]
          %v347 = vld [vmem:[%s268 + $0xc0] sm:$0xff]
          %v348 = vld [vmem:[%s268 + $0xc8] sm:$0xff]
          %v349 = vld [vmem:[%s268 + $0xd0] sm:$0xff]
          %v350 = vld [vmem:[%s268 + $0xd8] sm:$0xff]
          %v351 = vld [vmem:[%s268 + $0xe0] sm:$0xff]
          %v352 = vld [vmem:[%s268 + $0xe8] sm:$0xff]
          %v353 = vld [vmem:[%s268 + $0xf0] sm:$0xff]
          %v354 = vld [vmem:[%s268 + $0xf8] sm:$0xff]
          %v355 = vld [vmem:[%s268 + $0x100] sm:$0xff]
          %v356 = vld [vmem:[%s268 + $0x108] sm:$0xff]
          %v357 = vld [vmem:[%s268 + $0x110] sm:$0xff]
          %v358 = vld [vmem:[%s268 + $0x118] sm:$0xff]
          %v359 = vld [vmem:[%s268 + $0x120] sm:$0xff]
          %v360 = vld [vmem:[%s268 + $0x128] sm:$0xff]
          %v361 = vld [vmem:[%s268 + $0x130] sm:$0xff]
          %v362 = vld [vmem:[%s268 + $0x138] sm:$0xff]
          %v363 = vld [vmem:[%s268 + $0x140] sm:$0xff]
          %v364 = vld [vmem:[%s268 + $0x148] sm:$0xff]
          %v365 = vld [vmem:[%s268 + $0x150] sm:$0xff]
          %v366 = vld [vmem:[%s268 + $0x158] sm:$0xff]
          %v367 = vld [vmem:[%s268 + $0x160] sm:$0xff]
          %v368 = vld [vmem:[%s268 + $0x168] sm:$0xff]
          %v369 = vld [vmem:[%s268 + $0x170] sm:$0xff]
          %v370 = vld [vmem:[%s268 + $0x178] sm:$0xff]
          %v371 = vld [vmem:[%s268 + $0x180] sm:$0xff]
          %v372 = vld [vmem:[%s268 + $0x188] sm:$0xff]
          %v373 = vld [vmem:[%s268 + $0x190] sm:$0xff]
          %v374 = vld [vmem:[%s268 + $0x198] sm:$0xff]
          %v375 = vld [vmem:[%s268 + $0x1a0] sm:$0xff]
          %v376 = vld [vmem:[%s268 + $0x1a8] sm:$0xff]
          %v377 = vld [vmem:[%s268 + $0x1b0] sm:$0xff]
          %v378 = vld [vmem:[%s268 + $0x1b8] sm:$0xff]
          %v379 = vld [vmem:[%s268 + $0x1c0] sm:$0xff]
          %v380 = vld [vmem:[%s268 + $0x1c8] sm:$0xff]
          %v381 = vld [vmem:[%s268 + $0x1d0] sm:$0xff]
          %v382 = vld [vmem:[%s268 + $0x1d8] sm:$0xff]
          %v383 = vld [vmem:[%s268 + $0x1e0] sm:$0xff]
          %v384 = vld [vmem:[%s268 + $0x1e8] sm:$0xff]
          %v385 = vld [vmem:[%s268 + $0x1f0] sm:$0xff]
          %v386 = vld [vmem:[%s268 + $0x1f8] sm:$0xff]
          %v387 = vld [vmem:[%s268 + $0x200] sm:$0xff]
          %v388 = vld [vmem:[%s268 + $0x208] sm:$0xff]
          %v389 = vld [vmem:[%s268 + $0x210] sm:$0xff]
          %v390 = vld [vmem:[%s268 + $0x218] sm:$0xff]
          %v391 = vld [vmem:[%s268 + $0x220] sm:$0xff]
          %v392 = vld [vmem:[%s268 + $0x228] sm:$0xff]
          %v393 = vld [vmem:[%s268 + $0x230] sm:$0xff]
          %v394 = vld [vmem:[%s268 + $0x238] sm:$0xff]
          %v395 = vld [vmem:[%s268 + $0x240] sm:$0xff]
          %v396 = vld [vmem:[%s268 + $0x248] sm:$0xff]
          %v397 = vld [vmem:[%s268 + $0x250] sm:$0xff]
          %v398 = vld [vmem:[%s268 + $0x258] sm:$0xff]
          %v399 = vld [vmem:[%s268 + $0x260] sm:$0xff]
          %v400 = vld [vmem:[%s268 + $0x268] sm:$0xff]
          %v401 = vld [vmem:[%s268 + $0x270] sm:$0xff]
          %v402 = vld [vmem:[%s268 + $0x278] sm:$0xff]
          %v403 = vld [vmem:[%s268 + $0x280] sm:$0xff]
          %v404 = vld [vmem:[%s268 + $0x288] sm:$0xff]
          %v405 = vld [vmem:[%s268 + $0x290] sm:$0xff]
          %v406 = vld [vmem:[%s268 + $0x298] sm:$0xff]
          %v407 = vld [vmem:[%s268 + $0x2a0] sm:$0xff]
          %v408 = vld [vmem:[%s268 + $0x2a8] sm:$0xff]
          %v409 = vld [vmem:[%s268 + $0x2b0] sm:$0xff]
          %v410 = vld [vmem:[%s268 + $0x2b8] sm:$0xff]
          %v411 = vld [vmem:[%s268 + $0x2c0] sm:$0xff]
          %v412 = vld [vmem:[%s268 + $0x2c8] sm:$0xff]
          %v413 = vld [vmem:[%s268 + $0x2d0] sm:$0xff]
          %v414 = vld [vmem:[%s268 + $0x2d8] sm:$0xff]
          %v415 = vld [vmem:[%s268 + $0x2e0] sm:$0xff]
          %v416 = vld [vmem:[%s268 + $0x2e8] sm:$0xff]
          %v417 = vld [vmem:[%s268 + $0x2f0] sm:$0xff]
          %v418 = vld [vmem:[%s268 + $0x2f8] sm:$0xff]
          %v419 = vld [vmem:[%s268 + $0x300] sm:$0xff]
          %v420 = vld [vmem:[%s268 + $0x308] sm:$0xff]
          %v421 = vld [vmem:[%s268 + $0x310] sm:$0xff]
          %v422 = vld [vmem:[%s268 + $0x318] sm:$0xff]
          %v423 = vld [vmem:[%s268 + $0x320] sm:$0xff]
          %v424 = vld [vmem:[%s268 + $0x328] sm:$0xff]
          %v425 = vld [vmem:[%s268 + $0x330] sm:$0xff]
          %v426 = vld [vmem:[%s268 + $0x338] sm:$0xff]
          %v427 = vld [vmem:[%s268 + $0x340] sm:$0xff]
          %v428 = vld [vmem:[%s268 + $0x348] sm:$0xff]
          %v429 = vld [vmem:[%s268 + $0x350] sm:$0xff]
          %v430 = vld [vmem:[%s268 + $0x358] sm:$0xff]
          %v431 = vld [vmem:[%s268 + $0x360] sm:$0xff]
          %v432 = vld [vmem:[%s268 + $0x368] sm:$0xff]
          %v433 = vld [vmem:[%s268 + $0x370] sm:$0xff]
          %v434 = vld [vmem:[%s268 + $0x378] sm:$0xff]
          %v435 = vld [vmem:[%s268 + $0x380] sm:$0xff]
          %v436 = vld [vmem:[%s268 + $0x388] sm:$0xff]
          %v437 = vld [vmem:[%s268 + $0x390] sm:$0xff]
          %v438 = vld [vmem:[%s268 + $0x398] sm:$0xff]
          %v439 = vld [vmem:[%s268 + $0x3a0] sm:$0xff]
          %v440 = vld [vmem:[%s268 + $0x3a8] sm:$0xff]
          %v441 = vld [vmem:[%s268 + $0x3b0] sm:$0xff]
          %v442 = vld [vmem:[%s268 + $0x3b8] sm:$0xff]
          %v443 = vld [vmem:[%s268 + $0x3c0] sm:$0xff]
          %v444 = vld [vmem:[%s268 + $0x3c8] sm:$0xff]
          %v445 = vld [vmem:[%s268 + $0x3d0] sm:$0xff]
          %v446 = vld [vmem:[%s268 + $0x3d8] sm:$0xff]
          %v447 = vld [vmem:[%s268 + $0x3e0] sm:$0xff]
          %v448 = vld [vmem:[%s268 + $0x3e8] sm:$0xff]
          %v449 = vld [vmem:[%s268 + $0x3f0] sm:$0xff]
          %v450 = vld [vmem:[%s268 + $0x3f8] sm:$0xff]
          %v451 = vld [vmem:[%s268 + $0x400] sm:$0xff]
          %v452 = vld [vmem:[%s268 + $0x408] sm:$0xff]
          %v453 = vld [vmem:[%s268 + $0x410] sm:$0xff]
          %v454 = vld [vmem:[%s268 + $0x418] sm:$0xff]
          %v455 = vld [vmem:[%s268 + $0x420] sm:$0xff]
          %v456 = vld [vmem:[%s268 + $0x428] sm:$0xff]
          %v457 = vld [vmem:[%s268 + $0x430] sm:$0xff]
          %v458 = vld [vmem:[%s268 + $0x438] sm:$0xff]
          %v459 = vld [vmem:[%s268 + $0x440] sm:$0xff]
          %v460 = vld [vmem:[%s268 + $0x448] sm:$0xff]
          %v461 = vld [vmem:[%s268 + $0x450] sm:$0xff]
          %v462 = vld [vmem:[%s268 + $0x458] sm:$0xff]
          %v463 = vld [vmem:[%s268 + $0x460] sm:$0xff]
          %v464 = vld [vmem:[%s268 + $0x468] sm:$0xff]
          %v465 = vld [vmem:[%s268 + $0x470] sm:$0xff]
          %v466 = vld [vmem:[%s268 + $0x478] sm:$0xff]
          %v467 = vld [vmem:[%s268 + $0x480] sm:$0xff]
          %v468 = vld [vmem:[%s268 + $0x488] sm:$0xff]
          %v469 = vld [vmem:[%s268 + $0x490] sm:$0xff]
          %v470 = vld [vmem:[%s268 + $0x498] sm:$0xff]
          %v471 = vld [vmem:[%s268 + $0x4a0] sm:$0xff]
          %v472 = vld [vmem:[%s268 + $0x4a8] sm:$0xff]
          %v473 = vld [vmem:[%s268 + $0x4b0] sm:$0xff]
          %v474 = vld [vmem:[%s268 + $0x4b8] sm:$0xff]
          %v475 = vld [vmem:[%s268 + $0x4c0] sm:$0xff]
          %v476 = vld [vmem:[%s268 + $0x4c8] sm:$0xff]
          %v477 = vld [vmem:[%s268 + $0x4d0] sm:$0xff]
          %v478 = vld [vmem:[%s268 + $0x4d8] sm:$0xff]
          %v479 = vld [vmem:[%s268 + $0x4e0] sm:$0xff]
          %v480 = vld [vmem:[%s268 + $0x4e8] sm:$0xff]
          %v481 = vld [vmem:[%s268 + $0x4f0] sm:$0xff]
          %v482 = vld [vmem:[%s268 + $0x4f8] sm:$0xff]
          %v483 = vld [vmem:[%s268 + $0x500] sm:$0xff]
          %v484 = vld [vmem:[%s268 + $0x508] sm:$0xff]
          %v485 = vld [vmem:[%s268 + $0x510] sm:$0xff]
          %v486 = vld [vmem:[%s268 + $0x518] sm:$0xff]
          %v487 = vld [vmem:[%s268 + $0x520] sm:$0xff]
          %v488 = vld [vmem:[%s268 + $0x528] sm:$0xff]
          %v489 = vld [vmem:[%s268 + $0x530] sm:$0xff]
          %v490 = vld [vmem:[%s268 + $0x538] sm:$0xff]
          %v491 = vld [vmem:[%s268 + $0x540] sm:$0xff]
          %v492 = vld [vmem:[%s268 + $0x548] sm:$0xff]
          %v493 = vld [vmem:[%s268 + $0x550] sm:$0xff]
          %v494 = vld [vmem:[%s268 + $0x558] sm:$0xff]
          %v495 = vld [vmem:[%s268 + $0x560] sm:$0xff]
          %v496 = vld [vmem:[%s268 + $0x568] sm:$0xff]
          %v497 = vld [vmem:[%s268 + $0x570] sm:$0xff]
          %v498 = vld [vmem:[%s268 + $0x578] sm:$0xff]
          %v499 = vld [vmem:[%s268 + $0x580] sm:$0xff]
          %v500 = vld [vmem:[%s268 + $0x588] sm:$0xff]
          %v501 = vld [vmem:[%s268 + $0x590] sm:$0xff]
          %v502 = vld [vmem:[%s268 + $0x598] sm:$0xff]
          %v503 = vld [vmem:[%s268 + $0x5a0] sm:$0xff]
          %v504 = vld [vmem:[%s268 + $0x5a8] sm:$0xff]
          %v505 = vld [vmem:[%s268 + $0x5b0] sm:$0xff]
          %v506 = vld [vmem:[%s268 + $0x5b8] sm:$0xff]
          %v507 = vld [vmem:[%s268 + $0x5c0] sm:$0xff]
          %v508 = vld [vmem:[%s268 + $0x5c8] sm:$0xff]
          %v509 = vld [vmem:[%s268 + $0x5d0] sm:$0xff]
          %v510 = vld [vmem:[%s268 + $0x5d8] sm:$0xff]
          %v511 = vld [vmem:[%s268 + $0x5e0] sm:$0xff]
          %v512 = vld [vmem:[%s268 + $0x5e8] sm:$0xff]
          %v513 = vld [vmem:[%s268 + $0x5f0] sm:$0xff]
          %v514 = vld [vmem:[%s268 + $0x5f8] sm:$0xff]
          %v515 = vld [vmem:[%s268 + $0x600] sm:$0xff]
          %v516 = vld [vmem:[%s268 + $0x608] sm:$0xff]
          %v517 = vld [vmem:[%s268 + $0x610] sm:$0xff]
          %v518 = vld [vmem:[%s268 + $0x618] sm:$0xff]
          %v519 = vld [vmem:[%s268 + $0x620] sm:$0xff]
          %v520 = vld [vmem:[%s268 + $0x628] sm:$0xff]
          %v521 = vld [vmem:[%s268 + $0x630] sm:$0xff]
          %v522 = vld [vmem:[%s268 + $0x638] sm:$0xff]
          %v523 = vld [vmem:[%s268 + $0x640] sm:$0xff]
          %v524 = vld [vmem:[%s268 + $0x648] sm:$0xff]
          %v525 = vld [vmem:[%s268 + $0x650] sm:$0xff]
          %v526 = vld [vmem:[%s268 + $0x658] sm:$0xff]
          %v527 = vld [vmem:[%s268 + $0x660] sm:$0xff]
          %v528 = vld [vmem:[%s268 + $0x668] sm:$0xff]
          %v529 = vld [vmem:[%s268 + $0x670] sm:$0xff]
          %v530 = vld [vmem:[%s268 + $0x678] sm:$0xff]
          %v531 = vld [vmem:[%s268 + $0x680] sm:$0xff]
          %v532 = vld [vmem:[%s268 + $0x688] sm:$0xff]
          %v533 = vld [vmem:[%s268 + $0x690] sm:$0xff]
          %v534 = vld [vmem:[%s268 + $0x698] sm:$0xff]
          %v535 = vld [vmem:[%s268 + $0x6a0] sm:$0xff]
          %v536 = vld [vmem:[%s268 + $0x6a8] sm:$0xff]
          %v537 = vld [vmem:[%s268 + $0x6b0] sm:$0xff]
          %v538 = vld [vmem:[%s268 + $0x6b8] sm:$0xff]
          %v539 = vld [vmem:[%s268 + $0x6c0] sm:$0xff]
          %v540 = vld [vmem:[%s268 + $0x6c8] sm:$0xff]
          %v541 = vld [vmem:[%s268 + $0x6d0] sm:$0xff]
          %v542 = vld [vmem:[%s268 + $0x6d8] sm:$0xff]
          %v543 = vld [vmem:[%s268 + $0x6e0] sm:$0xff]
          %v544 = vld [vmem:[%s268 + $0x6e8] sm:$0xff]
          %v545 = vld [vmem:[%s268 + $0x6f0] sm:$0xff]
          %v546 = vld [vmem:[%s268 + $0x6f8] sm:$0xff]
          %v547 = vld [vmem:[%s268 + $0x700] sm:$0xff]
          %v548 = vld [vmem:[%s268 + $0x708] sm:$0xff]
          %v549 = vld [vmem:[%s268 + $0x710] sm:$0xff]
          %v550 = vld [vmem:[%s268 + $0x718] sm:$0xff]
          %v551 = vld [vmem:[%s268 + $0x720] sm:$0xff]
          %v552 = vld [vmem:[%s268 + $0x728] sm:$0xff]
          %v553 = vld [vmem:[%s268 + $0x730] sm:$0xff]
          %v554 = vld [vmem:[%s268 + $0x738] sm:$0xff]
          %v555 = vld [vmem:[%s268 + $0x740] sm:$0xff]
          %v556 = vld [vmem:[%s268 + $0x748] sm:$0xff]
          %v557 = vld [vmem:[%s268 + $0x750] sm:$0xff]
          %v558 = vld [vmem:[%s268 + $0x758] sm:$0xff]
          %v559 = vld [vmem:[%s268 + $0x760] sm:$0xff]
          %v560 = vld [vmem:[%s268 + $0x768] sm:$0xff]
          %v561 = vld [vmem:[%s268 + $0x770] sm:$0xff]
          %v562 = vld [vmem:[%s268 + $0x778] sm:$0xff]
          %v563 = vld [vmem:[%s268 + $0x780] sm:$0xff]
          %v564 = vld [vmem:[%s268 + $0x788] sm:$0xff]
          %v565 = vld [vmem:[%s268 + $0x790] sm:$0xff]
          %v566 = vld [vmem:[%s268 + $0x798] sm:$0xff]
          %v567 = vld [vmem:[%s268 + $0x7a0] sm:$0xff]
          %v568 = vld [vmem:[%s268 + $0x7a8] sm:$0xff]
          %v569 = vld [vmem:[%s268 + $0x7b0] sm:$0xff]
          %v570 = vld [vmem:[%s268 + $0x7b8] sm:$0xff]
          %v571 = vld [vmem:[%s268 + $0x7c0] sm:$0xff]
          %v572 = vld [vmem:[%s268 + $0x7c8] sm:$0xff]
          %v573 = vld [vmem:[%s268 + $0x7d0] sm:$0xff]
          %v574 = vld [vmem:[%s268 + $0x7d8] sm:$0xff]
          %v575 = vld [vmem:[%s268 + $0x7e0] sm:$0xff]
          %v576 = vld [vmem:[%s268 + $0x7e8] sm:$0xff]
          %v577 = vld [vmem:[%s268 + $0x7f0] sm:$0xff]
          %v578 = vld [vmem:[%s268 + $0x7f8] sm:$0xff]
          %v579 = vpack.c.bf16 %v339, %v323
          %v580 = vpack.c.bf16 %v340, %v324
          %v581 = vpack.c.bf16 %v341, %v325
          %v582 = vpack.c.bf16 %v342, %v326
          %v583 = vpack.c.bf16 %v343, %v327
          %v584 = vpack.c.bf16 %v344, %v328
          %v585 = vpack.c.bf16 %v345, %v329
          %v586 = vpack.c.bf16 %v346, %v330
          %v587 = vpack.c.bf16 %v347, %v331
          %v588 = vpack.c.bf16 %v348, %v332
          %v589 = vpack.c.bf16 %v349, %v333
          %v590 = vpack.c.bf16 %v350, %v334
          %v591 = vpack.c.bf16 %v351, %v335
          %v592 = vpack.c.bf16 %v352, %v336
          %v593 = vpack.c.bf16 %v353, %v337
          %v594 = vpack.c.bf16 %v354, %v338
          %v595 = vpack.c.bf16 %v371, %v355
          %v596 = vpack.c.bf16 %v372, %v356
          %v597 = vpack.c.bf16 %v373, %v357
          %v598 = vpack.c.bf16 %v374, %v358
          %v599 = vpack.c.bf16 %v375, %v359
          %v600 = vpack.c.bf16 %v376, %v360
          %v601 = vpack.c.bf16 %v377, %v361
          %v602 = vpack.c.bf16 %v378, %v362
          %v603 = vpack.c.bf16 %v379, %v363
          %v604 = vpack.c.bf16 %v380, %v364
          %v605 = vpack.c.bf16 %v381, %v365
          %v606 = vpack.c.bf16 %v382, %v366
          %v607 = vpack.c.bf16 %v383, %v367
          %v608 = vpack.c.bf16 %v384, %v368
          %v609 = vpack.c.bf16 %v385, %v369
          %v610 = vpack.c.bf16 %v386, %v370
          %v611 = vpack.c.bf16 %v403, %v387
          %v612 = vpack.c.bf16 %v404, %v388
          %v613 = vpack.c.bf16 %v405, %v389
          %v614 = vpack.c.bf16 %v406, %v390
          %v615 = vpack.c.bf16 %v407, %v391
          %v616 = vpack.c.bf16 %v408, %v392
          %v617 = vpack.c.bf16 %v409, %v393
          %v618 = vpack.c.bf16 %v410, %v394
          %v619 = vpack.c.bf16 %v411, %v395
          %v620 = vpack.c.bf16 %v412, %v396
          %v621 = vpack.c.bf16 %v413, %v397
          %v622 = vpack.c.bf16 %v414, %v398
          %v623 = vpack.c.bf16 %v415, %v399
          %v624 = vpack.c.bf16 %v416, %v400
          %v625 = vpack.c.bf16 %v417, %v401
          %v626 = vpack.c.bf16 %v418, %v402
          %v627 = vpack.c.bf16 %v435, %v419
          %v628 = vpack.c.bf16 %v436, %v420
          %v629 = vpack.c.bf16 %v437, %v421
          %v630 = vpack.c.bf16 %v438, %v422
          %v631 = vpack.c.bf16 %v439, %v423
          %v632 = vpack.c.bf16 %v440, %v424
          %v633 = vpack.c.bf16 %v441, %v425
          %v634 = vpack.c.bf16 %v442, %v426
          %v635 = vpack.c.bf16 %v443, %v427
          %v636 = vpack.c.bf16 %v444, %v428
          %v637 = vpack.c.bf16 %v445, %v429
          %v638 = vpack.c.bf16 %v446, %v430
          %v639 = vpack.c.bf16 %v447, %v431
          %v640 = vpack.c.bf16 %v448, %v432
          %v641 = vpack.c.bf16 %v449, %v433
          %v642 = vpack.c.bf16 %v450, %v434
          %v643 = vpack.c.bf16 %v467, %v451
          %v644 = vpack.c.bf16 %v468, %v452
          %v645 = vpack.c.bf16 %v469, %v453
          %v646 = vpack.c.bf16 %v470, %v454
          %v647 = vpack.c.bf16 %v471, %v455
          %v648 = vpack.c.bf16 %v472, %v456
          %v649 = vpack.c.bf16 %v473, %v457
          %v650 = vpack.c.bf16 %v474, %v458
          %v651 = vpack.c.bf16 %v475, %v459
          %v652 = vpack.c.bf16 %v476, %v460
          %v653 = vpack.c.bf16 %v477, %v461
          %v654 = vpack.c.bf16 %v478, %v462
          %v655 = vpack.c.bf16 %v479, %v463
          %v656 = vpack.c.bf16 %v480, %v464
          %v657 = vpack.c.bf16 %v481, %v465
          %v658 = vpack.c.bf16 %v482, %v466
          %v659 = vpack.c.bf16 %v499, %v483
          %v660 = vpack.c.bf16 %v500, %v484
          %v661 = vpack.c.bf16 %v501, %v485
          %v662 = vpack.c.bf16 %v502, %v486
          %v663 = vpack.c.bf16 %v503, %v487
          %v664 = vpack.c.bf16 %v504, %v488
          %v665 = vpack.c.bf16 %v505, %v489
          %v666 = vpack.c.bf16 %v506, %v490
          %v667 = vpack.c.bf16 %v507, %v491
          %v668 = vpack.c.bf16 %v508, %v492
          %v669 = vpack.c.bf16 %v509, %v493
          %v670 = vpack.c.bf16 %v510, %v494
          %v671 = vpack.c.bf16 %v511, %v495
          %v672 = vpack.c.bf16 %v512, %v496
          %v673 = vpack.c.bf16 %v513, %v497
          %v674 = vpack.c.bf16 %v514, %v498
          %v675 = vpack.c.bf16 %v531, %v515
          %v676 = vpack.c.bf16 %v532, %v516
          %v677 = vpack.c.bf16 %v533, %v517
          %v678 = vpack.c.bf16 %v534, %v518
          %v679 = vpack.c.bf16 %v535, %v519
          %v680 = vpack.c.bf16 %v536, %v520
          %v681 = vpack.c.bf16 %v537, %v521
          %v682 = vpack.c.bf16 %v538, %v522
          %v683 = vpack.c.bf16 %v539, %v523
          %v684 = vpack.c.bf16 %v540, %v524
          %v685 = vpack.c.bf16 %v541, %v525
          %v686 = vpack.c.bf16 %v542, %v526
          %v687 = vpack.c.bf16 %v543, %v527
          %v688 = vpack.c.bf16 %v544, %v528
          %v689 = vpack.c.bf16 %v545, %v529
          %v690 = vpack.c.bf16 %v546, %v530
          %v691 = vpack.c.bf16 %v563, %v547
          %v692 = vpack.c.bf16 %v564, %v548
          %v693 = vpack.c.bf16 %v565, %v549
          %v694 = vpack.c.bf16 %v566, %v550
          %v695 = vpack.c.bf16 %v567, %v551
          %v696 = vpack.c.bf16 %v568, %v552
          %v697 = vpack.c.bf16 %v569, %v553
          %v698 = vpack.c.bf16 %v570, %v554
          %v699 = vpack.c.bf16 %v571, %v555
          %v700 = vpack.c.bf16 %v572, %v556
          %v701 = vpack.c.bf16 %v573, %v557
          %v702 = vpack.c.bf16 %v574, %v558
          %v703 = vpack.c.bf16 %v575, %v559
          %v704 = vpack.c.bf16 %v576, %v560
          %v705 = vpack.c.bf16 %v577, %v561
          %v706 = vpack.c.bf16 %v578, %v562
          %707 = vst [vmem:[#allocation2] sm:$0xff] %v579
          %708 = vst [vmem:[#allocation2 + $0x8] sm:$0xff] %v580
          %709 = vst [vmem:[#allocation2 + $0x10] sm:$0xff] %v581
          %710 = vst [vmem:[#allocation2 + $0x18] sm:$0xff] %v582
          %711 = vst [vmem:[#allocation2 + $0x20] sm:$0xff] %v583
          %712 = vst [vmem:[#allocation2 + $0x28] sm:$0xff] %v584
          %713 = vst [vmem:[#allocation2 + $0x30] sm:$0xff] %v585
          %714 = vst [vmem:[#allocation2 + $0x38] sm:$0xff] %v586
          %715 = vst [vmem:[#allocation2 + $0x40] sm:$0xff] %v587
          %716 = vst [vmem:[#allocation2 + $0x48] sm:$0xff] %v588
          %717 = vst [vmem:[#allocation2 + $0x50] sm:$0xff] %v589
          %718 = vst [vmem:[#allocation2 + $0x58] sm:$0xff] %v590
          %719 = vst [vmem:[#allocation2 + $0x60] sm:$0xff] %v591
          %720 = vst [vmem:[#allocation2 + $0x68] sm:$0xff] %v592
          %721 = vst [vmem:[#allocation2 + $0x70] sm:$0xff] %v593
          %722 = vst [vmem:[#allocation2 + $0x78] sm:$0xff] %v594
          %723 = vst [vmem:[#allocation2 + $0x80] sm:$0xff] %v595
          %724 = vst [vmem:[#allocation2 + $0x88] sm:$0xff] %v596
          %725 = vst [vmem:[#allocation2 + $0x90] sm:$0xff] %v597
          %726 = vst [vmem:[#allocation2 + $0x98] sm:$0xff] %v598
          %727 = vst [vmem:[#allocation2 + $0xa0] sm:$0xff] %v599
          %728 = vst [vmem:[#allocation2 + $0xa8] sm:$0xff] %v600
          %729 = vst [vmem:[#allocation2 + $0xb0] sm:$0xff] %v601
          %730 = vst [vmem:[#allocation2 + $0xb8] sm:$0xff] %v602
          %731 = vst [vmem:[#allocation2 + $0xc0] sm:$0xff] %v603
          %732 = vst [vmem:[#allocation2 + $0xc8] sm:$0xff] %v604
          %733 = vst [vmem:[#allocation2 + $0xd0] sm:$0xff] %v605
          %734 = vst [vmem:[#allocation2 + $0xd8] sm:$0xff] %v606
          %735 = vst [vmem:[#allocation2 + $0xe0] sm:$0xff] %v607
          %736 = vst [vmem:[#allocation2 + $0xe8] sm:$0xff] %v608
          %737 = vst [vmem:[#allocation2 + $0xf0] sm:$0xff] %v609
          %738 = vst [vmem:[#allocation2 + $0xf8] sm:$0xff] %v610
          %739 = vst [vmem:[#allocation2 + $0x100] sm:$0xff] %v611
          %740 = vst [vmem:[#allocation2 + $0x108] sm:$0xff] %v612
          %741 = vst [vmem:[#allocation2 + $0x110] sm:$0xff] %v613
          %742 = vst [vmem:[#allocation2 + $0x118] sm:$0xff] %v614
          %743 = vst [vmem:[#allocation2 + $0x120] sm:$0xff] %v615
          %744 = vst [vmem:[#allocation2 + $0x128] sm:$0xff] %v616
          %745 = vst [vmem:[#allocation2 + $0x130] sm:$0xff] %v617
          %746 = vst [vmem:[#allocation2 + $0x138] sm:$0xff] %v618
          %747 = vst [vmem:[#allocation2 + $0x140] sm:$0xff] %v619
          %748 = vst [vmem:[#allocation2 + $0x148] sm:$0xff] %v620
          %749 = vst [vmem:[#allocation2 + $0x150] sm:$0xff] %v621
          %750 = vst [vmem:[#allocation2 + $0x158] sm:$0xff] %v622
          %751 = vst [vmem:[#allocation2 + $0x160] sm:$0xff] %v623
          %752 = vst [vmem:[#allocation2 + $0x168] sm:$0xff] %v624
          %753 = vst [vmem:[#allocation2 + $0x170] sm:$0xff] %v625
          %754 = vst [vmem:[#allocation2 + $0x178] sm:$0xff] %v626
          %755 = vst [vmem:[#allocation2 + $0x180] sm:$0xff] %v627
          %756 = vst [vmem:[#allocation2 + $0x188] sm:$0xff] %v628
          %757 = vst [vmem:[#allocation2 + $0x190] sm:$0xff] %v629
          %758 = vst [vmem:[#allocation2 + $0x198] sm:$0xff] %v630
          %759 = vst [vmem:[#allocation2 + $0x1a0] sm:$0xff] %v631
          %760 = vst [vmem:[#allocation2 + $0x1a8] sm:$0xff] %v632
          %761 = vst [vmem:[#allocation2 + $0x1b0] sm:$0xff] %v633
          %762 = vst [vmem:[#allocation2 + $0x1b8] sm:$0xff] %v634
          %763 = vst [vmem:[#allocation2 + $0x1c0] sm:$0xff] %v635
          %764 = vst [vmem:[#allocation2 + $0x1c8] sm:$0xff] %v636
          %765 = vst [vmem:[#allocation2 + $0x1d0] sm:$0xff] %v637
          %766 = vst [vmem:[#allocation2 + $0x1d8] sm:$0xff] %v638
          %767 = vst [vmem:[#allocation2 + $0x1e0] sm:$0xff] %v639
          %768 = vst [vmem:[#allocation2 + $0x1e8] sm:$0xff] %v640
          %769 = vst [vmem:[#allocation2 + $0x1f0] sm:$0xff] %v641
          %770 = vst [vmem:[#allocation2 + $0x1f8] sm:$0xff] %v642
          %771 = vst [vmem:[#allocation2 + $0x200] sm:$0xff] %v643
          %772 = vst [vmem:[#allocation2 + $0x208] sm:$0xff] %v644
          %773 = vst [vmem:[#allocation2 + $0x210] sm:$0xff] %v645
          %774 = vst [vmem:[#allocation2 + $0x218] sm:$0xff] %v646
          %775 = vst [vmem:[#allocation2 + $0x220] sm:$0xff] %v647
          %776 = vst [vmem:[#allocation2 + $0x228] sm:$0xff] %v648
          %777 = vst [vmem:[#allocation2 + $0x230] sm:$0xff] %v649
          %778 = vst [vmem:[#allocation2 + $0x238] sm:$0xff] %v650
          %779 = vst [vmem:[#allocation2 + $0x240] sm:$0xff] %v651
          %780 = vst [vmem:[#allocation2 + $0x248] sm:$0xff] %v652
          %781 = vst [vmem:[#allocation2 + $0x250] sm:$0xff] %v653
          %782 = vst [vmem:[#allocation2 + $0x258] sm:$0xff] %v654
          %783 = vst [vmem:[#allocation2 + $0x260] sm:$0xff] %v655
          %784 = vst [vmem:[#allocation2 + $0x268] sm:$0xff] %v656
          %785 = vst [vmem:[#allocation2 + $0x270] sm:$0xff] %v657
          %786 = vst [vmem:[#allocation2 + $0x278] sm:$0xff] %v658
          %787 = vst [vmem:[#allocation2 + $0x280] sm:$0xff] %v659
          %788 = vst [vmem:[#allocation2 + $0x288] sm:$0xff] %v660
          %789 = vst [vmem:[#allocation2 + $0x290] sm:$0xff] %v661
          %790 = vst [vmem:[#allocation2 + $0x298] sm:$0xff] %v662
          %791 = vst [vmem:[#allocation2 + $0x2a0] sm:$0xff] %v663
          %792 = vst [vmem:[#allocation2 + $0x2a8] sm:$0xff] %v664
          %793 = vst [vmem:[#allocation2 + $0x2b0] sm:$0xff] %v665
          %794 = vst [vmem:[#allocation2 + $0x2b8] sm:$0xff] %v666
          %795 = vst [vmem:[#allocation2 + $0x2c0] sm:$0xff] %v667
          %796 = vst [vmem:[#allocation2 + $0x2c8] sm:$0xff] %v668
          %797 = vst [vmem:[#allocation2 + $0x2d0] sm:$0xff] %v669
          %798 = vst [vmem:[#allocation2 + $0x2d8] sm:$0xff] %v670
          %799 = vst [vmem:[#allocation2 + $0x2e0] sm:$0xff] %v671
          %800 = vst [vmem:[#allocation2 + $0x2e8] sm:$0xff] %v672
          %801 = vst [vmem:[#allocation2 + $0x2f0] sm:$0xff] %v673
          %802 = vst [vmem:[#allocation2 + $0x2f8] sm:$0xff] %v674
          %803 = vst [vmem:[#allocation2 + $0x300] sm:$0xff] %v675
          %804 = vst [vmem:[#allocation2 + $0x308] sm:$0xff] %v676
          %805 = vst [vmem:[#allocation2 + $0x310] sm:$0xff] %v677
          %806 = vst [vmem:[#allocation2 + $0x318] sm:$0xff] %v678
          %807 = vst [vmem:[#allocation2 + $0x320] sm:$0xff] %v679
          %808 = vst [vmem:[#allocation2 + $0x328] sm:$0xff] %v680
          %809 = vst [vmem:[#allocation2 + $0x330] sm:$0xff] %v681
          %810 = vst [vmem:[#allocation2 + $0x338] sm:$0xff] %v682
          %811 = vst [vmem:[#allocation2 + $0x340] sm:$0xff] %v683
          %812 = vst [vmem:[#allocation2 + $0x348] sm:$0xff] %v684
          %813 = vst [vmem:[#allocation2 + $0x350] sm:$0xff] %v685
          %814 = vst [vmem:[#allocation2 + $0x358] sm:$0xff] %v686
          %815 = vst [vmem:[#allocation2 + $0x360] sm:$0xff] %v687
          %816 = vst [vmem:[#allocation2 + $0x368] sm:$0xff] %v688
          %817 = vst [vmem:[#allocation2 + $0x370] sm:$0xff] %v689
          %818 = vst [vmem:[#allocation2 + $0x378] sm:$0xff] %v690
          %819 = vst [vmem:[#allocation2 + $0x380] sm:$0xff] %v691
          %820 = vst [vmem:[#allocation2 + $0x388] sm:$0xff] %v692
          %821 = vst [vmem:[#allocation2 + $0x390] sm:$0xff] %v693
          %822 = vst [vmem:[#allocation2 + $0x398] sm:$0xff] %v694
          %823 = vst [vmem:[#allocation2 + $0x3a0] sm:$0xff] %v695
          %824 = vst [vmem:[#allocation2 + $0x3a8] sm:$0xff] %v696
          %825 = vst [vmem:[#allocation2 + $0x3b0] sm:$0xff] %v697
          %826 = vst [vmem:[#allocation2 + $0x3b8] sm:$0xff] %v698
          %827 = vst [vmem:[#allocation2 + $0x3c0] sm:$0xff] %v699
          %828 = vst [vmem:[#allocation2 + $0x3c8] sm:$0xff] %v700
          %829 = vst [vmem:[#allocation2 + $0x3d0] sm:$0xff] %v701
          %830 = vst [vmem:[#allocation2 + $0x3d8] sm:$0xff] %v702
          %831 = vst [vmem:[#allocation2 + $0x3e0] sm:$0xff] %v703
          %832 = vst [vmem:[#allocation2 + $0x3e8] sm:$0xff] %v704
          %833 = vst [vmem:[#allocation2 + $0x3f0] sm:$0xff] %v705
          %834 = vst [vmem:[#allocation2 + $0x3f8] sm:$0xff] %v706
        $region56: #{gpt2_transformer_block.9} parent=35 // pred_fallthru
          _
        %v835 = vld [vmem:[#allocation2] sm:$0xff]
        %v836 = vld [vmem:[#allocation2 + $0x8] sm:$0xff]
        %v837 = vld [vmem:[#allocation2 + $0x10] sm:$0xff]
        %v838 = vld [vmem:[#allocation2 + $0x18] sm:$0xff]
        %v839 = vld [vmem:[#allocation2 + $0x20] sm:$0xff]
        %v840 = vld [vmem:[#allocation2 + $0x28] sm:$0xff]
        %v841 = vld [vmem:[#allocation2 + $0x30] sm:$0xff]
        %v842 = vld [vmem:[#allocation2 + $0x38] sm:$0xff]
        %v843 = vld [vmem:[#allocation2 + $0x40] sm:$0xff]
        %v844 = vld [vmem:[#allocation2 + $0x48] sm:$0xff]
        %v845 = vld [vmem:[#allocation2 + $0x50] sm:$0xff]
        %v846 = vld [vmem:[#allocation2 + $0x58] sm:$0xff]
        %v847 = vld [vmem:[#allocation2 + $0x60] sm:$0xff]
        %v848 = vld [vmem:[#allocation2 + $0x68] sm:$0xff]
        %v849 = vld [vmem:[#allocation2 + $0x70] sm:$0xff]
        %v850 = vld [vmem:[#allocation2 + $0x78] sm:$0xff]
        %v851 = vld [vmem:[#allocation2 + $0x80] sm:$0xff]
        %v852 = vld [vmem:[#allocation2 + $0x88] sm:$0xff]
        %v853 = vld [vmem:[#allocation2 + $0x90] sm:$0xff]
        %v854 = vld [vmem:[#allocation2 + $0x98] sm:$0xff]
        %v855 = vld [vmem:[#allocation2 + $0xa0] sm:$0xff]
        %v856 = vld [vmem:[#allocation2 + $0xa8] sm:$0xff]
        %v857 = vld [vmem:[#allocation2 + $0xb0] sm:$0xff]
        %v858 = vld [vmem:[#allocation2 + $0xb8] sm:$0xff]
        %v859 = vld [vmem:[#allocation2 + $0xc0] sm:$0xff]
        %v860 = vld [vmem:[#allocation2 + $0xc8] sm:$0xff]
        %v861 = vld [vmem:[#allocation2 + $0xd0] sm:$0xff]
        %v862 = vld [vmem:[#allocation2 + $0xd8] sm:$0xff]
        %v863 = vld [vmem:[#allocation2 + $0xe0] sm:$0xff]
        %v864 = vld [vmem:[#allocation2 + $0xe8] sm:$0xff]
        %v865 = vld [vmem:[#allocation2 + $0xf0] sm:$0xff]
        %v866 = vld [vmem:[#allocation2 + $0xf8] sm:$0xff]
        %v867 = vld [vmem:[#allocation2 + $0x100] sm:$0xff]
        %v868 = vld [vmem:[#allocation2 + $0x108] sm:$0xff]
        %v869 = vld [vmem:[#allocation2 + $0x110] sm:$0xff]
        %v870 = vld [vmem:[#allocation2 + $0x118] sm:$0xff]
        %v871 = vld [vmem:[#allocation2 + $0x120] sm:$0xff]
        %v872 = vld [vmem:[#allocation2 + $0x128] sm:$0xff]
        %v873 = vld [vmem:[#allocation2 + $0x130] sm:$0xff]
        %v874 = vld [vmem:[#allocation2 + $0x138] sm:$0xff]
        %v875 = vld [vmem:[#allocation2 + $0x140] sm:$0xff]
        %v876 = vld [vmem:[#allocation2 + $0x148] sm:$0xff]
        %v877 = vld [vmem:[#allocation2 + $0x150] sm:$0xff]
        %v878 = vld [vmem:[#allocation2 + $0x158] sm:$0xff]
        %v879 = vld [vmem:[#allocation2 + $0x160] sm:$0xff]
        %v880 = vld [vmem:[#allocation2 + $0x168] sm:$0xff]
        %v881 = vld [vmem:[#allocation2 + $0x170] sm:$0xff]
        %v882 = vld [vmem:[#allocation2 + $0x178] sm:$0xff]
        %v883 = vld [vmem:[#allocation2 + $0x180] sm:$0xff]
        %v884 = vld [vmem:[#allocation2 + $0x188] sm:$0xff]
        %v885 = vld [vmem:[#allocation2 + $0x190] sm:$0xff]
        %v886 = vld [vmem:[#allocation2 + $0x198] sm:$0xff]
        %v887 = vld [vmem:[#allocation2 + $0x1a0] sm:$0xff]
        %v888 = vld [vmem:[#allocation2 + $0x1a8] sm:$0xff]
        %v889 = vld [vmem:[#allocation2 + $0x1b0] sm:$0xff]
        %v890 = vld [vmem:[#allocation2 + $0x1b8] sm:$0xff]
        %v891 = vld [vmem:[#allocation2 + $0x1c0] sm:$0xff]
        %v892 = vld [vmem:[#allocation2 + $0x1c8] sm:$0xff]
        %v893 = vld [vmem:[#allocation2 + $0x1d0] sm:$0xff]
        %v894 = vld [vmem:[#allocation2 + $0x1d8] sm:$0xff]
        %v895 = vld [vmem:[#allocation2 + $0x1e0] sm:$0xff]
        %v896 = vld [vmem:[#allocation2 + $0x1e8] sm:$0xff]
        %v897 = vld [vmem:[#allocation2 + $0x1f0] sm:$0xff]
        %v898 = vld [vmem:[#allocation2 + $0x1f8] sm:$0xff]
        %v899 = vld [vmem:[#allocation2 + $0x200] sm:$0xff]
        %v900 = vld [vmem:[#allocation2 + $0x208] sm:$0xff]
        %v901 = vld [vmem:[#allocation2 + $0x210] sm:$0xff]
        %v902 = vld [vmem:[#allocation2 + $0x218] sm:$0xff]
        %v903 = vld [vmem:[#allocation2 + $0x220] sm:$0xff]
        %v904 = vld [vmem:[#allocation2 + $0x228] sm:$0xff]
        %v905 = vld [vmem:[#allocation2 + $0x230] sm:$0xff]
        %v906 = vld [vmem:[#allocation2 + $0x238] sm:$0xff]
        %v907 = vld [vmem:[#allocation2 + $0x240] sm:$0xff]
        %v908 = vld [vmem:[#allocation2 + $0x248] sm:$0xff]
        %v909 = vld [vmem:[#allocation2 + $0x250] sm:$0xff]
        %v910 = vld [vmem:[#allocation2 + $0x258] sm:$0xff]
        %v911 = vld [vmem:[#allocation2 + $0x260] sm:$0xff]
        %v912 = vld [vmem:[#allocation2 + $0x268] sm:$0xff]
        %v913 = vld [vmem:[#allocation2 + $0x270] sm:$0xff]
        %v914 = vld [vmem:[#allocation2 + $0x278] sm:$0xff]
        %v915 = vld [vmem:[#allocation2 + $0x280] sm:$0xff]
        %v916 = vld [vmem:[#allocation2 + $0x288] sm:$0xff]
        %v917 = vld [vmem:[#allocation2 + $0x290] sm:$0xff]
        %v918 = vld [vmem:[#allocation2 + $0x298] sm:$0xff]
        %v919 = vld [vmem:[#allocation2 + $0x2a0] sm:$0xff]
        %v920 = vld [vmem:[#allocation2 + $0x2a8] sm:$0xff]
        %v921 = vld [vmem:[#allocation2 + $0x2b0] sm:$0xff]
        %v922 = vld [vmem:[#allocation2 + $0x2b8] sm:$0xff]
        %v923 = vld [vmem:[#allocation2 + $0x2c0] sm:$0xff]
        %v924 = vld [vmem:[#allocation2 + $0x2c8] sm:$0xff]
        %v925 = vld [vmem:[#allocation2 + $0x2d0] sm:$0xff]
        %v926 = vld [vmem:[#allocation2 + $0x2d8] sm:$0xff]
        %v927 = vld [vmem:[#allocation2 + $0x2e0] sm:$0xff]
        %v928 = vld [vmem:[#allocation2 + $0x2e8] sm:$0xff]
        %v929 = vld [vmem:[#allocation2 + $0x2f0] sm:$0xff]
        %v930 = vld [vmem:[#allocation2 + $0x2f8] sm:$0xff]
        %v931 = vld [vmem:[#allocation2 + $0x300] sm:$0xff]
        %v932 = vld [vmem:[#allocation2 + $0x308] sm:$0xff]
        %v933 = vld [vmem:[#allocation2 + $0x310] sm:$0xff]
        %v934 = vld [vmem:[#allocation2 + $0x318] sm:$0xff]
        %v935 = vld [vmem:[#allocation2 + $0x320] sm:$0xff]
        %v936 = vld [vmem:[#allocation2 + $0x328] sm:$0xff]
        %v937 = vld [vmem:[#allocation2 + $0x330] sm:$0xff]
        %v938 = vld [vmem:[#allocation2 + $0x338] sm:$0xff]
        %v939 = vld [vmem:[#allocation2 + $0x340] sm:$0xff]
        %v940 = vld [vmem:[#allocation2 + $0x348] sm:$0xff]
        %v941 = vld [vmem:[#allocation2 + $0x350] sm:$0xff]
        %v942 = vld [vmem:[#allocation2 + $0x358] sm:$0xff]
        %v943 = vld [vmem:[#allocation2 + $0x360] sm:$0xff]
        %v944 = vld [vmem:[#allocation2 + $0x368] sm:$0xff]
        %v945 = vld [vmem:[#allocation2 + $0x370] sm:$0xff]
        %v946 = vld [vmem:[#allocation2 + $0x378] sm:$0xff]
        %v947 = vld [vmem:[#allocation2 + $0x380] sm:$0xff]
        %v948 = vld [vmem:[#allocation2 + $0x388] sm:$0xff]
        %v949 = vld [vmem:[#allocation2 + $0x390] sm:$0xff]
        %v950 = vld [vmem:[#allocation2 + $0x398] sm:$0xff]
        %v951 = vld [vmem:[#allocation2 + $0x3a0] sm:$0xff]
        %v952 = vld [vmem:[#allocation2 + $0x3a8] sm:$0xff]
        %v953 = vld [vmem:[#allocation2 + $0x3b0] sm:$0xff]
        %v954 = vld [vmem:[#allocation2 + $0x3b8] sm:$0xff]
        %v955 = vld [vmem:[#allocation2 + $0x3c0] sm:$0xff]
        %v956 = vld [vmem:[#allocation2 + $0x3c8] sm:$0xff]
        %v957 = vld [vmem:[#allocation2 + $0x3d0] sm:$0xff]
        %v958 = vld [vmem:[#allocation2 + $0x3d8] sm:$0xff]
        %v959 = vld [vmem:[#allocation2 + $0x3e0] sm:$0xff]
        %v960 = vld [vmem:[#allocation2 + $0x3e8] sm:$0xff]
        %v961 = vld [vmem:[#allocation2 + $0x3f0] sm:$0xff]
        %v962 = vld [vmem:[#allocation2 + $0x3f8] sm:$0xff]
        %v963 = vld [vmem:[#allocation6] sm:$0xf]
        %v964 = vld [vmem:[#allocation6 + $0x4] sm:$0xf]
        %v965 = vld [vmem:[#allocation6 + $0x8] sm:$0xf]
        %v966 = vld [vmem:[#allocation6 + $0xc] sm:$0xf]
        %v967 = vld [vmem:[#allocation6 + $0x10] sm:$0xf]
        %v968 = vld [vmem:[#allocation6 + $0x14] sm:$0xf]
        %v969 = vld [vmem:[#allocation6 + $0x18] sm:$0xf]
        %v970 = vld [vmem:[#allocation6 + $0x1c] sm:$0xf]
        %v971 = vld [vmem:[#allocation6 + $0x20] sm:$0xf]
        %v972 = vld [vmem:[#allocation6 + $0x24] sm:$0xf]
        %v973 = vld [vmem:[#allocation6 + $0x28] sm:$0xf]
        %v974 = vld [vmem:[#allocation6 + $0x2c] sm:$0xf]
        %v975 = vld [vmem:[#allocation6 + $0x30] sm:$0xf]
        %v976 = vld [vmem:[#allocation6 + $0x34] sm:$0xf]
        %v977 = vld [vmem:[#allocation6 + $0x38] sm:$0xf]
        %v978 = vld [vmem:[#allocation6 + $0x3c] sm:$0xf]
        %v979 = vld [vmem:[#allocation6 + $0x40] sm:$0xf]
        %v980 = vld [vmem:[#allocation6 + $0x44] sm:$0xf]
        %v981 = vld [vmem:[#allocation6 + $0x48] sm:$0xf]
        %v982 = vld [vmem:[#allocation6 + $0x4c] sm:$0xf]
        %v983 = vld [vmem:[#allocation6 + $0x50] sm:$0xf]
        %v984 = vld [vmem:[#allocation6 + $0x54] sm:$0xf]
        %v985 = vld [vmem:[#allocation6 + $0x58] sm:$0xf]
        %v986 = vld [vmem:[#allocation6 + $0x5c] sm:$0xf]
        %v987 = vld [vmem:[#allocation6 + $0x60] sm:$0xf]
        %v988 = vld [vmem:[#allocation6 + $0x64] sm:$0xf]
        %v989 = vld [vmem:[#allocation6 + $0x68] sm:$0xf]
        %v990 = vld [vmem:[#allocation6 + $0x6c] sm:$0xf]
        %v991 = vld [vmem:[#allocation6 + $0x70] sm:$0xf]
        %v992 = vld [vmem:[#allocation6 + $0x74] sm:$0xf]
        %v993 = vld [vmem:[#allocation6 + $0x78] sm:$0xf]
        %v994 = vld [vmem:[#allocation6 + $0x7c] sm:$0xf]
        %v995 = vld [vmem:[#allocation6 + $0x80] sm:$0xf]
        %v996 = vld [vmem:[#allocation6 + $0x84] sm:$0xf]
        %v997 = vld [vmem:[#allocation6 + $0x88] sm:$0xf]
        %v998 = vld [vmem:[#allocation6 + $0x8c] sm:$0xf]
        %v999 = vld [vmem:[#allocation6 + $0x90] sm:$0xf]
        %v1000 = vld [vmem:[#allocation6 + $0x94] sm:$0xf]
        %v1001 = vld [vmem:[#allocation6 + $0x98] sm:$0xf]
        %v1002 = vld [vmem:[#allocation6 + $0x9c] sm:$0xf]
        %v1003 = vld [vmem:[#allocation6 + $0xa0] sm:$0xf]
        %v1004 = vld [vmem:[#allocation6 + $0xa4] sm:$0xf]
        %v1005 = vld [vmem:[#allocation6 + $0xa8] sm:$0xf]
        %v1006 = vld [vmem:[#allocation6 + $0xac] sm:$0xf]
        %v1007 = vld [vmem:[#allocation6 + $0xb0] sm:$0xf]
        %v1008 = vld [vmem:[#allocation6 + $0xb4] sm:$0xf]
        %v1009 = vld [vmem:[#allocation6 + $0xb8] sm:$0xf]
        %v1010 = vld [vmem:[#allocation6 + $0xbc] sm:$0xf]
        %v1011 = vld [vmem:[#allocation6 + $0xc0] sm:$0xf]
        %v1012 = vld [vmem:[#allocation6 + $0xc4] sm:$0xf]
        %v1013 = vld [vmem:[#allocation6 + $0xc8] sm:$0xf]
        %v1014 = vld [vmem:[#allocation6 + $0xcc] sm:$0xf]
        %v1015 = vld [vmem:[#allocation6 + $0xd0] sm:$0xf]
        %v1016 = vld [vmem:[#allocation6 + $0xd4] sm:$0xf]
        %v1017 = vld [vmem:[#allocation6 + $0xd8] sm:$0xf]
        %v1018 = vld [vmem:[#allocation6 + $0xdc] sm:$0xf]
        %v1019 = vld [vmem:[#allocation6 + $0xe0] sm:$0xf]
        %v1020 = vld [vmem:[#allocation6 + $0xe4] sm:$0xf]
        %v1021 = vld [vmem:[#allocation6 + $0xe8] sm:$0xf]
        %v1022 = vld [vmem:[#allocation6 + $0xec] sm:$0xf]
        %v1023 = vld [vmem:[#allocation6 + $0xf0] sm:$0xf]
        %v1024 = vld [vmem:[#allocation6 + $0xf4] sm:$0xf]
        %v1025 = vld [vmem:[#allocation6 + $0xf8] sm:$0xf]
        %v1026 = vld [vmem:[#allocation6 + $0xfc] sm:$0xf]
        %v1027 = vld [vmem:[#allocation6 + $0x100] sm:$0xf]
        %v1028 = vld [vmem:[#allocation6 + $0x104] sm:$0xf]
        %v1029 = vld [vmem:[#allocation6 + $0x108] sm:$0xf]
        %v1030 = vld [vmem:[#allocation6 + $0x10c] sm:$0xf]
        %v1031 = vld [vmem:[#allocation6 + $0x110] sm:$0xf]
        %v1032 = vld [vmem:[#allocation6 + $0x114] sm:$0xf]
        %v1033 = vld [vmem:[#allocation6 + $0x118] sm:$0xf]
        %v1034 = vld [vmem:[#allocation6 + $0x11c] sm:$0xf]
        %v1035 = vld [vmem:[#allocation6 + $0x120] sm:$0xf]
        %v1036 = vld [vmem:[#allocation6 + $0x124] sm:$0xf]
        %v1037 = vld [vmem:[#allocation6 + $0x128] sm:$0xf]
        %v1038 = vld [vmem:[#allocation6 + $0x12c] sm:$0xf]
        %v1039 = vld [vmem:[#allocation6 + $0x130] sm:$0xf]
        %v1040 = vld [vmem:[#allocation6 + $0x134] sm:$0xf]
        %v1041 = vld [vmem:[#allocation6 + $0x138] sm:$0xf]
        %v1042 = vld [vmem:[#allocation6 + $0x13c] sm:$0xf]
        %v1043 = vld [vmem:[#allocation6 + $0x140] sm:$0xf]
        %v1044 = vld [vmem:[#allocation6 + $0x144] sm:$0xf]
        %v1045 = vld [vmem:[#allocation6 + $0x148] sm:$0xf]
        %v1046 = vld [vmem:[#allocation6 + $0x14c] sm:$0xf]
        %v1047 = vld [vmem:[#allocation6 + $0x150] sm:$0xf]
        %v1048 = vld [vmem:[#allocation6 + $0x154] sm:$0xf]
        %v1049 = vld [vmem:[#allocation6 + $0x158] sm:$0xf]
        %v1050 = vld [vmem:[#allocation6 + $0x15c] sm:$0xf]
        %v1051 = vld [vmem:[#allocation6 + $0x160] sm:$0xf]
        %v1052 = vld [vmem:[#allocation6 + $0x164] sm:$0xf]
        %v1053 = vld [vmem:[#allocation6 + $0x168] sm:$0xf]
        %v1054 = vld [vmem:[#allocation6 + $0x16c] sm:$0xf]
        %v1055 = vld [vmem:[#allocation6 + $0x170] sm:$0xf]
        %v1056 = vld [vmem:[#allocation6 + $0x174] sm:$0xf]
        %v1057 = vld [vmem:[#allocation6 + $0x178] sm:$0xf]
        %v1058 = vld [vmem:[#allocation6 + $0x17c] sm:$0xf]
        %v1059 = vld [vmem:[#allocation6 + $0x180] sm:$0xf]
        %v1060 = vld [vmem:[#allocation6 + $0x184] sm:$0xf]
        %v1061 = vld [vmem:[#allocation6 + $0x188] sm:$0xf]
        %v1062 = vld [vmem:[#allocation6 + $0x18c] sm:$0xf]
        %v1063 = vld [vmem:[#allocation6 + $0x190] sm:$0xf]
        %v1064 = vld [vmem:[#allocation6 + $0x194] sm:$0xf]
        %v1065 = vld [vmem:[#allocation6 + $0x198] sm:$0xf]
        %v1066 = vld [vmem:[#allocation6 + $0x19c] sm:$0xf]
        %v1067 = vld [vmem:[#allocation6 + $0x1a0] sm:$0xf]
        %v1068 = vld [vmem:[#allocation6 + $0x1a4] sm:$0xf]
        %v1069 = vld [vmem:[#allocation6 + $0x1a8] sm:$0xf]
        %v1070 = vld [vmem:[#allocation6 + $0x1ac] sm:$0xf]
        %v1071 = vld [vmem:[#allocation6 + $0x1b0] sm:$0xf]
        %v1072 = vld [vmem:[#allocation6 + $0x1b4] sm:$0xf]
        %v1073 = vld [vmem:[#allocation6 + $0x1b8] sm:$0xf]
        %v1074 = vld [vmem:[#allocation6 + $0x1bc] sm:$0xf]
        %v1075 = vld [vmem:[#allocation6 + $0x1c0] sm:$0xf]
        %v1076 = vld [vmem:[#allocation6 + $0x1c4] sm:$0xf]
        %v1077 = vld [vmem:[#allocation6 + $0x1c8] sm:$0xf]
        %v1078 = vld [vmem:[#allocation6 + $0x1cc] sm:$0xf]
        %v1079 = vld [vmem:[#allocation6 + $0x1d0] sm:$0xf]
        %v1080 = vld [vmem:[#allocation6 + $0x1d4] sm:$0xf]
        %v1081 = vld [vmem:[#allocation6 + $0x1d8] sm:$0xf]
        %v1082 = vld [vmem:[#allocation6 + $0x1dc] sm:$0xf]
        %v1083 = vld [vmem:[#allocation6 + $0x1e0] sm:$0xf]
        %v1084 = vld [vmem:[#allocation6 + $0x1e4] sm:$0xf]
        %v1085 = vld [vmem:[#allocation6 + $0x1e8] sm:$0xf]
        %v1086 = vld [vmem:[#allocation6 + $0x1ec] sm:$0xf]
        %v1087 = vld [vmem:[#allocation6 + $0x1f0] sm:$0xf]
        %v1088 = vld [vmem:[#allocation6 + $0x1f4] sm:$0xf]
        %v1089 = vld [vmem:[#allocation6 + $0x1f8] sm:$0xf]
        %v1090 = vld [vmem:[#allocation6 + $0x1fc] sm:$0xf]
        %v1091 = vld [vmem:[#allocation6 + $0x200] sm:$0xf]
        %v1092 = vld [vmem:[#allocation6 + $0x204] sm:$0xf]
        %v1093 = vld [vmem:[#allocation6 + $0x208] sm:$0xf]
        %v1094 = vld [vmem:[#allocation6 + $0x20c] sm:$0xf]
        %v1095 = vld [vmem:[#allocation6 + $0x210] sm:$0xf]
        %v1096 = vld [vmem:[#allocation6 + $0x214] sm:$0xf]
        %v1097 = vld [vmem:[#allocation6 + $0x218] sm:$0xf]
        %v1098 = vld [vmem:[#allocation6 + $0x21c] sm:$0xf]
        %v1099 = vld [vmem:[#allocation6 + $0x220] sm:$0xf]
        %v1100 = vld [vmem:[#allocation6 + $0x224] sm:$0xf]
        %v1101 = vld [vmem:[#allocation6 + $0x228] sm:$0xf]
        %v1102 = vld [vmem:[#allocation6 + $0x22c] sm:$0xf]
        %v1103 = vld [vmem:[#allocation6 + $0x230] sm:$0xf]
        %v1104 = vld [vmem:[#allocation6 + $0x234] sm:$0xf]
        %v1105 = vld [vmem:[#allocation6 + $0x238] sm:$0xf]
        %v1106 = vld [vmem:[#allocation6 + $0x23c] sm:$0xf]
        %v1107 = vld [vmem:[#allocation6 + $0x240] sm:$0xf]
        %v1108 = vld [vmem:[#allocation6 + $0x244] sm:$0xf]
        %v1109 = vld [vmem:[#allocation6 + $0x248] sm:$0xf]
        %v1110 = vld [vmem:[#allocation6 + $0x24c] sm:$0xf]
        %v1111 = vld [vmem:[#allocation6 + $0x250] sm:$0xf]
        %v1112 = vld [vmem:[#allocation6 + $0x254] sm:$0xf]
        %v1113 = vld [vmem:[#allocation6 + $0x258] sm:$0xf]
        %v1114 = vld [vmem:[#allocation6 + $0x25c] sm:$0xf]
        %v1115 = vld [vmem:[#allocation6 + $0x260] sm:$0xf]
        %v1116 = vld [vmem:[#allocation6 + $0x264] sm:$0xf]
        %v1117 = vld [vmem:[#allocation6 + $0x268] sm:$0xf]
        %v1118 = vld [vmem:[#allocation6 + $0x26c] sm:$0xf]
        %v1119 = vld [vmem:[#allocation6 + $0x270] sm:$0xf]
        %v1120 = vld [vmem:[#allocation6 + $0x274] sm:$0xf]
        %v1121 = vld [vmem:[#allocation6 + $0x278] sm:$0xf]
        %v1122 = vld [vmem:[#allocation6 + $0x27c] sm:$0xf]
        %v1123 = vld [vmem:[#allocation6 + $0x280] sm:$0xf]
        %v1124 = vld [vmem:[#allocation6 + $0x284] sm:$0xf]
        %v1125 = vld [vmem:[#allocation6 + $0x288] sm:$0xf]
        %v1126 = vld [vmem:[#allocation6 + $0x28c] sm:$0xf]
        %v1127 = vld [vmem:[#allocation6 + $0x290] sm:$0xf]
        %v1128 = vld [vmem:[#allocation6 + $0x294] sm:$0xf]
        %v1129 = vld [vmem:[#allocation6 + $0x298] sm:$0xf]
        %v1130 = vld [vmem:[#allocation6 + $0x29c] sm:$0xf]
        %v1131 = vld [vmem:[#allocation6 + $0x2a0] sm:$0xf]
        %v1132 = vld [vmem:[#allocation6 + $0x2a4] sm:$0xf]
        %v1133 = vld [vmem:[#allocation6 + $0x2a8] sm:$0xf]
        %v1134 = vld [vmem:[#allocation6 + $0x2ac] sm:$0xf]
        %v1135 = vld [vmem:[#allocation6 + $0x2b0] sm:$0xf]
        %v1136 = vld [vmem:[#allocation6 + $0x2b4] sm:$0xf]
        %v1137 = vld [vmem:[#allocation6 + $0x2b8] sm:$0xf]
        %v1138 = vld [vmem:[#allocation6 + $0x2bc] sm:$0xf]
        %v1139 = vld [vmem:[#allocation6 + $0x2c0] sm:$0xf]
        %v1140 = vld [vmem:[#allocation6 + $0x2c4] sm:$0xf]
        %v1141 = vld [vmem:[#allocation6 + $0x2c8] sm:$0xf]
        %v1142 = vld [vmem:[#allocation6 + $0x2cc] sm:$0xf]
        %v1143 = vld [vmem:[#allocation6 + $0x2d0] sm:$0xf]
        %v1144 = vld [vmem:[#allocation6 + $0x2d4] sm:$0xf]
        %v1145 = vld [vmem:[#allocation6 + $0x2d8] sm:$0xf]
        %v1146 = vld [vmem:[#allocation6 + $0x2dc] sm:$0xf]
        %v1147 = vld [vmem:[#allocation6 + $0x2e0] sm:$0xf]
        %v1148 = vld [vmem:[#allocation6 + $0x2e4] sm:$0xf]
        %v1149 = vld [vmem:[#allocation6 + $0x2e8] sm:$0xf]
        %v1150 = vld [vmem:[#allocation6 + $0x2ec] sm:$0xf]
        %v1151 = vld [vmem:[#allocation6 + $0x2f0] sm:$0xf]
        %v1152 = vld [vmem:[#allocation6 + $0x2f4] sm:$0xf]
        %v1153 = vld [vmem:[#allocation6 + $0x2f8] sm:$0xf]
        %v1154 = vld [vmem:[#allocation6 + $0x2fc] sm:$0xf]
        %v1155 = vld [vmem:[#allocation6 + $0x300] sm:$0xf]
        %v1156 = vld [vmem:[#allocation6 + $0x304] sm:$0xf]
        %v1157 = vld [vmem:[#allocation6 + $0x308] sm:$0xf]
        %v1158 = vld [vmem:[#allocation6 + $0x30c] sm:$0xf]
        %v1159 = vld [vmem:[#allocation6 + $0x310] sm:$0xf]
        %v1160 = vld [vmem:[#allocation6 + $0x314] sm:$0xf]
        %v1161 = vld [vmem:[#allocation6 + $0x318] sm:$0xf]
        %v1162 = vld [vmem:[#allocation6 + $0x31c] sm:$0xf]
        %v1163 = vld [vmem:[#allocation6 + $0x320] sm:$0xf]
        %v1164 = vld [vmem:[#allocation6 + $0x324] sm:$0xf]
        %v1165 = vld [vmem:[#allocation6 + $0x328] sm:$0xf]
        %v1166 = vld [vmem:[#allocation6 + $0x32c] sm:$0xf]
        %v1167 = vld [vmem:[#allocation6 + $0x330] sm:$0xf]
        %v1168 = vld [vmem:[#allocation6 + $0x334] sm:$0xf]
        %v1169 = vld [vmem:[#allocation6 + $0x338] sm:$0xf]
        %v1170 = vld [vmem:[#allocation6 + $0x33c] sm:$0xf]
        %v1171 = vld [vmem:[#allocation6 + $0x340] sm:$0xf]
        %v1172 = vld [vmem:[#allocation6 + $0x344] sm:$0xf]
        %v1173 = vld [vmem:[#allocation6 + $0x348] sm:$0xf]
        %v1174 = vld [vmem:[#allocation6 + $0x34c] sm:$0xf]
        %v1175 = vld [vmem:[#allocation6 + $0x350] sm:$0xf]
        %v1176 = vld [vmem:[#allocation6 + $0x354] sm:$0xf]
        %v1177 = vld [vmem:[#allocation6 + $0x358] sm:$0xf]
        %v1178 = vld [vmem:[#allocation6 + $0x35c] sm:$0xf]
        %v1179 = vld [vmem:[#allocation6 + $0x360] sm:$0xf]
        %v1180 = vld [vmem:[#allocation6 + $0x364] sm:$0xf]
        %v1181 = vld [vmem:[#allocation6 + $0x368] sm:$0xf]
        %v1182 = vld [vmem:[#allocation6 + $0x36c] sm:$0xf]
        %v1183 = vld [vmem:[#allocation6 + $0x370] sm:$0xf]
        %v1184 = vld [vmem:[#allocation6 + $0x374] sm:$0xf]
        %v1185 = vld [vmem:[#allocation6 + $0x378] sm:$0xf]
        %v1186 = vld [vmem:[#allocation6 + $0x37c] sm:$0xf]
        %v1187 = vld [vmem:[#allocation6 + $0x380] sm:$0xf]
        %v1188 = vld [vmem:[#allocation6 + $0x384] sm:$0xf]
        %v1189 = vld [vmem:[#allocation6 + $0x388] sm:$0xf]
        %v1190 = vld [vmem:[#allocation6 + $0x38c] sm:$0xf]
        %v1191 = vld [vmem:[#allocation6 + $0x390] sm:$0xf]
        %v1192 = vld [vmem:[#allocation6 + $0x394] sm:$0xf]
        %v1193 = vld [vmem:[#allocation6 + $0x398] sm:$0xf]
        %v1194 = vld [vmem:[#allocation6 + $0x39c] sm:$0xf]
        %v1195 = vld [vmem:[#allocation6 + $0x3a0] sm:$0xf]
        %v1196 = vld [vmem:[#allocation6 + $0x3a4] sm:$0xf]
        %v1197 = vld [vmem:[#allocation6 + $0x3a8] sm:$0xf]
        %v1198 = vld [vmem:[#allocation6 + $0x3ac] sm:$0xf]
        %v1199 = vld [vmem:[#allocation6 + $0x3b0] sm:$0xf]
        %v1200 = vld [vmem:[#allocation6 + $0x3b4] sm:$0xf]
        %v1201 = vld [vmem:[#allocation6 + $0x3b8] sm:$0xf]
        %v1202 = vld [vmem:[#allocation6 + $0x3bc] sm:$0xf]
        %v1203 = vld [vmem:[#allocation6 + $0x3c0] sm:$0xf]
        %v1204 = vld [vmem:[#allocation6 + $0x3c4] sm:$0xf]
        %v1205 = vld [vmem:[#allocation6 + $0x3c8] sm:$0xf]
        %v1206 = vld [vmem:[#allocation6 + $0x3cc] sm:$0xf]
        %v1207 = vld [vmem:[#allocation6 + $0x3d0] sm:$0xf]
        %v1208 = vld [vmem:[#allocation6 + $0x3d4] sm:$0xf]
        %v1209 = vld [vmem:[#allocation6 + $0x3d8] sm:$0xf]
        %v1210 = vld [vmem:[#allocation6 + $0x3dc] sm:$0xf]
        %v1211 = vld [vmem:[#allocation6 + $0x3e0] sm:$0xf]
        %v1212 = vld [vmem:[#allocation6 + $0x3e4] sm:$0xf]
        %v1213 = vld [vmem:[#allocation6 + $0x3e8] sm:$0xf]
        %v1214 = vld [vmem:[#allocation6 + $0x3ec] sm:$0xf]
        %v1215 = vld [vmem:[#allocation6 + $0x3f0] sm:$0xf]
        %v1216 = vld [vmem:[#allocation6 + $0x3f4] sm:$0xf]
        %v1217 = vld [vmem:[#allocation6 + $0x3f8] sm:$0xf]
        %v1218 = vld [vmem:[#allocation6 + $0x3fc] sm:$0xf]
        %v1219 = vld [vmem:[#allocation8] sm:$0x1]
        %v1221 = vlaneseq
        %v1222 = vshrl.u32 %v1221, 7
        %v1223 = vsub.s32 0, %v1222
        %v1224 = vrot.slane %v1219, %v1223
        %v1482 = vunpack.c.l.b16 %v963
        %v1483 = vunpack.c.l.b16 %v964
        %v1484 = vunpack.c.l.b16 %v965
        %v1485 = vunpack.c.l.b16 %v966
        %v1486 = vunpack.c.l.b16 %v967
        %v1487 = vunpack.c.l.b16 %v968
        %v1488 = vunpack.c.l.b16 %v969
        %v1489 = vunpack.c.l.b16 %v970
        %v1490 = vunpack.c.l.b16 %v971
        %v1491 = vunpack.c.l.b16 %v972
        %v1492 = vunpack.c.l.b16 %v973
        %v1493 = vunpack.c.l.b16 %v974
        %v1494 = vunpack.c.l.b16 %v975
        %v1495 = vunpack.c.l.b16 %v976
        %v1496 = vunpack.c.l.b16 %v977
        %v1497 = vunpack.c.l.b16 %v978
        %v1498 = vunpack.c.l.b16 %v979
        %v1499 = vunpack.c.l.b16 %v980
        %v1500 = vunpack.c.l.b16 %v981
        %v1501 = vunpack.c.l.b16 %v982
        %v1502 = vunpack.c.l.b16 %v983
        %v1503 = vunpack.c.l.b16 %v984
        %v1504 = vunpack.c.l.b16 %v985
        %v1505 = vunpack.c.l.b16 %v986
        %v1506 = vunpack.c.l.b16 %v987
        %v1507 = vunpack.c.l.b16 %v988
        %v1508 = vunpack.c.l.b16 %v989
        %v1509 = vunpack.c.l.b16 %v990
        %v1510 = vunpack.c.l.b16 %v991
        %v1511 = vunpack.c.l.b16 %v992
        %v1512 = vunpack.c.l.b16 %v993
        %v1513 = vunpack.c.l.b16 %v994
        %v1514 = vunpack.c.l.b16 %v995
        %v1515 = vunpack.c.l.b16 %v996
        %v1516 = vunpack.c.l.b16 %v997
        %v1517 = vunpack.c.l.b16 %v998
        %v1518 = vunpack.c.l.b16 %v999
        %v1519 = vunpack.c.l.b16 %v1000
        %v1520 = vunpack.c.l.b16 %v1001
        %v1521 = vunpack.c.l.b16 %v1002
        %v1522 = vunpack.c.l.b16 %v1003
        %v1523 = vunpack.c.l.b16 %v1004
        %v1524 = vunpack.c.l.b16 %v1005
        %v1525 = vunpack.c.l.b16 %v1006
        %v1526 = vunpack.c.l.b16 %v1007
        %v1527 = vunpack.c.l.b16 %v1008
        %v1528 = vunpack.c.l.b16 %v1009
        %v1529 = vunpack.c.l.b16 %v1010
        %v1530 = vunpack.c.l.b16 %v1011
        %v1531 = vunpack.c.l.b16 %v1012
        %v1532 = vunpack.c.l.b16 %v1013
        %v1533 = vunpack.c.l.b16 %v1014
        %v1534 = vunpack.c.l.b16 %v1015
        %v1535 = vunpack.c.l.b16 %v1016
        %v1536 = vunpack.c.l.b16 %v1017
        %v1537 = vunpack.c.l.b16 %v1018
        %v1538 = vunpack.c.l.b16 %v1019
        %v1539 = vunpack.c.l.b16 %v1020
        %v1540 = vunpack.c.l.b16 %v1021
        %v1541 = vunpack.c.l.b16 %v1022
        %v1542 = vunpack.c.l.b16 %v1023
        %v1543 = vunpack.c.l.b16 %v1024
        %v1544 = vunpack.c.l.b16 %v1025
        %v1545 = vunpack.c.l.b16 %v1026
        %v1546 = vunpack.c.l.b16 %v1027
        %v1547 = vunpack.c.l.b16 %v1028
        %v1548 = vunpack.c.l.b16 %v1029
        %v1549 = vunpack.c.l.b16 %v1030
        %v1550 = vunpack.c.l.b16 %v1031
        %v1551 = vunpack.c.l.b16 %v1032
        %v1552 = vunpack.c.l.b16 %v1033
        %v1553 = vunpack.c.l.b16 %v1034
        %v1554 = vunpack.c.l.b16 %v1035
        %v1555 = vunpack.c.l.b16 %v1036
        %v1556 = vunpack.c.l.b16 %v1037
        %v1557 = vunpack.c.l.b16 %v1038
        %v1558 = vunpack.c.l.b16 %v1039
        %v1559 = vunpack.c.l.b16 %v1040
        %v1560 = vunpack.c.l.b16 %v1041
        %v1561 = vunpack.c.l.b16 %v1042
        %v1562 = vunpack.c.l.b16 %v1043
        %v1563 = vunpack.c.l.b16 %v1044
        %v1564 = vunpack.c.l.b16 %v1045
        %v1565 = vunpack.c.l.b16 %v1046
        %v1566 = vunpack.c.l.b16 %v1047
        %v1567 = vunpack.c.l.b16 %v1048
        %v1568 = vunpack.c.l.b16 %v1049
        %v1569 = vunpack.c.l.b16 %v1050
        %v1570 = vunpack.c.l.b16 %v1051
        %v1571 = vunpack.c.l.b16 %v1052
        %v1572 = vunpack.c.l.b16 %v1053
        %v1573 = vunpack.c.l.b16 %v1054
        %v1574 = vunpack.c.l.b16 %v1055
        %v1575 = vunpack.c.l.b16 %v1056
        %v1576 = vunpack.c.l.b16 %v1057
        %v1577 = vunpack.c.l.b16 %v1058
        %v1578 = vunpack.c.l.b16 %v1059
        %v1579 = vunpack.c.l.b16 %v1060
        %v1580 = vunpack.c.l.b16 %v1061
        %v1581 = vunpack.c.l.b16 %v1062
        %v1582 = vunpack.c.l.b16 %v1063
        %v1583 = vunpack.c.l.b16 %v1064
        %v1584 = vunpack.c.l.b16 %v1065
        %v1585 = vunpack.c.l.b16 %v1066
        %v1586 = vunpack.c.l.b16 %v1067
        %v1587 = vunpack.c.l.b16 %v1068
        %v1588 = vunpack.c.l.b16 %v1069
        %v1589 = vunpack.c.l.b16 %v1070
        %v1590 = vunpack.c.l.b16 %v1071
        %v1591 = vunpack.c.l.b16 %v1072
        %v1592 = vunpack.c.l.b16 %v1073
        %v1593 = vunpack.c.l.b16 %v1074
        %v1594 = vunpack.c.l.b16 %v1075
        %v1595 = vunpack.c.l.b16 %v1076
        %v1596 = vunpack.c.l.b16 %v1077
        %v1597 = vunpack.c.l.b16 %v1078
        %v1598 = vunpack.c.l.b16 %v1079
        %v1599 = vunpack.c.l.b16 %v1080
        %v1600 = vunpack.c.l.b16 %v1081
        %v1601 = vunpack.c.l.b16 %v1082
        %v1602 = vunpack.c.l.b16 %v1083
        %v1603 = vunpack.c.l.b16 %v1084
        %v1604 = vunpack.c.l.b16 %v1085
        %v1605 = vunpack.c.l.b16 %v1086
        %v1606 = vunpack.c.l.b16 %v1087
        %v1607 = vunpack.c.l.b16 %v1088
        %v1608 = vunpack.c.l.b16 %v1089
        %v1609 = vunpack.c.l.b16 %v1090
        %v1610 = vunpack.c.l.b16 %v1091
        %v1611 = vunpack.c.l.b16 %v1092
        %v1612 = vunpack.c.l.b16 %v1093
        %v1613 = vunpack.c.l.b16 %v1094
        %v1614 = vunpack.c.l.b16 %v1095
        %v1615 = vunpack.c.l.b16 %v1096
        %v1616 = vunpack.c.l.b16 %v1097
        %v1617 = vunpack.c.l.b16 %v1098
        %v1618 = vunpack.c.l.b16 %v1099
        %v1619 = vunpack.c.l.b16 %v1100
        %v1620 = vunpack.c.l.b16 %v1101
        %v1621 = vunpack.c.l.b16 %v1102
        %v1622 = vunpack.c.l.b16 %v1103
        %v1623 = vunpack.c.l.b16 %v1104
        %v1624 = vunpack.c.l.b16 %v1105
        %v1625 = vunpack.c.l.b16 %v1106
        %v1626 = vunpack.c.l.b16 %v1107
        %v1627 = vunpack.c.l.b16 %v1108
        %v1628 = vunpack.c.l.b16 %v1109
        %v1629 = vunpack.c.l.b16 %v1110
        %v1630 = vunpack.c.l.b16 %v1111
        %v1631 = vunpack.c.l.b16 %v1112
        %v1632 = vunpack.c.l.b16 %v1113
        %v1633 = vunpack.c.l.b16 %v1114
        %v1634 = vunpack.c.l.b16 %v1115
        %v1635 = vunpack.c.l.b16 %v1116
        %v1636 = vunpack.c.l.b16 %v1117
        %v1637 = vunpack.c.l.b16 %v1118
        %v1638 = vunpack.c.l.b16 %v1119
        %v1639 = vunpack.c.l.b16 %v1120
        %v1640 = vunpack.c.l.b16 %v1121
        %v1641 = vunpack.c.l.b16 %v1122
        %v1642 = vunpack.c.l.b16 %v1123
        %v1643 = vunpack.c.l.b16 %v1124
        %v1644 = vunpack.c.l.b16 %v1125
        %v1645 = vunpack.c.l.b16 %v1126
        %v1646 = vunpack.c.l.b16 %v1127
        %v1647 = vunpack.c.l.b16 %v1128
        %v1648 = vunpack.c.l.b16 %v1129
        %v1649 = vunpack.c.l.b16 %v1130
        %v1650 = vunpack.c.l.b16 %v1131
        %v1651 = vunpack.c.l.b16 %v1132
        %v1652 = vunpack.c.l.b16 %v1133
        %v1653 = vunpack.c.l.b16 %v1134
        %v1654 = vunpack.c.l.b16 %v1135
        %v1655 = vunpack.c.l.b16 %v1136
        %v1656 = vunpack.c.l.b16 %v1137
        %v1657 = vunpack.c.l.b16 %v1138
        %v1658 = vunpack.c.l.b16 %v1139
        %v1659 = vunpack.c.l.b16 %v1140
        %v1660 = vunpack.c.l.b16 %v1141
        %v1661 = vunpack.c.l.b16 %v1142
        %v1662 = vunpack.c.l.b16 %v1143
        %v1663 = vunpack.c.l.b16 %v1144
        %v1664 = vunpack.c.l.b16 %v1145
        %v1665 = vunpack.c.l.b16 %v1146
        %v1666 = vunpack.c.l.b16 %v1147
        %v1667 = vunpack.c.l.b16 %v1148
        %v1668 = vunpack.c.l.b16 %v1149
        %v1669 = vunpack.c.l.b16 %v1150
        %v1670 = vunpack.c.l.b16 %v1151
        %v1671 = vunpack.c.l.b16 %v1152
        %v1672 = vunpack.c.l.b16 %v1153
        %v1673 = vunpack.c.l.b16 %v1154
        %v1674 = vunpack.c.l.b16 %v1155
        %v1675 = vunpack.c.l.b16 %v1156
        %v1676 = vunpack.c.l.b16 %v1157
        %v1677 = vunpack.c.l.b16 %v1158
        %v1678 = vunpack.c.l.b16 %v1159
        %v1679 = vunpack.c.l.b16 %v1160
        %v1680 = vunpack.c.l.b16 %v1161
        %v1681 = vunpack.c.l.b16 %v1162
        %v1682 = vunpack.c.l.b16 %v1163
        %v1683 = vunpack.c.l.b16 %v1164
        %v1684 = vunpack.c.l.b16 %v1165
        %v1685 = vunpack.c.l.b16 %v1166
        %v1686 = vunpack.c.l.b16 %v1167
        %v1687 = vunpack.c.l.b16 %v1168
        %v1688 = vunpack.c.l.b16 %v1169
        %v1689 = vunpack.c.l.b16 %v1170
        %v1690 = vunpack.c.l.b16 %v1171
        %v1691 = vunpack.c.l.b16 %v1172
        %v1692 = vunpack.c.l.b16 %v1173
        %v1693 = vunpack.c.l.b16 %v1174
        %v1694 = vunpack.c.l.b16 %v1175
        %v1695 = vunpack.c.l.b16 %v1176
        %v1696 = vunpack.c.l.b16 %v1177
        %v1697 = vunpack.c.l.b16 %v1178
        %v1698 = vunpack.c.l.b16 %v1179
        %v1699 = vunpack.c.l.b16 %v1180
        %v1700 = vunpack.c.l.b16 %v1181
        %v1701 = vunpack.c.l.b16 %v1182
        %v1702 = vunpack.c.l.b16 %v1183
        %v1703 = vunpack.c.l.b16 %v1184
        %v1704 = vunpack.c.l.b16 %v1185
        %v1705 = vunpack.c.l.b16 %v1186
        %v1706 = vunpack.c.l.b16 %v1187
        %v1707 = vunpack.c.l.b16 %v1188
        %v1708 = vunpack.c.l.b16 %v1189
        %v1709 = vunpack.c.l.b16 %v1190
        %v1710 = vunpack.c.l.b16 %v1191
        %v1711 = vunpack.c.l.b16 %v1192
        %v1712 = vunpack.c.l.b16 %v1193
        %v1713 = vunpack.c.l.b16 %v1194
        %v1714 = vunpack.c.l.b16 %v1195
        %v1715 = vunpack.c.l.b16 %v1196
        %v1716 = vunpack.c.l.b16 %v1197
        %v1717 = vunpack.c.l.b16 %v1198
        %v1718 = vunpack.c.l.b16 %v1199
        %v1719 = vunpack.c.l.b16 %v1200
        %v1720 = vunpack.c.l.b16 %v1201
        %v1721 = vunpack.c.l.b16 %v1202
        %v1722 = vunpack.c.l.b16 %v1203
        %v1723 = vunpack.c.l.b16 %v1204
        %v1724 = vunpack.c.l.b16 %v1205
        %v1725 = vunpack.c.l.b16 %v1206
        %v1726 = vunpack.c.l.b16 %v1207
        %v1727 = vunpack.c.l.b16 %v1208
        %v1728 = vunpack.c.l.b16 %v1209
        %v1729 = vunpack.c.l.b16 %v1210
        %v1730 = vunpack.c.l.b16 %v1211
        %v1731 = vunpack.c.l.b16 %v1212
        %v1732 = vunpack.c.l.b16 %v1213
        %v1733 = vunpack.c.l.b16 %v1214
        %v1734 = vunpack.c.l.b16 %v1215
        %v1735 = vunpack.c.l.b16 %v1216
        %v1736 = vunpack.c.l.b16 %v1217
        %v1737 = vunpack.c.l.b16 %v1218
        %v1738 = vpack.c.b16 %v1483, %v1482
        %v1739 = vpack.c.b16 %v1485, %v1484
        %v1740 = vpack.c.b16 %v1487, %v1486
        %v1741 = vpack.c.b16 %v1489, %v1488
        %v1742 = vpack.c.b16 %v1491, %v1490
        %v1743 = vpack.c.b16 %v1493, %v1492
        %v1744 = vpack.c.b16 %v1495, %v1494
        %v1745 = vpack.c.b16 %v1497, %v1496
        %v1746 = vpack.c.b16 %v1499, %v1498
        %v1747 = vpack.c.b16 %v1501, %v1500
        %v1748 = vpack.c.b16 %v1503, %v1502
        %v1749 = vpack.c.b16 %v1505, %v1504
        %v1750 = vpack.c.b16 %v1507, %v1506
        %v1751 = vpack.c.b16 %v1509, %v1508
        %v1752 = vpack.c.b16 %v1511, %v1510
        %v1753 = vpack.c.b16 %v1513, %v1512
        %v1754 = vpack.c.b16 %v1515, %v1514
        %v1755 = vpack.c.b16 %v1517, %v1516
        %v1756 = vpack.c.b16 %v1519, %v1518
        %v1757 = vpack.c.b16 %v1521, %v1520
        %v1758 = vpack.c.b16 %v1523, %v1522
        %v1759 = vpack.c.b16 %v1525, %v1524
        %v1760 = vpack.c.b16 %v1527, %v1526
        %v1761 = vpack.c.b16 %v1529, %v1528
        %v1762 = vpack.c.b16 %v1531, %v1530
        %v1763 = vpack.c.b16 %v1533, %v1532
        %v1764 = vpack.c.b16 %v1535, %v1534
        %v1765 = vpack.c.b16 %v1537, %v1536
        %v1766 = vpack.c.b16 %v1539, %v1538
        %v1767 = vpack.c.b16 %v1541, %v1540
        %v1768 = vpack.c.b16 %v1543, %v1542
        %v1769 = vpack.c.b16 %v1545, %v1544
        %v1770 = vpack.c.b16 %v1547, %v1546
        %v1771 = vpack.c.b16 %v1549, %v1548
        %v1772 = vpack.c.b16 %v1551, %v1550
        %v1773 = vpack.c.b16 %v1553, %v1552
        %v1774 = vpack.c.b16 %v1555, %v1554
        %v1775 = vpack.c.b16 %v1557, %v1556
        %v1776 = vpack.c.b16 %v1559, %v1558
        %v1777 = vpack.c.b16 %v1561, %v1560
        %v1778 = vpack.c.b16 %v1563, %v1562
        %v1779 = vpack.c.b16 %v1565, %v1564
        %v1780 = vpack.c.b16 %v1567, %v1566
        %v1781 = vpack.c.b16 %v1569, %v1568
        %v1782 = vpack.c.b16 %v1571, %v1570
        %v1783 = vpack.c.b16 %v1573, %v1572
        %v1784 = vpack.c.b16 %v1575, %v1574
        %v1785 = vpack.c.b16 %v1577, %v1576
        %v1786 = vpack.c.b16 %v1579, %v1578
        %v1787 = vpack.c.b16 %v1581, %v1580
        %v1788 = vpack.c.b16 %v1583, %v1582
        %v1789 = vpack.c.b16 %v1585, %v1584
        %v1790 = vpack.c.b16 %v1587, %v1586
        %v1791 = vpack.c.b16 %v1589, %v1588
        %v1792 = vpack.c.b16 %v1591, %v1590
        %v1793 = vpack.c.b16 %v1593, %v1592
        %v1794 = vpack.c.b16 %v1595, %v1594
        %v1795 = vpack.c.b16 %v1597, %v1596
        %v1796 = vpack.c.b16 %v1599, %v1598
        %v1797 = vpack.c.b16 %v1601, %v1600
        %v1798 = vpack.c.b16 %v1603, %v1602
        %v1799 = vpack.c.b16 %v1605, %v1604
        %v1800 = vpack.c.b16 %v1607, %v1606
        %v1801 = vpack.c.b16 %v1609, %v1608
        %v1802 = vpack.c.b16 %v1611, %v1610
        %v1803 = vpack.c.b16 %v1613, %v1612
        %v1804 = vpack.c.b16 %v1615, %v1614
        %v1805 = vpack.c.b16 %v1617, %v1616
        %v1806 = vpack.c.b16 %v1619, %v1618
        %v1807 = vpack.c.b16 %v1621, %v1620
        %v1808 = vpack.c.b16 %v1623, %v1622
        %v1809 = vpack.c.b16 %v1625, %v1624
        %v1810 = vpack.c.b16 %v1627, %v1626
        %v1811 = vpack.c.b16 %v1629, %v1628
        %v1812 = vpack.c.b16 %v1631, %v1630
        %v1813 = vpack.c.b16 %v1633, %v1632
        %v1814 = vpack.c.b16 %v1635, %v1634
        %v1815 = vpack.c.b16 %v1637, %v1636
        %v1816 = vpack.c.b16 %v1639, %v1638
        %v1817 = vpack.c.b16 %v1641, %v1640
        %v1818 = vpack.c.b16 %v1643, %v1642
        %v1819 = vpack.c.b16 %v1645, %v1644
        %v1820 = vpack.c.b16 %v1647, %v1646
        %v1821 = vpack.c.b16 %v1649, %v1648
        %v1822 = vpack.c.b16 %v1651, %v1650
        %v1823 = vpack.c.b16 %v1653, %v1652
        %v1824 = vpack.c.b16 %v1655, %v1654
        %v1825 = vpack.c.b16 %v1657, %v1656
        %v1826 = vpack.c.b16 %v1659, %v1658
        %v1827 = vpack.c.b16 %v1661, %v1660
        %v1828 = vpack.c.b16 %v1663, %v1662
        %v1829 = vpack.c.b16 %v1665, %v1664
        %v1830 = vpack.c.b16 %v1667, %v1666
        %v1831 = vpack.c.b16 %v1669, %v1668
        %v1832 = vpack.c.b16 %v1671, %v1670
        %v1833 = vpack.c.b16 %v1673, %v1672
        %v1834 = vpack.c.b16 %v1675, %v1674
        %v1835 = vpack.c.b16 %v1677, %v1676
        %v1836 = vpack.c.b16 %v1679, %v1678
        %v1837 = vpack.c.b16 %v1681, %v1680
        %v1838 = vpack.c.b16 %v1683, %v1682
        %v1839 = vpack.c.b16 %v1685, %v1684
        %v1840 = vpack.c.b16 %v1687, %v1686
        %v1841 = vpack.c.b16 %v1689, %v1688
        %v1842 = vpack.c.b16 %v1691, %v1690
        %v1843 = vpack.c.b16 %v1693, %v1692
        %v1844 = vpack.c.b16 %v1695, %v1694
        %v1845 = vpack.c.b16 %v1697, %v1696
        %v1846 = vpack.c.b16 %v1699, %v1698
        %v1847 = vpack.c.b16 %v1701, %v1700
        %v1848 = vpack.c.b16 %v1703, %v1702
        %v1849 = vpack.c.b16 %v1705, %v1704
        %v1850 = vpack.c.b16 %v1707, %v1706
        %v1851 = vpack.c.b16 %v1709, %v1708
        %v1852 = vpack.c.b16 %v1711, %v1710
        %v1853 = vpack.c.b16 %v1713, %v1712
        %v1854 = vpack.c.b16 %v1715, %v1714
        %v1855 = vpack.c.b16 %v1717, %v1716
        %v1856 = vpack.c.b16 %v1719, %v1718
        %v1857 = vpack.c.b16 %v1721, %v1720
        %v1858 = vpack.c.b16 %v1723, %v1722
        %v1859 = vpack.c.b16 %v1725, %v1724
        %v1860 = vpack.c.b16 %v1727, %v1726
        %v1861 = vpack.c.b16 %v1729, %v1728
        %v1862 = vpack.c.b16 %v1731, %v1730
        %v1863 = vpack.c.b16 %v1733, %v1732
        %v1864 = vpack.c.b16 %v1735, %v1734
        %v1865 = vpack.c.b16 %v1737, %v1736
        %1994 = vmatprep.subr.bf16.mxu0 0
        %1995 = vmatpush1.bf16.msra.mxu0 %v1738
        %1996 = vmatprep.subr.bf16.mxu0 0
        %1997 = vmatpush1.bf16.msra.mxu0 %v1739
        %1998 = vmatprep.subr.bf16.mxu0 0
        %1999 = vmatpush1.bf16.msra.mxu0 %v1740
        %2000 = vmatprep.subr.bf16.mxu0 0
        %2001 = vmatpush1.bf16.msra.mxu0 %v1741
        %2002 = vmatprep.subr.bf16.mxu0 0
        %2003 = vmatpush1.bf16.msra.mxu0 %v1742
        %2004 = vmatprep.subr.bf16.mxu0 0
        %2005 = vmatpush1.bf16.msra.mxu0 %v1743
        %2006 = vmatprep.subr.bf16.mxu0 0
        %2007 = vmatpush1.bf16.msra.mxu0 %v1744
        %2008 = vmatprep.subr.bf16.mxu0 0
        %2009 = vmatpush1.bf16.msra.mxu0 %v1745
        %2010 = vmatprep.subr.bf16.mxu0 0
        %2011 = vmatpush1.bf16.msra.mxu0 %v1746
        %2012 = vmatprep.subr.bf16.mxu0 0
        %2013 = vmatpush1.bf16.msra.mxu0 %v1747
        %2014 = vmatprep.subr.bf16.mxu0 0
        %2015 = vmatpush1.bf16.msra.mxu0 %v1748
        %2016 = vmatprep.subr.bf16.mxu0 0
        %2017 = vmatpush1.bf16.msra.mxu0 %v1749
        %2018 = vmatprep.subr.bf16.mxu0 0
        %2019 = vmatpush1.bf16.msra.mxu0 %v1750
        %2020 = vmatprep.subr.bf16.mxu0 0
        %2021 = vmatpush1.bf16.msra.mxu0 %v1751
        %2022 = vmatprep.subr.bf16.mxu0 0
        %2023 = vmatpush1.bf16.msra.mxu0 %v1752
        %2024 = vmatprep.subr.bf16.mxu0 0
        %2025 = vmatpush1.bf16.msra.mxu0 %v1753
        %2026 = vmatprep.mubr.bf16.mxu0 %v836
        %2027 = vmatmul.mubr.bf16.gmra.mrb[0].mxu0 %v835
        %v2028 = vpop.f32.mrb[0].mxu0
        %v2029 = vadd.f32 %v1224, %v2028
        %v2030 = vpop.f32.mrb[0].mxu0
        %v2031 = vpop.f32.mrb[0].mxu0
        %v2032 = vadd.f32 %v1224, %v2031
        %v2033 = vpop.f32.mrb[0].mxu0
        %2034 = vmatprep.mubr.bf16.mxu0 %v852
        %2035 = vmatmul.mubr.bf16.gmra.mrb[0].mxu0 %v851
        %v2036 = vpop.f32.mrb[0].mxu0
        %v2037 = vadd.f32 %v1224, %v2036
        %v2038 = vpop.f32.mrb[0].mxu0
        %v2039 = vpop.f32.mrb[0].mxu0
        %v2040 = vadd.f32 %v1224, %v2039
        %v2041 = vpop.f32.mrb[0].mxu0
        %2042 = vmatprep.mubr.bf16.mxu0 %v868
        %2043 = vmatmul.mubr.bf16.gmra.mrb[0].mxu0 %v867
        %v2044 = vpop.f32.mrb[0].mxu0
        %v2045 = vadd.f32 %v1224, %v2044
        %v2046 = vpop.f32.mrb[0].mxu0
        %v2047 = vpop.f32.mrb[0].mxu0
        %v2048 = vadd.f32 %v1224, %v2047
        %v2049 = vpop.f32.mrb[0].mxu0
        %2050 = vmatprep.mubr.bf16.mxu0 %v884
        %2051 = vmatmul.mubr.bf16.gmra.mrb[0].mxu0 %v883
        %v2052 = vpop.f32.mrb[0].mxu0
        %v2053 = vadd.f32 %v1224, %v2052
        %v2054 = vpop.f32.mrb[0].mxu0
        %v2055 = vpop.f32.mrb[0].mxu0
        %v2056 = vadd.f32 %v1224, %v2055
        %v2057 = vpop.f32.mrb[0].mxu0
        %2058 = vmatprep.mubr.bf16.mxu0 %v900
        %2059 = vmatmul.mubr.bf16.gmra.mrb[0].mxu0 %v899
        %v2060 = vpop.f32.mrb[0].mxu0
        %v2061 = vadd.f32 %v1224, %v2060
        %v2062 = vpop.f32.mrb[0].mxu0
        %v2063 = vpop.f32.mrb[0].mxu0
        %v2064 = vadd.f32 %v1224, %v2063
        %v2065 = vpop.f32.mrb[0].mxu0
        %2066 = vmatprep.mubr.bf16.mxu0 %v916
        %2067 = vmatmul.mubr.bf16.gmra.mrb[0].mxu0 %v915
        %v2068 = vpop.f32.mrb[0].mxu0
        %v2069 = vadd.f32 %v1224, %v2068
        %v2070 = vpop.f32.mrb[0].mxu0
        %v2071 = vpop.f32.mrb[0].mxu0
        %v2072 = vadd.f32 %v1224, %v2071
        %v2073 = vpop.f32.mrb[0].mxu0
        %2074 = vmatprep.mubr.bf16.mxu0 %v932
        %2075 = vmatmul.mubr.bf16.gmra.mrb[0].mxu0 %v931
        %v2076 = vpop.f32.mrb[0].mxu0
        %v2077 = vadd.f32 %v1224, %v2076
        %v2078 = vpop.f32.mrb[0].mxu0
        %v2079 = vpop.f32.mrb[0].mxu0
        %v2080 = vadd.f32 %v1224, %v2079
        %v2081 = vpop.f32.mrb[0].mxu0
        %2082 = vmatprep.mubr.bf16.mxu0 %v948
        %2083 = vmatmul.mubr.bf16.gmra.mrb[0].mxu0 %v947
        %v2084 = vpop.f32.mrb[0].mxu0
        %v2085 = vadd.f32 %v1224, %v2084
        %v2086 = vpop.f32.mrb[0].mxu0
        %v2087 = vpop.f32.mrb[0].mxu0
        %v2088 = vadd.f32 %v1224, %v2087
        %v2089 = vpop.f32.mrb[0].mxu0
        %2090 = vdwg.mxu0
        %2091 = vmatprep.subr.bf16.mxu0 0
        %2092 = vmatpush1.bf16.msra.mxu0 %v1754
        %2093 = vmatprep.subr.bf16.mxu0 0
        %2094 = vmatpush1.bf16.msra.mxu0 %v1755
        %2095 = vmatprep.subr.bf16.mxu0 0
        %2096 = vmatpush1.bf16.msra.mxu0 %v1756
        %2097 = vmatprep.subr.bf16.mxu0 0
        %2098 = vmatpush1.bf16.msra.mxu0 %v1757
        %2099 = vmatprep.subr.bf16.mxu0 0
        %2100 = vmatpush1.bf16.msra.mxu0 %v1758
        %2101 = vmatprep.subr.bf16.mxu0 0
        %2102 = vmatpush1.bf16.msra.mxu0 %v1759
        %2103 = vmatprep.subr.bf16.mxu0 0
        %2104 = vmatpush1.bf16.msra.mxu0 %v1760
        %2105 = vmatprep.subr.bf16.mxu0 0
        %2106 = vmatpush1.bf16.msra.mxu0 %v1761
        %2107 = vmatprep.subr.bf16.mxu0 0
        %2108 = vmatpush1.bf16.msra.mxu0 %v1762
        %2109 = vmatprep.subr.bf16.mxu0 0
        %2110 = vmatpush1.bf16.msra.mxu0 %v1763
        %2111 = vmatprep.subr.bf16.mxu0 0
        %2112 = vmatpush1.bf16.msra.mxu0 %v1764
        %2113 = vmatprep.subr.bf16.mxu0 0
        %2114 = vmatpush1.bf16.msra.mxu0 %v1765
        %2115 = vmatprep.subr.bf16.mxu0 0
        %2116 = vmatpush1.bf16.msra.mxu0 %v1766
        %2117 = vmatprep.subr.bf16.mxu0 0
        %2118 = vmatpush1.bf16.msra.mxu0 %v1767
        %2119 = vmatprep.subr.bf16.mxu0 0
        %2120 = vmatpush1.bf16.msra.mxu0 %v1768
        %2121 = vmatprep.subr.bf16.mxu0 0
        %2122 = vmatpush1.bf16.msra.mxu0 %v1769
        %2123 = vmatprep.mubr.bf16.mxu0 %v838
        %2124 = vmatmul.mubr.bf16.gmra.mrb[0].mxu0 %v837
        %v2125 = vpop.f32.mrb[0].mxu0
        %v2126 = vadd.f32 %v2029, %v2125
        %v2127 = vpop.f32.mrb[0].mxu0
        %v2128 = vpop.f32.mrb[0].mxu0
        %v2129 = vadd.f32 %v2032, %v2128
        %v2130 = vpop.f32.mrb[0].mxu0
        %2131 = vmatprep.mubr.bf16.mxu0 %v854
        %2132 = vmatmul.mubr.bf16.gmra.mrb[0].mxu0 %v853
        %v2133 = vpop.f32.mrb[0].mxu0
        %v2134 = vadd.f32 %v2037, %v2133
        %v2135 = vpop.f32.mrb[0].mxu0
        %v2136 = vpop.f32.mrb[0].mxu0
        %v2137 = vadd.f32 %v2040, %v2136
        %v2138 = vpop.f32.mrb[0].mxu0
        %2139 = vmatprep.mubr.bf16.mxu0 %v870
        %2140 = vmatmul.mubr.bf16.gmra.mrb[0].mxu0 %v869
        %v2141 = vpop.f32.mrb[0].mxu0
        %v2142 = vadd.f32 %v2045, %v2141
        %v2143 = vpop.f32.mrb[0].mxu0
        %v2144 = vpop.f32.mrb[0].mxu0
        %v2145 = vadd.f32 %v2048, %v2144
        %v2146 = vpop.f32.mrb[0].mxu0
        %2147 = vmatprep.mubr.bf16.mxu0 %v886
        %2148 = vmatmul.mubr.bf16.gmra.mrb[0].mxu0 %v885
        %v2149 = vpop.f32.mrb[0].mxu0
        %v2150 = vadd.f32 %v2053, %v2149
        %v2151 = vpop.f32.mrb[0].mxu0
        %v2152 = vpop.f32.mrb[0].mxu0
        %v2153 = vadd.f32 %v2056, %v2152
        %v2154 = vpop.f32.mrb[0].mxu0
        %2155 = vmatprep.mubr.bf16.mxu0 %v902
        %2156 = vmatmul.mubr.bf16.gmra.mrb[0].mxu0 %v901
        %v2157 = vpop.f32.mrb[0].mxu0
        %v2158 = vadd.f32 %v2061, %v2157
        %v2159 = vpop.f32.mrb[0].mxu0
        %v2160 = vpop.f32.mrb[0].mxu0
        %v2161 = vadd.f32 %v2064, %v2160
        %v2162 = vpop.f32.mrb[0].mxu0
        %2163 = vmatprep.mubr.bf16.mxu0 %v918
        %2164 = vmatmul.mubr.bf16.gmra.mrb[0].mxu0 %v917
        %v2165 = vpop.f32.mrb[0].mxu0
        %v2166 = vadd.f32 %v2069, %v2165
        %v2167 = vpop.f32.mrb[0].mxu0
        %v2168 = vpop.f32.mrb[0].mxu0
        %v2169 = vadd.f32 %v2072, %v2168
        %v2170 = vpop.f32.mrb[0].mxu0
        %2171 = vmatprep.mubr.bf16.mxu0 %v934
        %2172 = vmatmul.mubr.bf16.gmra.mrb[0].mxu0 %v933
        %v2173 = vpop.f32.mrb[0].mxu0
        %v2174 = vadd.f32 %v2077, %v2173
        %v2175 = vpop.f32.mrb[0].mxu0
        %v2176 = vpop.f32.mrb[0].mxu0
        %v2177 = vadd.f32 %v2080, %v2176
        %v2178 = vpop.f32.mrb[0].mxu0
        %2179 = vmatprep.mubr.bf16.mxu0 %v950
        %2180 = vmatmul.mubr.bf16.gmra.mrb[0].mxu0 %v949
        %v2181 = vpop.f32.mrb[0].mxu0
        %v2182 = vadd.f32 %v2085, %v2181
        %v2183 = vpop.f32.mrb[0].mxu0
        %v2184 = vpop.f32.mrb[0].mxu0
        %v2185 = vadd.f32 %v2088, %v2184
        %v2186 = vpop.f32.mrb[0].mxu0
        %2187 = vdwg.mxu0
        %2188 = vmatprep.subr.bf16.mxu0 0
        %2189 = vmatpush1.bf16.msra.mxu0 %v1770
        %2190 = vmatprep.subr.bf16.mxu0 0
        %2191 = vmatpush1.bf16.msra.mxu0 %v1771
        %2192 = vmatprep.subr.bf16.mxu0 0
        %2193 = vmatpush1.bf16.msra.mxu0 %v1772
        %2194 = vmatprep.subr.bf16.mxu0 0
        %2195 = vmatpush1.bf16.msra.mxu0 %v1773
        %2196 = vmatprep.subr.bf16.mxu0 0
        %2197 = vmatpush1.bf16.msra.mxu0 %v1774
        %2198 = vmatprep.subr.bf16.mxu0 0
        %2199 = vmatpush1.bf16.msra.mxu0 %v1775
        %2200 = vmatprep.subr.bf16.mxu0 0
        %2201 = vmatpush1.bf16.msra.mxu0 %v1776
        %2202 = vmatprep.subr.bf16.mxu0 0
        %2203 = vmatpush1.bf16.msra.mxu0 %v1777
        %2204 = vmatprep.subr.bf16.mxu0 0
        %2205 = vmatpush1.bf16.msra.mxu0 %v1778
        %2206 = vmatprep.subr.bf16.mxu0 0
        %2207 = vmatpush1.bf16.msra.mxu0 %v1779
        %2208 = vmatprep.subr.bf16.mxu0 0
        %2209 = vmatpush1.bf16.msra.mxu0 %v1780
        %2210 = vmatprep.subr.bf16.mxu0 0
        %2211 = vmatpush1.bf16.msra.mxu0 %v1781
        %2212 = vmatprep.subr.bf16.mxu0 0
        %2213 = vmatpush1.bf16.msra.mxu0 %v1782
        %2214 = vmatprep.subr.bf16.mxu0 0
        %2215 = vmatpush1.bf16.msra.mxu0 %v1783
        %2216 = vmatprep.subr.bf16.mxu0 0
        %2217 = vmatpush1.bf16.msra.mxu0 %v1784
        %2218 = vmatprep.subr.bf16.mxu0 0
        %2219 = vmatpush1.bf16.msra.mxu0 %v1785
        %2220 = vmatprep.mubr.bf16.mxu0 %v840
        %2221 = vmatmul.mubr.bf16.gmra.mrb[0].mxu0 %v839
        %v2222 = vpop.f32.mrb[0].mxu0
        %v2223 = vadd.f32 %v2126, %v2222
        %v2224 = vpop.f32.mrb[0].mxu0
        %v2225 = vpop.f32.mrb[0].mxu0
        %v2226 = vadd.f32 %v2129, %v2225
        %v2227 = vpop.f32.mrb[0].mxu0
        %2228 = vmatprep.mubr.bf16.mxu0 %v856
        %2229 = vmatmul.mubr.bf16.gmra.mrb[0].mxu0 %v855
        %v2230 = vpop.f32.mrb[0].mxu0
        %v2231 = vadd.f32 %v2134, %v2230
        %v2232 = vpop.f32.mrb[0].mxu0
        %v2233 = vpop.f32.mrb[0].mxu0
        %v2234 = vadd.f32 %v2137, %v2233
        %v2235 = vpop.f32.mrb[0].mxu0
        %2236 = vmatprep.mubr.bf16.mxu0 %v872
        %2237 = vmatmul.mubr.bf16.gmra.mrb[0].mxu0 %v871
        %v2238 = vpop.f32.mrb[0].mxu0
        %v2239 = vadd.f32 %v2142, %v2238
        %v2240 = vpop.f32.mrb[0].mxu0
        %v2241 = vpop.f32.mrb[0].mxu0
        %v2242 = vadd.f32 %v2145, %v2241
        %v2243 = vpop.f32.mrb[0].mxu0
        %2244 = vmatprep.mubr.bf16.mxu0 %v888
        %2245 = vmatmul.mubr.bf16.gmra.mrb[0].mxu0 %v887
        %v2246 = vpop.f32.mrb[0].mxu0
        %v2247 = vadd.f32 %v2150, %v2246
        %v2248 = vpop.f32.mrb[0].mxu0
        %v2249 = vpop.f32.mrb[0].mxu0
        %v2250 = vadd.f32 %v2153, %v2249
        %v2251 = vpop.f32.mrb[0].mxu0
        %2252 = vmatprep.mubr.bf16.mxu0 %v904
        %2253 = vmatmul.mubr.bf16.gmra.mrb[0].mxu0 %v903
        %v2254 = vpop.f32.mrb[0].mxu0
        %v2255 = vadd.f32 %v2158, %v2254
        %v2256 = vpop.f32.mrb[0].mxu0
        %v2257 = vpop.f32.mrb[0].mxu0
        %v2258 = vadd.f32 %v2161, %v2257
        %v2259 = vpop.f32.mrb[0].mxu0
        %2260 = vmatprep.mubr.bf16.mxu0 %v920
        %2261 = vmatmul.mubr.bf16.gmra.mrb[0].mxu0 %v919
        %v2262 = vpop.f32.mrb[0].mxu0
        %v2263 = vadd.f32 %v2166, %v2262
        %v2264 = vpop.f32.mrb[0].mxu0
        %v2265 = vpop.f32.mrb[0].mxu0
        %v2266 = vadd.f32 %v2169, %v2265
        %v2267 = vpop.f32.mrb[0].mxu0
        %2268 = vmatprep.mubr.bf16.mxu0 %v936
        %2269 = vmatmul.mubr.bf16.gmra.mrb[0].mxu0 %v935
        %v2270 = vpop.f32.mrb[0].mxu0
        %v2271 = vadd.f32 %v2174, %v2270
        %v2272 = vpop.f32.mrb[0].mxu0
        %v2273 = vpop.f32.mrb[0].mxu0
        %v2274 = vadd.f32 %v2177, %v2273
        %v2275 = vpop.f32.mrb[0].mxu0
        %2276 = vmatprep.mubr.bf16.mxu0 %v952
        %2277 = vmatmul.mubr.bf16.gmra.mrb[0].mxu0 %v951
        %v2278 = vpop.f32.mrb[0].mxu0
        %v2279 = vadd.f32 %v2182, %v2278
        %v2280 = vpop.f32.mrb[0].mxu0
        %v2281 = vpop.f32.mrb[0].mxu0
        %v2282 = vadd.f32 %v2185, %v2281
        %v2283 = vpop.f32.mrb[0].mxu0
        %2284 = vdwg.mxu0
        %2285 = vmatprep.subr.bf16.mxu0 0
        %2286 = vmatpush1.bf16.msra.mxu0 %v1786
        %2287 = vmatprep.subr.bf16.mxu0 0
        %2288 = vmatpush1.bf16.msra.mxu0 %v1787
        %2289 = vmatprep.subr.bf16.mxu0 0
        %2290 = vmatpush1.bf16.msra.mxu0 %v1788
        %2291 = vmatprep.subr.bf16.mxu0 0
        %2292 = vmatpush1.bf16.msra.mxu0 %v1789
        %2293 = vmatprep.subr.bf16.mxu0 0
        %2294 = vmatpush1.bf16.msra.mxu0 %v1790
        %2295 = vmatprep.subr.bf16.mxu0 0
        %2296 = vmatpush1.bf16.msra.mxu0 %v1791
        %2297 = vmatprep.subr.bf16.mxu0 0
        %2298 = vmatpush1.bf16.msra.mxu0 %v1792
        %2299 = vmatprep.subr.bf16.mxu0 0
        %2300 = vmatpush1.bf16.msra.mxu0 %v1793
        %2301 = vmatprep.subr.bf16.mxu0 0
        %2302 = vmatpush1.bf16.msra.mxu0 %v1794
        %2303 = vmatprep.subr.bf16.mxu0 0
        %2304 = vmatpush1.bf16.msra.mxu0 %v1795
        %2305 = vmatprep.subr.bf16.mxu0 0
        %2306 = vmatpush1.bf16.msra.mxu0 %v1796
        %2307 = vmatprep.subr.bf16.mxu0 0
        %2308 = vmatpush1.bf16.msra.mxu0 %v1797
        %2309 = vmatprep.subr.bf16.mxu0 0
        %2310 = vmatpush1.bf16.msra.mxu0 %v1798
        %2311 = vmatprep.subr.bf16.mxu0 0
        %2312 = vmatpush1.bf16.msra.mxu0 %v1799
        %2313 = vmatprep.subr.bf16.mxu0 0
        %2314 = vmatpush1.bf16.msra.mxu0 %v1800
        %2315 = vmatprep.subr.bf16.mxu0 0
        %2316 = vmatpush1.bf16.msra.mxu0 %v1801
        %2317 = vmatprep.mubr.bf16.mxu0 %v842
        %2318 = vmatmul.mubr.bf16.gmra.mrb[0].mxu0 %v841
        %v2319 = vpop.f32.mrb[0].mxu0
        %v2320 = vadd.f32 %v2223, %v2319
        %v2321 = vpop.f32.mrb[0].mxu0
        %v2322 = vpop.f32.mrb[0].mxu0
        %v2323 = vadd.f32 %v2226, %v2322
        %v2324 = vpop.f32.mrb[0].mxu0
        %2325 = vmatprep.mubr.bf16.mxu0 %v858
        %2326 = vmatmul.mubr.bf16.gmra.mrb[0].mxu0 %v857
        %v2327 = vpop.f32.mrb[0].mxu0
        %v2328 = vadd.f32 %v2231, %v2327
        %v2329 = vpop.f32.mrb[0].mxu0
        %v2330 = vpop.f32.mrb[0].mxu0
        %v2331 = vadd.f32 %v2234, %v2330
        %v2332 = vpop.f32.mrb[0].mxu0
        %2333 = vmatprep.mubr.bf16.mxu0 %v874
        %2334 = vmatmul.mubr.bf16.gmra.mrb[0].mxu0 %v873
        %v2335 = vpop.f32.mrb[0].mxu0
        %v2336 = vadd.f32 %v2239, %v2335
        %v2337 = vpop.f32.mrb[0].mxu0
        %v2338 = vpop.f32.mrb[0].mxu0
        %v2339 = vadd.f32 %v2242, %v2338
        %v2340 = vpop.f32.mrb[0].mxu0
        %2341 = vmatprep.mubr.bf16.mxu0 %v890
        %2342 = vmatmul.mubr.bf16.gmra.mrb[0].mxu0 %v889
        %v2343 = vpop.f32.mrb[0].mxu0
        %v2344 = vadd.f32 %v2247, %v2343
        %v2345 = vpop.f32.mrb[0].mxu0
        %v2346 = vpop.f32.mrb[0].mxu0
        %v2347 = vadd.f32 %v2250, %v2346
        %v2348 = vpop.f32.mrb[0].mxu0
        %2349 = vmatprep.mubr.bf16.mxu0 %v906
        %2350 = vmatmul.mubr.bf16.gmra.mrb[0].mxu0 %v905
        %v2351 = vpop.f32.mrb[0].mxu0
        %v2352 = vadd.f32 %v2255, %v2351
        %v2353 = vpop.f32.mrb[0].mxu0
        %v2354 = vpop.f32.mrb[0].mxu0
        %v2355 = vadd.f32 %v2258, %v2354
        %v2356 = vpop.f32.mrb[0].mxu0
        %2357 = vmatprep.mubr.bf16.mxu0 %v922
        %2358 = vmatmul.mubr.bf16.gmra.mrb[0].mxu0 %v921
        %v2359 = vpop.f32.mrb[0].mxu0
        %v2360 = vadd.f32 %v2263, %v2359
        %v2361 = vpop.f32.mrb[0].mxu0
        %v2362 = vpop.f32.mrb[0].mxu0
        %v2363 = vadd.f32 %v2266, %v2362
        %v2364 = vpop.f32.mrb[0].mxu0
        %2365 = vmatprep.mubr.bf16.mxu0 %v938
        %2366 = vmatmul.mubr.bf16.gmra.mrb[0].mxu0 %v937
        %v2367 = vpop.f32.mrb[0].mxu0
        %v2368 = vadd.f32 %v2271, %v2367
        %v2369 = vpop.f32.mrb[0].mxu0
        %v2370 = vpop.f32.mrb[0].mxu0
        %v2371 = vadd.f32 %v2274, %v2370
        %v2372 = vpop.f32.mrb[0].mxu0
        %2373 = vmatprep.mubr.bf16.mxu0 %v954
        %2374 = vmatmul.mubr.bf16.gmra.mrb[0].mxu0 %v953
        %v2375 = vpop.f32.mrb[0].mxu0
        %v2376 = vadd.f32 %v2279, %v2375
        %v2377 = vpop.f32.mrb[0].mxu0
        %v2378 = vpop.f32.mrb[0].mxu0
        %v2379 = vadd.f32 %v2282, %v2378
        %v2380 = vpop.f32.mrb[0].mxu0
        %2381 = vdwg.mxu0
        %2382 = vmatprep.subr.bf16.mxu0 0
        %2383 = vmatpush1.bf16.msra.mxu0 %v1802
        %2384 = vmatprep.subr.bf16.mxu0 0
        %2385 = vmatpush1.bf16.msra.mxu0 %v1803
        %2386 = vmatprep.subr.bf16.mxu0 0
        %2387 = vmatpush1.bf16.msra.mxu0 %v1804
        %2388 = vmatprep.subr.bf16.mxu0 0
        %2389 = vmatpush1.bf16.msra.mxu0 %v1805
        %2390 = vmatprep.subr.bf16.mxu0 0
        %2391 = vmatpush1.bf16.msra.mxu0 %v1806
        %2392 = vmatprep.subr.bf16.mxu0 0
        %2393 = vmatpush1.bf16.msra.mxu0 %v1807
        %2394 = vmatprep.subr.bf16.mxu0 0
        %2395 = vmatpush1.bf16.msra.mxu0 %v1808
        %2396 = vmatprep.subr.bf16.mxu0 0
        %2397 = vmatpush1.bf16.msra.mxu0 %v1809
        %2398 = vmatprep.subr.bf16.mxu0 0
        %2399 = vmatpush1.bf16.msra.mxu0 %v1810
        %2400 = vmatprep.subr.bf16.mxu0 0
        %2401 = vmatpush1.bf16.msra.mxu0 %v1811
        %2402 = vmatprep.subr.bf16.mxu0 0
        %2403 = vmatpush1.bf16.msra.mxu0 %v1812
        %2404 = vmatprep.subr.bf16.mxu0 0
        %2405 = vmatpush1.bf16.msra.mxu0 %v1813
        %2406 = vmatprep.subr.bf16.mxu0 0
        %2407 = vmatpush1.bf16.msra.mxu0 %v1814
        %2408 = vmatprep.subr.bf16.mxu0 0
        %2409 = vmatpush1.bf16.msra.mxu0 %v1815
        %2410 = vmatprep.subr.bf16.mxu0 0
        %2411 = vmatpush1.bf16.msra.mxu0 %v1816
        %2412 = vmatprep.subr.bf16.mxu0 0
        %2413 = vmatpush1.bf16.msra.mxu0 %v1817
        %2414 = vmatprep.mubr.bf16.mxu0 %v844
        %2415 = vmatmul.mubr.bf16.gmra.mrb[0].mxu0 %v843
        %v2416 = vpop.f32.mrb[0].mxu0
        %v2417 = vadd.f32 %v2320, %v2416
        %v2418 = vpop.f32.mrb[0].mxu0
        %v2419 = vpop.f32.mrb[0].mxu0
        %v2420 = vadd.f32 %v2323, %v2419
        %v2421 = vpop.f32.mrb[0].mxu0
        %2422 = vmatprep.mubr.bf16.mxu0 %v860
        %2423 = vmatmul.mubr.bf16.gmra.mrb[0].mxu0 %v859
        %v2424 = vpop.f32.mrb[0].mxu0
        %v2425 = vadd.f32 %v2328, %v2424
        %v2426 = vpop.f32.mrb[0].mxu0
        %v2427 = vpop.f32.mrb[0].mxu0
        %v2428 = vadd.f32 %v2331, %v2427
        %v2429 = vpop.f32.mrb[0].mxu0
        %2430 = vmatprep.mubr.bf16.mxu0 %v876
        %2431 = vmatmul.mubr.bf16.gmra.mrb[0].mxu0 %v875
        %v2432 = vpop.f32.mrb[0].mxu0
        %v2433 = vadd.f32 %v2336, %v2432
        %v2434 = vpop.f32.mrb[0].mxu0
        %v2435 = vpop.f32.mrb[0].mxu0
        %v2436 = vadd.f32 %v2339, %v2435
        %v2437 = vpop.f32.mrb[0].mxu0
        %2438 = vmatprep.mubr.bf16.mxu0 %v892
        %2439 = vmatmul.mubr.bf16.gmra.mrb[0].mxu0 %v891
        %v2440 = vpop.f32.mrb[0].mxu0
        %v2441 = vadd.f32 %v2344, %v2440
        %v2442 = vpop.f32.mrb[0].mxu0
        %v2443 = vpop.f32.mrb[0].mxu0
        %v2444 = vadd.f32 %v2347, %v2443
        %v2445 = vpop.f32.mrb[0].mxu0
        %2446 = vmatprep.mubr.bf16.mxu0 %v908
        %2447 = vmatmul.mubr.bf16.gmra.mrb[0].mxu0 %v907
        %v2448 = vpop.f32.mrb[0].mxu0
        %v2449 = vadd.f32 %v2352, %v2448
        %v2450 = vpop.f32.mrb[0].mxu0
        %v2451 = vpop.f32.mrb[0].mxu0
        %v2452 = vadd.f32 %v2355, %v2451
        %v2453 = vpop.f32.mrb[0].mxu0
        %2454 = vmatprep.mubr.bf16.mxu0 %v924
        %2455 = vmatmul.mubr.bf16.gmra.mrb[0].mxu0 %v923
        %v2456 = vpop.f32.mrb[0].mxu0
        %v2457 = vadd.f32 %v2360, %v2456
        %v2458 = vpop.f32.mrb[0].mxu0
        %v2459 = vpop.f32.mrb[0].mxu0
        %v2460 = vadd.f32 %v2363, %v2459
        %v2461 = vpop.f32.mrb[0].mxu0
        %2462 = vmatprep.mubr.bf16.mxu0 %v940
        %2463 = vmatmul.mubr.bf16.gmra.mrb[0].mxu0 %v939
        %v2464 = vpop.f32.mrb[0].mxu0
        %v2465 = vadd.f32 %v2368, %v2464
        %v2466 = vpop.f32.mrb[0].mxu0
        %v2467 = vpop.f32.mrb[0].mxu0
        %v2468 = vadd.f32 %v2371, %v2467
        %v2469 = vpop.f32.mrb[0].mxu0
        %2470 = vmatprep.mubr.bf16.mxu0 %v956
        %2471 = vmatmul.mubr.bf16.gmra.mrb[0].mxu0 %v955
        %v2472 = vpop.f32.mrb[0].mxu0
        %v2473 = vadd.f32 %v2376, %v2472
        %v2474 = vpop.f32.mrb[0].mxu0
        %v2475 = vpop.f32.mrb[0].mxu0
        %v2476 = vadd.f32 %v2379, %v2475
        %v2477 = vpop.f32.mrb[0].mxu0
        %2478 = vdwg.mxu0
        %2479 = vmatprep.subr.bf16.mxu0 0
        %2480 = vmatpush1.bf16.msra.mxu0 %v1818
        %2481 = vmatprep.subr.bf16.mxu0 0
        %2482 = vmatpush1.bf16.msra.mxu0 %v1819
        %2483 = vmatprep.subr.bf16.mxu0 0
        %2484 = vmatpush1.bf16.msra.mxu0 %v1820
        %2485 = vmatprep.subr.bf16.mxu0 0
        %2486 = vmatpush1.bf16.msra.mxu0 %v1821
        %2487 = vmatprep.subr.bf16.mxu0 0
        %2488 = vmatpush1.bf16.msra.mxu0 %v1822
        %2489 = vmatprep.subr.bf16.mxu0 0
        %2490 = vmatpush1.bf16.msra.mxu0 %v1823
        %2491 = vmatprep.subr.bf16.mxu0 0
        %2492 = vmatpush1.bf16.msra.mxu0 %v1824
        %2493 = vmatprep.subr.bf16.mxu0 0
        %2494 = vmatpush1.bf16.msra.mxu0 %v1825
        %2495 = vmatprep.subr.bf16.mxu0 0
        %2496 = vmatpush1.bf16.msra.mxu0 %v1826
        %2497 = vmatprep.subr.bf16.mxu0 0
        %2498 = vmatpush1.bf16.msra.mxu0 %v1827
        %2499 = vmatprep.subr.bf16.mxu0 0
        %2500 = vmatpush1.bf16.msra.mxu0 %v1828
        %2501 = vmatprep.subr.bf16.mxu0 0
        %2502 = vmatpush1.bf16.msra.mxu0 %v1829
        %2503 = vmatprep.subr.bf16.mxu0 0
        %2504 = vmatpush1.bf16.msra.mxu0 %v1830
        %2505 = vmatprep.subr.bf16.mxu0 0
        %2506 = vmatpush1.bf16.msra.mxu0 %v1831
        %2507 = vmatprep.subr.bf16.mxu0 0
        %2508 = vmatpush1.bf16.msra.mxu0 %v1832
        %2509 = vmatprep.subr.bf16.mxu0 0
        %2510 = vmatpush1.bf16.msra.mxu0 %v1833
        %2511 = vmatprep.mubr.bf16.mxu0 %v846
        %2512 = vmatmul.mubr.bf16.gmra.mrb[0].mxu0 %v845
        %v2513 = vpop.f32.mrb[0].mxu0
        %v2514 = vadd.f32 %v2417, %v2513
        %v2515 = vpop.f32.mrb[0].mxu0
        %v2516 = vpop.f32.mrb[0].mxu0
        %v2517 = vadd.f32 %v2420, %v2516
        %v2518 = vpop.f32.mrb[0].mxu0
        %2519 = vmatprep.mubr.bf16.mxu0 %v862
        %2520 = vmatmul.mubr.bf16.gmra.mrb[0].mxu0 %v861
        %v2521 = vpop.f32.mrb[0].mxu0
        %v2522 = vadd.f32 %v2425, %v2521
        %v2523 = vpop.f32.mrb[0].mxu0
        %v2524 = vpop.f32.mrb[0].mxu0
        %v2525 = vadd.f32 %v2428, %v2524
        %v2526 = vpop.f32.mrb[0].mxu0
        %2527 = vmatprep.mubr.bf16.mxu0 %v878
        %2528 = vmatmul.mubr.bf16.gmra.mrb[0].mxu0 %v877
        %v2529 = vpop.f32.mrb[0].mxu0
        %v2530 = vadd.f32 %v2433, %v2529
        %v2531 = vpop.f32.mrb[0].mxu0
        %v2532 = vpop.f32.mrb[0].mxu0
        %v2533 = vadd.f32 %v2436, %v2532
        %v2534 = vpop.f32.mrb[0].mxu0
        %2535 = vmatprep.mubr.bf16.mxu0 %v894
        %2536 = vmatmul.mubr.bf16.gmra.mrb[0].mxu0 %v893
        %v2537 = vpop.f32.mrb[0].mxu0
        %v2538 = vadd.f32 %v2441, %v2537
        %v2539 = vpop.f32.mrb[0].mxu0
        %v2540 = vpop.f32.mrb[0].mxu0
        %v2541 = vadd.f32 %v2444, %v2540
        %v2542 = vpop.f32.mrb[0].mxu0
        %2543 = vmatprep.mubr.bf16.mxu0 %v910
        %2544 = vmatmul.mubr.bf16.gmra.mrb[0].mxu0 %v909
        %v2545 = vpop.f32.mrb[0].mxu0
        %v2546 = vadd.f32 %v2449, %v2545
        %v2547 = vpop.f32.mrb[0].mxu0
        %v2548 = vpop.f32.mrb[0].mxu0
        %v2549 = vadd.f32 %v2452, %v2548
        %v2550 = vpop.f32.mrb[0].mxu0
        %2551 = vmatprep.mubr.bf16.mxu0 %v926
        %2552 = vmatmul.mubr.bf16.gmra.mrb[0].mxu0 %v925
        %v2553 = vpop.f32.mrb[0].mxu0
        %v2554 = vadd.f32 %v2457, %v2553
        %v2555 = vpop.f32.mrb[0].mxu0
        %v2556 = vpop.f32.mrb[0].mxu0
        %v2557 = vadd.f32 %v2460, %v2556
        %v2558 = vpop.f32.mrb[0].mxu0
        %2559 = vmatprep.mubr.bf16.mxu0 %v942
        %2560 = vmatmul.mubr.bf16.gmra.mrb[0].mxu0 %v941
        %v2561 = vpop.f32.mrb[0].mxu0
        %v2562 = vadd.f32 %v2465, %v2561
        %v2563 = vpop.f32.mrb[0].mxu0
        %v2564 = vpop.f32.mrb[0].mxu0
        %v2565 = vadd.f32 %v2468, %v2564
        %v2566 = vpop.f32.mrb[0].mxu0
        %2567 = vmatprep.mubr.bf16.mxu0 %v958
        %2568 = vmatmul.mubr.bf16.gmra.mrb[0].mxu0 %v957
        %v2569 = vpop.f32.mrb[0].mxu0
        %v2570 = vadd.f32 %v2473, %v2569
        %v2571 = vpop.f32.mrb[0].mxu0
        %v2572 = vpop.f32.mrb[0].mxu0
        %v2573 = vadd.f32 %v2476, %v2572
        %v2574 = vpop.f32.mrb[0].mxu0
        %2575 = vdwg.mxu0
        %2576 = vmatprep.subr.bf16.mxu0 0
        %2577 = vmatpush1.bf16.msra.mxu0 %v1834
        %2578 = vmatprep.subr.bf16.mxu0 0
        %2579 = vmatpush1.bf16.msra.mxu0 %v1835
        %2580 = vmatprep.subr.bf16.mxu0 0
        %2581 = vmatpush1.bf16.msra.mxu0 %v1836
        %2582 = vmatprep.subr.bf16.mxu0 0
        %2583 = vmatpush1.bf16.msra.mxu0 %v1837
        %2584 = vmatprep.subr.bf16.mxu0 0
        %2585 = vmatpush1.bf16.msra.mxu0 %v1838
        %2586 = vmatprep.subr.bf16.mxu0 0
        %2587 = vmatpush1.bf16.msra.mxu0 %v1839
        %2588 = vmatprep.subr.bf16.mxu0 0
        %2589 = vmatpush1.bf16.msra.mxu0 %v1840
        %2590 = vmatprep.subr.bf16.mxu0 0
        %2591 = vmatpush1.bf16.msra.mxu0 %v1841
        %2592 = vmatprep.subr.bf16.mxu0 0
        %2593 = vmatpush1.bf16.msra.mxu0 %v1842
        %2594 = vmatprep.subr.bf16.mxu0 0
        %2595 = vmatpush1.bf16.msra.mxu0 %v1843
        %2596 = vmatprep.subr.bf16.mxu0 0
        %2597 = vmatpush1.bf16.msra.mxu0 %v1844
        %2598 = vmatprep.subr.bf16.mxu0 0
        %2599 = vmatpush1.bf16.msra.mxu0 %v1845
        %2600 = vmatprep.subr.bf16.mxu0 0
        %2601 = vmatpush1.bf16.msra.mxu0 %v1846
        %2602 = vmatprep.subr.bf16.mxu0 0
        %2603 = vmatpush1.bf16.msra.mxu0 %v1847
        %2604 = vmatprep.subr.bf16.mxu0 0
        %2605 = vmatpush1.bf16.msra.mxu0 %v1848
        %2606 = vmatprep.subr.bf16.mxu0 0
        %2607 = vmatpush1.bf16.msra.mxu0 %v1849
        %2608 = vmatprep.mubr.bf16.mxu0 %v848
        %2609 = vmatmul.mubr.bf16.gmra.mrb[0].mxu0 %v847
        %v2610 = vpop.f32.mrb[0].mxu0
        %v2611 = vadd.f32 %v2514, %v2610
        %v2612 = vpop.f32.mrb[0].mxu0
        %v2613 = vpop.f32.mrb[0].mxu0
        %v2614 = vadd.f32 %v2517, %v2613
        %v2615 = vpop.f32.mrb[0].mxu0
        %2616 = vmatprep.mubr.bf16.mxu0 %v864
        %2617 = vmatmul.mubr.bf16.gmra.mrb[0].mxu0 %v863
        %v2618 = vpop.f32.mrb[0].mxu0
        %v2619 = vadd.f32 %v2522, %v2618
        %v2620 = vpop.f32.mrb[0].mxu0
        %v2621 = vpop.f32.mrb[0].mxu0
        %v2622 = vadd.f32 %v2525, %v2621
        %v2623 = vpop.f32.mrb[0].mxu0
        %2624 = vmatprep.mubr.bf16.mxu0 %v880
        %2625 = vmatmul.mubr.bf16.gmra.mrb[0].mxu0 %v879
        %v2626 = vpop.f32.mrb[0].mxu0
        %v2627 = vadd.f32 %v2530, %v2626
        %v2628 = vpop.f32.mrb[0].mxu0
        %v2629 = vpop.f32.mrb[0].mxu0
        %v2630 = vadd.f32 %v2533, %v2629
        %v2631 = vpop.f32.mrb[0].mxu0
        %2632 = vmatprep.mubr.bf16.mxu0 %v896
        %2633 = vmatmul.mubr.bf16.gmra.mrb[0].mxu0 %v895
        %v2634 = vpop.f32.mrb[0].mxu0
        %v2635 = vadd.f32 %v2538, %v2634
        %v2636 = vpop.f32.mrb[0].mxu0
        %v2637 = vpop.f32.mrb[0].mxu0
        %v2638 = vadd.f32 %v2541, %v2637
        %v2639 = vpop.f32.mrb[0].mxu0
        %2640 = vmatprep.mubr.bf16.mxu0 %v912
        %2641 = vmatmul.mubr.bf16.gmra.mrb[0].mxu0 %v911
        %v2642 = vpop.f32.mrb[0].mxu0
        %v2643 = vadd.f32 %v2546, %v2642
        %v2644 = vpop.f32.mrb[0].mxu0
        %v2645 = vpop.f32.mrb[0].mxu0
        %v2646 = vadd.f32 %v2549, %v2645
        %v2647 = vpop.f32.mrb[0].mxu0
        %2648 = vmatprep.mubr.bf16.mxu0 %v928
        %2649 = vmatmul.mubr.bf16.gmra.mrb[0].mxu0 %v927
        %v2650 = vpop.f32.mrb[0].mxu0
        %v2651 = vadd.f32 %v2554, %v2650
        %v2652 = vpop.f32.mrb[0].mxu0
        %v2653 = vpop.f32.mrb[0].mxu0
        %v2654 = vadd.f32 %v2557, %v2653
        %v2655 = vpop.f32.mrb[0].mxu0
        %2656 = vmatprep.mubr.bf16.mxu0 %v944
        %2657 = vmatmul.mubr.bf16.gmra.mrb[0].mxu0 %v943
        %v2658 = vpop.f32.mrb[0].mxu0
        %v2659 = vadd.f32 %v2562, %v2658
        %v2660 = vpop.f32.mrb[0].mxu0
        %v2661 = vpop.f32.mrb[0].mxu0
        %v2662 = vadd.f32 %v2565, %v2661
        %v2663 = vpop.f32.mrb[0].mxu0
        %2664 = vmatprep.mubr.bf16.mxu0 %v960
        %2665 = vmatmul.mubr.bf16.gmra.mrb[0].mxu0 %v959
        %v2666 = vpop.f32.mrb[0].mxu0
        %v2667 = vadd.f32 %v2570, %v2666
        %v2668 = vpop.f32.mrb[0].mxu0
        %v2669 = vpop.f32.mrb[0].mxu0
        %v2670 = vadd.f32 %v2573, %v2669
        %v2671 = vpop.f32.mrb[0].mxu0
        %2672 = vdwg.mxu0
        %2673 = vmatprep.subr.bf16.mxu0 0
        %2674 = vmatpush1.bf16.msra.mxu0 %v1850
        %2675 = vmatprep.subr.bf16.mxu0 0
        %2676 = vmatpush1.bf16.msra.mxu0 %v1851
        %2677 = vmatprep.subr.bf16.mxu0 0
        %2678 = vmatpush1.bf16.msra.mxu0 %v1852
        %2679 = vmatprep.subr.bf16.mxu0 0
        %2680 = vmatpush1.bf16.msra.mxu0 %v1853
        %2681 = vmatprep.subr.bf16.mxu0 0
        %2682 = vmatpush1.bf16.msra.mxu0 %v1854
        %2683 = vmatprep.subr.bf16.mxu0 0
        %2684 = vmatpush1.bf16.msra.mxu0 %v1855
        %2685 = vmatprep.subr.bf16.mxu0 0
        %2686 = vmatpush1.bf16.msra.mxu0 %v1856
        %2687 = vmatprep.subr.bf16.mxu0 0
        %2688 = vmatpush1.bf16.msra.mxu0 %v1857
        %2689 = vmatprep.subr.bf16.mxu0 0
        %2690 = vmatpush1.bf16.msra.mxu0 %v1858
        %2691 = vmatprep.subr.bf16.mxu0 0
        %2692 = vmatpush1.bf16.msra.mxu0 %v1859
        %2693 = vmatprep.subr.bf16.mxu0 0
        %2694 = vmatpush1.bf16.msra.mxu0 %v1860
        %2695 = vmatprep.subr.bf16.mxu0 0
        %2696 = vmatpush1.bf16.msra.mxu0 %v1861
        %2697 = vmatprep.subr.bf16.mxu0 0
        %2698 = vmatpush1.bf16.msra.mxu0 %v1862
        %2699 = vmatprep.subr.bf16.mxu0 0
        %2700 = vmatpush1.bf16.msra.mxu0 %v1863
        %2701 = vmatprep.subr.bf16.mxu0 0
        %2702 = vmatpush1.bf16.msra.mxu0 %v1864
        %2703 = vmatprep.subr.bf16.mxu0 0
        %2704 = vmatpush1.bf16.msra.mxu0 %v1865
        %2705 = vmatprep.mubr.bf16.mxu0 %v850
        %2706 = vmatmul.mubr.bf16.gmra.mrb[0].mxu0 %v849
        %v2707 = vpop.f32.mrb[0].mxu0
        %v2708 = vadd.f32 %v2611, %v2707
        %v2709 = vpop.f32.mrb[0].mxu0
        %v2710 = vpop.f32.mrb[0].mxu0
        %v2711 = vadd.f32 %v2614, %v2710
        %v2712 = vpop.f32.mrb[0].mxu0
        %2713 = vmatprep.mubr.bf16.mxu0 %v866
        %2714 = vmatmul.mubr.bf16.gmra.mrb[0].mxu0 %v865
        %v2715 = vpop.f32.mrb[0].mxu0
        %v2716 = vadd.f32 %v2619, %v2715
        %v2717 = vpop.f32.mrb[0].mxu0
        %v2718 = vpop.f32.mrb[0].mxu0
        %v2719 = vadd.f32 %v2622, %v2718
        %v2720 = vpop.f32.mrb[0].mxu0
        %2721 = vmatprep.mubr.bf16.mxu0 %v882
        %2722 = vmatmul.mubr.bf16.gmra.mrb[0].mxu0 %v881
        %v2723 = vpop.f32.mrb[0].mxu0
        %v2724 = vadd.f32 %v2627, %v2723
        %v2725 = vpop.f32.mrb[0].mxu0
        %v2726 = vpop.f32.mrb[0].mxu0
        %v2727 = vadd.f32 %v2630, %v2726
        %v2728 = vpop.f32.mrb[0].mxu0
        %2729 = vmatprep.mubr.bf16.mxu0 %v898
        %2730 = vmatmul.mubr.bf16.gmra.mrb[0].mxu0 %v897
        %v2731 = vpop.f32.mrb[0].mxu0
        %v2732 = vadd.f32 %v2635, %v2731
        %v2733 = vpop.f32.mrb[0].mxu0
        %v2734 = vpop.f32.mrb[0].mxu0
        %v2735 = vadd.f32 %v2638, %v2734
        %v2736 = vpop.f32.mrb[0].mxu0
        %2737 = vmatprep.mubr.bf16.mxu0 %v914
        %2738 = vmatmul.mubr.bf16.gmra.mrb[0].mxu0 %v913
        %v2739 = vpop.f32.mrb[0].mxu0
        %v2740 = vadd.f32 %v2643, %v2739
        %v2741 = vpop.f32.mrb[0].mxu0
        %v2742 = vpop.f32.mrb[0].mxu0
        %v2743 = vadd.f32 %v2646, %v2742
        %v2744 = vpop.f32.mrb[0].mxu0
        %2745 = vmatprep.mubr.bf16.mxu0 %v930
        %2746 = vmatmul.mubr.bf16.gmra.mrb[0].mxu0 %v929
        %v2747 = vpop.f32.mrb[0].mxu0
        %v2748 = vadd.f32 %v2651, %v2747
        %v2749 = vpop.f32.mrb[0].mxu0
        %v2750 = vpop.f32.mrb[0].mxu0
        %v2751 = vadd.f32 %v2654, %v2750
        %v2752 = vpop.f32.mrb[0].mxu0
        %2753 = vmatprep.mubr.bf16.mxu0 %v946
        %2754 = vmatmul.mubr.bf16.gmra.mrb[0].mxu0 %v945
        %v2755 = vpop.f32.mrb[0].mxu0
        %v2756 = vadd.f32 %v2659, %v2755
        %v2757 = vpop.f32.mrb[0].mxu0
        %v2758 = vpop.f32.mrb[0].mxu0
        %v2759 = vadd.f32 %v2662, %v2758
        %v2760 = vpop.f32.mrb[0].mxu0
        %2761 = vmatprep.mubr.bf16.mxu0 %v962
        %2762 = vmatmul.mubr.bf16.gmra.mrb[0].mxu0 %v961
        %v2763 = vpop.f32.mrb[0].mxu0
        %v2764 = vadd.f32 %v2667, %v2763
        %v2765 = vpop.f32.mrb[0].mxu0
        %v2766 = vpop.f32.mrb[0].mxu0
        %v2767 = vadd.f32 %v2670, %v2766
        %v2768 = vpop.f32.mrb[0].mxu0
        %2769 = vdwg.mxu0
        %v2770 = vld [vmem:[%s285] sm:$0xff]
        %v2771 = vld [vmem:[%s285 + $0x8] sm:$0xff]
        %v2772 = vld [vmem:[%s285 + $0x10] sm:$0xff]
        %v2773 = vld [vmem:[%s285 + $0x18] sm:$0xff]
        %v2774 = vld [vmem:[%s285 + $0x20] sm:$0xff]
        %v2775 = vld [vmem:[%s285 + $0x28] sm:$0xff]
        %v2776 = vld [vmem:[%s285 + $0x30] sm:$0xff]
        %v2777 = vld [vmem:[%s285 + $0x38] sm:$0xff]
        %v2778 = vld [vmem:[%s285 + $0x40] sm:$0xff]
        %v2779 = vld [vmem:[%s285 + $0x48] sm:$0xff]
        %v2780 = vld [vmem:[%s285 + $0x50] sm:$0xff]
        %v2781 = vld [vmem:[%s285 + $0x58] sm:$0xff]
        %v2782 = vld [vmem:[%s285 + $0x60] sm:$0xff]
        %v2783 = vld [vmem:[%s285 + $0x68] sm:$0xff]
        %v2784 = vld [vmem:[%s285 + $0x70] sm:$0xff]
        %v2785 = vld [vmem:[%s285 + $0x78] sm:$0xff]
        %v2786 = vadd.f32 %v2708, %v2770
        %v2787 = vadd.f32 %v2711, %v2771
        %v2788 = vadd.f32 %v2716, %v2772
        %v2789 = vadd.f32 %v2719, %v2773
        %v2790 = vadd.f32 %v2724, %v2774
        %v2791 = vadd.f32 %v2727, %v2775
        %v2792 = vadd.f32 %v2732, %v2776
        %v2793 = vadd.f32 %v2735, %v2777
        %v2794 = vadd.f32 %v2740, %v2778
        %v2795 = vadd.f32 %v2743, %v2779
        %v2796 = vadd.f32 %v2748, %v2780
        %v2797 = vadd.f32 %v2751, %v2781
        %v2798 = vadd.f32 %v2756, %v2782
        %v2799 = vadd.f32 %v2759, %v2783
        %v2800 = vadd.f32 %v2764, %v2784
        %v2801 = vadd.f32 %v2767, %v2785
        %2802 = vst [vmem:[%s314] sm:$0xff] %v2786
        %2803 = vst [vmem:[%s314 + $0x8] sm:$0xff] %v2787
        %2804 = vst [vmem:[%s314 + $0x10] sm:$0xff] %v2788
        %2805 = vst [vmem:[%s314 + $0x18] sm:$0xff] %v2789
        %2806 = vst [vmem:[%s314 + $0x20] sm:$0xff] %v2790
        %2807 = vst [vmem:[%s314 + $0x28] sm:$0xff] %v2791
        %2808 = vst [vmem:[%s314 + $0x30] sm:$0xff] %v2792
        %2809 = vst [vmem:[%s314 + $0x38] sm:$0xff] %v2793
        %2810 = vst [vmem:[%s314 + $0x40] sm:$0xff] %v2794
        %2811 = vst [vmem:[%s314 + $0x48] sm:$0xff] %v2795
        %2812 = vst [vmem:[%s314 + $0x50] sm:$0xff] %v2796
        %2813 = vst [vmem:[%s314 + $0x58] sm:$0xff] %v2797
        %2814 = vst [vmem:[%s314 + $0x60] sm:$0xff] %v2798
        %2815 = vst [vmem:[%s314 + $0x68] sm:$0xff] %v2799
        %2816 = vst [vmem:[%s314 + $0x70] sm:$0xff] %v2800
        %2817 = vst [vmem:[%s314 + $0x78] sm:$0xff] %v2801
        %s2818 = sand.u32 %s153, 1
        %s2819 = scalar_lea.sflag [#allocation5], %s2818
        %s2820 = sand.u32 %s153, 1
        %s2821 = smul.addr %s2820, 128
        %s2822 = scalar_lea.vmem [#allocation11], %s2821
        // Predicated region
        $region57: #{gpt2_transformer_block.9} parent=35 // pred_check
          %p2823 = pneg %p163
        $region58: #{gpt2_transformer_block.9} parent=35 // pred_check_branch
          %2825 = sbr.rel (%p2823) target = $region60
        $region59: #{gpt2_transformer_block.9} parent=35 // pred_region
          %s2826 = smul.u32 16, %s29
          %s2828 = ssub.s32 2048, 2048
          %2829 = vsyncadd %s2819, %s2828
          %s2830 = sadd.s32 %s30, %s2826
          %s2831 = smul.addr %s2830, 128
          %s2832 = scalar_lea.hbm %s4, %s2831
          %s2833 = sshll.u32 %s2822, 4
          %s2834 = int_to_ptr.vmem [resolvable:$true] %s2833
          %2839 = dma.vmem_to_hbm [thread:$0]  %s2834, 2048, %s2832, %s2819, 128, 128, 8
        $region60: #{gpt2_transformer_block.9} parent=35 // pred_fallthru
          _
      $region36: #{gpt2_transformer_block.9} parent=5 // pred_fallthru
        _
      %p2840 = scmp.le.s32.totalorder 2, %s20
      // Predicated region
      $region61: #{gpt2_transformer_block.9} parent=5 // pred_check
        %p2841 = pneg %p2840
      $region62: #{gpt2_transformer_block.9} parent=5 // pred_check_branch
        %2843 = sbr.rel (%p2841) target = $region64
      $region63: #{gpt2_transformer_block.9} parent=5 // pred_region
        %s2844 = ssub.s32 %s20, 2
        // Predicated region
        $region65: #{gpt2_transformer_block.9} parent=63 // pred_check
          %p2845 = pneg %p169
        $region66: #{gpt2_transformer_block.9} parent=63 // pred_check_branch
          %2847 = sbr.rel (%p2845) target = $region68
        $region67: #{gpt2_transformer_block.9} parent=63 // pred_region
          %s2848 = sand.u32 %s154, 1
          %s2849 = scalar_lea.sflag [#allocation5], %s2848
          %s2850 = sand.u32 %s154, 1
          %s2851 = smul.addr %s2850, 128
          %s2852 = scalar_lea.vmem [#allocation11], %s2851
          %2853 = dma.done %s2849, 2048
        $region68: #{gpt2_transformer_block.9} parent=63 // pred_fallthru
          _
      $region64: #{gpt2_transformer_block.9} parent=5 // pred_fallthru
        _
    $region6: #{gpt2_transformer_block.9} parent=1 // loop_footer
      %s24 = sadd.s32 1, %s20
    $region7: #{gpt2_transformer_block.9} parent=1 // loop_footer_branch
      %19 = sbr.rel target = $region3
    $region8: #{gpt2_transformer_block.9} parent=1 // loop_exit
      _
    %2854 = vsyncpa [#allocation4], 1
    %s2855 = scalar_lea.sflag [#allocation4], 1
    %2856 = vsyncpa %s2855, 1
    %2857 = vsyncpa [#allocation7], 1
    %2858 = vsyncpa [#allocation10], 1
    %s2859 = scalar_lea.sflag [#allocation10], 1
    %2860 = vsyncpa %s2859, 1
    %2861 = vsyncpa [#allocation5], 1
    %s2862 = scalar_lea.sflag [#allocation5], 1
    %2863 = vsyncpa %s2862, 1

</llo_original>
